<compile_context>
chip_gen: v7x
topology: tpu7x:2x2x1
jax: 0.10.0
libtpu: 0.0.40
codegen_flags: <defaults>
</compile_context>

<pallas_src>
import functools
import math

import jax
import jax.numpy as jnp
from jax.experimental import pallas as pl
from jax.experimental.pallas import tpu as pltpu


# ---------------------------------------------------------------------------
# kernel 1: local representation (3x3 conv + BN + SiLU fused with the 1x1 conv)
# ---------------------------------------------------------------------------

def _local_rep_kernel(x_ref, w3_ref, b3_ref, w1_ref, o_ref):
    # x_ref : (1, Hp, Wp, Cin)  zero-padded input (f32)
    # w3_ref: (9, Cin, Cmid)    3x3 weights with BN scale folded in (bf16)
    # b3_ref: (1, Cmid)         folded BN shift (f32)
    # w1_ref: (Cmid, D)         1x1 conv weights (bf16, no bias/norm/act)
    # o_ref : (1, 1, Wo, D)     one output row
    i = pl.program_id(1)
    wo = o_ref.shape[2]
    cmid = w3_ref.shape[2]
    acc = jnp.zeros((wo, cmid), jnp.float32)
    for ki in range(3):
        row = x_ref[0, i + ki]                        # (Wp, Cin) f32
        for kj in range(3):
            xs = row[kj:kj + wo, :].astype(jnp.bfloat16)
            acc = acc + jnp.dot(xs, w3_ref[3 * ki + kj],
                                preferred_element_type=jnp.float32)
    acc = acc + b3_ref[...]
    acc = acc * jax.nn.sigmoid(acc)                   # SiLU
    y = jnp.dot(acc.astype(jnp.bfloat16), w1_ref[...],
                preferred_element_type=jnp.float32)
    o_ref[0, 0] = y


def local_representation(x, w3, b3, w1):
    n, h, w, cin = x.shape
    d = w1.shape[1]
    xp = jnp.pad(x, ((0, 0), (1, 1), (1, 1), (0, 0)))   # semantic 'same' padding
    hp, wp = h + 2, w + 2
    return pl.pallas_call(
        _local_rep_kernel,
        out_shape=jax.ShapeDtypeStruct((n, h, w, d), jnp.float32),
        grid=(n, h),
        in_specs=[
            pl.BlockSpec((1, hp, wp, cin), lambda b, i: (b, 0, 0, 0)),
            pl.BlockSpec(w3.shape, lambda b, i: (0, 0, 0)),
            pl.BlockSpec(b3.shape, lambda b, i: (0, 0)),
            pl.BlockSpec(w1.shape, lambda b, i: (0, 0)),
        ],
        out_specs=pl.BlockSpec((1, 1, w, d), lambda b, i: (b, i, 0, 0)),
        compiler_params=pltpu.CompilerParams(
            dimension_semantics=("parallel", "parallel")),
    )(xp, w3, b3, w1)


# ---------------------------------------------------------------------------
# kernel 2: global representation (all transformers + LN + 1x1 projection conv)
# ---------------------------------------------------------------------------

def _make_global_kernel(n_blocks, num_heads, scale):
    def _ln(v, g, b):
        mu = jnp.mean(v, axis=-1, keepdims=True)
        vc = v - mu
        var = jnp.mean(vc * vc, axis=-1, keepdims=True)
        return vc * jax.lax.rsqrt(var + 1e-5) * g + b

    def kernel(x_ref,
               ln1g_ref, ln1b_ref,
               qw_ref, qb_ref, kw_ref, kb_ref, vw_ref, vb_ref,
               ow_ref, ob_ref,
               ln2g_ref, ln2b_ref,
               f1w_ref, f1b_ref, f2w_ref, f2b_ref,
               lnfg_ref, lnfb_ref,
               pw_ref, pb_ref,
               o_ref):
        x = x_ref[0]                                   # (S, E) f32
        s_len, e_dim = x.shape
        for l in range(n_blocks):
            # ---- pre-norm multi-head self-attention ----
            h = _ln(x, ln1g_ref[l], ln1b_ref[l])
            hb = h.astype(jnp.bfloat16)
            attn = jnp.zeros((s_len, e_dim), jnp.float32)
            for hh in range(num_heads):
                q = jnp.dot(hb, qw_ref[l, hh],
                            preferred_element_type=jnp.float32) + qb_ref[l, hh]
                k = jnp.dot(hb, kw_ref[l, hh],
                            preferred_element_type=jnp.float32) + kb_ref[l, hh]
                v = jnp.dot(hb, vw_ref[l, hh],
                            preferred_element_type=jnp.float32) + vb_ref[l, hh]
                q = q * scale
                sc = jax.lax.dot_general(
                    q.astype(jnp.bfloat16), k.astype(jnp.bfloat16),
                    (((1,), (1,)), ((), ())),
                    preferred_element_type=jnp.float32)           # (S, S)
                sc = sc - jnp.max(sc, axis=-1, keepdims=True)
                ex = jnp.exp(sc)                                  # f32 softmax
                p = ex * pl.reciprocal(jnp.sum(ex, axis=-1, keepdims=True),
                                       approx=True)
                o = jnp.dot(p.astype(jnp.bfloat16), v.astype(jnp.bfloat16),
                            preferred_element_type=jnp.float32)   # (S, hd)
                attn = attn + jnp.dot(o.astype(jnp.bfloat16), ow_ref[l, hh],
                                      preferred_element_type=jnp.float32)
            x = x + attn + ob_ref[l]
            # ---- pre-norm feed-forward ----
            h = _ln(x, ln2g_ref[l], ln2b_ref[l])
            f = jnp.dot(h.astype(jnp.bfloat16), f1w_ref[l],
                        preferred_element_type=jnp.float32) + f1b_ref[l]
            f = f * jax.nn.sigmoid(f)                             # SiLU
            f = jnp.dot(f.astype(jnp.bfloat16), f2w_ref[l],
                        preferred_element_type=jnp.float32) + f2b_ref[l]
            x = x + f
        # ---- final LayerNorm of the global representation ----
        x = _ln(x, lnfg_ref[...], lnfb_ref[...])
        # ---- fused 1x1 projection conv (+ folded BN) + SiLU ----
        y = jnp.dot(x.astype(jnp.bfloat16), pw_ref[...],
                    preferred_element_type=jnp.float32) + pb_ref[...]
        y = y * jax.nn.sigmoid(y)
        o_ref[0] = y

    return kernel


def _const_index_map(ndim):
    return lambda i: (0,) * ndim


def global_representation(patches, params, kernel):
    bp, s, e = patches.shape
    c = params['proj_w'].shape[1]
    weights = (params['ln1_g'], params['ln1_b'],
               params['qw'], params['qb'], params['kw'], params['kb'],
               params['vw'], params['vb'],
               params['ow'], params['ob'],
               params['ln2_g'], params['ln2_b'],
               params['ff1_w'], params['ff1_b'],
               params['ff2_w'], params['ff2_b'],
               params['lnf_g'], params['lnf_b'],
               params['proj_w'], params['proj_b'])
    in_specs = [pl.BlockSpec((1, s, e), lambda i: (i, 0, 0))]
    for wgt in weights:
        in_specs.append(pl.BlockSpec(wgt.shape, _const_index_map(wgt.ndim)))
    return pl.pallas_call(
        kernel,
        out_shape=jax.ShapeDtypeStruct((bp, s, c), jnp.float32),
        grid=(bp,),
        in_specs=in_specs,
        out_specs=pl.BlockSpec((1, s, c), lambda i: (i, 0, 0)),
        compiler_params=pltpu.CompilerParams(dimension_semantics=("parallel",)),
    )(patches, *weights)


# ---------------------------------------------------------------------------
# kernel 3: fusion 3x3 valid conv over concat(residual, projected map)
# ---------------------------------------------------------------------------

def _fusion_kernel(r_ref, z_ref, wa_ref, wb_ref, b_ref, o_ref):
    # The channel concat is fused by splitting the weight into wa (residual
    # part, first C input channels) and wb (projected part, last C channels).
    i = pl.program_id(1)
    wo = o_ref.shape[2]
    cout = wa_ref.shape[2]
    acc = jnp.zeros((wo, cout), jnp.float32)
    for ki in range(3):
        rrow = r_ref[0, i + ki]                       # (W, C) f32
        zrow = z_ref[0, i + ki]
        for kj in range(3):
            t = 3 * ki + kj
            acc = acc + jnp.dot(rrow[kj:kj + wo, :].astype(jnp.bfloat16),
                                wa_ref[t], preferred_element_type=jnp.float32)
            acc = acc + jnp.dot(zrow[kj:kj + wo, :].astype(jnp.bfloat16),
                                wb_ref[t], preferred_element_type=jnp.float32)
    acc = acc + b_ref[...]
    acc = acc * jax.nn.sigmoid(acc)                   # SiLU
    o_ref[0, 0] = acc


def fusion_conv(res, proj, wa, wb, bias):
    n, h, w, c = res.shape
    cout = wa.shape[2]
    ho, wo = h - 2, w - 2                             # padding=0 in the reference
    return pl.pallas_call(
        _fusion_kernel,
        out_shape=jax.ShapeDtypeStruct((n, ho, wo, cout), jnp.float32),
        grid=(n, ho),
        in_specs=[
            pl.BlockSpec((1, h, w, c), lambda b, i: (b, 0, 0, 0)),
            pl.BlockSpec((1, h, w, c), lambda b, i: (b, 0, 0, 0)),
            pl.BlockSpec(wa.shape, lambda b, i: (0, 0, 0)),
            pl.BlockSpec(wb.shape, lambda b, i: (0, 0, 0)),
            pl.BlockSpec(bias.shape, lambda b, i: (0, 0)),
        ],
        out_specs=pl.BlockSpec((1, 1, wo, cout), lambda b, i: (b, i, 0, 0)),
        compiler_params=pltpu.CompilerParams(
            dimension_semantics=("parallel", "parallel")),
    )(res, proj, wa, wb, bias)


# ---------------------------------------------------------------------------
# parameters (random, deterministic; BatchNorm folded into weights/bias)
# ---------------------------------------------------------------------------

class _ParamGen:
    def __init__(self, key):
        self._key = key

    def normal(self, shape, std=1.0):
        self._key, sub = jax.random.split(self._key)
        return std * jax.random.normal(sub, shape, dtype=jnp.float32)


def _folded_bn(pg, c):
    gamma = 1.0 + 0.1 * pg.normal((c,))
    beta = 0.1 * pg.normal((c,))
    mean = 0.05 * pg.normal((c,))
    var = 1.0 + 0.1 * jnp.abs(pg.normal((c,)))
    scale = gamma * jax.lax.rsqrt(var + 1e-5)
    shift = beta - mean * scale
    return scale, shift


def make_mobilevit_block_params(key, in_channels, attn_dim, ff_mult,
                                num_heads, n_blocks):
    assert attn_dim % num_heads == 0
    c, e = in_channels, attn_dim
    hd = e // num_heads
    ff = int(ff_mult * e // 16 * 16)
    pg = _ParamGen(key)
    p = {}

    # local representation: 3x3 conv (+BN+SiLU) and 1x1 conv (no norm / act)
    w3 = pg.normal((9, c, c), std=1.0 / math.sqrt(9 * c))
    sc, sh = _folded_bn(pg, c)
    p['local_w3'] = (w3 * sc[None, None, :]).astype(jnp.bfloat16)
    p['local_b3'] = sh.reshape(1, c)
    p['local_w1'] = pg.normal((c, e), std=1.0 / math.sqrt(c)).astype(jnp.bfloat16)

    def stack(fn):
        return jnp.stack([fn() for _ in range(n_blocks)], axis=0)

    p['ln1_g'] = stack(lambda: 1.0 + 0.1 * pg.normal((1, e)))
    p['ln1_b'] = stack(lambda: 0.1 * pg.normal((1, e)))
    p['qw'] = stack(lambda: pg.normal((num_heads, e, hd),
                                      std=1.0 / math.sqrt(e))).astype(jnp.bfloat16)
    p['qb'] = stack(lambda: 0.02 * pg.normal((num_heads, 1, hd)))
    p['kw'] = stack(lambda: pg.normal((num_heads, e, hd),
                                      std=1.0 / math.sqrt(e))).astype(jnp.bfloat16)
    p['kb'] = stack(lambda: 0.02 * pg.normal((num_heads, 1, hd)))
    p['vw'] = stack(lambda: pg.normal((num_heads, e, hd),
                                      std=1.0 / math.sqrt(e))).astype(jnp.bfloat16)
    p['vb'] = stack(lambda: 0.02 * pg.normal((num_heads, 1, hd)))
    p['ow'] = stack(lambda: pg.normal((num_heads, hd, e),
                                      std=1.0 / math.sqrt(e))).astype(jnp.bfloat16)
    p['ob'] = stack(lambda: 0.02 * pg.normal((1, e)))
    p['ln2_g'] = stack(lambda: 1.0 + 0.1 * pg.normal((1, e)))
    p['ln2_b'] = stack(lambda: 0.1 * pg.normal((1, e)))
    p['ff1_w'] = stack(lambda: pg.normal((e, ff),
                                         std=1.0 / math.sqrt(e))).astype(jnp.bfloat16)
    p['ff1_b'] = stack(lambda: 0.02 * pg.normal((1, ff)))
    p['ff2_w'] = stack(lambda: pg.normal((ff, e),
                                         std=1.0 / math.sqrt(ff))).astype(jnp.bfloat16)
    p['ff2_b'] = stack(lambda: 0.02 * pg.normal((1, e)))

    p['lnf_g'] = 1.0 + 0.1 * pg.normal((1, e))
    p['lnf_b'] = 0.1 * pg.normal((1, e))

    # 1x1 projection conv (+BN+SiLU), BN folded
    wp = pg.normal((e, c), std=1.0 / math.sqrt(e))
    sc, sh = _folded_bn(pg, c)
    p['proj_w'] = (wp * sc[None, :]).astype(jnp.bfloat16)
    p['proj_b'] = sh.reshape(1, c)

    # fusion 3x3 conv on concat(residual, projected), padding=0, +BN+SiLU
    wf = pg.normal((9, 2 * c, c), std=1.0 / math.sqrt(9 * 2 * c))
    sc, sh = _folded_bn(pg, c)
    wf = wf * sc[None, None, :]
    p['fus_wa'] = wf[:, :c, :].astype(jnp.bfloat16)
    p['fus_wb'] = wf[:, c:, :].astype(jnp.bfloat16)
    p['fus_b'] = sh.reshape(1, c)
    return p


# ---------------------------------------------------------------------------
# forward pass
# ---------------------------------------------------------------------------

def build_mobilevit_block(patch_size, num_heads, dim_per_head, n_blocks):
    ph, pw = patch_size
    scale = float(dim_per_head) ** -0.5    # reference uses dimension_per_head
    gkernel = _make_global_kernel(n_blocks, num_heads, scale)

    @jax.jit
    def forward(params, x_nchw):
        x = jnp.transpose(x_nchw, (0, 2, 3, 1)).astype(jnp.float32)   # NHWC
        residual = x

        # local representation (one fused pallas_call)
        y = local_representation(x, params['local_w3'], params['local_b3'],
                                 params['local_w1'])
        b, h, w, e = y.shape
        nh, nw = h // ph, w // pw
        # TODO(synk): bilinear-resize branch (h or w not a multiple of the
        # patch size) of unfolding/folding is not implemented.

        # unfolding: (b, h, w, e) -> (b*ph*pw, nh*nw, e)
        patches = (y.reshape(b, nh, ph, nw, pw, e)
                     .transpose(0, 2, 4, 1, 3, 5)
                     .reshape(b * ph * pw, nh * nw, e))

        # global representation: all transformers + LN + 1x1 projection conv
        z = global_representation(patches, params, gkernel)

        # folding: (b*ph*pw, nh*nw, c) -> (b, h, w, c)
        c = z.shape[-1]
        fm = (z.reshape(b, ph, pw, nh, nw, c)
                .transpose(0, 3, 1, 4, 2, 5)
                .reshape(b, nh * ph, nw * pw, c))

        # fusion 3x3 valid conv over concat(residual, fm); concat fused in-kernel
        out = fusion_conv(residual, fm, params['fus_wa'], params['fus_wb'],
                          params['fus_b'])
        return jnp.transpose(out, (0, 3, 1, 2))                        # NCHW
    return forward


# ---------------------------------------------------------------------------
# plain-JAX reference (applies the same bf16 rounding to the MXU operands)
# ---------------------------------------------------------------------------

def _reference_forward(params, x_nchw, patch_size, num_heads, dim_per_head,
                       n_blocks):
    ph, pw = patch_size
    scale = float(dim_per_head) ** -0.5
    f32 = jnp.float32

    def rnd(v):
        return v.astype(jnp.bfloat16).astype(f32)

    def mm(a, w):
        return jnp.dot(rnd(a), w.astype(f32))

    def ln(v, g, b):
        mu = jnp.mean(v, axis=-1, keepdims=True)
        vc = v - mu
        var = jnp.mean(vc * vc, axis=-1, keepdims=True)
        return vc * jax.lax.rsqrt(var + 1e-5) * g + b

    def conv3x3(xpad, w9, ho, wo):
        acc = jnp.zeros(xpad.shape[:1] + (ho, wo, w9.shape[-1]), f32)
        for ki in range(3):
            for kj in range(3):
                tap = xpad[:, ki:ki + ho, kj:kj + wo, :]
                acc = acc + jnp.einsum('nhwc,cd->nhwd', rnd(tap),
                                       w9[3 * ki + kj].astype(f32))
        return acc

    x = jnp.transpose(x_nchw, (0, 2, 3, 1)).astype(f32)
    res = x
    n, h, w, _ = x.shape

    y = conv3x3(jnp.pad(x, ((0, 0), (1, 1), (1, 1), (0, 0))),
                params['local_w3'], h, w) + params['local_b3'][0]
    y = y * jax.nn.sigmoid(y)
    y = jnp.einsum('nhwc,cd->nhwd', rnd(y), params['local_w1'].astype(f32))
    e = y.shape[-1]
    nh, nw = h // ph, w // pw
    z = (y.reshape(n, nh, ph, nw, pw, e).transpose(0, 2, 4, 1, 3, 5)
           .reshape(n * ph * pw, nh * nw, e))

    for l in range(n_blocks):
        hdn = ln(z, params['ln1_g'][l], params['ln1_b'][l])
        attn = jnp.zeros_like(z)
        for head in range(num_heads):
            q = mm(hdn, params['qw'][l, head]) + params['qb'][l, head]
            k = mm(hdn, params['kw'][l, head]) + params['kb'][l, head]
            v = mm(hdn, params['vw'][l, head]) + params['vb'][l, head]
            s = jnp.einsum('bqd,bkd->bqk', rnd(q * scale), rnd(k))
            p = jax.nn.softmax(s, axis=-1)
            o = jnp.einsum('bqk,bkd->bqd', rnd(p), rnd(v))
            attn = attn + mm(o, params['ow'][l, head])
        z = z + attn + params['ob'][l]
        hdn = ln(z, params['ln2_g'][l], params['ln2_b'][l])
        f = mm(hdn, params['ff1_w'][l]) + params['ff1_b'][l]
        f = f * jax.nn.sigmoid(f)
        z = z + mm(f, params['ff2_w'][l]) + params['ff2_b'][l]
    z = ln(z, params['lnf_g'], params['lnf_b'])
    pz = mm(z, params['proj_w']) + params['proj_b']
    pz = pz * jax.nn.sigmoid(pz)

    c = pz.shape[-1]
    fm = (pz.reshape(n, ph, pw, nh, nw, c).transpose(0, 3, 1, 4, 2, 5)
            .reshape(n, h, w, c))
    cat = jnp.concatenate([res, fm], axis=-1)
    wf = jnp.concatenate([params['fus_wa'], params['fus_wb']], axis=1)
    out = conv3x3(cat, wf, h - 2, w - 2) + params['fus_b'][0]
    out = out * jax.nn.sigmoid(out)
    return jnp.transpose(out, (0, 3, 1, 2))


# ---------------------------------------------------------------------------
# main
# ---------------------------------------------------------------------------

if __name__ == "__main__":
    BATCH, CHANNELS, HEIGHT, WIDTH = 2, 16, 16, 16
    ATTN_DIM, FF_MULT, NUM_HEADS, DIM_PER_HEAD = 32, 2, 4, 8
    NUM_BLOCKS, PATCH = 2, (2, 2)

    root = jax.random.PRNGKey(0)
    kx, kp = jax.random.split(root)
    x = jax.random.normal(kx, (BATCH, CHANNELS, HEIGHT, WIDTH), dtype=jnp.float32)
    params = make_mobilevit_block_params(kp, CHANNELS, ATTN_DIM, FF_MULT,
                                         NUM_HEADS, NUM_BLOCKS)

    forward = build_mobilevit_block(PATCH, NUM_HEADS, DIM_PER_HEAD, NUM_BLOCKS)
    out = jax.block_until_ready(forward(params, x))

    assert out.shape == (BATCH, CHANNELS, HEIGHT - 2, WIDTH - 2), out.shape
    assert bool(jnp.all(jnp.isfinite(out)))

    # cross-check against a plain-JAX reference that applies the same bf16
    # rounding to the matmul operands (the kernels' only intended deviation).
    ref_fn = jax.jit(functools.partial(_reference_forward,
                                       patch_size=PATCH, num_heads=NUM_HEADS,
                                       dim_per_head=DIM_PER_HEAD,
                                       n_blocks=NUM_BLOCKS))
    ref = jax.block_until_ready(ref_fn(params, x))
    assert bool(jnp.allclose(out, ref, atol=2e-2, rtol=2e-2)), \
        float(jnp.max(jnp.abs(out - ref)))

    print("KERNEL_OK")
</pallas_src>

<mosaic_0001>
module attributes {stable_mosaic.version = 11 : i64} {
  func.func @_local_rep_kernel(%arg0: i32, %arg1: i32, %arg2: memref<1x18x18x16xf32, #tpu.memory_space<vmem>>, %arg3: memref<9x16x16xbf16, #tpu.memory_space<vmem>>, %arg4: memref<1x16xf32, #tpu.memory_space<vmem>>, %arg5: memref<16x32xbf16, #tpu.memory_space<vmem>>, %arg6: memref<1x1x16x32xf32, #tpu.memory_space<vmem>>) attributes {dimension_semantics = [#tpu.dimension_semantics<parallel>, #tpu.dimension_semantics<parallel>], iteration_bounds = array<i64: 2, 16>, scalar_prefetch = 0 : i64, scratch_operands = 0 : i64, tpu.core_type = #tpu.core_type<tc>, window_params = [{transform_indices = @transform_0, window_bounds = array<i64: 1, 18, 18, 16>}, {pipeline_mode = #tpu.pipeline_mode<synchronous>, transform_indices = @transform_1, window_bounds = array<i64: 9, 16, 16>}, {pipeline_mode = #tpu.pipeline_mode<synchronous>, transform_indices = @transform_2, window_bounds = array<i64: 1, 16>}, {pipeline_mode = #tpu.pipeline_mode<synchronous>, transform_indices = @transform_3, window_bounds = array<i64: 16, 32>}, {transform_indices = @transform_4, window_bounds = array<i64: 1, 1, 16, 32>}]} {
    %cst = arith.constant 0.000000e+00 : f32
    %0 = vector.broadcast %cst : f32 to vector<16x16xf32>
    %c0_i32 = arith.constant 0 : i32
    %1 = arith.addi %arg1, %c0_i32 : i32
    %c0 = arith.constant 0 : index
    %2 = arith.index_cast %1 : i32 to index
    %c0_0 = arith.constant 0 : index
    %c0_1 = arith.constant 0 : index
    %3 = vector.load %arg2[%c0, %2, %c0_0, %c0_1] : memref<1x18x18x16xf32, #tpu.memory_space<vmem>>, vector<1x1x18x16xf32>
    %4 = vector.shape_cast %3 : vector<1x1x18x16xf32> to vector<18x16xf32>
    %5 = vector.extract_strided_slice %4 {offsets = [0, 0], sizes = [16, 16], strides = [1, 1]} : vector<18x16xf32> to vector<16x16xf32>
    %6 = arith.truncf %5 : vector<16x16xf32> to vector<16x16xbf16>
    %c0_2 = arith.constant 0 : index
    %c0_3 = arith.constant 0 : index
    %c0_4 = arith.constant 0 : index
    %7 = vector.load %arg3[%c0_2, %c0_3, %c0_4] : memref<9x16x16xbf16, #tpu.memory_space<vmem>>, vector<1x16x16xbf16>
    %8 = vector.shape_cast %7 : vector<1x16x16xbf16> to vector<16x16xbf16>
    %cst_5 = arith.constant dense<0.000000e+00> : vector<16x16xf32>
    %9 = tpu.matmul %6, %8, %cst_5 {dimension_numbers = #tpu.dot_dimension_numbers<[1], [0], [0], [1], [0, 0, 1, 1], [], []>} : vector<16x16xbf16>, vector<16x16xbf16>, vector<16x16xf32> -> vector<16x16xf32>
    %10 = arith.addf %0, %9 : vector<16x16xf32>
    %11 = vector.extract_strided_slice %4 {offsets = [1, 0], sizes = [16, 16], strides = [1, 1]} : vector<18x16xf32> to vector<16x16xf32>
    %12 = arith.truncf %11 : vector<16x16xf32> to vector<16x16xbf16>
    %c1 = arith.constant 1 : index
    %c0_6 = arith.constant 0 : index
    %c0_7 = arith.constant 0 : index
    %13 = vector.load %arg3[%c1, %c0_6, %c0_7] : memref<9x16x16xbf16, #tpu.memory_space<vmem>>, vector<1x16x16xbf16>
    %14 = vector.shape_cast %13 : vector<1x16x16xbf16> to vector<16x16xbf16>
    %cst_8 = arith.constant dense<0.000000e+00> : vector<16x16xf32>
    %15 = tpu.matmul %12, %14, %cst_8 {dimension_numbers = #tpu.dot_dimension_numbers<[1], [0], [0], [1], [0, 0, 1, 1], [], []>} : vector<16x16xbf16>, vector<16x16xbf16>, vector<16x16xf32> -> vector<16x16xf32>
    %16 = arith.addf %10, %15 : vector<16x16xf32>
    %17 = vector.extract_strided_slice %4 {offsets = [2, 0], sizes = [16, 16], strides = [1, 1]} : vector<18x16xf32> to vector<16x16xf32>
    %18 = arith.truncf %17 : vector<16x16xf32> to vector<16x16xbf16>
    %c2 = arith.constant 2 : index
    %c0_9 = arith.constant 0 : index
    %c0_10 = arith.constant 0 : index
    %19 = vector.load %arg3[%c2, %c0_9, %c0_10] : memref<9x16x16xbf16, #tpu.memory_space<vmem>>, vector<1x16x16xbf16>
    %20 = vector.shape_cast %19 : vector<1x16x16xbf16> to vector<16x16xbf16>
    %cst_11 = arith.constant dense<0.000000e+00> : vector<16x16xf32>
    %21 = tpu.matmul %18, %20, %cst_11 {dimension_numbers = #tpu.dot_dimension_numbers<[1], [0], [0], [1], [0, 0, 1, 1], [], []>} : vector<16x16xbf16>, vector<16x16xbf16>, vector<16x16xf32> -> vector<16x16xf32>
    %22 = arith.addf %16, %21 : vector<16x16xf32>
    %c1_i32 = arith.constant 1 : i32
    %23 = arith.addi %arg1, %c1_i32 : i32
    %c0_12 = arith.constant 0 : index
    %24 = arith.index_cast %23 : i32 to index
    %c0_13 = arith.constant 0 : index
    %c0_14 = arith.constant 0 : index
    %25 = vector.load %arg2[%c0_12, %24, %c0_13, %c0_14] : memref<1x18x18x16xf32, #tpu.memory_space<vmem>>, vector<1x1x18x16xf32>
    %26 = vector.shape_cast %25 : vector<1x1x18x16xf32> to vector<18x16xf32>
    %27 = vector.extract_strided_slice %26 {offsets = [0, 0], sizes = [16, 16], strides = [1, 1]} : vector<18x16xf32> to vector<16x16xf32>
    %28 = arith.truncf %27 : vector<16x16xf32> to vector<16x16xbf16>
    %c3 = arith.constant 3 : index
    %c0_15 = arith.constant 0 : index
    %c0_16 = arith.constant 0 : index
    %29 = vector.load %arg3[%c3, %c0_15, %c0_16] : memref<9x16x16xbf16, #tpu.memory_space<vmem>>, vector<1x16x16xbf16>
    %30 = vector.shape_cast %29 : vector<1x16x16xbf16> to vector<16x16xbf16>
    %cst_17 = arith.constant dense<0.000000e+00> : vector<16x16xf32>
    %31 = tpu.matmul %28, %30, %cst_17 {dimension_numbers = #tpu.dot_dimension_numbers<[1], [0], [0], [1], [0, 0, 1, 1], [], []>} : vector<16x16xbf16>, vector<16x16xbf16>, vector<16x16xf32> -> vector<16x16xf32>
    %32 = arith.addf %22, %31 : vector<16x16xf32>
    %33 = vector.extract_strided_slice %26 {offsets = [1, 0], sizes = [16, 16], strides = [1, 1]} : vector<18x16xf32> to vector<16x16xf32>
    %34 = arith.truncf %33 : vector<16x16xf32> to vector<16x16xbf16>
    %c4 = arith.constant 4 : index
    %c0_18 = arith.constant 0 : index
    %c0_19 = arith.constant 0 : index
    %35 = vector.load %arg3[%c4, %c0_18, %c0_19] : memref<9x16x16xbf16, #tpu.memory_space<vmem>>, vector<1x16x16xbf16>
    %36 = vector.shape_cast %35 : vector<1x16x16xbf16> to vector<16x16xbf16>
    %cst_20 = arith.constant dense<0.000000e+00> : vector<16x16xf32>
    %37 = tpu.matmul %34, %36, %cst_20 {dimension_numbers = #tpu.dot_dimension_numbers<[1], [0], [0], [1], [0, 0, 1, 1], [], []>} : vector<16x16xbf16>, vector<16x16xbf16>, vector<16x16xf32> -> vector<16x16xf32>
    %38 = arith.addf %32, %37 : vector<16x16xf32>
    %39 = vector.extract_strided_slice %26 {offsets = [2, 0], sizes = [16, 16], strides = [1, 1]} : vector<18x16xf32> to vector<16x16xf32>
    %40 = arith.truncf %39 : vector<16x16xf32> to vector<16x16xbf16>
    %c5 = arith.constant 5 : index
    %c0_21 = arith.constant 0 : index
    %c0_22 = arith.constant 0 : index
    %41 = vector.load %arg3[%c5, %c0_21, %c0_22] : memref<9x16x16xbf16, #tpu.memory_space<vmem>>, vector<1x16x16xbf16>
    %42 = vector.shape_cast %41 : vector<1x16x16xbf16> to vector<16x16xbf16>
    %cst_23 = arith.constant dense<0.000000e+00> : vector<16x16xf32>
    %43 = tpu.matmul %40, %42, %cst_23 {dimension_numbers = #tpu.dot_dimension_numbers<[1], [0], [0], [1], [0, 0, 1, 1], [], []>} : vector<16x16xbf16>, vector<16x16xbf16>, vector<16x16xf32> -> vector<16x16xf32>
    %44 = arith.addf %38, %43 : vector<16x16xf32>
    %c2_i32 = arith.constant 2 : i32
    %45 = arith.addi %arg1, %c2_i32 : i32
    %c0_24 = arith.constant 0 : index
    %46 = arith.index_cast %45 : i32 to index
    %c0_25 = arith.constant 0 : index
    %c0_26 = arith.constant 0 : index
    %47 = vector.load %arg2[%c0_24, %46, %c0_25, %c0_26] : memref<1x18x18x16xf32, #tpu.memory_space<vmem>>, vector<1x1x18x16xf32>
    %48 = vector.shape_cast %47 : vector<1x1x18x16xf32> to vector<18x16xf32>
    %49 = vector.extract_strided_slice %48 {offsets = [0, 0], sizes = [16, 16], strides = [1, 1]} : vector<18x16xf32> to vector<16x16xf32>
    %50 = arith.truncf %49 : vector<16x16xf32> to vector<16x16xbf16>
    %c6 = arith.constant 6 : index
    %c0_27 = arith.constant 0 : index
    %c0_28 = arith.constant 0 : index
    %51 = vector.load %arg3[%c6, %c0_27, %c0_28] : memref<9x16x16xbf16, #tpu.memory_space<vmem>>, vector<1x16x16xbf16>
    %52 = vector.shape_cast %51 : vector<1x16x16xbf16> to vector<16x16xbf16>
    %cst_29 = arith.constant dense<0.000000e+00> : vector<16x16xf32>
    %53 = tpu.matmul %50, %52, %cst_29 {dimension_numbers = #tpu.dot_dimension_numbers<[1], [0], [0], [1], [0, 0, 1, 1], [], []>} : vector<16x16xbf16>, vector<16x16xbf16>, vector<16x16xf32> -> vector<16x16xf32>
    %54 = arith.addf %44, %53 : vector<16x16xf32>
    %55 = vector.extract_strided_slice %48 {offsets = [1, 0], sizes = [16, 16], strides = [1, 1]} : vector<18x16xf32> to vector<16x16xf32>
    %56 = arith.truncf %55 : vector<16x16xf32> to vector<16x16xbf16>
    %c7 = arith.constant 7 : index
    %c0_30 = arith.constant 0 : index
    %c0_31 = arith.constant 0 : index
    %57 = vector.load %arg3[%c7, %c0_30, %c0_31] : memref<9x16x16xbf16, #tpu.memory_space<vmem>>, vector<1x16x16xbf16>
    %58 = vector.shape_cast %57 : vector<1x16x16xbf16> to vector<16x16xbf16>
    %cst_32 = arith.constant dense<0.000000e+00> : vector<16x16xf32>
    %59 = tpu.matmul %56, %58, %cst_32 {dimension_numbers = #tpu.dot_dimension_numbers<[1], [0], [0], [1], [0, 0, 1, 1], [], []>} : vector<16x16xbf16>, vector<16x16xbf16>, vector<16x16xf32> -> vector<16x16xf32>
    %60 = arith.addf %54, %59 : vector<16x16xf32>
    %61 = vector.extract_strided_slice %48 {offsets = [2, 0], sizes = [16, 16], strides = [1, 1]} : vector<18x16xf32> to vector<16x16xf32>
    %62 = arith.truncf %61 : vector<16x16xf32> to vector<16x16xbf16>
    %c8 = arith.constant 8 : index
    %c0_33 = arith.constant 0 : index
    %c0_34 = arith.constant 0 : index
    %63 = vector.load %arg3[%c8, %c0_33, %c0_34] : memref<9x16x16xbf16, #tpu.memory_space<vmem>>, vector<1x16x16xbf16>
    %64 = vector.shape_cast %63 : vector<1x16x16xbf16> to vector<16x16xbf16>
    %cst_35 = arith.constant dense<0.000000e+00> : vector<16x16xf32>
    %65 = tpu.matmul %62, %64, %cst_35 {dimension_numbers = #tpu.dot_dimension_numbers<[1], [0], [0], [1], [0, 0, 1, 1], [], []>} : vector<16x16xbf16>, vector<16x16xbf16>, vector<16x16xf32> -> vector<16x16xf32>
    %66 = arith.addf %60, %65 : vector<16x16xf32>
    %c0_36 = arith.constant 0 : index
    %c0_37 = arith.constant 0 : index
    %67 = vector.load %arg4[%c0_36, %c0_37] : memref<1x16xf32, #tpu.memory_space<vmem>>, vector<1x16xf32>
    %68 = vector.broadcast %67 : vector<1x16xf32> to vector<16x16xf32>
    %69 = arith.addf %66, %68 : vector<16x16xf32>
    %70 = arith.negf %69 : vector<16x16xf32>
    %71 = math.exp %70 : vector<16x16xf32>
    %cst_38 = arith.constant 1.000000e+00 : f32
    %72 = vector.broadcast %cst_38 : f32 to vector<16x16xf32>
    %73 = arith.addf %72, %71 : vector<16x16xf32>
    %74 = arith.divf %72, %73 : vector<16x16xf32>
    %75 = arith.mulf %69, %74 : vector<16x16xf32>
    %76 = arith.truncf %75 : vector<16x16xf32> to vector<16x16xbf16>
    %c0_39 = arith.constant 0 : index
    %c0_40 = arith.constant 0 : index
    %77 = vector.load %arg5[%c0_39, %c0_40] : memref<16x32xbf16, #tpu.memory_space<vmem>>, vector<16x32xbf16>
    %cst_41 = arith.constant dense<0.000000e+00> : vector<16x32xf32>
    %78 = tpu.matmul %76, %77, %cst_41 {dimension_numbers = #tpu.dot_dimension_numbers<[1], [0], [0], [1], [0, 0, 1, 1], [], []>} : vector<16x16xbf16>, vector<16x32xbf16>, vector<16x32xf32> -> vector<16x32xf32>
    %c0_42 = arith.constant 0 : index
    %c0_43 = arith.constant 0 : index
    %c0_44 = arith.constant 0 : index
    %c0_45 = arith.constant 0 : index
    %79 = vector.load %arg6[%c0_42, %c0_43, %c0_44, %c0_45] : memref<1x1x16x32xf32, #tpu.memory_space<vmem>>, vector<1x1x16x32xf32>
    %80 = vector.shape_cast %79 : vector<1x1x16x32xf32> to vector<16x32xf32>
    %81 = vector.shape_cast %78 : vector<16x32xf32> to vector<1x1x16x32xf32>
    tpu.vector_store %arg6[%c0_42, %c0_43, %c0_44, %c0_45], %81 {strides = array<i32>} : memref<1x1x16x32xf32, #tpu.memory_space<vmem>>, vector<1x1x16x32xf32>,
    return
  }
  func.func @transform_0(%arg0: i32, %arg1: i32) -> (i32, i32, i32, i32) {
    %c0_i32 = arith.constant 0 : i32
    %c0_i32_0 = arith.constant 0 : i32
    %c0_i32_1 = arith.constant 0 : i32
    %c0_i32_2 = arith.constant 0 : i32
    return %arg0, %c0_i32, %c0_i32_0, %c0_i32_1 : i32, i32, i32, i32
  }
  func.func @transform_1(%arg0: i32, %arg1: i32) -> (i32, i32, i32) {
    %c0_i32 = arith.constant 0 : i32
    %c0_i32_0 = arith.constant 0 : i32
    %c0_i32_1 = arith.constant 0 : i32
    %c0_i32_2 = arith.constant 0 : i32
    return %c0_i32, %c0_i32_0, %c0_i32_1 : i32, i32, i32
  }
  func.func @transform_2(%arg0: i32, %arg1: i32) -> (i32, i32) {
    %c0_i32 = arith.constant 0 : i32
    %c0_i32_0 = arith.constant 0 : i32
    %c0_i32_1 = arith.constant 0 : i32
    return %c0_i32, %c0_i32_0 : i32, i32
  }
  func.func @transform_3(%arg0: i32, %arg1: i32) -> (i32, i32) {
    %c0_i32 = arith.constant 0 : i32
    %c0_i32_0 = arith.constant 0 : i32
    %c0_i32_1 = arith.constant 0 : i32
    return %c0_i32, %c0_i32_0 : i32, i32
  }
  func.func @transform_4(%arg0: i32, %arg1: i32) -> (i32, i32, i32, i32) {
    %c0_i32 = arith.constant 0 : i32
    %c0_i32_0 = arith.constant 0 : i32
    %c0_i32_1 = arith.constant 0 : i32
    return %arg0, %arg1, %c0_i32, %c0_i32_0 : i32, i32, i32, i32
  }
}

module attributes {stable_mosaic.version = 11 : i64} {
  func.func @_fusion_kernel(%arg0: i32, %arg1: i32, %arg2: memref<1x16x16x16xf32, #tpu.memory_space<vmem>>, %arg3: memref<1x16x16x16xf32, #tpu.memory_space<vmem>>, %arg4: memref<9x16x16xbf16, #tpu.memory_space<vmem>>, %arg5: memref<9x16x16xbf16, #tpu.memory_space<vmem>>, %arg6: memref<1x16xf32, #tpu.memory_space<vmem>>, %arg7: memref<1x1x14x16xf32, #tpu.memory_space<vmem>>) attributes {dimension_semantics = [#tpu.dimension_semantics<parallel>, #tpu.dimension_semantics<parallel>], iteration_bounds = array<i64: 2, 14>, scalar_prefetch = 0 : i64, scratch_operands = 0 : i64, tpu.core_type = #tpu.core_type<tc>, window_params = [{transform_indices = @transform_0, window_bounds = array<i64: 1, 16, 16, 16>}, {transform_indices = @transform_1, window_bounds = array<i64: 1, 16, 16, 16>}, {pipeline_mode = #tpu.pipeline_mode<synchronous>, transform_indices = @transform_2, window_bounds = array<i64: 9, 16, 16>}, {pipeline_mode = #tpu.pipeline_mode<synchronous>, transform_indices = @transform_3, window_bounds = array<i64: 9, 16, 16>}, {pipeline_mode = #tpu.pipeline_mode<synchronous>, transform_indices = @transform_4, window_bounds = array<i64: 1, 16>}, {transform_indices = @transform_5, window_bounds = array<i64: 1, 1, 14, 16>}]} {
    %cst = arith.constant 0.000000e+00 : f32
    %0 = vector.broadcast %cst : f32 to vector<14x16xf32>
    %c0_i32 = arith.constant 0 : i32
    %1 = arith.addi %arg1, %c0_i32 : i32
    %c0 = arith.constant 0 : index
    %2 = arith.index_cast %1 : i32 to index
    %c0_0 = arith.constant 0 : index
    %c0_1 = arith.constant 0 : index
    %3 = vector.load %arg2[%c0, %2, %c0_0, %c0_1] : memref<1x16x16x16xf32, #tpu.memory_space<vmem>>, vector<1x1x16x16xf32>
    %4 = vector.shape_cast %3 : vector<1x1x16x16xf32> to vector<16x16xf32>
    %c0_i32_2 = arith.constant 0 : i32
    %5 = arith.addi %arg1, %c0_i32_2 : i32
    %c0_3 = arith.constant 0 : index
    %6 = arith.index_cast %5 : i32 to index
    %c0_4 = arith.constant 0 : index
    %c0_5 = arith.constant 0 : index
    %7 = vector.load %arg3[%c0_3, %6, %c0_4, %c0_5] : memref<1x16x16x16xf32, #tpu.memory_space<vmem>>, vector<1x1x16x16xf32>
    %8 = vector.shape_cast %7 : vector<1x1x16x16xf32> to vector<16x16xf32>
    %9 = vector.extract_strided_slice %4 {offsets = [0, 0], sizes = [14, 16], strides = [1, 1]} : vector<16x16xf32> to vector<14x16xf32>
    %10 = arith.truncf %9 : vector<14x16xf32> to vector<14x16xbf16>
    %c0_6 = arith.constant 0 : index
    %c0_7 = arith.constant 0 : index
    %c0_8 = arith.constant 0 : index
    %11 = vector.load %arg4[%c0_6, %c0_7, %c0_8] : memref<9x16x16xbf16, #tpu.memory_space<vmem>>, vector<1x16x16xbf16>
    %12 = vector.shape_cast %11 : vector<1x16x16xbf16> to vector<16x16xbf16>
    %cst_9 = arith.constant dense<0.000000e+00> : vector<14x16xf32>
    %13 = tpu.matmul %10, %12, %cst_9 {dimension_numbers = #tpu.dot_dimension_numbers<[1], [0], [0], [1], [0, 0, 1, 1], [], []>} : vector<14x16xbf16>, vector<16x16xbf16>, vector<14x16xf32> -> vector<14x16xf32>
    %14 = arith.addf %0, %13 : vector<14x16xf32>
    %15 = vector.extract_strided_slice %8 {offsets = [0, 0], sizes = [14, 16], strides = [1, 1]} : vector<16x16xf32> to vector<14x16xf32>
    %16 = arith.truncf %15 : vector<14x16xf32> to vector<14x16xbf16>
    %c0_10 = arith.constant 0 : index
    %c0_11 = arith.constant 0 : index
    %c0_12 = arith.constant 0 : index
    %17 = vector.load %arg5[%c0_10, %c0_11, %c0_12] : memref<9x16x16xbf16, #tpu.memory_space<vmem>>, vector<1x16x16xbf16>
    %18 = vector.shape_cast %17 : vector<1x16x16xbf16> to vector<16x16xbf16>
    %cst_13 = arith.constant dense<0.000000e+00> : vector<14x16xf32>
    %19 = tpu.matmul %16, %18, %cst_13 {dimension_numbers = #tpu.dot_dimension_numbers<[1], [0], [0], [1], [0, 0, 1, 1], [], []>} : vector<14x16xbf16>, vector<16x16xbf16>, vector<14x16xf32> -> vector<14x16xf32>
    %20 = arith.addf %14, %19 : vector<14x16xf32>
    %21 = vector.extract_strided_slice %4 {offsets = [1, 0], sizes = [14, 16], strides = [1, 1]} : vector<16x16xf32> to vector<14x16xf32>
    %22 = arith.truncf %21 : vector<14x16xf32> to vector<14x16xbf16>
    %c1 = arith.constant 1 : index
    %c0_14 = arith.constant 0 : index
    %c0_15 = arith.constant 0 : index
    %23 = vector.load %arg4[%c1, %c0_14, %c0_15] : memref<9x16x16xbf16, #tpu.memory_space<vmem>>, vector<1x16x16xbf16>
    %24 = vector.shape_cast %23 : vector<1x16x16xbf16> to vector<16x16xbf16>
    %cst_16 = arith.constant dense<0.000000e+00> : vector<14x16xf32>
    %25 = tpu.matmul %22, %24, %cst_16 {dimension_numbers = #tpu.dot_dimension_numbers<[1], [0], [0], [1], [0, 0, 1, 1], [], []>} : vector<14x16xbf16>, vector<16x16xbf16>, vector<14x16xf32> -> vector<14x16xf32>
    %26 = arith.addf %20, %25 : vector<14x16xf32>
    %27 = vector.extract_strided_slice %8 {offsets = [1, 0], sizes = [14, 16], strides = [1, 1]} : vector<16x16xf32> to vector<14x16xf32>
    %28 = arith.truncf %27 : vector<14x16xf32> to vector<14x16xbf16>
    %c1_17 = arith.constant 1 : index
    %c0_18 = arith.constant 0 : index
    %c0_19 = arith.constant 0 : index
    %29 = vector.load %arg5[%c1_17, %c0_18, %c0_19] : memref<9x16x16xbf16, #tpu.memory_space<vmem>>, vector<1x16x16xbf16>
    %30 = vector.shape_cast %29 : vector<1x16x16xbf16> to vector<16x16xbf16>
    %cst_20 = arith.constant dense<0.000000e+00> : vector<14x16xf32>
    %31 = tpu.matmul %28, %30, %cst_20 {dimension_numbers = #tpu.dot_dimension_numbers<[1], [0], [0], [1], [0, 0, 1, 1], [], []>} : vector<14x16xbf16>, vector<16x16xbf16>, vector<14x16xf32> -> vector<14x16xf32>
    %32 = arith.addf %26, %31 : vector<14x16xf32>
    %33 = vector.extract_strided_slice %4 {offsets = [2, 0], sizes = [14, 16], strides = [1, 1]} : vector<16x16xf32> to vector<14x16xf32>
    %34 = arith.truncf %33 : vector<14x16xf32> to vector<14x16xbf16>
    %c2 = arith.constant 2 : index
    %c0_21 = arith.constant 0 : index
    %c0_22 = arith.constant 0 : index
    %35 = vector.load %arg4[%c2, %c0_21, %c0_22] : memref<9x16x16xbf16, #tpu.memory_space<vmem>>, vector<1x16x16xbf16>
    %36 = vector.shape_cast %35 : vector<1x16x16xbf16> to vector<16x16xbf16>
    %cst_23 = arith.constant dense<0.000000e+00> : vector<14x16xf32>
    %37 = tpu.matmul %34, %36, %cst_23 {dimension_numbers = #tpu.dot_dimension_numbers<[1], [0], [0], [1], [0, 0, 1, 1], [], []>} : vector<14x16xbf16>, vector<16x16xbf16>, vector<14x16xf32> -> vector<14x16xf32>
    %38 = arith.addf %32, %37 : vector<14x16xf32>
    %39 = vector.extract_strided_slice %8 {offsets = [2, 0], sizes = [14, 16], strides = [1, 1]} : vector<16x16xf32> to vector<14x16xf32>
    %40 = arith.truncf %39 : vector<14x16xf32> to vector<14x16xbf16>
    %c2_24 = arith.constant 2 : index
    %c0_25 = arith.constant 0 : index
    %c0_26 = arith.constant 0 : index
    %41 = vector.load %arg5[%c2_24, %c0_25, %c0_26] : memref<9x16x16xbf16, #tpu.memory_space<vmem>>, vector<1x16x16xbf16>
    %42 = vector.shape_cast %41 : vector<1x16x16xbf16> to vector<16x16xbf16>
    %cst_27 = arith.constant dense<0.000000e+00> : vector<14x16xf32>
    %43 = tpu.matmul %40, %42, %cst_27 {dimension_numbers = #tpu.dot_dimension_numbers<[1], [0], [0], [1], [0, 0, 1, 1], [], []>} : vector<14x16xbf16>, vector<16x16xbf16>, vector<14x16xf32> -> vector<14x16xf32>
    %44 = arith.addf %38, %43 : vector<14x16xf32>
    %c1_i32 = arith.constant 1 : i32
    %45 = arith.addi %arg1, %c1_i32 : i32
    %c0_28 = arith.constant 0 : index
    %46 = arith.index_cast %45 : i32 to index
    %c0_29 = arith.constant 0 : index
    %c0_30 = arith.constant 0 : index
    %47 = vector.load %arg2[%c0_28, %46, %c0_29, %c0_30] : memref<1x16x16x16xf32, #tpu.memory_space<vmem>>, vector<1x1x16x16xf32>
    %48 = vector.shape_cast %47 : vector<1x1x16x16xf32> to vector<16x16xf32>
    %c1_i32_31 = arith.constant 1 : i32
    %49 = arith.addi %arg1, %c1_i32_31 : i32
    %c0_32 = arith.constant 0 : index
    %50 = arith.index_cast %49 : i32 to index
    %c0_33 = arith.constant 0 : index
    %c0_34 = arith.constant 0 : index
    %51 = vector.load %arg3[%c0_32, %50, %c0_33, %c0_34] : memref<1x16x16x16xf32, #tpu.memory_space<vmem>>, vector<1x1x16x16xf32>
    %52 = vector.shape_cast %51 : vector<1x1x16x16xf32> to vector<16x16xf32>
    %53 = vector.extract_strided_slice %48 {offsets = [0, 0], sizes = [14, 16], strides = [1, 1]} : vector<16x16xf32> to vector<14x16xf32>
    %54 = arith.truncf %53 : vector<14x16xf32> to vector<14x16xbf16>
    %c3 = arith.constant 3 : index
    %c0_35 = arith.constant 0 : index
    %c0_36 = arith.constant 0 : index
    %55 = vector.load %arg4[%c3, %c0_35, %c0_36] : memref<9x16x16xbf16, #tpu.memory_space<vmem>>, vector<1x16x16xbf16>
    %56 = vector.shape_cast %55 : vector<1x16x16xbf16> to vector<16x16xbf16>
    %cst_37 = arith.constant dense<0.000000e+00> : vector<14x16xf32>
    %57 = tpu.matmul %54, %56, %cst_37 {dimension_numbers = #tpu.dot_dimension_numbers<[1], [0], [0], [1], [0, 0, 1, 1], [], []>} : vector<14x16xbf16>, vector<16x16xbf16>, vector<14x16xf32> -> vector<14x16xf32>
    %58 = arith.addf %44, %57 : vector<14x16xf32>
    %59 = vector.extract_strided_slice %52 {offsets = [0, 0], sizes = [14, 16], strides = [1, 1]} : vector<16x16xf32> to vector<14x16xf32>
    %60 = arith.truncf %59 : vector<14x16xf32> to vector<14x16xbf16>
    %c3_38 = arith.constant 3 : index
    %c0_39 = arith.constant 0 : index
    %c0_40 = arith.constant 0 : index
    %61 = vector.load %arg5[%c3_38, %c0_39, %c0_40] : memref<9x16x16xbf16, #tpu.memory_space<vmem>>, vector<1x16x16xbf16>
    %62 = vector.shape_cast %61 : vector<1x16x16xbf16> to vector<16x16xbf16>
    %cst_41 = arith.constant dense<0.000000e+00> : vector<14x16xf32>
    %63 = tpu.matmul %60, %62, %cst_41 {dimension_numbers = #tpu.dot_dimension_numbers<[1], [0], [0], [1], [0, 0, 1, 1], [], []>} : vector<14x16xbf16>, vector<16x16xbf16>, vector<14x16xf32> -> vector<14x16xf32>
    %64 = arith.addf %58, %63 : vector<14x16xf32>
    %65 = vector.extract_strided_slice %48 {offsets = [1, 0], sizes = [14, 16], strides = [1, 1]} : vector<16x16xf32> to vector<14x16xf32>
    %66 = arith.truncf %65 : vector<14x16xf32> to vector<14x16xbf16>
    %c4 = arith.constant 4 : index
    %c0_42 = arith.constant 0 : index
    %c0_43 = arith.constant 0 : index
    %67 = vector.load %arg4[%c4, %c0_42, %c0_43] : memref<9x16x16xbf16, #tpu.memory_space<vmem>>, vector<1x16x16xbf16>
    %68 = vector.shape_cast %67 : vector<1x16x16xbf16> to vector<16x16xbf16>
    %cst_44 = arith.constant dense<0.000000e+00> : vector<14x16xf32>
    %69 = tpu.matmul %66, %68, %cst_44 {dimension_numbers = #tpu.dot_dimension_numbers<[1], [0], [0], [1], [0, 0, 1, 1], [], []>} : vector<14x16xbf16>, vector<16x16xbf16>, vector<14x16xf32> -> vector<14x16xf32>
    %70 = arith.addf %64, %69 : vector<14x16xf32>
    %71 = vector.extract_strided_slice %52 {offsets = [1, 0], sizes = [14, 16], strides = [1, 1]} : vector<16x16xf32> to vector<14x16xf32>
    %72 = arith.truncf %71 : vector<14x16xf32> to vector<14x16xbf16>
    %c4_45 = arith.constant 4 : index
    %c0_46 = arith.constant 0 : index
    %c0_47 = arith.constant 0 : index
    %73 = vector.load %arg5[%c4_45, %c0_46, %c0_47] : memref<9x16x16xbf16, #tpu.memory_space<vmem>>, vector<1x16x16xbf16>
    %74 = vector.shape_cast %73 : vector<1x16x16xbf16> to vector<16x16xbf16>
    %cst_48 = arith.constant dense<0.000000e+00> : vector<14x16xf32>
    %75 = tpu.matmul %72, %74, %cst_48 {dimension_numbers = #tpu.dot_dimension_numbers<[1], [0], [0], [1], [0, 0, 1, 1], [], []>} : vector<14x16xbf16>, vector<16x16xbf16>, vector<14x16xf32> -> vector<14x16xf32>
    %76 = arith.addf %70, %75 : vector<14x16xf32>
    %77 = vector.extract_strided_slice %48 {offsets = [2, 0], sizes = [14, 16], strides = [1, 1]} : vector<16x16xf32> to vector<14x16xf32>
    %78 = arith.truncf %77 : vector<14x16xf32> to vector<14x16xbf16>
    %c5 = arith.constant 5 : index
    %c0_49 = arith.constant 0 : index
    %c0_50 = arith.constant 0 : index
    %79 = vector.load %arg4[%c5, %c0_49, %c0_50] : memref<9x16x16xbf16, #tpu.memory_space<vmem>>, vector<1x16x16xbf16>
    %80 = vector.shape_cast %79 : vector<1x16x16xbf16> to vector<16x16xbf16>
    %cst_51 = arith.constant dense<0.000000e+00> : vector<14x16xf32>
    %81 = tpu.matmul %78, %80, %cst_51 {dimension_numbers = #tpu.dot_dimension_numbers<[1], [0], [0], [1], [0, 0, 1, 1], [], []>} : vector<14x16xbf16>, vector<16x16xbf16>, vector<14x16xf32> -> vector<14x16xf32>
    %82 = arith.addf %76, %81 : vector<14x16xf32>
    %83 = vector.extract_strided_slice %52 {offsets = [2, 0], sizes = [14, 16], strides = [1, 1]} : vector<16x16xf32> to vector<14x16xf32>
    %84 = arith.truncf %83 : vector<14x16xf32> to vector<14x16xbf16>
    %c5_52 = arith.constant 5 : index
    %c0_53 = arith.constant 0 : index
    %c0_54 = arith.constant 0 : index
    %85 = vector.load %arg5[%c5_52, %c0_53, %c0_54] : memref<9x16x16xbf16, #tpu.memory_space<vmem>>, vector<1x16x16xbf16>
    %86 = vector.shape_cast %85 : vector<1x16x16xbf16> to vector<16x16xbf16>
    %cst_55 = arith.constant dense<0.000000e+00> : vector<14x16xf32>
    %87 = tpu.matmul %84, %86, %cst_55 {dimension_numbers = #tpu.dot_dimension_numbers<[1], [0], [0], [1], [0, 0, 1, 1], [], []>} : vector<14x16xbf16>, vector<16x16xbf16>, vector<14x16xf32> -> vector<14x16xf32>
    %88 = arith.addf %82, %87 : vector<14x16xf32>
    %c2_i32 = arith.constant 2 : i32
    %89 = arith.addi %arg1, %c2_i32 : i32
    %c0_56 = arith.constant 0 : index
    %90 = arith.index_cast %89 : i32 to index
    %c0_57 = arith.constant 0 : index
    %c0_58 = arith.constant 0 : index
    %91 = vector.load %arg2[%c0_56, %90, %c0_57, %c0_58] : memref<1x16x16x16xf32, #tpu.memory_space<vmem>>, vector<1x1x16x16xf32>
    %92 = vector.shape_cast %91 : vector<1x1x16x16xf32> to vector<16x16xf32>
    %c2_i32_59 = arith.constant 2 : i32
    %93 = arith.addi %arg1, %c2_i32_59 : i32
    %c0_60 = arith.constant 0 : index
    %94 = arith.index_cast %93 : i32 to index
    %c0_61 = arith.constant 0 : index
    %c0_62 = arith.constant 0 : index
    %95 = vector.load %arg3[%c0_60, %94, %c0_61, %c0_62] : memref<1x16x16x16xf32, #tpu.memory_space<vmem>>, vector<1x1x16x16xf32>
    %96 = vector.shape_cast %95 : vector<1x1x16x16xf32> to vector<16x16xf32>
    %97 = vector.extract_strided_slice %92 {offsets = [0, 0], sizes = [14, 16], strides = [1, 1]} : vector<16x16xf32> to vector<14x16xf32>
    %98 = arith.truncf %97 : vector<14x16xf32> to vector<14x16xbf16>
    %c6 = arith.constant 6 : index
    %c0_63 = arith.constant 0 : index
    %c0_64 = arith.constant 0 : index
    %99 = vector.load %arg4[%c6, %c0_63, %c0_64] : memref<9x16x16xbf16, #tpu.memory_space<vmem>>, vector<1x16x16xbf16>
    %100 = vector.shape_cast %99 : vector<1x16x16xbf16> to vector<16x16xbf16>
    %cst_65 = arith.constant dense<0.000000e+00> : vector<14x16xf32>
    %101 = tpu.matmul %98, %100, %cst_65 {dimension_numbers = #tpu.dot_dimension_numbers<[1], [0], [0], [1], [0, 0, 1, 1], [], []>} : vector<14x16xbf16>, vector<16x16xbf16>, vector<14x16xf32> -> vector<14x16xf32>
    %102 = arith.addf %88, %101 : vector<14x16xf32>
    %103 = vector.extract_strided_slice %96 {offsets = [0, 0], sizes = [14, 16], strides = [1, 1]} : vector<16x16xf32> to vector<14x16xf32>
    %104 = arith.truncf %103 : vector<14x16xf32> to vector<14x16xbf16>
    %c6_66 = arith.constant 6 : index
    %c0_67 = arith.constant 0 : index
    %c0_68 = arith.constant 0 : index
    %105 = vector.load %arg5[%c6_66, %c0_67, %c0_68] : memref<9x16x16xbf16, #tpu.memory_space<vmem>>, vector<1x16x16xbf16>
    %106 = vector.shape_cast %105 : vector<1x16x16xbf16> to vector<16x16xbf16>
    %cst_69 = arith.constant dense<0.000000e+00> : vector<14x16xf32>
    %107 = tpu.matmul %104, %106, %cst_69 {dimension_numbers = #tpu.dot_dimension_numbers<[1], [0], [0], [1], [0, 0, 1, 1], [], []>} : vector<14x16xbf16>, vector<16x16xbf16>, vector<14x16xf32> -> vector<14x16xf32>
    %108 = arith.addf %102, %107 : vector<14x16xf32>
    %109 = vector.extract_strided_slice %92 {offsets = [1, 0], sizes = [14, 16], strides = [1, 1]} : vector<16x16xf32> to vector<14x16xf32>
    %110 = arith.truncf %109 : vector<14x16xf32> to vector<14x16xbf16>
    %c7 = arith.constant 7 : index
    %c0_70 = arith.constant 0 : index
    %c0_71 = arith.constant 0 : index
    %111 = vector.load %arg4[%c7, %c0_70, %c0_71] : memref<9x16x16xbf16, #tpu.memory_space<vmem>>, vector<1x16x16xbf16>
    %112 = vector.shape_cast %111 : vector<1x16x16xbf16> to vector<16x16xbf16>
    %cst_72 = arith.constant dense<0.000000e+00> : vector<14x16xf32>
    %113 = tpu.matmul %110, %112, %cst_72 {dimension_numbers = #tpu.dot_dimension_numbers<[1], [0], [0], [1], [0, 0, 1, 1], [], []>} : vector<14x16xbf16>, vector<16x16xbf16>, vector<14x16xf32> -> vector<14x16xf32>
    %114 = arith.addf %108, %113 : vector<14x16xf32>
    %115 = vector.extract_strided_slice %96 {offsets = [1, 0], sizes = [14, 16], strides = [1, 1]} : vector<16x16xf32> to vector<14x16xf32>
    %116 = arith.truncf %115 : vector<14x16xf32> to vector<14x16xbf16>
    %c7_73 = arith.constant 7 : index
    %c0_74 = arith.constant 0 : index
    %c0_75 = arith.constant 0 : index
    %117 = vector.load %arg5[%c7_73, %c0_74, %c0_75] : memref<9x16x16xbf16, #tpu.memory_space<vmem>>, vector<1x16x16xbf16>
    %118 = vector.shape_cast %117 : vector<1x16x16xbf16> to vector<16x16xbf16>
    %cst_76 = arith.constant dense<0.000000e+00> : vector<14x16xf32>
    %119 = tpu.matmul %116, %118, %cst_76 {dimension_numbers = #tpu.dot_dimension_numbers<[1], [0], [0], [1], [0, 0, 1, 1], [], []>} : vector<14x16xbf16>, vector<16x16xbf16>, vector<14x16xf32> -> vector<14x16xf32>
    %120 = arith.addf %114, %119 : vector<14x16xf32>
    %121 = vector.extract_strided_slice %92 {offsets = [2, 0], sizes = [14, 16], strides = [1, 1]} : vector<16x16xf32> to vector<14x16xf32>
    %122 = arith.truncf %121 : vector<14x16xf32> to vector<14x16xbf16>
    %c8 = arith.constant 8 : index
    %c0_77 = arith.constant 0 : index
    %c0_78 = arith.constant 0 : index
    %123 = vector.load %arg4[%c8, %c0_77, %c0_78] : memref<9x16x16xbf16, #tpu.memory_space<vmem>>, vector<1x16x16xbf16>
    %124 = vector.shape_cast %123 : vector<1x16x16xbf16> to vector<16x16xbf16>
    %cst_79 = arith.constant dense<0.000000e+00> : vector<14x16xf32>
    %125 = tpu.matmul %122, %124, %cst_79 {dimension_numbers = #tpu.dot_dimension_numbers<[1], [0], [0], [1], [0, 0, 1, 1], [], []>} : vector<14x16xbf16>, vector<16x16xbf16>, vector<14x16xf32> -> vector<14x16xf32>
    %126 = arith.addf %120, %125 : vector<14x16xf32>
    %127 = vector.extract_strided_slice %96 {offsets = [2, 0], sizes = [14, 16], strides = [1, 1]} : vector<16x16xf32> to vector<14x16xf32>
    %128 = arith.truncf %127 : vector<14x16xf32> to vector<14x16xbf16>
    %c8_80 = arith.constant 8 : index
    %c0_81 = arith.constant 0 : index
    %c0_82 = arith.constant 0 : index
    %129 = vector.load %arg5[%c8_80, %c0_81, %c0_82] : memref<9x16x16xbf16, #tpu.memory_space<vmem>>, vector<1x16x16xbf16>
    %130 = vector.shape_cast %129 : vector<1x16x16xbf16> to vector<16x16xbf16>
    %cst_83 = arith.constant dense<0.000000e+00> : vector<14x16xf32>
    %131 = tpu.matmul %128, %130, %cst_83 {dimension_numbers = #tpu.dot_dimension_numbers<[1], [0], [0], [1], [0, 0, 1, 1], [], []>} : vector<14x16xbf16>, vector<16x16xbf16>, vector<14x16xf32> -> vector<14x16xf32>
    %132 = arith.addf %126, %131 : vector<14x16xf32>
    %c0_84 = arith.constant 0 : index
    %c0_85 = arith.constant 0 : index
    %133 = vector.load %arg6[%c0_84, %c0_85] : memref<1x16xf32, #tpu.memory_space<vmem>>, vector<1x16xf32>
    %134 = vector.broadcast %133 : vector<1x16xf32> to vector<14x16xf32>
    %135 = arith.addf %132, %134 : vector<14x16xf32>
    %136 = arith.negf %135 : vector<14x16xf32>
    %137 = math.exp %136 : vector<14x16xf32>
    %cst_86 = arith.constant 1.000000e+00 : f32
    %138 = vector.broadcast %cst_86 : f32 to vector<14x16xf32>
    %139 = arith.addf %138, %137 : vector<14x16xf32>
    %140 = arith.divf %138, %139 : vector<14x16xf32>
    %141 = arith.mulf %135, %140 : vector<14x16xf32>
    %c0_87 = arith.constant 0 : index
    %c0_88 = arith.constant 0 : index
    %c0_89 = arith.constant 0 : index
    %c0_90 = arith.constant 0 : index
    %142 = vector.load %arg7[%c0_87, %c0_88, %c0_89, %c0_90] : memref<1x1x14x16xf32, #tpu.memory_space<vmem>>, vector<1x1x14x16xf32>
    %143 = vector.shape_cast %142 : vector<1x1x14x16xf32> to vector<14x16xf32>
    %144 = vector.shape_cast %141 : vector<14x16xf32> to vector<1x1x14x16xf32>
    tpu.vector_store %arg7[%c0_87, %c0_88, %c0_89, %c0_90], %144 {strides = array<i32>} : memref<1x1x14x16xf32, #tpu.memory_space<vmem>>, vector<1x1x14x16xf32>,
    return
  }
  func.func @transform_0(%arg0: i32, %arg1: i32) -> (i32, i32, i32, i32) {
    %c0_i32 = arith.constant 0 : i32
    %c0_i32_0 = arith.constant 0 : i32
    %c0_i32_1 = arith.constant 0 : i32
    %c0_i32_2 = arith.constant 0 : i32
    return %arg0, %c0_i32, %c0_i32_0, %c0_i32_1 : i32, i32, i32, i32
  }
  func.func @transform_1(%arg0: i32, %arg1: i32) -> (i32, i32, i32, i32) {
    %c0_i32 = arith.constant 0 : i32
    %c0_i32_0 = arith.constant 0 : i32
    %c0_i32_1 = arith.constant 0 : i32
    %c0_i32_2 = arith.constant 0 : i32
    return %arg0, %c0_i32, %c0_i32_0, %c0_i32_1 : i32, i32, i32, i32
  }
  func.func @transform_2(%arg0: i32, %arg1: i32) -> (i32, i32, i32) {
    %c0_i32 = arith.constant 0 : i32
    %c0_i32_0 = arith.constant 0 : i32
    %c0_i32_1 = arith.constant 0 : i32
    %c0_i32_2 = arith.constant 0 : i32
    return %c0_i32, %c0_i32_0, %c0_i32_1 : i32, i32, i32
  }
  func.func @transform_3(%arg0: i32, %arg1: i32) -> (i32, i32, i32) {
    %c0_i32 = arith.constant 0 : i32
    %c0_i32_0 = arith.constant 0 : i32
    %c0_i32_1 = arith.constant 0 : i32
    %c0_i32_2 = arith.constant 0 : i32
    return %c0_i32, %c0_i32_0, %c0_i32_1 : i32, i32, i32
  }
  func.func @transform_4(%arg0: i32, %arg1: i32) -> (i32, i32) {
    %c0_i32 = arith.constant 0 : i32
    %c0_i32_0 = arith.constant 0 : i32
    %c0_i32_1 = arith.constant 0 : i32
    return %c0_i32, %c0_i32_0 : i32, i32
  }
  func.func @transform_5(%arg0: i32, %arg1: i32) -> (i32, i32, i32, i32) {
    %c0_i32 = arith.constant 0 : i32
    %c0_i32_0 = arith.constant 0 : i32
    %c0_i32_1 = arith.constant 0 : i32
    return %arg0, %arg1, %c0_i32, %c0_i32_0 : i32, i32, i32, i32
  }
}

module attributes {stable_mosaic.version = 11 : i64} {
  func.func @kernel(%arg0: i32, %arg1: memref<1x64x32xf32, #tpu.memory_space<vmem>>, %arg2: memref<2x1x32xf32, #tpu.memory_space<vmem>>, %arg3: memref<2x1x32xf32, #tpu.memory_space<vmem>>, %arg4: memref<2x4x32x8xbf16, #tpu.memory_space<vmem>>, %arg5: memref<2x4x1x8xf32, #tpu.memory_space<vmem>>, %arg6: memref<2x4x32x8xbf16, #tpu.memory_space<vmem>>, %arg7: memref<2x4x1x8xf32, #tpu.memory_space<vmem>>, %arg8: memref<2x4x32x8xbf16, #tpu.memory_space<vmem>>, %arg9: memref<2x4x1x8xf32, #tpu.memory_space<vmem>>, %arg10: memref<2x4x8x32xbf16, #tpu.memory_space<vmem>>, %arg11: memref<2x1x32xf32, #tpu.memory_space<vmem>>, %arg12: memref<2x1x32xf32, #tpu.memory_space<vmem>>, %arg13: memref<2x1x32xf32, #tpu.memory_space<vmem>>, %arg14: memref<2x32x64xbf16, #tpu.memory_space<vmem>>, %arg15: memref<2x1x64xf32, #tpu.memory_space<vmem>>, %arg16: memref<2x64x32xbf16, #tpu.memory_space<vmem>>, %arg17: memref<2x1x32xf32, #tpu.memory_space<vmem>>, %arg18: memref<1x32xf32, #tpu.memory_space<vmem>>, %arg19: memref<1x32xf32, #tpu.memory_space<vmem>>, %arg20: memref<32x16xbf16, #tpu.memory_space<vmem>>, %arg21: memref<1x16xf32, #tpu.memory_space<vmem>>, %arg22: memref<1x64x16xf32, #tpu.memory_space<vmem>>) attributes {dimension_semantics = [#tpu.dimension_semantics<parallel>], iteration_bounds = array<i64: 8>, scalar_prefetch = 0 : i64, scratch_operands = 0 : i64, tpu.core_type = #tpu.core_type<tc>, window_params = [{transform_indices = @transform_0, window_bounds = array<i64: 1, 64, 32>}, {pipeline_mode = #tpu.pipeline_mode<synchronous>, transform_indices = @transform_1, window_bounds = array<i64: 2, 1, 32>}, {pipeline_mode = #tpu.pipeline_mode<synchronous>, transform_indices = @transform_2, window_bounds = array<i64: 2, 1, 32>}, {pipeline_mode = #tpu.pipeline_mode<synchronous>, transform_indices = @transform_3, window_bounds = array<i64: 2, 4, 32, 8>}, {pipeline_mode = #tpu.pipeline_mode<synchronous>, transform_indices = @transform_4, window_bounds = array<i64: 2, 4, 1, 8>}, {pipeline_mode = #tpu.pipeline_mode<synchronous>, transform_indices = @transform_5, window_bounds = array<i64: 2, 4, 32, 8>}, {pipeline_mode = #tpu.pipeline_mode<synchronous>, transform_indices = @transform_6, window_bounds = array<i64: 2, 4, 1, 8>}, {pipeline_mode = #tpu.pipeline_mode<synchronous>, transform_indices = @transform_7, window_bounds = array<i64: 2, 4, 32, 8>}, {pipeline_mode = #tpu.pipeline_mode<synchronous>, transform_indices = @transform_8, window_bounds = array<i64: 2, 4, 1, 8>}, {pipeline_mode = #tpu.pipeline_mode<synchronous>, transform_indices = @transform_9, window_bounds = array<i64: 2, 4, 8, 32>}, {pipeline_mode = #tpu.pipeline_mode<synchronous>, transform_indices = @transform_10, window_bounds = array<i64: 2, 1, 32>}, {pipeline_mode = #tpu.pipeline_mode<synchronous>, transform_indices = @transform_11, window_bounds = array<i64: 2, 1, 32>}, {pipeline_mode = #tpu.pipeline_mode<synchronous>, transform_indices = @transform_12, window_bounds = array<i64: 2, 1, 32>}, {pipeline_mode = #tpu.pipeline_mode<synchronous>, transform_indices = @transform_13, window_bounds = array<i64: 2, 32, 64>}, {pipeline_mode = #tpu.pipeline_mode<synchronous>, transform_indices = @transform_14, window_bounds = array<i64: 2, 1, 64>}, {pipeline_mode = #tpu.pipeline_mode<synchronous>, transform_indices = @transform_15, window_bounds = array<i64: 2, 64, 32>}, {pipeline_mode = #tpu.pipeline_mode<synchronous>, transform_indices = @transform_16, window_bounds = array<i64: 2, 1, 32>}, {pipeline_mode = #tpu.pipeline_mode<synchronous>, transform_indices = @transform_17, window_bounds = array<i64: 1, 32>}, {pipeline_mode = #tpu.pipeline_mode<synchronous>, transform_indices = @transform_18, window_bounds = array<i64: 1, 32>}, {pipeline_mode = #tpu.pipeline_mode<synchronous>, transform_indices = @transform_19, window_bounds = array<i64: 32, 16>}, {pipeline_mode = #tpu.pipeline_mode<synchronous>, transform_indices = @transform_20, window_bounds = array<i64: 1, 16>}, {transform_indices = @transform_21, window_bounds = array<i64: 1, 64, 16>}]} {
    %c0 = arith.constant 0 : index
    %c0_0 = arith.constant 0 : index
    %c0_1 = arith.constant 0 : index
    %0 = vector.load %arg1[%c0, %c0_0, %c0_1] : memref<1x64x32xf32, #tpu.memory_space<vmem>>, vector<1x64x32xf32>
    %1 = vector.shape_cast %0 : vector<1x64x32xf32> to vector<64x32xf32>
    %c0_2 = arith.constant 0 : index
    %c0_3 = arith.constant 0 : index
    %c0_4 = arith.constant 0 : index
    %2 = vector.load %arg2[%c0_2, %c0_3, %c0_4] : memref<2x1x32xf32, #tpu.memory_space<vmem>>, vector<1x1x32xf32>
    %3 = vector.shape_cast %2 : vector<1x1x32xf32> to vector<1x32xf32>
    %c0_5 = arith.constant 0 : index
    %c0_6 = arith.constant 0 : index
    %c0_7 = arith.constant 0 : index
    %4 = vector.load %arg3[%c0_5, %c0_6, %c0_7] : memref<2x1x32xf32, #tpu.memory_space<vmem>>, vector<1x1x32xf32>
    %5 = vector.shape_cast %4 : vector<1x1x32xf32> to vector<1x32xf32>
    %cst = arith.constant dense<0.000000e+00> : vector<64xf32>
    %6 = vector.multi_reduction <add>, %1, %cst [1] : vector<64x32xf32> to vector<64xf32>
    %7 = vector.shape_cast %6 : vector<64xf32> to vector<64x1xf32>
    %cst_8 = arith.constant 3.200000e+01 : f32
    %8 = vector.broadcast %cst_8 : f32 to vector<64x1xf32>
    %9 = arith.divf %7, %8 : vector<64x1xf32>
    %10 = vector.broadcast %9 : vector<64x1xf32> to vector<64x32xf32>
    %11 = arith.subf %1, %10 : vector<64x32xf32>
    %12 = arith.mulf %11, %11 : vector<64x32xf32>
    %cst_9 = arith.constant dense<0.000000e+00> : vector<64xf32>
    %13 = vector.multi_reduction <add>, %12, %cst_9 [1] : vector<64x32xf32> to vector<64xf32>
    %14 = vector.shape_cast %13 : vector<64xf32> to vector<64x1xf32>
    %cst_10 = arith.constant 3.200000e+01 : f32
    %15 = vector.broadcast %cst_10 : f32 to vector<64x1xf32>
    %16 = arith.divf %14, %15 : vector<64x1xf32>
    %cst_11 = arith.constant 9.99999974E-6 : f32
    %17 = vector.broadcast %cst_11 : f32 to vector<64x1xf32>
    %18 = arith.addf %16, %17 : vector<64x1xf32>
    %19 = math.rsqrt %18 : vector<64x1xf32>
    %20 = vector.broadcast %19 : vector<64x1xf32> to vector<64x32xf32>
    %21 = arith.mulf %11, %20 : vector<64x32xf32>
    %22 = vector.broadcast %3 : vector<1x32xf32> to vector<64x32xf32>
    %23 = arith.mulf %21, %22 : vector<64x32xf32>
    %24 = vector.broadcast %5 : vector<1x32xf32> to vector<64x32xf32>
    %25 = arith.addf %23, %24 : vector<64x32xf32>
    %26 = arith.truncf %25 : vector<64x32xf32> to vector<64x32xbf16>
    %cst_12 = arith.constant 0.000000e+00 : f32
    %27 = vector.broadcast %cst_12 : f32 to vector<64x32xf32>
    %c0_13 = arith.constant 0 : index
    %c0_14 = arith.constant 0 : index
    %c0_15 = arith.constant 0 : index
    %c0_16 = arith.constant 0 : index
    %28 = vector.load %arg4[%c0_13, %c0_14, %c0_15, %c0_16] : memref<2x4x32x8xbf16, #tpu.memory_space<vmem>>, vector<1x1x32x8xbf16>
    %29 = vector.shape_cast %28 : vector<1x1x32x8xbf16> to vector<32x8xbf16>
    %cst_17 = arith.constant dense<0.000000e+00> : vector<64x8xf32>
    %30 = tpu.matmul %26, %29, %cst_17 {dimension_numbers = #tpu.dot_dimension_numbers<[1], [0], [0], [1], [0, 0, 1, 1], [], []>} : vector<64x32xbf16>, vector<32x8xbf16>, vector<64x8xf32> -> vector<64x8xf32>
    %c0_18 = arith.constant 0 : index
    %c0_19 = arith.constant 0 : index
    %c0_20 = arith.constant 0 : index
    %c0_21 = arith.constant 0 : index
    %31 = vector.load %arg5[%c0_18, %c0_19, %c0_20, %c0_21] : memref<2x4x1x8xf32, #tpu.memory_space<vmem>>, vector<1x1x1x8xf32>
    %32 = vector.shape_cast %31 : vector<1x1x1x8xf32> to vector<1x8xf32>
    %33 = vector.broadcast %32 : vector<1x8xf32> to vector<64x8xf32>
    %34 = arith.addf %30, %33 : vector<64x8xf32>
    %c0_22 = arith.constant 0 : index
    %c0_23 = arith.constant 0 : index
    %c0_24 = arith.constant 0 : index
    %c0_25 = arith.constant 0 : index
    %35 = vector.load %arg6[%c0_22, %c0_23, %c0_24, %c0_25] : memref<2x4x32x8xbf16, #tpu.memory_space<vmem>>, vector<1x1x32x8xbf16>
    %36 = vector.shape_cast %35 : vector<1x1x32x8xbf16> to vector<32x8xbf16>
    %cst_26 = arith.constant dense<0.000000e+00> : vector<64x8xf32>
    %37 = tpu.matmul %26, %36, %cst_26 {dimension_numbers = #tpu.dot_dimension_numbers<[1], [0], [0], [1], [0, 0, 1, 1], [], []>} : vector<64x32xbf16>, vector<32x8xbf16>, vector<64x8xf32> -> vector<64x8xf32>
    %c0_27 = arith.constant 0 : index
    %c0_28 = arith.constant 0 : index
    %c0_29 = arith.constant 0 : index
    %c0_30 = arith.constant 0 : index
    %38 = vector.load %arg7[%c0_27, %c0_28, %c0_29, %c0_30] : memref<2x4x1x8xf32, #tpu.memory_space<vmem>>, vector<1x1x1x8xf32>
    %39 = vector.shape_cast %38 : vector<1x1x1x8xf32> to vector<1x8xf32>
    %40 = vector.broadcast %39 : vector<1x8xf32> to vector<64x8xf32>
    %41 = arith.addf %37, %40 : vector<64x8xf32>
    %c0_31 = arith.constant 0 : index
    %c0_32 = arith.constant 0 : index
    %c0_33 = arith.constant 0 : index
    %c0_34 = arith.constant 0 : index
    %42 = vector.load %arg8[%c0_31, %c0_32, %c0_33, %c0_34] : memref<2x4x32x8xbf16, #tpu.memory_space<vmem>>, vector<1x1x32x8xbf16>
    %43 = vector.shape_cast %42 : vector<1x1x32x8xbf16> to vector<32x8xbf16>
    %cst_35 = arith.constant dense<0.000000e+00> : vector<64x8xf32>
    %44 = tpu.matmul %26, %43, %cst_35 {dimension_numbers = #tpu.dot_dimension_numbers<[1], [0], [0], [1], [0, 0, 1, 1], [], []>} : vector<64x32xbf16>, vector<32x8xbf16>, vector<64x8xf32> -> vector<64x8xf32>
    %c0_36 = arith.constant 0 : index
    %c0_37 = arith.constant 0 : index
    %c0_38 = arith.constant 0 : index
    %c0_39 = arith.constant 0 : index
    %45 = vector.load %arg9[%c0_36, %c0_37, %c0_38, %c0_39] : memref<2x4x1x8xf32, #tpu.memory_space<vmem>>, vector<1x1x1x8xf32>
    %46 = vector.shape_cast %45 : vector<1x1x1x8xf32> to vector<1x8xf32>
    %47 = vector.broadcast %46 : vector<1x8xf32> to vector<64x8xf32>
    %48 = arith.addf %44, %47 : vector<64x8xf32>
    %cst_40 = arith.constant 0.353553385 : f32
    %49 = vector.broadcast %cst_40 : f32 to vector<64x8xf32>
    %50 = arith.mulf %34, %49 : vector<64x8xf32>
    %51 = arith.truncf %50 : vector<64x8xf32> to vector<64x8xbf16>
    %52 = arith.truncf %41 : vector<64x8xf32> to vector<64x8xbf16>
    %cst_41 = arith.constant dense<0.000000e+00> : vector<64x64xf32>
    %53 = tpu.matmul %51, %52, %cst_41 {dimension_numbers = #tpu.dot_dimension_numbers<[1], [1], [0], [0], [0, 0, 1, 0], [], []>} : vector<64x8xbf16>, vector<64x8xbf16>, vector<64x64xf32> -> vector<64x64xf32>
    %cst_42 = arith.constant dense<0xFF800000> : vector<64xf32>
    %54 = vector.multi_reduction <maximumf>, %53, %cst_42 [1] : vector<64x64xf32> to vector<64xf32>
    %55 = vector.shape_cast %54 : vector<64xf32> to vector<64x1xf32>
    %56 = vector.broadcast %55 : vector<64x1xf32> to vector<64x64xf32>
    %57 = arith.subf %53, %56 : vector<64x64xf32>
    %58 = math.exp %57 : vector<64x64xf32>
    %cst_43 = arith.constant dense<0.000000e+00> : vector<64xf32>
    %59 = vector.multi_reduction <add>, %58, %cst_43 [1] : vector<64x64xf32> to vector<64xf32>
    %60 = vector.shape_cast %59 : vector<64xf32> to vector<64x1xf32>
    %61 = tpu.reciprocal %60 {approx = true} : vector<64x1xf32> -> vector<64x1xf32>
    %62 = vector.broadcast %61 : vector<64x1xf32> to vector<64x64xf32>
    %63 = arith.mulf %58, %62 : vector<64x64xf32>
    %64 = arith.truncf %63 : vector<64x64xf32> to vector<64x64xbf16>
    %65 = arith.truncf %48 : vector<64x8xf32> to vector<64x8xbf16>
    %cst_44 = arith.constant dense<0.000000e+00> : vector<64x8xf32>
    %66 = tpu.matmul %64, %65, %cst_44 {dimension_numbers = #tpu.dot_dimension_numbers<[1], [0], [0], [1], [0, 0, 1, 1], [], []>} : vector<64x64xbf16>, vector<64x8xbf16>, vector<64x8xf32> -> vector<64x8xf32>
    %67 = arith.truncf %66 : vector<64x8xf32> to vector<64x8xbf16>
    %c0_45 = arith.constant 0 : index
    %c0_46 = arith.constant 0 : index
    %c0_47 = arith.constant 0 : index
    %c0_48 = arith.constant 0 : index
    %68 = vector.load %arg10[%c0_45, %c0_46, %c0_47, %c0_48] : memref<2x4x8x32xbf16, #tpu.memory_space<vmem>>, vector<1x1x8x32xbf16>
    %69 = vector.shape_cast %68 : vector<1x1x8x32xbf16> to vector<8x32xbf16>
    %cst_49 = arith.constant dense<0.000000e+00> : vector<64x32xf32>
    %70 = tpu.matmul %67, %69, %cst_49 {dimension_numbers = #tpu.dot_dimension_numbers<[1], [0], [0], [1], [0, 0, 1, 1], [], []>} : vector<64x8xbf16>, vector<8x32xbf16>, vector<64x32xf32> -> vector<64x32xf32>
    %71 = arith.addf %27, %70 : vector<64x32xf32>
    %c0_50 = arith.constant 0 : index
    %c1 = arith.constant 1 : index
    %c0_51 = arith.constant 0 : index
    %c0_52 = arith.constant 0 : index
    %72 = vector.load %arg4[%c0_50, %c1, %c0_51, %c0_52] : memref<2x4x32x8xbf16, #tpu.memory_space<vmem>>, vector<1x1x32x8xbf16>
    %73 = vector.shape_cast %72 : vector<1x1x32x8xbf16> to vector<32x8xbf16>
    %cst_53 = arith.constant dense<0.000000e+00> : vector<64x8xf32>
    %74 = tpu.matmul %26, %73, %cst_53 {dimension_numbers = #tpu.dot_dimension_numbers<[1], [0], [0], [1], [0, 0, 1, 1], [], []>} : vector<64x32xbf16>, vector<32x8xbf16>, vector<64x8xf32> -> vector<64x8xf32>
    %c0_54 = arith.constant 0 : index
    %c1_55 = arith.constant 1 : index
    %c0_56 = arith.constant 0 : index
    %c0_57 = arith.constant 0 : index
    %75 = vector.load %arg5[%c0_54, %c1_55, %c0_56, %c0_57] : memref<2x4x1x8xf32, #tpu.memory_space<vmem>>, vector<1x1x1x8xf32>
    %76 = vector.shape_cast %75 : vector<1x1x1x8xf32> to vector<1x8xf32>
    %77 = vector.broadcast %76 : vector<1x8xf32> to vector<64x8xf32>
    %78 = arith.addf %74, %77 : vector<64x8xf32>
    %c0_58 = arith.constant 0 : index
    %c1_59 = arith.constant 1 : index
    %c0_60 = arith.constant 0 : index
    %c0_61 = arith.constant 0 : index
    %79 = vector.load %arg6[%c0_58, %c1_59, %c0_60, %c0_61] : memref<2x4x32x8xbf16, #tpu.memory_space<vmem>>, vector<1x1x32x8xbf16>
    %80 = vector.shape_cast %79 : vector<1x1x32x8xbf16> to vector<32x8xbf16>
    %cst_62 = arith.constant dense<0.000000e+00> : vector<64x8xf32>
    %81 = tpu.matmul %26, %80, %cst_62 {dimension_numbers = #tpu.dot_dimension_numbers<[1], [0], [0], [1], [0, 0, 1, 1], [], []>} : vector<64x32xbf16>, vector<32x8xbf16>, vector<64x8xf32> -> vector<64x8xf32>
    %c0_63 = arith.constant 0 : index
    %c1_64 = arith.constant 1 : index
    %c0_65 = arith.constant 0 : index
    %c0_66 = arith.constant 0 : index
    %82 = vector.load %arg7[%c0_63, %c1_64, %c0_65, %c0_66] : memref<2x4x1x8xf32, #tpu.memory_space<vmem>>, vector<1x1x1x8xf32>
    %83 = vector.shape_cast %82 : vector<1x1x1x8xf32> to vector<1x8xf32>
    %84 = vector.broadcast %83 : vector<1x8xf32> to vector<64x8xf32>
    %85 = arith.addf %81, %84 : vector<64x8xf32>
    %c0_67 = arith.constant 0 : index
    %c1_68 = arith.constant 1 : index
    %c0_69 = arith.constant 0 : index
    %c0_70 = arith.constant 0 : index
    %86 = vector.load %arg8[%c0_67, %c1_68, %c0_69, %c0_70] : memref<2x4x32x8xbf16, #tpu.memory_space<vmem>>, vector<1x1x32x8xbf16>
    %87 = vector.shape_cast %86 : vector<1x1x32x8xbf16> to vector<32x8xbf16>
    %cst_71 = arith.constant dense<0.000000e+00> : vector<64x8xf32>
    %88 = tpu.matmul %26, %87, %cst_71 {dimension_numbers = #tpu.dot_dimension_numbers<[1], [0], [0], [1], [0, 0, 1, 1], [], []>} : vector<64x32xbf16>, vector<32x8xbf16>, vector<64x8xf32> -> vector<64x8xf32>
    %c0_72 = arith.constant 0 : index
    %c1_73 = arith.constant 1 : index
    %c0_74 = arith.constant 0 : index
    %c0_75 = arith.constant 0 : index
    %89 = vector.load %arg9[%c0_72, %c1_73, %c0_74, %c0_75] : memref<2x4x1x8xf32, #tpu.memory_space<vmem>>, vector<1x1x1x8xf32>
    %90 = vector.shape_cast %89 : vector<1x1x1x8xf32> to vector<1x8xf32>
    %91 = vector.broadcast %90 : vector<1x8xf32> to vector<64x8xf32>
    %92 = arith.addf %88, %91 : vector<64x8xf32>
    %cst_76 = arith.constant 0.353553385 : f32
    %93 = vector.broadcast %cst_76 : f32 to vector<64x8xf32>
    %94 = arith.mulf %78, %93 : vector<64x8xf32>
    %95 = arith.truncf %94 : vector<64x8xf32> to vector<64x8xbf16>
    %96 = arith.truncf %85 : vector<64x8xf32> to vector<64x8xbf16>
    %cst_77 = arith.constant dense<0.000000e+00> : vector<64x64xf32>
    %97 = tpu.matmul %95, %96, %cst_77 {dimension_numbers = #tpu.dot_dimension_numbers<[1], [1], [0], [0], [0, 0, 1, 0], [], []>} : vector<64x8xbf16>, vector<64x8xbf16>, vector<64x64xf32> -> vector<64x64xf32>
    %cst_78 = arith.constant dense<0xFF800000> : vector<64xf32>
    %98 = vector.multi_reduction <maximumf>, %97, %cst_78 [1] : vector<64x64xf32> to vector<64xf32>
    %99 = vector.shape_cast %98 : vector<64xf32> to vector<64x1xf32>
    %100 = vector.broadcast %99 : vector<64x1xf32> to vector<64x64xf32>
    %101 = arith.subf %97, %100 : vector<64x64xf32>
    %102 = math.exp %101 : vector<64x64xf32>
    %cst_79 = arith.constant dense<0.000000e+00> : vector<64xf32>
    %103 = vector.multi_reduction <add>, %102, %cst_79 [1] : vector<64x64xf32> to vector<64xf32>
    %104 = vector.shape_cast %103 : vector<64xf32> to vector<64x1xf32>
    %105 = tpu.reciprocal %104 {approx = true} : vector<64x1xf32> -> vector<64x1xf32>
    %106 = vector.broadcast %105 : vector<64x1xf32> to vector<64x64xf32>
    %107 = arith.mulf %102, %106 : vector<64x64xf32>
    %108 = arith.truncf %107 : vector<64x64xf32> to vector<64x64xbf16>
    %109 = arith.truncf %92 : vector<64x8xf32> to vector<64x8xbf16>
    %cst_80 = arith.constant dense<0.000000e+00> : vector<64x8xf32>
    %110 = tpu.matmul %108, %109, %cst_80 {dimension_numbers = #tpu.dot_dimension_numbers<[1], [0], [0], [1], [0, 0, 1, 1], [], []>} : vector<64x64xbf16>, vector<64x8xbf16>, vector<64x8xf32> -> vector<64x8xf32>
    %111 = arith.truncf %110 : vector<64x8xf32> to vector<64x8xbf16>
    %c0_81 = arith.constant 0 : index
    %c1_82 = arith.constant 1 : index
    %c0_83 = arith.constant 0 : index
    %c0_84 = arith.constant 0 : index
    %112 = vector.load %arg10[%c0_81, %c1_82, %c0_83, %c0_84] : memref<2x4x8x32xbf16, #tpu.memory_space<vmem>>, vector<1x1x8x32xbf16>
    %113 = vector.shape_cast %112 : vector<1x1x8x32xbf16> to vector<8x32xbf16>
    %cst_85 = arith.constant dense<0.000000e+00> : vector<64x32xf32>
    %114 = tpu.matmul %111, %113, %cst_85 {dimension_numbers = #tpu.dot_dimension_numbers<[1], [0], [0], [1], [0, 0, 1, 1], [], []>} : vector<64x8xbf16>, vector<8x32xbf16>, vector<64x32xf32> -> vector<64x32xf32>
    %115 = arith.addf %71, %114 : vector<64x32xf32>
    %c0_86 = arith.constant 0 : index
    %c2 = arith.constant 2 : index
    %c0_87 = arith.constant 0 : index
    %c0_88 = arith.constant 0 : index
    %116 = vector.load %arg4[%c0_86, %c2, %c0_87, %c0_88] : memref<2x4x32x8xbf16, #tpu.memory_space<vmem>>, vector<1x1x32x8xbf16>
    %117 = vector.shape_cast %116 : vector<1x1x32x8xbf16> to vector<32x8xbf16>
    %cst_89 = arith.constant dense<0.000000e+00> : vector<64x8xf32>
    %118 = tpu.matmul %26, %117, %cst_89 {dimension_numbers = #tpu.dot_dimension_numbers<[1], [0], [0], [1], [0, 0, 1, 1], [], []>} : vector<64x32xbf16>, vector<32x8xbf16>, vector<64x8xf32> -> vector<64x8xf32>
    %c0_90 = arith.constant 0 : index
    %c2_91 = arith.constant 2 : index
    %c0_92 = arith.constant 0 : index
    %c0_93 = arith.constant 0 : index
    %119 = vector.load %arg5[%c0_90, %c2_91, %c0_92, %c0_93] : memref<2x4x1x8xf32, #tpu.memory_space<vmem>>, vector<1x1x1x8xf32>
    %120 = vector.shape_cast %119 : vector<1x1x1x8xf32> to vector<1x8xf32>
    %121 = vector.broadcast %120 : vector<1x8xf32> to vector<64x8xf32>
    %122 = arith.addf %118, %121 : vector<64x8xf32>
    %c0_94 = arith.constant 0 : index
    %c2_95 = arith.constant 2 : index
    %c0_96 = arith.constant 0 : index
    %c0_97 = arith.constant 0 : index
    %123 = vector.load %arg6[%c0_94, %c2_95, %c0_96, %c0_97] : memref<2x4x32x8xbf16, #tpu.memory_space<vmem>>, vector<1x1x32x8xbf16>
    %124 = vector.shape_cast %123 : vector<1x1x32x8xbf16> to vector<32x8xbf16>
    %cst_98 = arith.constant dense<0.000000e+00> : vector<64x8xf32>
    %125 = tpu.matmul %26, %124, %cst_98 {dimension_numbers = #tpu.dot_dimension_numbers<[1], [0], [0], [1], [0, 0, 1, 1], [], []>} : vector<64x32xbf16>, vector<32x8xbf16>, vector<64x8xf32> -> vector<64x8xf32>
    %c0_99 = arith.constant 0 : index
    %c2_100 = arith.constant 2 : index
    %c0_101 = arith.constant 0 : index
    %c0_102 = arith.constant 0 : index
    %126 = vector.load %arg7[%c0_99, %c2_100, %c0_101, %c0_102] : memref<2x4x1x8xf32, #tpu.memory_space<vmem>>, vector<1x1x1x8xf32>
    %127 = vector.shape_cast %126 : vector<1x1x1x8xf32> to vector<1x8xf32>
    %128 = vector.broadcast %127 : vector<1x8xf32> to vector<64x8xf32>
    %129 = arith.addf %125, %128 : vector<64x8xf32>
    %c0_103 = arith.constant 0 : index
    %c2_104 = arith.constant 2 : index
    %c0_105 = arith.constant 0 : index
    %c0_106 = arith.constant 0 : index
    %130 = vector.load %arg8[%c0_103, %c2_104, %c0_105, %c0_106] : memref<2x4x32x8xbf16, #tpu.memory_space<vmem>>, vector<1x1x32x8xbf16>
    %131 = vector.shape_cast %130 : vector<1x1x32x8xbf16> to vector<32x8xbf16>
    %cst_107 = arith.constant dense<0.000000e+00> : vector<64x8xf32>
    %132 = tpu.matmul %26, %131, %cst_107 {dimension_numbers = #tpu.dot_dimension_numbers<[1], [0], [0], [1], [0, 0, 1, 1], [], []>} : vector<64x32xbf16>, vector<32x8xbf16>, vector<64x8xf32> -> vector<64x8xf32>
    %c0_108 = arith.constant 0 : index
    %c2_109 = arith.constant 2 : index
    %c0_110 = arith.constant 0 : index
    %c0_111 = arith.constant 0 : index
    %133 = vector.load %arg9[%c0_108, %c2_109, %c0_110, %c0_111] : memref<2x4x1x8xf32, #tpu.memory_space<vmem>>, vector<1x1x1x8xf32>
    %134 = vector.shape_cast %133 : vector<1x1x1x8xf32> to vector<1x8xf32>
    %135 = vector.broadcast %134 : vector<1x8xf32> to vector<64x8xf32>
    %136 = arith.addf %132, %135 : vector<64x8xf32>
    %cst_112 = arith.constant 0.353553385 : f32
    %137 = vector.broadcast %cst_112 : f32 to vector<64x8xf32>
    %138 = arith.mulf %122, %137 : vector<64x8xf32>
    %139 = arith.truncf %138 : vector<64x8xf32> to vector<64x8xbf16>
    %140 = arith.truncf %129 : vector<64x8xf32> to vector<64x8xbf16>
    %cst_113 = arith.constant dense<0.000000e+00> : vector<64x64xf32>
    %141 = tpu.matmul %139, %140, %cst_113 {dimension_numbers = #tpu.dot_dimension_numbers<[1], [1], [0], [0], [0, 0, 1, 0], [], []>} : vector<64x8xbf16>, vector<64x8xbf16>, vector<64x64xf32> -> vector<64x64xf32>
    %cst_114 = arith.constant dense<0xFF800000> : vector<64xf32>
    %142 = vector.multi_reduction <maximumf>, %141, %cst_114 [1] : vector<64x64xf32> to vector<64xf32>
    %143 = vector.shape_cast %142 : vector<64xf32> to vector<64x1xf32>
    %144 = vector.broadcast %143 : vector<64x1xf32> to vector<64x64xf32>
    %145 = arith.subf %141, %144 : vector<64x64xf32>
    %146 = math.exp %145 : vector<64x64xf32>
    %cst_115 = arith.constant dense<0.000000e+00> : vector<64xf32>
    %147 = vector.multi_reduction <add>, %146, %cst_115 [1] : vector<64x64xf32> to vector<64xf32>
    %148 = vector.shape_cast %147 : vector<64xf32> to vector<64x1xf32>
    %149 = tpu.reciprocal %148 {approx = true} : vector<64x1xf32> -> vector<64x1xf32>
    %150 = vector.broadcast %149 : vector<64x1xf32> to vector<64x64xf32>
    %151 = arith.mulf %146, %150 : vector<64x64xf32>
    %152 = arith.truncf %151 : vector<64x64xf32> to vector<64x64xbf16>
    %153 = arith.truncf %136 : vector<64x8xf32> to vector<64x8xbf16>
    %cst_116 = arith.constant dense<0.000000e+00> : vector<64x8xf32>
    %154 = tpu.matmul %152, %153, %cst_116 {dimension_numbers = #tpu.dot_dimension_numbers<[1], [0], [0], [1], [0, 0, 1, 1], [], []>} : vector<64x64xbf16>, vector<64x8xbf16>, vector<64x8xf32> -> vector<64x8xf32>
    %155 = arith.truncf %154 : vector<64x8xf32> to vector<64x8xbf16>
    %c0_117 = arith.constant 0 : index
    %c2_118 = arith.constant 2 : index
    %c0_119 = arith.constant 0 : index
    %c0_120 = arith.constant 0 : index
    %156 = vector.load %arg10[%c0_117, %c2_118, %c0_119, %c0_120] : memref<2x4x8x32xbf16, #tpu.memory_space<vmem>>, vector<1x1x8x32xbf16>
    %157 = vector.shape_cast %156 : vector<1x1x8x32xbf16> to vector<8x32xbf16>
    %cst_121 = arith.constant dense<0.000000e+00> : vector<64x32xf32>
    %158 = tpu.matmul %155, %157, %cst_121 {dimension_numbers = #tpu.dot_dimension_numbers<[1], [0], [0], [1], [0, 0, 1, 1], [], []>} : vector<64x8xbf16>, vector<8x32xbf16>, vector<64x32xf32> -> vector<64x32xf32>
    %159 = arith.addf %115, %158 : vector<64x32xf32>
    %c0_122 = arith.constant 0 : index
    %c3 = arith.constant 3 : index
    %c0_123 = arith.constant 0 : index
    %c0_124 = arith.constant 0 : index
    %160 = vector.load %arg4[%c0_122, %c3, %c0_123, %c0_124] : memref<2x4x32x8xbf16, #tpu.memory_space<vmem>>, vector<1x1x32x8xbf16>
    %161 = vector.shape_cast %160 : vector<1x1x32x8xbf16> to vector<32x8xbf16>
    %cst_125 = arith.constant dense<0.000000e+00> : vector<64x8xf32>
    %162 = tpu.matmul %26, %161, %cst_125 {dimension_numbers = #tpu.dot_dimension_numbers<[1], [0], [0], [1], [0, 0, 1, 1], [], []>} : vector<64x32xbf16>, vector<32x8xbf16>, vector<64x8xf32> -> vector<64x8xf32>
    %c0_126 = arith.constant 0 : index
    %c3_127 = arith.constant 3 : index
    %c0_128 = arith.constant 0 : index
    %c0_129 = arith.constant 0 : index
    %163 = vector.load %arg5[%c0_126, %c3_127, %c0_128, %c0_129] : memref<2x4x1x8xf32, #tpu.memory_space<vmem>>, vector<1x1x1x8xf32>
    %164 = vector.shape_cast %163 : vector<1x1x1x8xf32> to vector<1x8xf32>
    %165 = vector.broadcast %164 : vector<1x8xf32> to vector<64x8xf32>
    %166 = arith.addf %162, %165 : vector<64x8xf32>
    %c0_130 = arith.constant 0 : index
    %c3_131 = arith.constant 3 : index
    %c0_132 = arith.constant 0 : index
    %c0_133 = arith.constant 0 : index
    %167 = vector.load %arg6[%c0_130, %c3_131, %c0_132, %c0_133] : memref<2x4x32x8xbf16, #tpu.memory_space<vmem>>, vector<1x1x32x8xbf16>
    %168 = vector.shape_cast %167 : vector<1x1x32x8xbf16> to vector<32x8xbf16>
    %cst_134 = arith.constant dense<0.000000e+00> : vector<64x8xf32>
    %169 = tpu.matmul %26, %168, %cst_134 {dimension_numbers = #tpu.dot_dimension_numbers<[1], [0], [0], [1], [0, 0, 1, 1], [], []>} : vector<64x32xbf16>, vector<32x8xbf16>, vector<64x8xf32> -> vector<64x8xf32>
    %c0_135 = arith.constant 0 : index
    %c3_136 = arith.constant 3 : index
    %c0_137 = arith.constant 0 : index
    %c0_138 = arith.constant 0 : index
    %170 = vector.load %arg7[%c0_135, %c3_136, %c0_137, %c0_138] : memref<2x4x1x8xf32, #tpu.memory_space<vmem>>, vector<1x1x1x8xf32>
    %171 = vector.shape_cast %170 : vector<1x1x1x8xf32> to vector<1x8xf32>
    %172 = vector.broadcast %171 : vector<1x8xf32> to vector<64x8xf32>
    %173 = arith.addf %169, %172 : vector<64x8xf32>
    %c0_139 = arith.constant 0 : index
    %c3_140 = arith.constant 3 : index
    %c0_141 = arith.constant 0 : index
    %c0_142 = arith.constant 0 : index
    %174 = vector.load %arg8[%c0_139, %c3_140, %c0_141, %c0_142] : memref<2x4x32x8xbf16, #tpu.memory_space<vmem>>, vector<1x1x32x8xbf16>
    %175 = vector.shape_cast %174 : vector<1x1x32x8xbf16> to vector<32x8xbf16>
    %cst_143 = arith.constant dense<0.000000e+00> : vector<64x8xf32>
    %176 = tpu.matmul %26, %175, %cst_143 {dimension_numbers = #tpu.dot_dimension_numbers<[1], [0], [0], [1], [0, 0, 1, 1], [], []>} : vector<64x32xbf16>, vector<32x8xbf16>, vector<64x8xf32> -> vector<64x8xf32>
    %c0_144 = arith.constant 0 : index
    %c3_145 = arith.constant 3 : index
    %c0_146 = arith.constant 0 : index
    %c0_147 = arith.constant 0 : index
    %177 = vector.load %arg9[%c0_144, %c3_145, %c0_146, %c0_147] : memref<2x4x1x8xf32, #tpu.memory_space<vmem>>, vector<1x1x1x8xf32>
    %178 = vector.shape_cast %177 : vector<1x1x1x8xf32> to vector<1x8xf32>
    %179 = vector.broadcast %178 : vector<1x8xf32> to vector<64x8xf32>
    %180 = arith.addf %176, %179 : vector<64x8xf32>
    %cst_148 = arith.constant 0.353553385 : f32
    %181 = vector.broadcast %cst_148 : f32 to vector<64x8xf32>
    %182 = arith.mulf %166, %181 : vector<64x8xf32>
    %183 = arith.truncf %182 : vector<64x8xf32> to vector<64x8xbf16>
    %184 = arith.truncf %173 : vector<64x8xf32> to vector<64x8xbf16>
    %cst_149 = arith.constant dense<0.000000e+00> : vector<64x64xf32>
    %185 = tpu.matmul %183, %184, %cst_149 {dimension_numbers = #tpu.dot_dimension_numbers<[1], [1], [0], [0], [0, 0, 1, 0], [], []>} : vector<64x8xbf16>, vector<64x8xbf16>, vector<64x64xf32> -> vector<64x64xf32>
    %cst_150 = arith.constant dense<0xFF800000> : vector<64xf32>
    %186 = vector.multi_reduction <maximumf>, %185, %cst_150 [1] : vector<64x64xf32> to vector<64xf32>
    %187 = vector.shape_cast %186 : vector<64xf32> to vector<64x1xf32>
    %188 = vector.broadcast %187 : vector<64x1xf32> to vector<64x64xf32>
    %189 = arith.subf %185, %188 : vector<64x64xf32>
    %190 = math.exp %189 : vector<64x64xf32>
    %cst_151 = arith.constant dense<0.000000e+00> : vector<64xf32>
    %191 = vector.multi_reduction <add>, %190, %cst_151 [1] : vector<64x64xf32> to vector<64xf32>
    %192 = vector.shape_cast %191 : vector<64xf32> to vector<64x1xf32>
    %193 = tpu.reciprocal %192 {approx = true} : vector<64x1xf32> -> vector<64x1xf32>
    %194 = vector.broadcast %193 : vector<64x1xf32> to vector<64x64xf32>
    %195 = arith.mulf %190, %194 : vector<64x64xf32>
    %196 = arith.truncf %195 : vector<64x64xf32> to vector<64x64xbf16>
    %197 = arith.truncf %180 : vector<64x8xf32> to vector<64x8xbf16>
    %cst_152 = arith.constant dense<0.000000e+00> : vector<64x8xf32>
    %198 = tpu.matmul %196, %197, %cst_152 {dimension_numbers = #tpu.dot_dimension_numbers<[1], [0], [0], [1], [0, 0, 1, 1], [], []>} : vector<64x64xbf16>, vector<64x8xbf16>, vector<64x8xf32> -> vector<64x8xf32>
    %199 = arith.truncf %198 : vector<64x8xf32> to vector<64x8xbf16>
    %c0_153 = arith.constant 0 : index
    %c3_154 = arith.constant 3 : index
    %c0_155 = arith.constant 0 : index
    %c0_156 = arith.constant 0 : index
    %200 = vector.load %arg10[%c0_153, %c3_154, %c0_155, %c0_156] : memref<2x4x8x32xbf16, #tpu.memory_space<vmem>>, vector<1x1x8x32xbf16>
    %201 = vector.shape_cast %200 : vector<1x1x8x32xbf16> to vector<8x32xbf16>
    %cst_157 = arith.constant dense<0.000000e+00> : vector<64x32xf32>
    %202 = tpu.matmul %199, %201, %cst_157 {dimension_numbers = #tpu.dot_dimension_numbers<[1], [0], [0], [1], [0, 0, 1, 1], [], []>} : vector<64x8xbf16>, vector<8x32xbf16>, vector<64x32xf32> -> vector<64x32xf32>
    %203 = arith.addf %159, %202 : vector<64x32xf32>
    %204 = arith.addf %1, %203 : vector<64x32xf32>
    %c0_158 = arith.constant 0 : index
    %c0_159 = arith.constant 0 : index
    %c0_160 = arith.constant 0 : index
    %205 = vector.load %arg11[%c0_158, %c0_159, %c0_160] : memref<2x1x32xf32, #tpu.memory_space<vmem>>, vector<1x1x32xf32>
    %206 = vector.shape_cast %205 : vector<1x1x32xf32> to vector<1x32xf32>
    %207 = vector.broadcast %206 : vector<1x32xf32> to vector<64x32xf32>
    %208 = arith.addf %204, %207 : vector<64x32xf32>
    %c0_161 = arith.constant 0 : index
    %c0_162 = arith.constant 0 : index
    %c0_163 = arith.constant 0 : index
    %209 = vector.load %arg12[%c0_161, %c0_162, %c0_163] : memref<2x1x32xf32, #tpu.memory_space<vmem>>, vector<1x1x32xf32>
    %210 = vector.shape_cast %209 : vector<1x1x32xf32> to vector<1x32xf32>
    %c0_164 = arith.constant 0 : index
    %c0_165 = arith.constant 0 : index
    %c0_166 = arith.constant 0 : index
    %211 = vector.load %arg13[%c0_164, %c0_165, %c0_166] : memref<2x1x32xf32, #tpu.memory_space<vmem>>, vector<1x1x32xf32>
    %212 = vector.shape_cast %211 : vector<1x1x32xf32> to vector<1x32xf32>
    %cst_167 = arith.constant dense<0.000000e+00> : vector<64xf32>
    %213 = vector.multi_reduction <add>, %208, %cst_167 [1] : vector<64x32xf32> to vector<64xf32>
    %214 = vector.shape_cast %213 : vector<64xf32> to vector<64x1xf32>
    %cst_168 = arith.constant 3.200000e+01 : f32
    %215 = vector.broadcast %cst_168 : f32 to vector<64x1xf32>
    %216 = arith.divf %214, %215 : vector<64x1xf32>
    %217 = vector.broadcast %216 : vector<64x1xf32> to vector<64x32xf32>
    %218 = arith.subf %208, %217 : vector<64x32xf32>
    %219 = arith.mulf %218, %218 : vector<64x32xf32>
    %cst_169 = arith.constant dense<0.000000e+00> : vector<64xf32>
    %220 = vector.multi_reduction <add>, %219, %cst_169 [1] : vector<64x32xf32> to vector<64xf32>
    %221 = vector.shape_cast %220 : vector<64xf32> to vector<64x1xf32>
    %cst_170 = arith.constant 3.200000e+01 : f32
    %222 = vector.broadcast %cst_170 : f32 to vector<64x1xf32>
    %223 = arith.divf %221, %222 : vector<64x1xf32>
    %cst_171 = arith.constant 9.99999974E-6 : f32
    %224 = vector.broadcast %cst_171 : f32 to vector<64x1xf32>
    %225 = arith.addf %223, %224 : vector<64x1xf32>
    %226 = math.rsqrt %225 : vector<64x1xf32>
    %227 = vector.broadcast %226 : vector<64x1xf32> to vector<64x32xf32>
    %228 = arith.mulf %218, %227 : vector<64x32xf32>
    %229 = vector.broadcast %210 : vector<1x32xf32> to vector<64x32xf32>
    %230 = arith.mulf %228, %229 : vector<64x32xf32>
    %231 = vector.broadcast %212 : vector<1x32xf32> to vector<64x32xf32>
    %232 = arith.addf %230, %231 : vector<64x32xf32>
    %233 = arith.truncf %232 : vector<64x32xf32> to vector<64x32xbf16>
    %c0_172 = arith.constant 0 : index
    %c0_173 = arith.constant 0 : index
    %c0_174 = arith.constant 0 : index
    %234 = vector.load %arg14[%c0_172, %c0_173, %c0_174] : memref<2x32x64xbf16, #tpu.memory_space<vmem>>, vector<1x32x64xbf16>
    %235 = vector.shape_cast %234 : vector<1x32x64xbf16> to vector<32x64xbf16>
    %cst_175 = arith.constant dense<0.000000e+00> : vector<64x64xf32>
    %236 = tpu.matmul %233, %235, %cst_175 {dimension_numbers = #tpu.dot_dimension_numbers<[1], [0], [0], [1], [0, 0, 1, 1], [], []>} : vector<64x32xbf16>, vector<32x64xbf16>, vector<64x64xf32> -> vector<64x64xf32>
    %c0_176 = arith.constant 0 : index
    %c0_177 = arith.constant 0 : index
    %c0_178 = arith.constant 0 : index
    %237 = vector.load %arg15[%c0_176, %c0_177, %c0_178] : memref<2x1x64xf32, #tpu.memory_space<vmem>>, vector<1x1x64xf32>
    %238 = vector.shape_cast %237 : vector<1x1x64xf32> to vector<1x64xf32>
    %239 = vector.broadcast %238 : vector<1x64xf32> to vector<64x64xf32>
    %240 = arith.addf %236, %239 : vector<64x64xf32>
    %241 = arith.negf %240 : vector<64x64xf32>
    %242 = math.exp %241 : vector<64x64xf32>
    %cst_179 = arith.constant 1.000000e+00 : f32
    %243 = vector.broadcast %cst_179 : f32 to vector<64x64xf32>
    %244 = arith.addf %243, %242 : vector<64x64xf32>
    %245 = arith.divf %243, %244 : vector<64x64xf32>
    %246 = arith.mulf %240, %245 : vector<64x64xf32>
    %247 = arith.truncf %246 : vector<64x64xf32> to vector<64x64xbf16>
    %c0_180 = arith.constant 0 : index
    %c0_181 = arith.constant 0 : index
    %c0_182 = arith.constant 0 : index
    %248 = vector.load %arg16[%c0_180, %c0_181, %c0_182] : memref<2x64x32xbf16, #tpu.memory_space<vmem>>, vector<1x64x32xbf16>
    %249 = vector.shape_cast %248 : vector<1x64x32xbf16> to vector<64x32xbf16>
    %cst_183 = arith.constant dense<0.000000e+00> : vector<64x32xf32>
    %250 = tpu.matmul %247, %249, %cst_183 {dimension_numbers = #tpu.dot_dimension_numbers<[1], [0], [0], [1], [0, 0, 1, 1], [], []>} : vector<64x64xbf16>, vector<64x32xbf16>, vector<64x32xf32> -> vector<64x32xf32>
    %c0_184 = arith.constant 0 : index
    %c0_185 = arith.constant 0 : index
    %c0_186 = arith.constant 0 : index
    %251 = vector.load %arg17[%c0_184, %c0_185, %c0_186] : memref<2x1x32xf32, #tpu.memory_space<vmem>>, vector<1x1x32xf32>
    %252 = vector.shape_cast %251 : vector<1x1x32xf32> to vector<1x32xf32>
    %253 = vector.broadcast %252 : vector<1x32xf32> to vector<64x32xf32>
    %254 = arith.addf %250, %253 : vector<64x32xf32>
    %255 = arith.addf %208, %254 : vector<64x32xf32>
    %c1_187 = arith.constant 1 : index
    %c0_188 = arith.constant 0 : index
    %c0_189 = arith.constant 0 : index
    %256 = vector.load %arg2[%c1_187, %c0_188, %c0_189] : memref<2x1x32xf32, #tpu.memory_space<vmem>>, vector<1x1x32xf32>
    %257 = vector.shape_cast %256 : vector<1x1x32xf32> to vector<1x32xf32>
    %c1_190 = arith.constant 1 : index
    %c0_191 = arith.constant 0 : index
    %c0_192 = arith.constant 0 : index
    %258 = vector.load %arg3[%c1_190, %c0_191, %c0_192] : memref<2x1x32xf32, #tpu.memory_space<vmem>>, vector<1x1x32xf32>
    %259 = vector.shape_cast %258 : vector<1x1x32xf32> to vector<1x32xf32>
    %cst_193 = arith.constant dense<0.000000e+00> : vector<64xf32>
    %260 = vector.multi_reduction <add>, %255, %cst_193 [1] : vector<64x32xf32> to vector<64xf32>
    %261 = vector.shape_cast %260 : vector<64xf32> to vector<64x1xf32>
    %cst_194 = arith.constant 3.200000e+01 : f32
    %262 = vector.broadcast %cst_194 : f32 to vector<64x1xf32>
    %263 = arith.divf %261, %262 : vector<64x1xf32>
    %264 = vector.broadcast %263 : vector<64x1xf32> to vector<64x32xf32>
    %265 = arith.subf %255, %264 : vector<64x32xf32>
    %266 = arith.mulf %265, %265 : vector<64x32xf32>
    %cst_195 = arith.constant dense<0.000000e+00> : vector<64xf32>
    %267 = vector.multi_reduction <add>, %266, %cst_195 [1] : vector<64x32xf32> to vector<64xf32>
    %268 = vector.shape_cast %267 : vector<64xf32> to vector<64x1xf32>
    %cst_196 = arith.constant 3.200000e+01 : f32
    %269 = vector.broadcast %cst_196 : f32 to vector<64x1xf32>
    %270 = arith.divf %268, %269 : vector<64x1xf32>
    %cst_197 = arith.constant 9.99999974E-6 : f32
    %271 = vector.broadcast %cst_197 : f32 to vector<64x1xf32>
    %272 = arith.addf %270, %271 : vector<64x1xf32>
    %273 = math.rsqrt %272 : vector<64x1xf32>
    %274 = vector.broadcast %273 : vector<64x1xf32> to vector<64x32xf32>
    %275 = arith.mulf %265, %274 : vector<64x32xf32>
    %276 = vector.broadcast %257 : vector<1x32xf32> to vector<64x32xf32>
    %277 = arith.mulf %275, %276 : vector<64x32xf32>
    %278 = vector.broadcast %259 : vector<1x32xf32> to vector<64x32xf32>
    %279 = arith.addf %277, %278 : vector<64x32xf32>
    %280 = arith.truncf %279 : vector<64x32xf32> to vector<64x32xbf16>
    %cst_198 = arith.constant 0.000000e+00 : f32
    %281 = vector.broadcast %cst_198 : f32 to vector<64x32xf32>
    %c1_199 = arith.constant 1 : index
    %c0_200 = arith.constant 0 : index
    %c0_201 = arith.constant 0 : index
    %c0_202 = arith.constant 0 : index
    %282 = vector.load %arg4[%c1_199, %c0_200, %c0_201, %c0_202] : memref<2x4x32x8xbf16, #tpu.memory_space<vmem>>, vector<1x1x32x8xbf16>
    %283 = vector.shape_cast %282 : vector<1x1x32x8xbf16> to vector<32x8xbf16>
    %cst_203 = arith.constant dense<0.000000e+00> : vector<64x8xf32>
    %284 = tpu.matmul %280, %283, %cst_203 {dimension_numbers = #tpu.dot_dimension_numbers<[1], [0], [0], [1], [0, 0, 1, 1], [], []>} : vector<64x32xbf16>, vector<32x8xbf16>, vector<64x8xf32> -> vector<64x8xf32>
    %c1_204 = arith.constant 1 : index
    %c0_205 = arith.constant 0 : index
    %c0_206 = arith.constant 0 : index
    %c0_207 = arith.constant 0 : index
    %285 = vector.load %arg5[%c1_204, %c0_205, %c0_206, %c0_207] : memref<2x4x1x8xf32, #tpu.memory_space<vmem>>, vector<1x1x1x8xf32>
    %286 = vector.shape_cast %285 : vector<1x1x1x8xf32> to vector<1x8xf32>
    %287 = vector.broadcast %286 : vector<1x8xf32> to vector<64x8xf32>
    %288 = arith.addf %284, %287 : vector<64x8xf32>
    %c1_208 = arith.constant 1 : index
    %c0_209 = arith.constant 0 : index
    %c0_210 = arith.constant 0 : index
    %c0_211 = arith.constant 0 : index
    %289 = vector.load %arg6[%c1_208, %c0_209, %c0_210, %c0_211] : memref<2x4x32x8xbf16, #tpu.memory_space<vmem>>, vector<1x1x32x8xbf16>
    %290 = vector.shape_cast %289 : vector<1x1x32x8xbf16> to vector<32x8xbf16>
    %cst_212 = arith.constant dense<0.000000e+00> : vector<64x8xf32>
    %291 = tpu.matmul %280, %290, %cst_212 {dimension_numbers = #tpu.dot_dimension_numbers<[1], [0], [0], [1], [0, 0, 1, 1], [], []>} : vector<64x32xbf16>, vector<32x8xbf16>, vector<64x8xf32> -> vector<64x8xf32>
    %c1_213 = arith.constant 1 : index
    %c0_214 = arith.constant 0 : index
    %c0_215 = arith.constant 0 : index
    %c0_216 = arith.constant 0 : index
    %292 = vector.load %arg7[%c1_213, %c0_214, %c0_215, %c0_216] : memref<2x4x1x8xf32, #tpu.memory_space<vmem>>, vector<1x1x1x8xf32>
    %293 = vector.shape_cast %292 : vector<1x1x1x8xf32> to vector<1x8xf32>
    %294 = vector.broadcast %293 : vector<1x8xf32> to vector<64x8xf32>
    %295 = arith.addf %291, %294 : vector<64x8xf32>
    %c1_217 = arith.constant 1 : index
    %c0_218 = arith.constant 0 : index
    %c0_219 = arith.constant 0 : index
    %c0_220 = arith.constant 0 : index
    %296 = vector.load %arg8[%c1_217, %c0_218, %c0_219, %c0_220] : memref<2x4x32x8xbf16, #tpu.memory_space<vmem>>, vector<1x1x32x8xbf16>
    %297 = vector.shape_cast %296 : vector<1x1x32x8xbf16> to vector<32x8xbf16>
    %cst_221 = arith.constant dense<0.000000e+00> : vector<64x8xf32>
    %298 = tpu.matmul %280, %297, %cst_221 {dimension_numbers = #tpu.dot_dimension_numbers<[1], [0], [0], [1], [0, 0, 1, 1], [], []>} : vector<64x32xbf16>, vector<32x8xbf16>, vector<64x8xf32> -> vector<64x8xf32>
    %c1_222 = arith.constant 1 : index
    %c0_223 = arith.constant 0 : index
    %c0_224 = arith.constant 0 : index
    %c0_225 = arith.constant 0 : index
    %299 = vector.load %arg9[%c1_222, %c0_223, %c0_224, %c0_225] : memref<2x4x1x8xf32, #tpu.memory_space<vmem>>, vector<1x1x1x8xf32>
    %300 = vector.shape_cast %299 : vector<1x1x1x8xf32> to vector<1x8xf32>
    %301 = vector.broadcast %300 : vector<1x8xf32> to vector<64x8xf32>
    %302 = arith.addf %298, %301 : vector<64x8xf32>
    %cst_226 = arith.constant 0.353553385 : f32
    %303 = vector.broadcast %cst_226 : f32 to vector<64x8xf32>
    %304 = arith.mulf %288, %303 : vector<64x8xf32>
    %305 = arith.truncf %304 : vector<64x8xf32> to vector<64x8xbf16>
    %306 = arith.truncf %295 : vector<64x8xf32> to vector<64x8xbf16>
    %cst_227 = arith.constant dense<0.000000e+00> : vector<64x64xf32>
    %307 = tpu.matmul %305, %306, %cst_227 {dimension_numbers = #tpu.dot_dimension_numbers<[1], [1], [0], [0], [0, 0, 1, 0], [], []>} : vector<64x8xbf16>, vector<64x8xbf16>, vector<64x64xf32> -> vector<64x64xf32>
    %cst_228 = arith.constant dense<0xFF800000> : vector<64xf32>
    %308 = vector.multi_reduction <maximumf>, %307, %cst_228 [1] : vector<64x64xf32> to vector<64xf32>
    %309 = vector.shape_cast %308 : vector<64xf32> to vector<64x1xf32>
    %310 = vector.broadcast %309 : vector<64x1xf32> to vector<64x64xf32>
    %311 = arith.subf %307, %310 : vector<64x64xf32>
    %312 = math.exp %311 : vector<64x64xf32>
    %cst_229 = arith.constant dense<0.000000e+00> : vector<64xf32>
    %313 = vector.multi_reduction <add>, %312, %cst_229 [1] : vector<64x64xf32> to vector<64xf32>
    %314 = vector.shape_cast %313 : vector<64xf32> to vector<64x1xf32>
    %315 = tpu.reciprocal %314 {approx = true} : vector<64x1xf32> -> vector<64x1xf32>
    %316 = vector.broadcast %315 : vector<64x1xf32> to vector<64x64xf32>
    %317 = arith.mulf %312, %316 : vector<64x64xf32>
    %318 = arith.truncf %317 : vector<64x64xf32> to vector<64x64xbf16>
    %319 = arith.truncf %302 : vector<64x8xf32> to vector<64x8xbf16>
    %cst_230 = arith.constant dense<0.000000e+00> : vector<64x8xf32>
    %320 = tpu.matmul %318, %319, %cst_230 {dimension_numbers = #tpu.dot_dimension_numbers<[1], [0], [0], [1], [0, 0, 1, 1], [], []>} : vector<64x64xbf16>, vector<64x8xbf16>, vector<64x8xf32> -> vector<64x8xf32>
    %321 = arith.truncf %320 : vector<64x8xf32> to vector<64x8xbf16>
    %c1_231 = arith.constant 1 : index
    %c0_232 = arith.constant 0 : index
    %c0_233 = arith.constant 0 : index
    %c0_234 = arith.constant 0 : index
    %322 = vector.load %arg10[%c1_231, %c0_232, %c0_233, %c0_234] : memref<2x4x8x32xbf16, #tpu.memory_space<vmem>>, vector<1x1x8x32xbf16>
    %323 = vector.shape_cast %322 : vector<1x1x8x32xbf16> to vector<8x32xbf16>
    %cst_235 = arith.constant dense<0.000000e+00> : vector<64x32xf32>
    %324 = tpu.matmul %321, %323, %cst_235 {dimension_numbers = #tpu.dot_dimension_numbers<[1], [0], [0], [1], [0, 0, 1, 1], [], []>} : vector<64x8xbf16>, vector<8x32xbf16>, vector<64x32xf32> -> vector<64x32xf32>
    %325 = arith.addf %281, %324 : vector<64x32xf32>
    %c1_236 = arith.constant 1 : index
    %c1_237 = arith.constant 1 : index
    %c0_238 = arith.constant 0 : index
    %c0_239 = arith.constant 0 : index
    %326 = vector.load %arg4[%c1_236, %c1_237, %c0_238, %c0_239] : memref<2x4x32x8xbf16, #tpu.memory_space<vmem>>, vector<1x1x32x8xbf16>
    %327 = vector.shape_cast %326 : vector<1x1x32x8xbf16> to vector<32x8xbf16>
    %cst_240 = arith.constant dense<0.000000e+00> : vector<64x8xf32>
    %328 = tpu.matmul %280, %327, %cst_240 {dimension_numbers = #tpu.dot_dimension_numbers<[1], [0], [0], [1], [0, 0, 1, 1], [], []>} : vector<64x32xbf16>, vector<32x8xbf16>, vector<64x8xf32> -> vector<64x8xf32>
    %c1_241 = arith.constant 1 : index
    %c1_242 = arith.constant 1 : index
    %c0_243 = arith.constant 0 : index
    %c0_244 = arith.constant 0 : index
    %329 = vector.load %arg5[%c1_241, %c1_242, %c0_243, %c0_244] : memref<2x4x1x8xf32, #tpu.memory_space<vmem>>, vector<1x1x1x8xf32>
    %330 = vector.shape_cast %329 : vector<1x1x1x8xf32> to vector<1x8xf32>
    %331 = vector.broadcast %330 : vector<1x8xf32> to vector<64x8xf32>
    %332 = arith.addf %328, %331 : vector<64x8xf32>
    %c1_245 = arith.constant 1 : index
    %c1_246 = arith.constant 1 : index
    %c0_247 = arith.constant 0 : index
    %c0_248 = arith.constant 0 : index
    %333 = vector.load %arg6[%c1_245, %c1_246, %c0_247, %c0_248] : memref<2x4x32x8xbf16, #tpu.memory_space<vmem>>, vector<1x1x32x8xbf16>
    %334 = vector.shape_cast %333 : vector<1x1x32x8xbf16> to vector<32x8xbf16>
    %cst_249 = arith.constant dense<0.000000e+00> : vector<64x8xf32>
    %335 = tpu.matmul %280, %334, %cst_249 {dimension_numbers = #tpu.dot_dimension_numbers<[1], [0], [0], [1], [0, 0, 1, 1], [], []>} : vector<64x32xbf16>, vector<32x8xbf16>, vector<64x8xf32> -> vector<64x8xf32>
    %c1_250 = arith.constant 1 : index
    %c1_251 = arith.constant 1 : index
    %c0_252 = arith.constant 0 : index
    %c0_253 = arith.constant 0 : index
    %336 = vector.load %arg7[%c1_250, %c1_251, %c0_252, %c0_253] : memref<2x4x1x8xf32, #tpu.memory_space<vmem>>, vector<1x1x1x8xf32>
    %337 = vector.shape_cast %336 : vector<1x1x1x8xf32> to vector<1x8xf32>
    %338 = vector.broadcast %337 : vector<1x8xf32> to vector<64x8xf32>
    %339 = arith.addf %335, %338 : vector<64x8xf32>
    %c1_254 = arith.constant 1 : index
    %c1_255 = arith.constant 1 : index
    %c0_256 = arith.constant 0 : index
    %c0_257 = arith.constant 0 : index
    %340 = vector.load %arg8[%c1_254, %c1_255, %c0_256, %c0_257] : memref<2x4x32x8xbf16, #tpu.memory_space<vmem>>, vector<1x1x32x8xbf16>
    %341 = vector.shape_cast %340 : vector<1x1x32x8xbf16> to vector<32x8xbf16>
    %cst_258 = arith.constant dense<0.000000e+00> : vector<64x8xf32>
    %342 = tpu.matmul %280, %341, %cst_258 {dimension_numbers = #tpu.dot_dimension_numbers<[1], [0], [0], [1], [0, 0, 1, 1], [], []>} : vector<64x32xbf16>, vector<32x8xbf16>, vector<64x8xf32> -> vector<64x8xf32>
    %c1_259 = arith.constant 1 : index
    %c1_260 = arith.constant 1 : index
    %c0_261 = arith.constant 0 : index
    %c0_262 = arith.constant 0 : index
    %343 = vector.load %arg9[%c1_259, %c1_260, %c0_261, %c0_262] : memref<2x4x1x8xf32, #tpu.memory_space<vmem>>, vector<1x1x1x8xf32>
    %344 = vector.shape_cast %343 : vector<1x1x1x8xf32> to vector<1x8xf32>
    %345 = vector.broadcast %344 : vector<1x8xf32> to vector<64x8xf32>
    %346 = arith.addf %342, %345 : vector<64x8xf32>
    %cst_263 = arith.constant 0.353553385 : f32
    %347 = vector.broadcast %cst_263 : f32 to vector<64x8xf32>
    %348 = arith.mulf %332, %347 : vector<64x8xf32>
    %349 = arith.truncf %348 : vector<64x8xf32> to vector<64x8xbf16>
    %350 = arith.truncf %339 : vector<64x8xf32> to vector<64x8xbf16>
    %cst_264 = arith.constant dense<0.000000e+00> : vector<64x64xf32>
    %351 = tpu.matmul %349, %350, %cst_264 {dimension_numbers = #tpu.dot_dimension_numbers<[1], [1], [0], [0], [0, 0, 1, 0], [], []>} : vector<64x8xbf16>, vector<64x8xbf16>, vector<64x64xf32> -> vector<64x64xf32>
    %cst_265 = arith.constant dense<0xFF800000> : vector<64xf32>
    %352 = vector.multi_reduction <maximumf>, %351, %cst_265 [1] : vector<64x64xf32> to vector<64xf32>
    %353 = vector.shape_cast %352 : vector<64xf32> to vector<64x1xf32>
    %354 = vector.broadcast %353 : vector<64x1xf32> to vector<64x64xf32>
    %355 = arith.subf %351, %354 : vector<64x64xf32>
    %356 = math.exp %355 : vector<64x64xf32>
    %cst_266 = arith.constant dense<0.000000e+00> : vector<64xf32>
    %357 = vector.multi_reduction <add>, %356, %cst_266 [1] : vector<64x64xf32> to vector<64xf32>
    %358 = vector.shape_cast %357 : vector<64xf32> to vector<64x1xf32>
    %359 = tpu.reciprocal %358 {approx = true} : vector<64x1xf32> -> vector<64x1xf32>
    %360 = vector.broadcast %359 : vector<64x1xf32> to vector<64x64xf32>
    %361 = arith.mulf %356, %360 : vector<64x64xf32>
    %362 = arith.truncf %361 : vector<64x64xf32> to vector<64x64xbf16>
    %363 = arith.truncf %346 : vector<64x8xf32> to vector<64x8xbf16>
    %cst_267 = arith.constant dense<0.000000e+00> : vector<64x8xf32>
    %364 = tpu.matmul %362, %363, %cst_267 {dimension_numbers = #tpu.dot_dimension_numbers<[1], [0], [0], [1], [0, 0, 1, 1], [], []>} : vector<64x64xbf16>, vector<64x8xbf16>, vector<64x8xf32> -> vector<64x8xf32>
    %365 = arith.truncf %364 : vector<64x8xf32> to vector<64x8xbf16>
    %c1_268 = arith.constant 1 : index
    %c1_269 = arith.constant 1 : index
    %c0_270 = arith.constant 0 : index
    %c0_271 = arith.constant 0 : index
    %366 = vector.load %arg10[%c1_268, %c1_269, %c0_270, %c0_271] : memref<2x4x8x32xbf16, #tpu.memory_space<vmem>>, vector<1x1x8x32xbf16>
    %367 = vector.shape_cast %366 : vector<1x1x8x32xbf16> to vector<8x32xbf16>
    %cst_272 = arith.constant dense<0.000000e+00> : vector<64x32xf32>
    %368 = tpu.matmul %365, %367, %cst_272 {dimension_numbers = #tpu.dot_dimension_numbers<[1], [0], [0], [1], [0, 0, 1, 1], [], []>} : vector<64x8xbf16>, vector<8x32xbf16>, vector<64x32xf32> -> vector<64x32xf32>
    %369 = arith.addf %325, %368 : vector<64x32xf32>
    %c1_273 = arith.constant 1 : index
    %c2_274 = arith.constant 2 : index
    %c0_275 = arith.constant 0 : index
    %c0_276 = arith.constant 0 : index
    %370 = vector.load %arg4[%c1_273, %c2_274, %c0_275, %c0_276] : memref<2x4x32x8xbf16, #tpu.memory_space<vmem>>, vector<1x1x32x8xbf16>
    %371 = vector.shape_cast %370 : vector<1x1x32x8xbf16> to vector<32x8xbf16>
    %cst_277 = arith.constant dense<0.000000e+00> : vector<64x8xf32>
    %372 = tpu.matmul %280, %371, %cst_277 {dimension_numbers = #tpu.dot_dimension_numbers<[1], [0], [0], [1], [0, 0, 1, 1], [], []>} : vector<64x32xbf16>, vector<32x8xbf16>, vector<64x8xf32> -> vector<64x8xf32>
    %c1_278 = arith.constant 1 : index
    %c2_279 = arith.constant 2 : index
    %c0_280 = arith.constant 0 : index
    %c0_281 = arith.constant 0 : index
    %373 = vector.load %arg5[%c1_278, %c2_279, %c0_280, %c0_281] : memref<2x4x1x8xf32, #tpu.memory_space<vmem>>, vector<1x1x1x8xf32>
    %374 = vector.shape_cast %373 : vector<1x1x1x8xf32> to vector<1x8xf32>
    %375 = vector.broadcast %374 : vector<1x8xf32> to vector<64x8xf32>
    %376 = arith.addf %372, %375 : vector<64x8xf32>
    %c1_282 = arith.constant 1 : index
    %c2_283 = arith.constant 2 : index
    %c0_284 = arith.constant 0 : index
    %c0_285 = arith.constant 0 : index
    %377 = vector.load %arg6[%c1_282, %c2_283, %c0_284, %c0_285] : memref<2x4x32x8xbf16, #tpu.memory_space<vmem>>, vector<1x1x32x8xbf16>
    %378 = vector.shape_cast %377 : vector<1x1x32x8xbf16> to vector<32x8xbf16>
    %cst_286 = arith.constant dense<0.000000e+00> : vector<64x8xf32>
    %379 = tpu.matmul %280, %378, %cst_286 {dimension_numbers = #tpu.dot_dimension_numbers<[1], [0], [0], [1], [0, 0, 1, 1], [], []>} : vector<64x32xbf16>, vector<32x8xbf16>, vector<64x8xf32> -> vector<64x8xf32>
    %c1_287 = arith.constant 1 : index
    %c2_288 = arith.constant 2 : index
    %c0_289 = arith.constant 0 : index
    %c0_290 = arith.constant 0 : index
    %380 = vector.load %arg7[%c1_287, %c2_288, %c0_289, %c0_290] : memref<2x4x1x8xf32, #tpu.memory_space<vmem>>, vector<1x1x1x8xf32>
    %381 = vector.shape_cast %380 : vector<1x1x1x8xf32> to vector<1x8xf32>
    %382 = vector.broadcast %381 : vector<1x8xf32> to vector<64x8xf32>
    %383 = arith.addf %379, %382 : vector<64x8xf32>
    %c1_291 = arith.constant 1 : index
    %c2_292 = arith.constant 2 : index
    %c0_293 = arith.constant 0 : index
    %c0_294 = arith.constant 0 : index
    %384 = vector.load %arg8[%c1_291, %c2_292, %c0_293, %c0_294] : memref<2x4x32x8xbf16, #tpu.memory_space<vmem>>, vector<1x1x32x8xbf16>
    %385 = vector.shape_cast %384 : vector<1x1x32x8xbf16> to vector<32x8xbf16>
    %cst_295 = arith.constant dense<0.000000e+00> : vector<64x8xf32>
    %386 = tpu.matmul %280, %385, %cst_295 {dimension_numbers = #tpu.dot_dimension_numbers<[1], [0], [0], [1], [0, 0, 1, 1], [], []>} : vector<64x32xbf16>, vector<32x8xbf16>, vector<64x8xf32> -> vector<64x8xf32>
    %c1_296 = arith.constant 1 : index
    %c2_297 = arith.constant 2 : index
    %c0_298 = arith.constant 0 : index
    %c0_299 = arith.constant 0 : index
    %387 = vector.load %arg9[%c1_296, %c2_297, %c0_298, %c0_299] : memref<2x4x1x8xf32, #tpu.memory_space<vmem>>, vector<1x1x1x8xf32>
    %388 = vector.shape_cast %387 : vector<1x1x1x8xf32> to vector<1x8xf32>
    %389 = vector.broadcast %388 : vector<1x8xf32> to vector<64x8xf32>
    %390 = arith.addf %386, %389 : vector<64x8xf32>
    %cst_300 = arith.constant 0.353553385 : f32
    %391 = vector.broadcast %cst_300 : f32 to vector<64x8xf32>
    %392 = arith.mulf %376, %391 : vector<64x8xf32>
    %393 = arith.truncf %392 : vector<64x8xf32> to vector<64x8xbf16>
    %394 = arith.truncf %383 : vector<64x8xf32> to vector<64x8xbf16>
    %cst_301 = arith.constant dense<0.000000e+00> : vector<64x64xf32>
    %395 = tpu.matmul %393, %394, %cst_301 {dimension_numbers = #tpu.dot_dimension_numbers<[1], [1], [0], [0], [0, 0, 1, 0], [], []>} : vector<64x8xbf16>, vector<64x8xbf16>, vector<64x64xf32> -> vector<64x64xf32>
    %cst_302 = arith.constant dense<0xFF800000> : vector<64xf32>
    %396 = vector.multi_reduction <maximumf>, %395, %cst_302 [1] : vector<64x64xf32> to vector<64xf32>
    %397 = vector.shape_cast %396 : vector<64xf32> to vector<64x1xf32>
    %398 = vector.broadcast %397 : vector<64x1xf32> to vector<64x64xf32>
    %399 = arith.subf %395, %398 : vector<64x64xf32>
    %400 = math.exp %399 : vector<64x64xf32>
    %cst_303 = arith.constant dense<0.000000e+00> : vector<64xf32>
    %401 = vector.multi_reduction <add>, %400, %cst_303 [1] : vector<64x64xf32> to vector<64xf32>
    %402 = vector.shape_cast %401 : vector<64xf32> to vector<64x1xf32>
    %403 = tpu.reciprocal %402 {approx = true} : vector<64x1xf32> -> vector<64x1xf32>
    %404 = vector.broadcast %403 : vector<64x1xf32> to vector<64x64xf32>
    %405 = arith.mulf %400, %404 : vector<64x64xf32>
    %406 = arith.truncf %405 : vector<64x64xf32> to vector<64x64xbf16>
    %407 = arith.truncf %390 : vector<64x8xf32> to vector<64x8xbf16>
    %cst_304 = arith.constant dense<0.000000e+00> : vector<64x8xf32>
    %408 = tpu.matmul %406, %407, %cst_304 {dimension_numbers = #tpu.dot_dimension_numbers<[1], [0], [0], [1], [0, 0, 1, 1], [], []>} : vector<64x64xbf16>, vector<64x8xbf16>, vector<64x8xf32> -> vector<64x8xf32>
    %409 = arith.truncf %408 : vector<64x8xf32> to vector<64x8xbf16>
    %c1_305 = arith.constant 1 : index
    %c2_306 = arith.constant 2 : index
    %c0_307 = arith.constant 0 : index
    %c0_308 = arith.constant 0 : index
    %410 = vector.load %arg10[%c1_305, %c2_306, %c0_307, %c0_308] : memref<2x4x8x32xbf16, #tpu.memory_space<vmem>>, vector<1x1x8x32xbf16>
    %411 = vector.shape_cast %410 : vector<1x1x8x32xbf16> to vector<8x32xbf16>
    %cst_309 = arith.constant dense<0.000000e+00> : vector<64x32xf32>
    %412 = tpu.matmul %409, %411, %cst_309 {dimension_numbers = #tpu.dot_dimension_numbers<[1], [0], [0], [1], [0, 0, 1, 1], [], []>} : vector<64x8xbf16>, vector<8x32xbf16>, vector<64x32xf32> -> vector<64x32xf32>
    %413 = arith.addf %369, %412 : vector<64x32xf32>
    %c1_310 = arith.constant 1 : index
    %c3_311 = arith.constant 3 : index
    %c0_312 = arith.constant 0 : index
    %c0_313 = arith.constant 0 : index
    %414 = vector.load %arg4[%c1_310, %c3_311, %c0_312, %c0_313] : memref<2x4x32x8xbf16, #tpu.memory_space<vmem>>, vector<1x1x32x8xbf16>
    %415 = vector.shape_cast %414 : vector<1x1x32x8xbf16> to vector<32x8xbf16>
    %cst_314 = arith.constant dense<0.000000e+00> : vector<64x8xf32>
    %416 = tpu.matmul %280, %415, %cst_314 {dimension_numbers = #tpu.dot_dimension_numbers<[1], [0], [0], [1], [0, 0, 1, 1], [], []>} : vector<64x32xbf16>, vector<32x8xbf16>, vector<64x8xf32> -> vector<64x8xf32>
    %c1_315 = arith.constant 1 : index
    %c3_316 = arith.constant 3 : index
    %c0_317 = arith.constant 0 : index
    %c0_318 = arith.constant 0 : index
    %417 = vector.load %arg5[%c1_315, %c3_316, %c0_317, %c0_318] : memref<2x4x1x8xf32, #tpu.memory_space<vmem>>, vector<1x1x1x8xf32>
    %418 = vector.shape_cast %417 : vector<1x1x1x8xf32> to vector<1x8xf32>
    %419 = vector.broadcast %418 : vector<1x8xf32> to vector<64x8xf32>
    %420 = arith.addf %416, %419 : vector<64x8xf32>
    %c1_319 = arith.constant 1 : index
    %c3_320 = arith.constant 3 : index
    %c0_321 = arith.constant 0 : index
    %c0_322 = arith.constant 0 : index
    %421 = vector.load %arg6[%c1_319, %c3_320, %c0_321, %c0_322] : memref<2x4x32x8xbf16, #tpu.memory_space<vmem>>, vector<1x1x32x8xbf16>
    %422 = vector.shape_cast %421 : vector<1x1x32x8xbf16> to vector<32x8xbf16>
    %cst_323 = arith.constant dense<0.000000e+00> : vector<64x8xf32>
    %423 = tpu.matmul %280, %422, %cst_323 {dimension_numbers = #tpu.dot_dimension_numbers<[1], [0], [0], [1], [0, 0, 1, 1], [], []>} : vector<64x32xbf16>, vector<32x8xbf16>, vector<64x8xf32> -> vector<64x8xf32>
    %c1_324 = arith.constant 1 : index
    %c3_325 = arith.constant 3 : index
    %c0_326 = arith.constant 0 : index
    %c0_327 = arith.constant 0 : index
    %424 = vector.load %arg7[%c1_324, %c3_325, %c0_326, %c0_327] : memref<2x4x1x8xf32, #tpu.memory_space<vmem>>, vector<1x1x1x8xf32>
    %425 = vector.shape_cast %424 : vector<1x1x1x8xf32> to vector<1x8xf32>
    %426 = vector.broadcast %425 : vector<1x8xf32> to vector<64x8xf32>
    %427 = arith.addf %423, %426 : vector<64x8xf32>
    %c1_328 = arith.constant 1 : index
    %c3_329 = arith.constant 3 : index
    %c0_330 = arith.constant 0 : index
    %c0_331 = arith.constant 0 : index
    %428 = vector.load %arg8[%c1_328, %c3_329, %c0_330, %c0_331] : memref<2x4x32x8xbf16, #tpu.memory_space<vmem>>, vector<1x1x32x8xbf16>
    %429 = vector.shape_cast %428 : vector<1x1x32x8xbf16> to vector<32x8xbf16>
    %cst_332 = arith.constant dense<0.000000e+00> : vector<64x8xf32>
    %430 = tpu.matmul %280, %429, %cst_332 {dimension_numbers = #tpu.dot_dimension_numbers<[1], [0], [0], [1], [0, 0, 1, 1], [], []>} : vector<64x32xbf16>, vector<32x8xbf16>, vector<64x8xf32> -> vector<64x8xf32>
    %c1_333 = arith.constant 1 : index
    %c3_334 = arith.constant 3 : index
    %c0_335 = arith.constant 0 : index
    %c0_336 = arith.constant 0 : index
    %431 = vector.load %arg9[%c1_333, %c3_334, %c0_335, %c0_336] : memref<2x4x1x8xf32, #tpu.memory_space<vmem>>, vector<1x1x1x8xf32>
    %432 = vector.shape_cast %431 : vector<1x1x1x8xf32> to vector<1x8xf32>
    %433 = vector.broadcast %432 : vector<1x8xf32> to vector<64x8xf32>
    %434 = arith.addf %430, %433 : vector<64x8xf32>
    %cst_337 = arith.constant 0.353553385 : f32
    %435 = vector.broadcast %cst_337 : f32 to vector<64x8xf32>
    %436 = arith.mulf %420, %435 : vector<64x8xf32>
    %437 = arith.truncf %436 : vector<64x8xf32> to vector<64x8xbf16>
    %438 = arith.truncf %427 : vector<64x8xf32> to vector<64x8xbf16>
    %cst_338 = arith.constant dense<0.000000e+00> : vector<64x64xf32>
    %439 = tpu.matmul %437, %438, %cst_338 {dimension_numbers = #tpu.dot_dimension_numbers<[1], [1], [0], [0], [0, 0, 1, 0], [], []>} : vector<64x8xbf16>, vector<64x8xbf16>, vector<64x64xf32> -> vector<64x64xf32>
    %cst_339 = arith.constant dense<0xFF800000> : vector<64xf32>
    %440 = vector.multi_reduction <maximumf>, %439, %cst_339 [1] : vector<64x64xf32> to vector<64xf32>
    %441 = vector.shape_cast %440 : vector<64xf32> to vector<64x1xf32>
    %442 = vector.broadcast %441 : vector<64x1xf32> to vector<64x64xf32>
    %443 = arith.subf %439, %442 : vector<64x64xf32>
    %444 = math.exp %443 : vector<64x64xf32>
    %cst_340 = arith.constant dense<0.000000e+00> : vector<64xf32>
    %445 = vector.multi_reduction <add>, %444, %cst_340 [1] : vector<64x64xf32> to vector<64xf32>
    %446 = vector.shape_cast %445 : vector<64xf32> to vector<64x1xf32>
    %447 = tpu.reciprocal %446 {approx = true} : vector<64x1xf32> -> vector<64x1xf32>
    %448 = vector.broadcast %447 : vector<64x1xf32> to vector<64x64xf32>
    %449 = arith.mulf %444, %448 : vector<64x64xf32>
    %450 = arith.truncf %449 : vector<64x64xf32> to vector<64x64xbf16>
    %451 = arith.truncf %434 : vector<64x8xf32> to vector<64x8xbf16>
    %cst_341 = arith.constant dense<0.000000e+00> : vector<64x8xf32>
    %452 = tpu.matmul %450, %451, %cst_341 {dimension_numbers = #tpu.dot_dimension_numbers<[1], [0], [0], [1], [0, 0, 1, 1], [], []>} : vector<64x64xbf16>, vector<64x8xbf16>, vector<64x8xf32> -> vector<64x8xf32>
    %453 = arith.truncf %452 : vector<64x8xf32> to vector<64x8xbf16>
    %c1_342 = arith.constant 1 : index
    %c3_343 = arith.constant 3 : index
    %c0_344 = arith.constant 0 : index
    %c0_345 = arith.constant 0 : index
    %454 = vector.load %arg10[%c1_342, %c3_343, %c0_344, %c0_345] : memref<2x4x8x32xbf16, #tpu.memory_space<vmem>>, vector<1x1x8x32xbf16>
    %455 = vector.shape_cast %454 : vector<1x1x8x32xbf16> to vector<8x32xbf16>
    %cst_346 = arith.constant dense<0.000000e+00> : vector<64x32xf32>
    %456 = tpu.matmul %453, %455, %cst_346 {dimension_numbers = #tpu.dot_dimension_numbers<[1], [0], [0], [1], [0, 0, 1, 1], [], []>} : vector<64x8xbf16>, vector<8x32xbf16>, vector<64x32xf32> -> vector<64x32xf32>
    %457 = arith.addf %413, %456 : vector<64x32xf32>
    %458 = arith.addf %255, %457 : vector<64x32xf32>
    %c1_347 = arith.constant 1 : index
    %c0_348 = arith.constant 0 : index
    %c0_349 = arith.constant 0 : index
    %459 = vector.load %arg11[%c1_347, %c0_348, %c0_349] : memref<2x1x32xf32, #tpu.memory_space<vmem>>, vector<1x1x32xf32>
    %460 = vector.shape_cast %459 : vector<1x1x32xf32> to vector<1x32xf32>
    %461 = vector.broadcast %460 : vector<1x32xf32> to vector<64x32xf32>
    %462 = arith.addf %458, %461 : vector<64x32xf32>
    %c1_350 = arith.constant 1 : index
    %c0_351 = arith.constant 0 : index
    %c0_352 = arith.constant 0 : index
    %463 = vector.load %arg12[%c1_350, %c0_351, %c0_352] : memref<2x1x32xf32, #tpu.memory_space<vmem>>, vector<1x1x32xf32>
    %464 = vector.shape_cast %463 : vector<1x1x32xf32> to vector<1x32xf32>
    %c1_353 = arith.constant 1 : index
    %c0_354 = arith.constant 0 : index
    %c0_355 = arith.constant 0 : index
    %465 = vector.load %arg13[%c1_353, %c0_354, %c0_355] : memref<2x1x32xf32, #tpu.memory_space<vmem>>, vector<1x1x32xf32>
    %466 = vector.shape_cast %465 : vector<1x1x32xf32> to vector<1x32xf32>
    %cst_356 = arith.constant dense<0.000000e+00> : vector<64xf32>
    %467 = vector.multi_reduction <add>, %462, %cst_356 [1] : vector<64x32xf32> to vector<64xf32>
    %468 = vector.shape_cast %467 : vector<64xf32> to vector<64x1xf32>
    %cst_357 = arith.constant 3.200000e+01 : f32
    %469 = vector.broadcast %cst_357 : f32 to vector<64x1xf32>
    %470 = arith.divf %468, %469 : vector<64x1xf32>
    %471 = vector.broadcast %470 : vector<64x1xf32> to vector<64x32xf32>
    %472 = arith.subf %462, %471 : vector<64x32xf32>
    %473 = arith.mulf %472, %472 : vector<64x32xf32>
    %cst_358 = arith.constant dense<0.000000e+00> : vector<64xf32>
    %474 = vector.multi_reduction <add>, %473, %cst_358 [1] : vector<64x32xf32> to vector<64xf32>
    %475 = vector.shape_cast %474 : vector<64xf32> to vector<64x1xf32>
    %cst_359 = arith.constant 3.200000e+01 : f32
    %476 = vector.broadcast %cst_359 : f32 to vector<64x1xf32>
    %477 = arith.divf %475, %476 : vector<64x1xf32>
    %cst_360 = arith.constant 9.99999974E-6 : f32
    %478 = vector.broadcast %cst_360 : f32 to vector<64x1xf32>
    %479 = arith.addf %477, %478 : vector<64x1xf32>
    %480 = math.rsqrt %479 : vector<64x1xf32>
    %481 = vector.broadcast %480 : vector<64x1xf32> to vector<64x32xf32>
    %482 = arith.mulf %472, %481 : vector<64x32xf32>
    %483 = vector.broadcast %464 : vector<1x32xf32> to vector<64x32xf32>
    %484 = arith.mulf %482, %483 : vector<64x32xf32>
    %485 = vector.broadcast %466 : vector<1x32xf32> to vector<64x32xf32>
    %486 = arith.addf %484, %485 : vector<64x32xf32>
    %487 = arith.truncf %486 : vector<64x32xf32> to vector<64x32xbf16>
    %c1_361 = arith.constant 1 : index
    %c0_362 = arith.constant 0 : index
    %c0_363 = arith.constant 0 : index
    %488 = vector.load %arg14[%c1_361, %c0_362, %c0_363] : memref<2x32x64xbf16, #tpu.memory_space<vmem>>, vector<1x32x64xbf16>
    %489 = vector.shape_cast %488 : vector<1x32x64xbf16> to vector<32x64xbf16>
    %cst_364 = arith.constant dense<0.000000e+00> : vector<64x64xf32>
    %490 = tpu.matmul %487, %489, %cst_364 {dimension_numbers = #tpu.dot_dimension_numbers<[1], [0], [0], [1], [0, 0, 1, 1], [], []>} : vector<64x32xbf16>, vector<32x64xbf16>, vector<64x64xf32> -> vector<64x64xf32>
    %c1_365 = arith.constant 1 : index
    %c0_366 = arith.constant 0 : index
    %c0_367 = arith.constant 0 : index
    %491 = vector.load %arg15[%c1_365, %c0_366, %c0_367] : memref<2x1x64xf32, #tpu.memory_space<vmem>>, vector<1x1x64xf32>
    %492 = vector.shape_cast %491 : vector<1x1x64xf32> to vector<1x64xf32>
    %493 = vector.broadcast %492 : vector<1x64xf32> to vector<64x64xf32>
    %494 = arith.addf %490, %493 : vector<64x64xf32>
    %495 = arith.negf %494 : vector<64x64xf32>
    %496 = math.exp %495 : vector<64x64xf32>
    %cst_368 = arith.constant 1.000000e+00 : f32
    %497 = vector.broadcast %cst_368 : f32 to vector<64x64xf32>
    %498 = arith.addf %497, %496 : vector<64x64xf32>
    %499 = arith.divf %497, %498 : vector<64x64xf32>
    %500 = arith.mulf %494, %499 : vector<64x64xf32>
    %501 = arith.truncf %500 : vector<64x64xf32> to vector<64x64xbf16>
    %c1_369 = arith.constant 1 : index
    %c0_370 = arith.constant 0 : index
    %c0_371 = arith.constant 0 : index
    %502 = vector.load %arg16[%c1_369, %c0_370, %c0_371] : memref<2x64x32xbf16, #tpu.memory_space<vmem>>, vector<1x64x32xbf16>
    %503 = vector.shape_cast %502 : vector<1x64x32xbf16> to vector<64x32xbf16>
    %cst_372 = arith.constant dense<0.000000e+00> : vector<64x32xf32>
    %504 = tpu.matmul %501, %503, %cst_372 {dimension_numbers = #tpu.dot_dimension_numbers<[1], [0], [0], [1], [0, 0, 1, 1], [], []>} : vector<64x64xbf16>, vector<64x32xbf16>, vector<64x32xf32> -> vector<64x32xf32>
    %c1_373 = arith.constant 1 : index
    %c0_374 = arith.constant 0 : index
    %c0_375 = arith.constant 0 : index
    %505 = vector.load %arg17[%c1_373, %c0_374, %c0_375] : memref<2x1x32xf32, #tpu.memory_space<vmem>>, vector<1x1x32xf32>
    %506 = vector.shape_cast %505 : vector<1x1x32xf32> to vector<1x32xf32>
    %507 = vector.broadcast %506 : vector<1x32xf32> to vector<64x32xf32>
    %508 = arith.addf %504, %507 : vector<64x32xf32>
    %509 = arith.addf %462, %508 : vector<64x32xf32>
    %c0_376 = arith.constant 0 : index
    %c0_377 = arith.constant 0 : index
    %510 = vector.load %arg18[%c0_376, %c0_377] : memref<1x32xf32, #tpu.memory_space<vmem>>, vector<1x32xf32>
    %c0_378 = arith.constant 0 : index
    %c0_379 = arith.constant 0 : index
    %511 = vector.load %arg19[%c0_378, %c0_379] : memref<1x32xf32, #tpu.memory_space<vmem>>, vector<1x32xf32>
    %cst_380 = arith.constant dense<0.000000e+00> : vector<64xf32>
    %512 = vector.multi_reduction <add>, %509, %cst_380 [1] : vector<64x32xf32> to vector<64xf32>
    %513 = vector.shape_cast %512 : vector<64xf32> to vector<64x1xf32>
    %cst_381 = arith.constant 3.200000e+01 : f32
    %514 = vector.broadcast %cst_381 : f32 to vector<64x1xf32>
    %515 = arith.divf %513, %514 : vector<64x1xf32>
    %516 = vector.broadcast %515 : vector<64x1xf32> to vector<64x32xf32>
    %517 = arith.subf %509, %516 : vector<64x32xf32>
    %518 = arith.mulf %517, %517 : vector<64x32xf32>
    %cst_382 = arith.constant dense<0.000000e+00> : vector<64xf32>
    %519 = vector.multi_reduction <add>, %518, %cst_382 [1] : vector<64x32xf32> to vector<64xf32>
    %520 = vector.shape_cast %519 : vector<64xf32> to vector<64x1xf32>
    %cst_383 = arith.constant 3.200000e+01 : f32
    %521 = vector.broadcast %cst_383 : f32 to vector<64x1xf32>
    %522 = arith.divf %520, %521 : vector<64x1xf32>
    %cst_384 = arith.constant 9.99999974E-6 : f32
    %523 = vector.broadcast %cst_384 : f32 to vector<64x1xf32>
    %524 = arith.addf %522, %523 : vector<64x1xf32>
    %525 = math.rsqrt %524 : vector<64x1xf32>
    %526 = vector.broadcast %525 : vector<64x1xf32> to vector<64x32xf32>
    %527 = arith.mulf %517, %526 : vector<64x32xf32>
    %528 = vector.broadcast %510 : vector<1x32xf32> to vector<64x32xf32>
    %529 = arith.mulf %527, %528 : vector<64x32xf32>
    %530 = vector.broadcast %511 : vector<1x32xf32> to vector<64x32xf32>
    %531 = arith.addf %529, %530 : vector<64x32xf32>
    %532 = arith.truncf %531 : vector<64x32xf32> to vector<64x32xbf16>
    %c0_385 = arith.constant 0 : index
    %c0_386 = arith.constant 0 : index
    %533 = vector.load %arg20[%c0_385, %c0_386] : memref<32x16xbf16, #tpu.memory_space<vmem>>, vector<32x16xbf16>
    %cst_387 = arith.constant dense<0.000000e+00> : vector<64x16xf32>
    %534 = tpu.matmul %532, %533, %cst_387 {dimension_numbers = #tpu.dot_dimension_numbers<[1], [0], [0], [1], [0, 0, 1, 1], [], []>} : vector<64x32xbf16>, vector<32x16xbf16>, vector<64x16xf32> -> vector<64x16xf32>
    %c0_388 = arith.constant 0 : index
    %c0_389 = arith.constant 0 : index
    %535 = vector.load %arg21[%c0_388, %c0_389] : memref<1x16xf32, #tpu.memory_space<vmem>>, vector<1x16xf32>
    %536 = vector.broadcast %535 : vector<1x16xf32> to vector<64x16xf32>
    %537 = arith.addf %534, %536 : vector<64x16xf32>
    %538 = arith.negf %537 : vector<64x16xf32>
    %539 = math.exp %538 : vector<64x16xf32>
    %cst_390 = arith.constant 1.000000e+00 : f32
    %540 = vector.broadcast %cst_390 : f32 to vector<64x16xf32>
    %541 = arith.addf %540, %539 : vector<64x16xf32>
    %542 = arith.divf %540, %541 : vector<64x16xf32>
    %543 = arith.mulf %537, %542 : vector<64x16xf32>
    %c0_391 = arith.constant 0 : index
    %c0_392 = arith.constant 0 : index
    %c0_393 = arith.constant 0 : index
    %544 = vector.load %arg22[%c0_391, %c0_392, %c0_393] : memref<1x64x16xf32, #tpu.memory_space<vmem>>, vector<1x64x16xf32>
    %545 = vector.shape_cast %544 : vector<1x64x16xf32> to vector<64x16xf32>
    %546 = vector.shape_cast %543 : vector<64x16xf32> to vector<1x64x16xf32>
    tpu.vector_store %arg22[%c0_391, %c0_392, %c0_393], %546 {strides = array<i32>} : memref<1x64x16xf32, #tpu.memory_space<vmem>>, vector<1x64x16xf32>,
    return
  }
  func.func @transform_0(%arg0: i32) -> (i32, i32, i32) {
    %c0_i32 = arith.constant 0 : i32
    %c0_i32_0 = arith.constant 0 : i32
    %c0_i32_1 = arith.constant 0 : i32
    return %arg0, %c0_i32, %c0_i32_0 : i32, i32, i32
  }
  func.func @transform_1(%arg0: i32) -> (i32, i32, i32) {
    %c0_i32 = arith.constant 0 : i32
    %c0_i32_0 = arith.constant 0 : i32
    %c0_i32_1 = arith.constant 0 : i32
    %c0_i32_2 = arith.constant 0 : i32
    return %c0_i32, %c0_i32_0, %c0_i32_1 : i32, i32, i32
  }
  func.func @transform_2(%arg0: i32) -> (i32, i32, i32) {
    %c0_i32 = arith.constant 0 : i32
    %c0_i32_0 = arith.constant 0 : i32
    %c0_i32_1 = arith.constant 0 : i32
    %c0_i32_2 = arith.constant 0 : i32
    return %c0_i32, %c0_i32_0, %c0_i32_1 : i32, i32, i32
  }
  func.func @transform_3(%arg0: i32) -> (i32, i32, i32, i32) {
    %c0_i32 = arith.constant 0 : i32
    %c0_i32_0 = arith.constant 0 : i32
    %c0_i32_1 = arith.constant 0 : i32
    %c0_i32_2 = arith.constant 0 : i32
    %c0_i32_3 = arith.constant 0 : i32
    return %c0_i32, %c0_i32_0, %c0_i32_1, %c0_i32_2 : i32, i32, i32, i32
  }
  func.func @transform_4(%arg0: i32) -> (i32, i32, i32, i32) {
    %c0_i32 = arith.constant 0 : i32
    %c0_i32_0 = arith.constant 0 : i32
    %c0_i32_1 = arith.constant 0 : i32
    %c0_i32_2 = arith.constant 0 : i32
    %c0_i32_3 = arith.constant 0 : i32
    return %c0_i32, %c0_i32_0, %c0_i32_1, %c0_i32_2 : i32, i32, i32, i32
  }
  func.func @transform_5(%arg0: i32) -> (i32, i32, i32, i32) {
    %c0_i32 = arith.constant 0 : i32
    %c0_i32_0 = arith.constant 0 : i32
    %c0_i32_1 = arith.constant 0 : i32
    %c0_i32_2 = arith.constant 0 : i32
    %c0_i32_3 = arith.constant 0 : i32
    return %c0_i32, %c0_i32_0, %c0_i32_1, %c0_i32_2 : i32, i32, i32, i32
  }
  func.func @transform_6(%arg0: i32) -> (i32, i32, i32, i32) {
    %c0_i32 = arith.constant 0 : i32
    %c0_i32_0 = arith.constant 0 : i32
    %c0_i32_1 = arith.constant 0 : i32
    %c0_i32_2 = arith.constant 0 : i32
    %c0_i32_3 = arith.constant 0 : i32
    return %c0_i32, %c0_i32_0, %c0_i32_1, %c0_i32_2 : i32, i32, i32, i32
  }
  func.func @transform_7(%arg0: i32) -> (i32, i32, i32, i32) {
    %c0_i32 = arith.constant 0 : i32
    %c0_i32_0 = arith.constant 0 : i32
    %c0_i32_1 = arith.constant 0 : i32
    %c0_i32_2 = arith.constant 0 : i32
    %c0_i32_3 = arith.constant 0 : i32
    return %c0_i32, %c0_i32_0, %c0_i32_1, %c0_i32_2 : i32, i32, i32, i32
  }
  func.func @transform_8(%arg0: i32) -> (i32, i32, i32, i32) {
    %c0_i32 = arith.constant 0 : i32
    %c0_i32_0 = arith.constant 0 : i32
    %c0_i32_1 = arith.constant 0 : i32
    %c0_i32_2 = arith.constant 0 : i32
    %c0_i32_3 = arith.constant 0 : i32
    return %c0_i32, %c0_i32_0, %c0_i32_1, %c0_i32_2 : i32, i32, i32, i32
  }
  func.func @transform_9(%arg0: i32) -> (i32, i32, i32, i32) {
    %c0_i32 = arith.constant 0 : i32
    %c0_i32_0 = arith.constant 0 : i32
    %c0_i32_1 = arith.constant 0 : i32
    %c0_i32_2 = arith.constant 0 : i32
    %c0_i32_3 = arith.constant 0 : i32
    return %c0_i32, %c0_i32_0, %c0_i32_1, %c0_i32_2 : i32, i32, i32, i32
  }
  func.func @transform_10(%arg0: i32) -> (i32, i32, i32) {
    %c0_i32 = arith.constant 0 : i32
    %c0_i32_0 = arith.constant 0 : i32
    %c0_i32_1 = arith.constant 0 : i32
    %c0_i32_2 = arith.constant 0 : i32
    return %c0_i32, %c0_i32_0, %c0_i32_1 : i32, i32, i32
  }
  func.func @transform_11(%arg0: i32) -> (i32, i32, i32) {
    %c0_i32 = arith.constant 0 : i32
    %c0_i32_0 = arith.constant 0 : i32
    %c0_i32_1 = arith.constant 0 : i32
    %c0_i32_2 = arith.constant 0 : i32
    return %c0_i32, %c0_i32_0, %c0_i32_1 : i32, i32, i32
  }
  func.func @transform_12(%arg0: i32) -> (i32, i32, i32) {
    %c0_i32 = arith.constant 0 : i32
    %c0_i32_0 = arith.constant 0 : i32
    %c0_i32_1 = arith.constant 0 : i32
    %c0_i32_2 = arith.constant 0 : i32
    return %c0_i32, %c0_i32_0, %c0_i32_1 : i32, i32, i32
  }
  func.func @transform_13(%arg0: i32) -> (i32, i32, i32) {
    %c0_i32 = arith.constant 0 : i32
    %c0_i32_0 = arith.constant 0 : i32
    %c0_i32_1 = arith.constant 0 : i32
    %c0_i32_2 = arith.constant 0 : i32
    return %c0_i32, %c0_i32_0, %c0_i32_1 : i32, i32, i32
  }
  func.func @transform_14(%arg0: i32) -> (i32, i32, i32) {
    %c0_i32 = arith.constant 0 : i32
    %c0_i32_0 = arith.constant 0 : i32
    %c0_i32_1 = arith.constant 0 : i32
    %c0_i32_2 = arith.constant 0 : i32
    return %c0_i32, %c0_i32_0, %c0_i32_1 : i32, i32, i32
  }
  func.func @transform_15(%arg0: i32) -> (i32, i32, i32) {
    %c0_i32 = arith.constant 0 : i32
    %c0_i32_0 = arith.constant 0 : i32
    %c0_i32_1 = arith.constant 0 : i32
    %c0_i32_2 = arith.constant 0 : i32
    return %c0_i32, %c0_i32_0, %c0_i32_1 : i32, i32, i32
  }
  func.func @transform_16(%arg0: i32) -> (i32, i32, i32) {
    %c0_i32 = arith.constant 0 : i32
    %c0_i32_0 = arith.constant 0 : i32
    %c0_i32_1 = arith.constant 0 : i32
    %c0_i32_2 = arith.constant 0 : i32
    return %c0_i32, %c0_i32_0, %c0_i32_1 : i32, i32, i32
  }
  func.func @transform_17(%arg0: i32) -> (i32, i32) {
    %c0_i32 = arith.constant 0 : i32
    %c0_i32_0 = arith.constant 0 : i32
    %c0_i32_1 = arith.constant 0 : i32
    return %c0_i32, %c0_i32_0 : i32, i32
  }
  func.func @transform_18(%arg0: i32) -> (i32, i32) {
    %c0_i32 = arith.constant 0 : i32
    %c0_i32_0 = arith.constant 0 : i32
    %c0_i32_1 = arith.constant 0 : i32
    return %c0_i32, %c0_i32_0 : i32, i32
  }
  func.func @transform_19(%arg0: i32) -> (i32, i32) {
    %c0_i32 = arith.constant 0 : i32
    %c0_i32_0 = arith.constant 0 : i32
    %c0_i32_1 = arith.constant 0 : i32
    return %c0_i32, %c0_i32_0 : i32, i32
  }
  func.func @transform_20(%arg0: i32) -> (i32, i32) {
    %c0_i32 = arith.constant 0 : i32
    %c0_i32_0 = arith.constant 0 : i32
    %c0_i32_1 = arith.constant 0 : i32
    return %c0_i32, %c0_i32_0 : i32, i32
  }
  func.func @transform_21(%arg0: i32) -> (i32, i32, i32) {
    %c0_i32 = arith.constant 0 : i32
    %c0_i32_0 = arith.constant 0 : i32
    %c0_i32_1 = arith.constant 0 : i32
    return %arg0, %c0_i32, %c0_i32_0 : i32, i32, i32
  }
}

</mosaic_0001>

<llo_original>
// kernel: forward.3
$region0: #{forward.3}
  #allocation0 [shape = 'u32[]', space=smem, size = 0x4, offset = 0x4, fixed_abs, tag = 'smem constant byte address 0x4 - core index']
  #allocation1 [shape = 'u32[144,128]{1,0:T(1,128)}', space=vmem, size = 0x12000, scoped, tag = 'internal scratch']
  %s0 = inlined_call_operand.vmem [shape: f32[2,18,18,16], index: 0, kind: input, shape index: {}]
  %s1 = inlined_call_operand.vmem [shape: bf16[9,16,16], index: 1, kind: input, shape index: {}]
  %s2 = inlined_call_operand.vmem [shape: f32[1,16], index: 2, kind: input, shape index: {}]
  %s3 = inlined_call_operand.vmem [shape: bf16[16,32], index: 3, kind: input, shape index: {}]
  %s4 = inlined_call_operand.vmem [shape: f32[2,16,16,32], index: 4, kind: output, shape index: {}]
  %s5 = sld [smem:[#allocation0]]
  $region49: #{forward.3} parent=0
    _
  %s7 = ssub.s32 1, %s5
  %s8 = scalar_select 0, %s7, %s5
  loop: start=0, step=1, limit=34
  $region2: #{forward.3} parent=0 // loop_pre_header
    _
  $region3: #{forward.3} parent=0 // loop_header
    %s10 = sphi 0, %s14
    %p11 = scmp.ge.s32.totalorder %s10, 34
    %s17 = sphi 0, %s29
    %s18 = sphi 0, %s25
    %s19 = sphi 0, %s17
    %s20 = sphi 0, %s18
    %s21 = sphi 0, %s19
    %s22 = sphi 0, %s20
    %s32 = sphi 0, %s34
    %s35 = sphi 0, %s32
    %s36 = sphi 0, %s35
    %s52 = sphi 0, %s36
    %s56 = sphi 0, %s56
    %s58 = sphi 0, %s56
    %s59 = sphi 0, %s58
    %s73 = sphi 0, %s59
    %s77 = sphi 0, %s77
    %s79 = sphi 0, %s77
    %s80 = sphi 0, %s79
    %s94 = sphi 0, %s80
    %s98 = sphi 0, %s98
    %s100 = sphi 0, %s98
    %s101 = sphi 0, %s100
    %s115 = sphi 0, %s101
    %s123 = sphi 0, %s125
    %s126 = sphi 0, %s123
    %s127 = sphi 0, %s126
    %s143 = sphi 0, %s127
  $region4: #{forward.3} parent=0 // loop_header_branch
    %13 = sbr.rel (%p11) target = $region8
  $region5: #{forward.3} parent=0 // loop_body
    %s15 = ssub.s32 %s10, 1
    %s16 = ssub.s32 %s10, 2
    %s23 = sadd.s32 1, %s18
    %p24 = scmp.ge.s32.totalorder %s23, 16
    %s25 = scalar_select %p24, 0, %s23
    %s26 = sadd.s32 1, %s17
    %s27 = scalar_select %p24, %s26, %s17
    %p28 = scmp.ge.s32.totalorder %s27, 2
    %s29 = scalar_select %p28, 0, %s27
    %s30 = ssub.s32 %s17, %s29
    %p31 = scmp.eq.s32.totalorder %s30, 0
    %s33 = sadd.s32 %s32, 1
    %s34 = scalar_select %p31, %s32, %s33
    %p37 = pneg %p31
    %p38 = scmp.eq.s32.totalorder %s10, 31
    %p39 = por %p37, %p38
    %p40 = scmp.ne.s32.totalorder %s32, %s35
    %p41 = scmp.eq.s32.totalorder %s10, 0
    %p42 = por %p40, %p41
    %p43 = scmp.ne.s32.totalorder %s32, %s35
    %p44 = scmp.eq.s32.totalorder %s15, 31
    %p45 = por %p43, %p44
    %p46 = scmp.ne.s32.totalorder %s35, %s36
    %p47 = scmp.eq.s32.totalorder %s15, 0
    %p48 = por %p46, %p47
    %p49 = scmp.ne.s32.totalorder %s35, %s36
    %p50 = scmp.eq.s32.totalorder %s16, 31
    %p51 = por %p49, %p50
    %p53 = scmp.ne.s32.totalorder %s36, %s52
    %p54 = scmp.eq.s32.totalorder %s16, 0
    %p55 = por %p53, %p54
    %s57 = sadd.s32 %s56, 1
    %p60 = scmp.eq.s32.totalorder %s10, 31
    %p61 = scmp.ne.s32.totalorder %s56, %s58
    %p62 = scmp.eq.s32.totalorder %s10, 0
    %p63 = por %p61, %p62
    %p64 = scmp.ne.s32.totalorder %s56, %s58
    %p65 = scmp.eq.s32.totalorder %s15, 31
    %p66 = por %p64, %p65
    %p67 = scmp.ne.s32.totalorder %s58, %s59
    %p68 = scmp.eq.s32.totalorder %s15, 0
    %p69 = por %p67, %p68
    %p70 = scmp.ne.s32.totalorder %s58, %s59
    %p71 = scmp.eq.s32.totalorder %s16, 31
    %p72 = por %p70, %p71
    %p74 = scmp.ne.s32.totalorder %s59, %s73
    %p75 = scmp.eq.s32.totalorder %s16, 0
    %p76 = por %p74, %p75
    %s78 = sadd.s32 %s77, 1
    %p81 = scmp.eq.s32.totalorder %s10, 31
    %p82 = scmp.ne.s32.totalorder %s77, %s79
    %p83 = scmp.eq.s32.totalorder %s10, 0
    %p84 = por %p82, %p83
    %p85 = scmp.ne.s32.totalorder %s77, %s79
    %p86 = scmp.eq.s32.totalorder %s15, 31
    %p87 = por %p85, %p86
    %p88 = scmp.ne.s32.totalorder %s79, %s80
    %p89 = scmp.eq.s32.totalorder %s15, 0
    %p90 = por %p88, %p89
    %p91 = scmp.ne.s32.totalorder %s79, %s80
    %p92 = scmp.eq.s32.totalorder %s16, 31
    %p93 = por %p91, %p92
    %p95 = scmp.ne.s32.totalorder %s80, %s94
    %p96 = scmp.eq.s32.totalorder %s16, 0
    %p97 = por %p95, %p96
    %s99 = sadd.s32 %s98, 1
    %p102 = scmp.eq.s32.totalorder %s10, 31
    %p103 = scmp.ne.s32.totalorder %s98, %s100
    %p104 = scmp.eq.s32.totalorder %s10, 0
    %p105 = por %p103, %p104
    %p106 = scmp.ne.s32.totalorder %s98, %s100
    %p107 = scmp.eq.s32.totalorder %s15, 31
    %p108 = por %p106, %p107
    %p109 = scmp.ne.s32.totalorder %s100, %s101
    %p110 = scmp.eq.s32.totalorder %s15, 0
    %p111 = por %p109, %p110
    %p112 = scmp.ne.s32.totalorder %s100, %s101
    %p113 = scmp.eq.s32.totalorder %s16, 31
    %p114 = por %p112, %p113
    %p116 = scmp.ne.s32.totalorder %s101, %s115
    %p117 = scmp.eq.s32.totalorder %s16, 0
    %p118 = por %p116, %p117
    %s119 = ssub.s32 %s17, %s29
    %s120 = ssub.s32 %s18, %s25
    %s121 = sor.u32 %s119, %s120
    %p122 = scmp.eq.s32.totalorder %s121, 0
    %s124 = sadd.s32 %s123, 1
    %s125 = scalar_select %p122, %s123, %s124
    %p128 = pneg %p122
    %p129 = scmp.eq.s32.totalorder %s10, 31
    %p130 = por %p128, %p129
    %p131 = scmp.ne.s32.totalorder %s123, %s126
    %p132 = scmp.eq.s32.totalorder %s10, 0
    %p133 = por %p131, %p132
    %p134 = scmp.ne.s32.totalorder %s123, %s126
    %p135 = scmp.eq.s32.totalorder %s15, 31
    %p136 = por %p134, %p135
    %p137 = scmp.ne.s32.totalorder %s126, %s127
    %p138 = scmp.eq.s32.totalorder %s15, 0
    %p139 = por %p137, %p138
    %p140 = scmp.ne.s32.totalorder %s126, %s127
    %p141 = scmp.eq.s32.totalorder %s16, 31
    %p142 = por %p140, %p141
    %p144 = scmp.ne.s32.totalorder %s127, %s143
    %p145 = scmp.eq.s32.totalorder %s16, 0
    %p146 = por %p144, %p145
    %p147 = scmp.le.s32.totalorder 1, %s10
    %p148 = scmp.lt.s32.totalorder %s10, 33
    %p149 = pnand %p147, %p148
    %p150 = pneg %p149
    // Predicated region
    $region9: #{forward.3} parent=5 // pred_check
      _
    $region10: #{forward.3} parent=5 // pred_check_branch
      %152 = sbr.rel (%p149) target = $region12
    $region11: #{forward.3} parent=5 // pred_region
      %s153 = ssub.s32 %s10, 1
      // Predicated region
      $region13: #{forward.3} parent=11 // pred_check
        %p154 = pneg %p69
      $region14: #{forward.3} parent=11 // pred_check_branch
        %156 = sbr.rel (%p154) target = $region16
      $region15: #{forward.3} parent=11 // pred_region
        _
      $region16: #{forward.3} parent=11 // pred_fallthru
        _
      // Predicated region
      $region17: #{forward.3} parent=11 // pred_check
        %p157 = pneg %p90
      $region18: #{forward.3} parent=11 // pred_check_branch
        %159 = sbr.rel (%p157) target = $region20
      $region19: #{forward.3} parent=11 // pred_region
        _
      $region20: #{forward.3} parent=11 // pred_fallthru
        _
      // Predicated region
      $region21: #{forward.3} parent=11 // pred_check
        %p160 = pneg %p111
      $region22: #{forward.3} parent=11 // pred_check_branch
        %162 = sbr.rel (%p160) target = $region24
      $region23: #{forward.3} parent=11 // pred_region
        _
      $region24: #{forward.3} parent=11 // pred_fallthru
        _
    $region12: #{forward.3} parent=5 // pred_fallthru
      _
    %p163 = scmp.lt.s32.totalorder %s10, 32
    // Predicated region
    $region25: #{forward.3} parent=5 // pred_check
      %p164 = pneg %p163
    $region26: #{forward.3} parent=5 // pred_check_branch
      %166 = sbr.rel (%p164) target = $region28
    $region27: #{forward.3} parent=5 // pred_region
      // Predicated region
      $region29: #{forward.3} parent=27 // pred_check
        %p167 = pneg %p42
      $region30: #{forward.3} parent=27 // pred_check_branch
        %169 = sbr.rel (%p167) target = $region32
      $region31: #{forward.3} parent=27 // pred_region
        %p170 = scmp.lt.s32.totalorder %s17, 1
        %s171 = scalar_select %p170, %s17, 1
        %s172 = smul.addr %s171, 54
        %s173 = smul.addr %s172, 8
        %s174 = scalar_lea.vmem %s0, %s173
      $region32: #{forward.3} parent=27 // pred_fallthru
        _
    $region28: #{forward.3} parent=5 // pred_fallthru
      _
    %p175 = scmp.le.s32.totalorder 1, %s10
    %p176 = scmp.lt.s32.totalorder %s10, 33
    %p177 = pnand %p175, %p176
    %p178 = pneg %p177
    // Predicated region
    $region33: #{forward.3} parent=5 // pred_check
      _
    $region34: #{forward.3} parent=5 // pred_check_branch
      %180 = sbr.rel (%p177) target = $region36
    $region35: #{forward.3} parent=5 // pred_region
      %s181 = ssub.s32 %s10, 1
      %p182 = scmp.lt.s32.totalorder %s19, 1
      %s183 = scalar_select %p182, %s19, 1
      %s184 = smul.addr %s183, 54
      %s185 = smul.addr %s184, 8
      %s186 = scalar_lea.vmem %s0, %s185
      %p187 = pneg %p48
      %p188 = pneg %p45
      %p189 = pneg %p69
      %p190 = pneg %p66
      %p191 = pneg %p90
      %p192 = pneg %p87
      %p193 = pneg %p111
      %p194 = pneg %p108
      %p195 = pneg %p139
      %p196 = pneg %p136
      %p197 = scmp.lt.s32.totalorder %s19, 1
      %s198 = scalar_select %p197, %s19, 1
      %p199 = scmp.lt.s32.totalorder %s20, 15
      %s200 = scalar_select %p199, %s20, 15
      %s201 = smul.addr %s200, 2
      %s202 = smul.addr %s198, 32
      %s203 = sadd.s32 %s201, %s202
      %s204 = smul.addr %s203, 8
      %s205 = scalar_lea.vmem %s4, %s204
      %p206 = scmp.lt.s32.totalorder %s19, 1
      %s207 = scalar_select %p206, %s19, 1
      %s208 = smul.addr %s207, 54
      %s209 = smul.addr %s208, 8
      %s210 = scalar_lea.vmem %s0, %s209
      %p211 = scmp.lt.s32.totalorder %s19, 1
      %s212 = scalar_select %p211, %s19, 1
      %p213 = scmp.lt.s32.totalorder %s20, 15
      %s214 = scalar_select %p213, %s20, 15
      %s215 = smul.addr %s214, 2
      %s216 = smul.addr %s212, 32
      %s217 = sadd.s32 %s215, %s216
      %s218 = smul.addr %s217, 8
      %s219 = scalar_lea.vmem %s4, %s218
      %s221 = smul.u32 %s20, 24
      %s222 = scalar_lea.vmem %s210, %s221
      %v223 = vld [vmem:[%s222] sm:$0xff]
      %v224 = vld [vmem:[%s222 + $0x8] sm:$0xff]
      %v225 = vld [vmem:[%s222 + $0x10] sm:$0x3]
      %v226 = vpack.c.bf16 %v224, %v223
      %v227 = vld [vmem:[%s1] sm:$0xf]
      %v228 = vld [vmem:[%s1 + $0x4] sm:$0xf]
      %v229 = vpack.c.bf16 %v225, %v225
      %s230 = scalar_lea.vmem %s1, 8
      %v231 = vld [vmem:[%s230] sm:$0xf]
      %v232 = vld [vmem:[%s230 + $0x4] sm:$0xf]
      %vm233 = vsmask.f32 7424
      %v235 = vshrl.u32 %v226, 16
      %v237 = vshll.u32 %v226, 16
      %v239 = vrot.slane %v237, 1
      %v240 = vor.u32 %v235, %v239
      %v242 = vshll.u32 %v229, 16
      %v244 = vrot.slane %v242, 1
      %v245 = vsel %vm233, %v240, %v244
      %v248 = vunpack.c.l.b16 %v231
      %v249 = vunpack.c.l.b16 %v232
      %v250 = vpack.c.b16 %v249, %v248
      %vm252 = vcmask 130048
      %v254 = vsel %vm252, %v245, 0
      %256 = vmatprep.subr.bf16.mxu0 0
      %257 = vmatpush1.bf16.msra.mxu0 %v250
      %258 = vmatprep.subr.bf16.mxu0 0
      %259 = vmatpush1.bf16.msra.mxu0 0
      %260 = vmatprep.subr.bf16.mxu0 0
      %261 = vmatpush1.bf16.msra.mxu0 0
      %262 = vmatprep.subr.bf16.mxu0 0
      %263 = vmatpush1.bf16.msra.mxu0 0
      %264 = vmatprep.subr.bf16.mxu0 0
      %265 = vmatpush1.bf16.msra.mxu0 0
      %266 = vmatprep.subr.bf16.mxu0 0
      %267 = vmatpush1.bf16.msra.mxu0 0
      %268 = vmatprep.subr.bf16.mxu0 0
      %269 = vmatpush1.bf16.msra.mxu0 0
      %270 = vmatprep.subr.bf16.mxu0 0
      %271 = vmatpush1.bf16.msra.mxu0 0
      %272 = vmatprep.subr.bf16.mxu0 0
      %273 = vmatpush1.bf16.msra.mxu0 0
      %274 = vmatprep.subr.bf16.mxu0 0
      %275 = vmatpush1.bf16.msra.mxu0 0
      %276 = vmatprep.subr.bf16.mxu0 0
      %277 = vmatpush1.bf16.msra.mxu0 0
      %278 = vmatprep.subr.bf16.mxu0 0
      %279 = vmatpush1.bf16.msra.mxu0 0
      %280 = vmatprep.subr.bf16.mxu0 0
      %281 = vmatpush1.bf16.msra.mxu0 0
      %282 = vmatprep.subr.bf16.mxu0 0
      %283 = vmatpush1.bf16.msra.mxu0 0
      %284 = vmatprep.subr.bf16.mxu0 0
      %285 = vmatpush1.bf16.msra.mxu0 0
      %286 = vmatprep.subr.bf16.mxu0 0
      %287 = vmatpush1.bf16.msra.mxu0 0
      %288 = vmatprep.mubr.bf16.mxu0 0
      %289 = vmatmul.mubr.bf16.gmra.mrb[0].mxu0 %v254
      %v290 = vpop.f32.mrb[0].mxu0
      %v291 = vadd.f32 0.0, %v290
      %v292 = vpop.f32.mrb[0].mxu0
      %v293 = vpop.f32.mrb[0].mxu0
      %v294 = vadd.f32 0.0, %v293
      %v295 = vpop.f32.mrb[0].mxu0
      %296 = vdwg.mxu0
      %v299 = vunpack.c.l.b16 %v227
      %v300 = vunpack.c.l.b16 %v228
      %v301 = vpack.c.b16 %v300, %v299
      %v303 = vsel %vm252, %v226, 0
      %305 = vmatprep.subr.bf16.mxu0 0
      %306 = vmatpush1.bf16.msra.mxu0 %v301
      %307 = vmatprep.subr.bf16.mxu0 0
      %308 = vmatpush1.bf16.msra.mxu0 0
      %309 = vmatprep.subr.bf16.mxu0 0
      %310 = vmatpush1.bf16.msra.mxu0 0
      %311 = vmatprep.subr.bf16.mxu0 0
      %312 = vmatpush1.bf16.msra.mxu0 0
      %313 = vmatprep.subr.bf16.mxu0 0
      %314 = vmatpush1.bf16.msra.mxu0 0
      %315 = vmatprep.subr.bf16.mxu0 0
      %316 = vmatpush1.bf16.msra.mxu0 0
      %317 = vmatprep.subr.bf16.mxu0 0
      %318 = vmatpush1.bf16.msra.mxu0 0
      %319 = vmatprep.subr.bf16.mxu0 0
      %320 = vmatpush1.bf16.msra.mxu0 0
      %321 = vmatprep.subr.bf16.mxu0 0
      %322 = vmatpush1.bf16.msra.mxu0 0
      %323 = vmatprep.subr.bf16.mxu0 0
      %324 = vmatpush1.bf16.msra.mxu0 0
      %325 = vmatprep.subr.bf16.mxu0 0
      %326 = vmatpush1.bf16.msra.mxu0 0
      %327 = vmatprep.subr.bf16.mxu0 0
      %328 = vmatpush1.bf16.msra.mxu0 0
      %329 = vmatprep.subr.bf16.mxu0 0
      %330 = vmatpush1.bf16.msra.mxu0 0
      %331 = vmatprep.subr.bf16.mxu0 0
      %332 = vmatpush1.bf16.msra.mxu0 0
      %333 = vmatprep.subr.bf16.mxu0 0
      %334 = vmatpush1.bf16.msra.mxu0 0
      %335 = vmatprep.subr.bf16.mxu0 0
      %336 = vmatpush1.bf16.msra.mxu0 0
      %337 = vmatprep.mubr.bf16.mxu0 0
      %338 = vmatmul.mubr.bf16.gmra.mrb[0].mxu0 %v303
      %v339 = vpop.f32.mrb[0].mxu0
      %v340 = vadd.f32 %v291, %v339
      %v341 = vpop.f32.mrb[0].mxu0
      %v342 = vpop.f32.mrb[0].mxu0
      %v343 = vadd.f32 %v294, %v342
      %v344 = vpop.f32.mrb[0].mxu0
      %345 = vdwg.mxu0
      %s346 = scalar_lea.vmem %s1, 16
      %v347 = vld [vmem:[%s346] sm:$0xf]
      %v348 = vld [vmem:[%s346 + $0x4] sm:$0xf]
      %vm351 = vcmask 1046528
      %v352 = vrot.slane %v226, 1
      %v353 = vrot.slane %v229, 1
      %v354 = vsel %vm351, %v352, %v353
      %v357 = vunpack.c.l.b16 %v347
      %v358 = vunpack.c.l.b16 %v348
      %v359 = vpack.c.b16 %v358, %v357
      %v362 = vsel %vm252, %v354, 0
      %364 = vmatprep.subr.bf16.mxu0 0
      %365 = vmatpush1.bf16.msra.mxu0 %v359
      %366 = vmatprep.subr.bf16.mxu0 0
      %367 = vmatpush1.bf16.msra.mxu0 0
      %368 = vmatprep.subr.bf16.mxu0 0
      %369 = vmatpush1.bf16.msra.mxu0 0
      %370 = vmatprep.subr.bf16.mxu0 0
      %371 = vmatpush1.bf16.msra.mxu0 0
      %372 = vmatprep.subr.bf16.mxu0 0
      %373 = vmatpush1.bf16.msra.mxu0 0
      %374 = vmatprep.subr.bf16.mxu0 0
      %375 = vmatpush1.bf16.msra.mxu0 0
      %376 = vmatprep.subr.bf16.mxu0 0
      %377 = vmatpush1.bf16.msra.mxu0 0
      %378 = vmatprep.subr.bf16.mxu0 0
      %379 = vmatpush1.bf16.msra.mxu0 0
      %380 = vmatprep.subr.bf16.mxu0 0
      %381 = vmatpush1.bf16.msra.mxu0 0
      %382 = vmatprep.subr.bf16.mxu0 0
      %383 = vmatpush1.bf16.msra.mxu0 0
      %384 = vmatprep.subr.bf16.mxu0 0
      %385 = vmatpush1.bf16.msra.mxu0 0
      %386 = vmatprep.subr.bf16.mxu0 0
      %387 = vmatpush1.bf16.msra.mxu0 0
      %388 = vmatprep.subr.bf16.mxu0 0
      %389 = vmatpush1.bf16.msra.mxu0 0
      %390 = vmatprep.subr.bf16.mxu0 0
      %391 = vmatpush1.bf16.msra.mxu0 0
      %392 = vmatprep.subr.bf16.mxu0 0
      %393 = vmatpush1.bf16.msra.mxu0 0
      %394 = vmatprep.subr.bf16.mxu0 0
      %395 = vmatpush1.bf16.msra.mxu0 0
      %396 = vmatprep.mubr.bf16.mxu0 0
      %397 = vmatmul.mubr.bf16.gmra.mrb[0].mxu0 %v362
      %v398 = vpop.f32.mrb[0].mxu0
      %v399 = vadd.f32 0.0, %v398
      %v400 = vpop.f32.mrb[0].mxu0
      %v401 = vpop.f32.mrb[0].mxu0
      %v402 = vadd.f32 0.0, %v401
      %v403 = vpop.f32.mrb[0].mxu0
      %404 = vdwg.mxu0
      %v405 = vadd.f32 %v340, %v399
      %v406 = vadd.f32 %v343, %v402
      %s407 = sadd.s32 %s20, 1
      %s408 = smul.u32 %s407, 24
      %s409 = scalar_lea.vmem %s210, %s408
      %v410 = vld [vmem:[%s409] sm:$0xff]
      %v411 = vld [vmem:[%s409 + $0x8] sm:$0xff]
      %v412 = vld [vmem:[%s409 + $0x10] sm:$0x3]
      %v413 = vpack.c.bf16 %v411, %v410
      %s414 = scalar_lea.vmem %s1, 24
      %v415 = vld [vmem:[%s414] sm:$0xf]
      %v416 = vld [vmem:[%s414 + $0x4] sm:$0xf]
      %v419 = vunpack.c.l.b16 %v415
      %v420 = vunpack.c.l.b16 %v416
      %v421 = vpack.c.b16 %v420, %v419
      %v424 = vsel %vm252, %v413, 0
      %426 = vmatprep.subr.bf16.mxu0 0
      %427 = vmatpush1.bf16.msra.mxu0 %v421
      %428 = vmatprep.subr.bf16.mxu0 0
      %429 = vmatpush1.bf16.msra.mxu0 0
      %430 = vmatprep.subr.bf16.mxu0 0
      %431 = vmatpush1.bf16.msra.mxu0 0
      %432 = vmatprep.subr.bf16.mxu0 0
      %433 = vmatpush1.bf16.msra.mxu0 0
      %434 = vmatprep.subr.bf16.mxu0 0
      %435 = vmatpush1.bf16.msra.mxu0 0
      %436 = vmatprep.subr.bf16.mxu0 0
      %437 = vmatpush1.bf16.msra.mxu0 0
      %438 = vmatprep.subr.bf16.mxu0 0
      %439 = vmatpush1.bf16.msra.mxu0 0
      %440 = vmatprep.subr.bf16.mxu0 0
      %441 = vmatpush1.bf16.msra.mxu0 0
      %442 = vmatprep.subr.bf16.mxu0 0
      %443 = vmatpush1.bf16.msra.mxu0 0
      %444 = vmatprep.subr.bf16.mxu0 0
      %445 = vmatpush1.bf16.msra.mxu0 0
      %446 = vmatprep.subr.bf16.mxu0 0
      %447 = vmatpush1.bf16.msra.mxu0 0
      %448 = vmatprep.subr.bf16.mxu0 0
      %449 = vmatpush1.bf16.msra.mxu0 0
      %450 = vmatprep.subr.bf16.mxu0 0
      %451 = vmatpush1.bf16.msra.mxu0 0
      %452 = vmatprep.subr.bf16.mxu0 0
      %453 = vmatpush1.bf16.msra.mxu0 0
      %454 = vmatprep.subr.bf16.mxu0 0
      %455 = vmatpush1.bf16.msra.mxu0 0
      %456 = vmatprep.subr.bf16.mxu0 0
      %457 = vmatpush1.bf16.msra.mxu0 0
      %458 = vmatprep.mubr.bf16.mxu0 0
      %459 = vmatmul.mubr.bf16.gmra.mrb[0].mxu0 %v424
      %v460 = vpop.f32.mrb[0].mxu0
      %v461 = vadd.f32 0.0, %v460
      %v462 = vpop.f32.mrb[0].mxu0
      %v463 = vpop.f32.mrb[0].mxu0
      %v464 = vadd.f32 0.0, %v463
      %v465 = vpop.f32.mrb[0].mxu0
      %466 = vdwg.mxu0
      %v467 = vadd.f32 %v405, %v461
      %v468 = vadd.f32 %v406, %v464
      %v469 = vpack.c.bf16 %v412, %v412
      %s470 = scalar_lea.vmem %s1, 32
      %v471 = vld [vmem:[%s470] sm:$0xf]
      %v472 = vld [vmem:[%s470 + $0x4] sm:$0xf]
      %v473 = vshrl.u32 %v413, 16
      %v475 = vshll.u32 %v413, 16
      %v477 = vrot.slane %v475, 1
      %v478 = vor.u32 %v473, %v477
      %v480 = vshll.u32 %v469, 16
      %v482 = vrot.slane %v480, 1
      %v483 = vsel %vm233, %v478, %v482
      %v486 = vunpack.c.l.b16 %v471
      %v487 = vunpack.c.l.b16 %v472
      %v488 = vpack.c.b16 %v487, %v486
      %v491 = vsel %vm252, %v483, 0
      %493 = vmatprep.subr.bf16.mxu0 0
      %494 = vmatpush1.bf16.msra.mxu0 %v488
      %495 = vmatprep.subr.bf16.mxu0 0
      %496 = vmatpush1.bf16.msra.mxu0 0
      %497 = vmatprep.subr.bf16.mxu0 0
      %498 = vmatpush1.bf16.msra.mxu0 0
      %499 = vmatprep.subr.bf16.mxu0 0
      %500 = vmatpush1.bf16.msra.mxu0 0
      %501 = vmatprep.subr.bf16.mxu0 0
      %502 = vmatpush1.bf16.msra.mxu0 0
      %503 = vmatprep.subr.bf16.mxu0 0
      %504 = vmatpush1.bf16.msra.mxu0 0
      %505 = vmatprep.subr.bf16.mxu0 0
      %506 = vmatpush1.bf16.msra.mxu0 0
      %507 = vmatprep.subr.bf16.mxu0 0
      %508 = vmatpush1.bf16.msra.mxu0 0
      %509 = vmatprep.subr.bf16.mxu0 0
      %510 = vmatpush1.bf16.msra.mxu0 0
      %511 = vmatprep.subr.bf16.mxu0 0
      %512 = vmatpush1.bf16.msra.mxu0 0
      %513 = vmatprep.subr.bf16.mxu0 0
      %514 = vmatpush1.bf16.msra.mxu0 0
      %515 = vmatprep.subr.bf16.mxu0 0
      %516 = vmatpush1.bf16.msra.mxu0 0
      %517 = vmatprep.subr.bf16.mxu0 0
      %518 = vmatpush1.bf16.msra.mxu0 0
      %519 = vmatprep.subr.bf16.mxu0 0
      %520 = vmatpush1.bf16.msra.mxu0 0
      %521 = vmatprep.subr.bf16.mxu0 0
      %522 = vmatpush1.bf16.msra.mxu0 0
      %523 = vmatprep.subr.bf16.mxu0 0
      %524 = vmatpush1.bf16.msra.mxu0 0
      %525 = vmatprep.mubr.bf16.mxu0 0
      %526 = vmatmul.mubr.bf16.gmra.mrb[0].mxu0 %v491
      %v527 = vpop.f32.mrb[0].mxu0
      %v528 = vadd.f32 0.0, %v527
      %v529 = vpop.f32.mrb[0].mxu0
      %v530 = vpop.f32.mrb[0].mxu0
      %v531 = vadd.f32 0.0, %v530
      %v532 = vpop.f32.mrb[0].mxu0
      %533 = vdwg.mxu0
      %v534 = vadd.f32 %v467, %v528
      %v535 = vadd.f32 %v468, %v531
      %s536 = scalar_lea.vmem %s1, 40
      %v537 = vld [vmem:[%s536] sm:$0xf]
      %v538 = vld [vmem:[%s536 + $0x4] sm:$0xf]
      %v541 = vrot.slane %v413, 1
      %v542 = vrot.slane %v469, 1
      %v543 = vsel %vm351, %v541, %v542
      %v546 = vunpack.c.l.b16 %v537
      %v547 = vunpack.c.l.b16 %v538
      %v548 = vpack.c.b16 %v547, %v546
      %v551 = vsel %vm252, %v543, 0
      %553 = vmatprep.subr.bf16.mxu0 0
      %554 = vmatpush1.bf16.msra.mxu0 %v548
      %555 = vmatprep.subr.bf16.mxu0 0
      %556 = vmatpush1.bf16.msra.mxu0 0
      %557 = vmatprep.subr.bf16.mxu0 0
      %558 = vmatpush1.bf16.msra.mxu0 0
      %559 = vmatprep.subr.bf16.mxu0 0
      %560 = vmatpush1.bf16.msra.mxu0 0
      %561 = vmatprep.subr.bf16.mxu0 0
      %562 = vmatpush1.bf16.msra.mxu0 0
      %563 = vmatprep.subr.bf16.mxu0 0
      %564 = vmatpush1.bf16.msra.mxu0 0
      %565 = vmatprep.subr.bf16.mxu0 0
      %566 = vmatpush1.bf16.msra.mxu0 0
      %567 = vmatprep.subr.bf16.mxu0 0
      %568 = vmatpush1.bf16.msra.mxu0 0
      %569 = vmatprep.subr.bf16.mxu0 0
      %570 = vmatpush1.bf16.msra.mxu0 0
      %571 = vmatprep.subr.bf16.mxu0 0
      %572 = vmatpush1.bf16.msra.mxu0 0
      %573 = vmatprep.subr.bf16.mxu0 0
      %574 = vmatpush1.bf16.msra.mxu0 0
      %575 = vmatprep.subr.bf16.mxu0 0
      %576 = vmatpush1.bf16.msra.mxu0 0
      %577 = vmatprep.subr.bf16.mxu0 0
      %578 = vmatpush1.bf16.msra.mxu0 0
      %579 = vmatprep.subr.bf16.mxu0 0
      %580 = vmatpush1.bf16.msra.mxu0 0
      %581 = vmatprep.subr.bf16.mxu0 0
      %582 = vmatpush1.bf16.msra.mxu0 0
      %583 = vmatprep.subr.bf16.mxu0 0
      %584 = vmatpush1.bf16.msra.mxu0 0
      %585 = vmatprep.mubr.bf16.mxu0 0
      %586 = vmatmul.mubr.bf16.gmra.mrb[0].mxu0 %v551
      %v587 = vpop.f32.mrb[0].mxu0
      %v588 = vadd.f32 0.0, %v587
      %v589 = vpop.f32.mrb[0].mxu0
      %v590 = vpop.f32.mrb[0].mxu0
      %v591 = vadd.f32 0.0, %v590
      %v592 = vpop.f32.mrb[0].mxu0
      %593 = vdwg.mxu0
      %v594 = vadd.f32 %v534, %v588
      %v595 = vadd.f32 %v535, %v591
      %s596 = sadd.s32 %s20, 2
      %s597 = smul.u32 %s596, 24
      %s598 = scalar_lea.vmem %s210, %s597
      %v599 = vld [vmem:[%s598] sm:$0xff]
      %v600 = vld [vmem:[%s598 + $0x8] sm:$0xff]
      %v601 = vld [vmem:[%s598 + $0x10] sm:$0x3]
      %v602 = vpack.c.bf16 %v600, %v599
      %s603 = scalar_lea.vmem %s1, 48
      %v604 = vld [vmem:[%s603] sm:$0xf]
      %v605 = vld [vmem:[%s603 + $0x4] sm:$0xf]
      %v608 = vunpack.c.l.b16 %v604
      %v609 = vunpack.c.l.b16 %v605
      %v610 = vpack.c.b16 %v609, %v608
      %v613 = vsel %vm252, %v602, 0
      %615 = vmatprep.subr.bf16.mxu0 0
      %616 = vmatpush1.bf16.msra.mxu0 %v610
      %617 = vmatprep.subr.bf16.mxu0 0
      %618 = vmatpush1.bf16.msra.mxu0 0
      %619 = vmatprep.subr.bf16.mxu0 0
      %620 = vmatpush1.bf16.msra.mxu0 0
      %621 = vmatprep.subr.bf16.mxu0 0
      %622 = vmatpush1.bf16.msra.mxu0 0
      %623 = vmatprep.subr.bf16.mxu0 0
      %624 = vmatpush1.bf16.msra.mxu0 0
      %625 = vmatprep.subr.bf16.mxu0 0
      %626 = vmatpush1.bf16.msra.mxu0 0
      %627 = vmatprep.subr.bf16.mxu0 0
      %628 = vmatpush1.bf16.msra.mxu0 0
      %629 = vmatprep.subr.bf16.mxu0 0
      %630 = vmatpush1.bf16.msra.mxu0 0
      %631 = vmatprep.subr.bf16.mxu0 0
      %632 = vmatpush1.bf16.msra.mxu0 0
      %633 = vmatprep.subr.bf16.mxu0 0
      %634 = vmatpush1.bf16.msra.mxu0 0
      %635 = vmatprep.subr.bf16.mxu0 0
      %636 = vmatpush1.bf16.msra.mxu0 0
      %637 = vmatprep.subr.bf16.mxu0 0
      %638 = vmatpush1.bf16.msra.mxu0 0
      %639 = vmatprep.subr.bf16.mxu0 0
      %640 = vmatpush1.bf16.msra.mxu0 0
      %641 = vmatprep.subr.bf16.mxu0 0
      %642 = vmatpush1.bf16.msra.mxu0 0
      %643 = vmatprep.subr.bf16.mxu0 0
      %644 = vmatpush1.bf16.msra.mxu0 0
      %645 = vmatprep.subr.bf16.mxu0 0
      %646 = vmatpush1.bf16.msra.mxu0 0
      %647 = vmatprep.mubr.bf16.mxu0 0
      %648 = vmatmul.mubr.bf16.gmra.mrb[0].mxu0 %v613
      %v649 = vpop.f32.mrb[0].mxu0
      %v650 = vadd.f32 0.0, %v649
      %v651 = vpop.f32.mrb[0].mxu0
      %v652 = vpop.f32.mrb[0].mxu0
      %v653 = vadd.f32 0.0, %v652
      %v654 = vpop.f32.mrb[0].mxu0
      %655 = vdwg.mxu0
      %v656 = vadd.f32 %v594, %v650
      %v657 = vadd.f32 %v595, %v653
      %v658 = vpack.c.bf16 %v601, %v601
      %s659 = scalar_lea.vmem %s1, 56
      %v660 = vld [vmem:[%s659] sm:$0xf]
      %v661 = vld [vmem:[%s659 + $0x4] sm:$0xf]
      %v662 = vshrl.u32 %v602, 16
      %v664 = vshll.u32 %v602, 16
      %v666 = vrot.slane %v664, 1
      %v667 = vor.u32 %v662, %v666
      %v669 = vshll.u32 %v658, 16
      %v671 = vrot.slane %v669, 1
      %v672 = vsel %vm233, %v667, %v671
      %v675 = vunpack.c.l.b16 %v660
      %v676 = vunpack.c.l.b16 %v661
      %v677 = vpack.c.b16 %v676, %v675
      %v680 = vsel %vm252, %v672, 0
      %682 = vmatprep.subr.bf16.mxu0 0
      %683 = vmatpush1.bf16.msra.mxu0 %v677
      %684 = vmatprep.subr.bf16.mxu0 0
      %685 = vmatpush1.bf16.msra.mxu0 0
      %686 = vmatprep.subr.bf16.mxu0 0
      %687 = vmatpush1.bf16.msra.mxu0 0
      %688 = vmatprep.subr.bf16.mxu0 0
      %689 = vmatpush1.bf16.msra.mxu0 0
      %690 = vmatprep.subr.bf16.mxu0 0
      %691 = vmatpush1.bf16.msra.mxu0 0
      %692 = vmatprep.subr.bf16.mxu0 0
      %693 = vmatpush1.bf16.msra.mxu0 0
      %694 = vmatprep.subr.bf16.mxu0 0
      %695 = vmatpush1.bf16.msra.mxu0 0
      %696 = vmatprep.subr.bf16.mxu0 0
      %697 = vmatpush1.bf16.msra.mxu0 0
      %698 = vmatprep.subr.bf16.mxu0 0
      %699 = vmatpush1.bf16.msra.mxu0 0
      %700 = vmatprep.subr.bf16.mxu0 0
      %701 = vmatpush1.bf16.msra.mxu0 0
      %702 = vmatprep.subr.bf16.mxu0 0
      %703 = vmatpush1.bf16.msra.mxu0 0
      %704 = vmatprep.subr.bf16.mxu0 0
      %705 = vmatpush1.bf16.msra.mxu0 0
      %706 = vmatprep.subr.bf16.mxu0 0
      %707 = vmatpush1.bf16.msra.mxu0 0
      %708 = vmatprep.subr.bf16.mxu0 0
      %709 = vmatpush1.bf16.msra.mxu0 0
      %710 = vmatprep.subr.bf16.mxu0 0
      %711 = vmatpush1.bf16.msra.mxu0 0
      %712 = vmatprep.subr.bf16.mxu0 0
      %713 = vmatpush1.bf16.msra.mxu0 0
      %714 = vmatprep.mubr.bf16.mxu0 0
      %715 = vmatmul.mubr.bf16.gmra.mrb[0].mxu0 %v680
      %v716 = vpop.f32.mrb[0].mxu0
      %v717 = vadd.f32 0.0, %v716
      %v718 = vpop.f32.mrb[0].mxu0
      %v719 = vpop.f32.mrb[0].mxu0
      %v720 = vadd.f32 0.0, %v719
      %v721 = vpop.f32.mrb[0].mxu0
      %722 = vdwg.mxu0
      %v723 = vadd.f32 %v656, %v717
      %v724 = vadd.f32 %v657, %v720
      %s725 = scalar_lea.vmem %s1, 64
      %v726 = vld [vmem:[%s725] sm:$0xf]
      %v727 = vld [vmem:[%s725 + $0x4] sm:$0xf]
      %v730 = vrot.slane %v602, 1
      %v731 = vrot.slane %v658, 1
      %v732 = vsel %vm351, %v730, %v731
      %v735 = vunpack.c.l.b16 %v726
      %v736 = vunpack.c.l.b16 %v727
      %v737 = vpack.c.b16 %v736, %v735
      %v740 = vsel %vm252, %v732, 0
      %742 = vmatprep.subr.bf16.mxu0 0
      %743 = vmatpush1.bf16.msra.mxu0 %v737
      %744 = vmatprep.subr.bf16.mxu0 0
      %745 = vmatpush1.bf16.msra.mxu0 0
      %746 = vmatprep.subr.bf16.mxu0 0
      %747 = vmatpush1.bf16.msra.mxu0 0
      %748 = vmatprep.subr.bf16.mxu0 0
      %749 = vmatpush1.bf16.msra.mxu0 0
      %750 = vmatprep.subr.bf16.mxu0 0
      %751 = vmatpush1.bf16.msra.mxu0 0
      %752 = vmatprep.subr.bf16.mxu0 0
      %753 = vmatpush1.bf16.msra.mxu0 0
      %754 = vmatprep.subr.bf16.mxu0 0
      %755 = vmatpush1.bf16.msra.mxu0 0
      %756 = vmatprep.subr.bf16.mxu0 0
      %757 = vmatpush1.bf16.msra.mxu0 0
      %758 = vmatprep.subr.bf16.mxu0 0
      %759 = vmatpush1.bf16.msra.mxu0 0
      %760 = vmatprep.subr.bf16.mxu0 0
      %761 = vmatpush1.bf16.msra.mxu0 0
      %762 = vmatprep.subr.bf16.mxu0 0
      %763 = vmatpush1.bf16.msra.mxu0 0
      %764 = vmatprep.subr.bf16.mxu0 0
      %765 = vmatpush1.bf16.msra.mxu0 0
      %766 = vmatprep.subr.bf16.mxu0 0
      %767 = vmatpush1.bf16.msra.mxu0 0
      %768 = vmatprep.subr.bf16.mxu0 0
      %769 = vmatpush1.bf16.msra.mxu0 0
      %770 = vmatprep.subr.bf16.mxu0 0
      %771 = vmatpush1.bf16.msra.mxu0 0
      %772 = vmatprep.subr.bf16.mxu0 0
      %773 = vmatpush1.bf16.msra.mxu0 0
      %774 = vmatprep.mubr.bf16.mxu0 0
      %775 = vmatmul.mubr.bf16.gmra.mrb[0].mxu0 %v740
      %v776 = vpop.f32.mrb[0].mxu0
      %v777 = vadd.f32 0.0, %v776
      %v778 = vpop.f32.mrb[0].mxu0
      %v779 = vpop.f32.mrb[0].mxu0
      %v780 = vadd.f32 0.0, %v779
      %v781 = vpop.f32.mrb[0].mxu0
      %782 = vdwg.mxu0
      %v783 = vadd.f32 %v723, %v777
      %v784 = vadd.f32 %v724, %v780
      %v785 = vld [vmem:[%s2] sm:$0x1]
      %v787 = vlaneseq
      %v788 = vshrl.u32 %v787, 7
      %v789 = vsub.s32 0, %v788
      %v790 = vrot.slane %v785, %v789
      %v792 = vadd.f32 %v783, %v790
      %v793 = vadd.f32 %v784, %v790
      %v794 = vxor.u32 %v792, 2147483648
      %v795 = vxor.u32 %v793, 2147483648
      %v796 = vmul.f32 %v794, 1.442695
      %v797 = vpow.pop %v796
      %v798 = vmul.f32 %v795, 1.442695
      %v799 = vpow.pop %v798
      %v800 = vadd.f32 %v797, 1.0
      %v801 = vadd.f32 %v799, 1.0
      %v802 = vrcp.pop %v800
      %v803 = vmul.f32 1.0, %v802
      %v804 = vrcp.pop %v801
      %v805 = vmul.f32 1.0, %v804
      %v806 = vmul.f32 %v792, %v803
      %v807 = vmul.f32 %v793, %v805
      %v808 = vpack.c.bf16 %v807, %v806
      %v809 = vld [vmem:[%s3] sm:$0xf]
      %v810 = vld [vmem:[%s3 + $0x4] sm:$0xf]
      %v813 = vunpack.c.l.b16 %v809
      %v814 = vunpack.c.l.b16 %v810
      %v815 = vpack.c.b16 %v814, %v813
      %v818 = vsel %vm252, %v808, 0
      %820 = vmatprep.subr.bf16.mxu0 0
      %821 = vmatpush1.bf16.msra.mxu0 %v815
      %822 = vmatprep.subr.bf16.mxu0 0
      %823 = vmatpush1.bf16.msra.mxu0 0
      %824 = vmatprep.subr.bf16.mxu0 0
      %825 = vmatpush1.bf16.msra.mxu0 0
      %826 = vmatprep.subr.bf16.mxu0 0
      %827 = vmatpush1.bf16.msra.mxu0 0
      %828 = vmatprep.subr.bf16.mxu0 0
      %829 = vmatpush1.bf16.msra.mxu0 0
      %830 = vmatprep.subr.bf16.mxu0 0
      %831 = vmatpush1.bf16.msra.mxu0 0
      %832 = vmatprep.subr.bf16.mxu0 0
      %833 = vmatpush1.bf16.msra.mxu0 0
      %834 = vmatprep.subr.bf16.mxu0 0
      %835 = vmatpush1.bf16.msra.mxu0 0
      %836 = vmatprep.subr.bf16.mxu0 0
      %837 = vmatpush1.bf16.msra.mxu0 0
      %838 = vmatprep.subr.bf16.mxu0 0
      %839 = vmatpush1.bf16.msra.mxu0 0
      %840 = vmatprep.subr.bf16.mxu0 0
      %841 = vmatpush1.bf16.msra.mxu0 0
      %842 = vmatprep.subr.bf16.mxu0 0
      %843 = vmatpush1.bf16.msra.mxu0 0
      %844 = vmatprep.subr.bf16.mxu0 0
      %845 = vmatpush1.bf16.msra.mxu0 0
      %846 = vmatprep.subr.bf16.mxu0 0
      %847 = vmatpush1.bf16.msra.mxu0 0
      %848 = vmatprep.subr.bf16.mxu0 0
      %849 = vmatpush1.bf16.msra.mxu0 0
      %850 = vmatprep.subr.bf16.mxu0 0
      %851 = vmatpush1.bf16.msra.mxu0 0
      %852 = vmatprep.mubr.bf16.mxu0 0
      %853 = vmatmul.mubr.bf16.gmra.mrb[0].mxu0 %v818
      %v854 = vpop.f32.mrb[0].mxu0
      %v855 = vadd.f32 0.0, %v854
      %v856 = vpop.f32.mrb[0].mxu0
      %v857 = vpop.f32.mrb[0].mxu0
      %v858 = vadd.f32 0.0, %v857
      %v859 = vpop.f32.mrb[0].mxu0
      %860 = vdwg.mxu0
      %vm861 = vcmask 261120
      %862 = vst.msk [vmem:[%s219] sm:$0xff] %vm861, %v855
      %863 = vst.msk [vmem:[%s219 + $0x8] sm:$0xff] %vm861, %v858
      %p864 = scmp.lt.s32.totalorder %s19, 1
      %s865 = scalar_select %p864, %s19, 1
      %p866 = scmp.lt.s32.totalorder %s20, 15
      %s867 = scalar_select %p866, %s20, 15
      %s868 = smul.addr %s867, 2
      %s869 = smul.addr %s865, 32
      %s870 = sadd.s32 %s868, %s869
      %s871 = smul.addr %s870, 8
      %s872 = scalar_lea.vmem %s4, %s871
      // Predicated region
      $region37: #{forward.3} parent=35 // pred_check
        %p873 = pneg %p136
      $region38: #{forward.3} parent=35 // pred_check_branch
        %875 = sbr.rel (%p873) target = $region40
      $region39: #{forward.3} parent=35 // pred_region
        _
      $region40: #{forward.3} parent=35 // pred_fallthru
        _
    $region36: #{forward.3} parent=5 // pred_fallthru
      _
    %p876 = scmp.le.s32.totalorder 2, %s10
    // Predicated region
    $region41: #{forward.3} parent=5 // pred_check
      %p877 = pneg %p876
    $region42: #{forward.3} parent=5 // pred_check_branch
      %879 = sbr.rel (%p877) target = $region44
    $region43: #{forward.3} parent=5 // pred_region
      %s880 = ssub.s32 %s10, 2
      // Predicated region
      $region45: #{forward.3} parent=43 // pred_check
        %p881 = pneg %p142
      $region46: #{forward.3} parent=43 // pred_check_branch
        %883 = sbr.rel (%p881) target = $region48
      $region47: #{forward.3} parent=43 // pred_region
        %p884 = scmp.lt.s32.totalorder %s21, 1
        %s885 = scalar_select %p884, %s21, 1
        %p886 = scmp.lt.s32.totalorder %s22, 15
        %s887 = scalar_select %p886, %s22, 15
        %s888 = smul.addr %s887, 2
        %s889 = smul.addr %s885, 32
        %s890 = sadd.s32 %s888, %s889
        %s891 = smul.addr %s890, 8
        %s892 = scalar_lea.vmem %s4, %s891
      $region48: #{forward.3} parent=43 // pred_fallthru
        _
    $region44: #{forward.3} parent=5 // pred_fallthru
      _
  $region6: #{forward.3} parent=0 // loop_footer
    %s14 = sadd.s32 1, %s10
  $region7: #{forward.3} parent=0 // loop_footer_branch
    %9 = sbr.rel target = $region3
  $region8: #{forward.3} parent=0 // loop_exit
    _

// kernel: forward.5
$region0: #{forward.5}
  #allocation0 [shape = 'u32[]', space=smem, size = 0x4, offset = 0x4, fixed_abs, tag = 'smem constant byte address 0x4 - core index']
  #allocation1 [shape = 'u32[144,128]{1,0:T(1,128)}', space=vmem, size = 0x12000, scoped, tag = 'internal scratch']
  %s0 = inlined_call_operand.vmem [shape: f32[2,16,16,16], index: 0, kind: input, shape index: {}]
  %s1 = inlined_call_operand.vmem [shape: f32[2,16,16,16], index: 1, kind: input, shape index: {}]
  %s2 = inlined_call_operand.vmem [shape: bf16[9,16,16], index: 2, kind: input, shape index: {}]
  %s3 = inlined_call_operand.vmem [shape: bf16[9,16,16], index: 3, kind: input, shape index: {}]
  %s4 = inlined_call_operand.vmem [shape: f32[1,16], index: 4, kind: input, shape index: {}]
  %s5 = inlined_call_operand.vmem [shape: f32[2,14,14,16], index: 5, kind: output, shape index: {}]
  %s6 = sld [smem:[#allocation0]]
  $region53: #{forward.5} parent=0
    _
  %s8 = ssub.s32 1, %s6
  %s9 = scalar_select 0, %s8, %s6
  loop: start=0, step=1, limit=30
  $region2: #{forward.5} parent=0 // loop_pre_header
    _
  $region3: #{forward.5} parent=0 // loop_header
    %s11 = sphi 0, %s15
    %p12 = scmp.ge.s32.totalorder %s11, 30
    %s18 = sphi 0, %s30
    %s19 = sphi 0, %s26
    %s20 = sphi 0, %s18
    %s21 = sphi 0, %s19
    %s22 = sphi 0, %s20
    %s23 = sphi 0, %s21
    %s33 = sphi 0, %s35
    %s36 = sphi 0, %s33
    %s37 = sphi 0, %s36
    %s53 = sphi 0, %s37
    %s59 = sphi 0, %s61
    %s62 = sphi 0, %s59
    %s63 = sphi 0, %s62
    %s79 = sphi 0, %s63
    %s83 = sphi 0, %s83
    %s85 = sphi 0, %s83
    %s86 = sphi 0, %s85
    %s100 = sphi 0, %s86
    %s104 = sphi 0, %s104
    %s106 = sphi 0, %s104
    %s107 = sphi 0, %s106
    %s121 = sphi 0, %s107
    %s125 = sphi 0, %s125
    %s127 = sphi 0, %s125
    %s128 = sphi 0, %s127
    %s142 = sphi 0, %s128
    %s150 = sphi 0, %s152
    %s153 = sphi 0, %s150
    %s154 = sphi 0, %s153
    %s170 = sphi 0, %s154
  $region4: #{forward.5} parent=0 // loop_header_branch
    %14 = sbr.rel (%p12) target = $region8
  $region5: #{forward.5} parent=0 // loop_body
    %s16 = ssub.s32 %s11, 1
    %s17 = ssub.s32 %s11, 2
    %s24 = sadd.s32 1, %s19
    %p25 = scmp.ge.s32.totalorder %s24, 14
    %s26 = scalar_select %p25, 0, %s24
    %s27 = sadd.s32 1, %s18
    %s28 = scalar_select %p25, %s27, %s18
    %p29 = scmp.ge.s32.totalorder %s28, 2
    %s30 = scalar_select %p29, 0, %s28
    %s31 = ssub.s32 %s18, %s30
    %p32 = scmp.eq.s32.totalorder %s31, 0
    %s34 = sadd.s32 %s33, 1
    %s35 = scalar_select %p32, %s33, %s34
    %p38 = pneg %p32
    %p39 = scmp.eq.s32.totalorder %s11, 27
    %p40 = por %p38, %p39
    %p41 = scmp.ne.s32.totalorder %s33, %s36
    %p42 = scmp.eq.s32.totalorder %s11, 0
    %p43 = por %p41, %p42
    %p44 = scmp.ne.s32.totalorder %s33, %s36
    %p45 = scmp.eq.s32.totalorder %s16, 27
    %p46 = por %p44, %p45
    %p47 = scmp.ne.s32.totalorder %s36, %s37
    %p48 = scmp.eq.s32.totalorder %s16, 0
    %p49 = por %p47, %p48
    %p50 = scmp.ne.s32.totalorder %s36, %s37
    %p51 = scmp.eq.s32.totalorder %s17, 27
    %p52 = por %p50, %p51
    %p54 = scmp.ne.s32.totalorder %s37, %s53
    %p55 = scmp.eq.s32.totalorder %s17, 0
    %p56 = por %p54, %p55
    %s57 = ssub.s32 %s18, %s30
    %p58 = scmp.eq.s32.totalorder %s57, 0
    %s60 = sadd.s32 %s59, 1
    %s61 = scalar_select %p58, %s59, %s60
    %p64 = pneg %p58
    %p65 = scmp.eq.s32.totalorder %s11, 27
    %p66 = por %p64, %p65
    %p67 = scmp.ne.s32.totalorder %s59, %s62
    %p68 = scmp.eq.s32.totalorder %s11, 0
    %p69 = por %p67, %p68
    %p70 = scmp.ne.s32.totalorder %s59, %s62
    %p71 = scmp.eq.s32.totalorder %s16, 27
    %p72 = por %p70, %p71
    %p73 = scmp.ne.s32.totalorder %s62, %s63
    %p74 = scmp.eq.s32.totalorder %s16, 0
    %p75 = por %p73, %p74
    %p76 = scmp.ne.s32.totalorder %s62, %s63
    %p77 = scmp.eq.s32.totalorder %s17, 27
    %p78 = por %p76, %p77
    %p80 = scmp.ne.s32.totalorder %s63, %s79
    %p81 = scmp.eq.s32.totalorder %s17, 0
    %p82 = por %p80, %p81
    %s84 = sadd.s32 %s83, 1
    %p87 = scmp.eq.s32.totalorder %s11, 27
    %p88 = scmp.ne.s32.totalorder %s83, %s85
    %p89 = scmp.eq.s32.totalorder %s11, 0
    %p90 = por %p88, %p89
    %p91 = scmp.ne.s32.totalorder %s83, %s85
    %p92 = scmp.eq.s32.totalorder %s16, 27
    %p93 = por %p91, %p92
    %p94 = scmp.ne.s32.totalorder %s85, %s86
    %p95 = scmp.eq.s32.totalorder %s16, 0
    %p96 = por %p94, %p95
    %p97 = scmp.ne.s32.totalorder %s85, %s86
    %p98 = scmp.eq.s32.totalorder %s17, 27
    %p99 = por %p97, %p98
    %p101 = scmp.ne.s32.totalorder %s86, %s100
    %p102 = scmp.eq.s32.totalorder %s17, 0
    %p103 = por %p101, %p102
    %s105 = sadd.s32 %s104, 1
    %p108 = scmp.eq.s32.totalorder %s11, 27
    %p109 = scmp.ne.s32.totalorder %s104, %s106
    %p110 = scmp.eq.s32.totalorder %s11, 0
    %p111 = por %p109, %p110
    %p112 = scmp.ne.s32.totalorder %s104, %s106
    %p113 = scmp.eq.s32.totalorder %s16, 27
    %p114 = por %p112, %p113
    %p115 = scmp.ne.s32.totalorder %s106, %s107
    %p116 = scmp.eq.s32.totalorder %s16, 0
    %p117 = por %p115, %p116
    %p118 = scmp.ne.s32.totalorder %s106, %s107
    %p119 = scmp.eq.s32.totalorder %s17, 27
    %p120 = por %p118, %p119
    %p122 = scmp.ne.s32.totalorder %s107, %s121
    %p123 = scmp.eq.s32.totalorder %s17, 0
    %p124 = por %p122, %p123
    %s126 = sadd.s32 %s125, 1
    %p129 = scmp.eq.s32.totalorder %s11, 27
    %p130 = scmp.ne.s32.totalorder %s125, %s127
    %p131 = scmp.eq.s32.totalorder %s11, 0
    %p132 = por %p130, %p131
    %p133 = scmp.ne.s32.totalorder %s125, %s127
    %p134 = scmp.eq.s32.totalorder %s16, 27
    %p135 = por %p133, %p134
    %p136 = scmp.ne.s32.totalorder %s127, %s128
    %p137 = scmp.eq.s32.totalorder %s16, 0
    %p138 = por %p136, %p137
    %p139 = scmp.ne.s32.totalorder %s127, %s128
    %p140 = scmp.eq.s32.totalorder %s17, 27
    %p141 = por %p139, %p140
    %p143 = scmp.ne.s32.totalorder %s128, %s142
    %p144 = scmp.eq.s32.totalorder %s17, 0
    %p145 = por %p143, %p144
    %s146 = ssub.s32 %s18, %s30
    %s147 = ssub.s32 %s19, %s26
    %s148 = sor.u32 %s146, %s147
    %p149 = scmp.eq.s32.totalorder %s148, 0
    %s151 = sadd.s32 %s150, 1
    %s152 = scalar_select %p149, %s150, %s151
    %p155 = pneg %p149
    %p156 = scmp.eq.s32.totalorder %s11, 27
    %p157 = por %p155, %p156
    %p158 = scmp.ne.s32.totalorder %s150, %s153
    %p159 = scmp.eq.s32.totalorder %s11, 0
    %p160 = por %p158, %p159
    %p161 = scmp.ne.s32.totalorder %s150, %s153
    %p162 = scmp.eq.s32.totalorder %s16, 27
    %p163 = por %p161, %p162
    %p164 = scmp.ne.s32.totalorder %s153, %s154
    %p165 = scmp.eq.s32.totalorder %s16, 0
    %p166 = por %p164, %p165
    %p167 = scmp.ne.s32.totalorder %s153, %s154
    %p168 = scmp.eq.s32.totalorder %s17, 27
    %p169 = por %p167, %p168
    %p171 = scmp.ne.s32.totalorder %s154, %s170
    %p172 = scmp.eq.s32.totalorder %s17, 0
    %p173 = por %p171, %p172
    %p174 = scmp.le.s32.totalorder 1, %s11
    %p175 = scmp.lt.s32.totalorder %s11, 29
    %p176 = pnand %p174, %p175
    %p177 = pneg %p176
    // Predicated region
    $region9: #{forward.5} parent=5 // pred_check
      _
    $region10: #{forward.5} parent=5 // pred_check_branch
      %179 = sbr.rel (%p176) target = $region12
    $region11: #{forward.5} parent=5 // pred_region
      %s180 = ssub.s32 %s11, 1
      // Predicated region
      $region13: #{forward.5} parent=11 // pred_check
        %p181 = pneg %p96
      $region14: #{forward.5} parent=11 // pred_check_branch
        %183 = sbr.rel (%p181) target = $region16
      $region15: #{forward.5} parent=11 // pred_region
        _
      $region16: #{forward.5} parent=11 // pred_fallthru
        _
      // Predicated region
      $region17: #{forward.5} parent=11 // pred_check
        %p184 = pneg %p117
      $region18: #{forward.5} parent=11 // pred_check_branch
        %186 = sbr.rel (%p184) target = $region20
      $region19: #{forward.5} parent=11 // pred_region
        _
      $region20: #{forward.5} parent=11 // pred_fallthru
        _
      // Predicated region
      $region21: #{forward.5} parent=11 // pred_check
        %p187 = pneg %p138
      $region22: #{forward.5} parent=11 // pred_check_branch
        %189 = sbr.rel (%p187) target = $region24
      $region23: #{forward.5} parent=11 // pred_region
        _
      $region24: #{forward.5} parent=11 // pred_fallthru
        _
    $region12: #{forward.5} parent=5 // pred_fallthru
      _
    %p190 = scmp.lt.s32.totalorder %s11, 28
    // Predicated region
    $region25: #{forward.5} parent=5 // pred_check
      %p191 = pneg %p190
    $region26: #{forward.5} parent=5 // pred_check_branch
      %193 = sbr.rel (%p191) target = $region28
    $region27: #{forward.5} parent=5 // pred_region
      // Predicated region
      $region29: #{forward.5} parent=27 // pred_check
        %p194 = pneg %p43
      $region30: #{forward.5} parent=27 // pred_check_branch
        %196 = sbr.rel (%p194) target = $region32
      $region31: #{forward.5} parent=27 // pred_region
        %p197 = scmp.lt.s32.totalorder %s18, 1
        %s198 = scalar_select %p197, %s18, 1
        %s199 = smul.addr %s198, 32
        %s200 = smul.addr %s199, 8
        %s201 = scalar_lea.vmem %s0, %s200
      $region32: #{forward.5} parent=27 // pred_fallthru
        _
      // Predicated region
      $region33: #{forward.5} parent=27 // pred_check
        %p202 = pneg %p69
      $region34: #{forward.5} parent=27 // pred_check_branch
        %204 = sbr.rel (%p202) target = $region36
      $region35: #{forward.5} parent=27 // pred_region
        %p205 = scmp.lt.s32.totalorder %s18, 1
        %s206 = scalar_select %p205, %s18, 1
        %s207 = smul.addr %s206, 32
        %s208 = smul.addr %s207, 8
        %s209 = scalar_lea.vmem %s1, %s208
      $region36: #{forward.5} parent=27 // pred_fallthru
        _
    $region28: #{forward.5} parent=5 // pred_fallthru
      _
    %p210 = scmp.le.s32.totalorder 1, %s11
    %p211 = scmp.lt.s32.totalorder %s11, 29
    %p212 = pnand %p210, %p211
    %p213 = pneg %p212
    // Predicated region
    $region37: #{forward.5} parent=5 // pred_check
      _
    $region38: #{forward.5} parent=5 // pred_check_branch
      %215 = sbr.rel (%p212) target = $region40
    $region39: #{forward.5} parent=5 // pred_region
      %s216 = ssub.s32 %s11, 1
      %p217 = scmp.lt.s32.totalorder %s20, 1
      %s218 = scalar_select %p217, %s20, 1
      %s219 = smul.addr %s218, 32
      %s220 = smul.addr %s219, 8
      %s221 = scalar_lea.vmem %s0, %s220
      %p222 = pneg %p49
      %p223 = pneg %p46
      %p224 = scmp.lt.s32.totalorder %s20, 1
      %s225 = scalar_select %p224, %s20, 1
      %s226 = smul.addr %s225, 32
      %s227 = smul.addr %s226, 8
      %s228 = scalar_lea.vmem %s1, %s227
      %p229 = pneg %p75
      %p230 = pneg %p72
      %p231 = pneg %p96
      %p232 = pneg %p93
      %p233 = pneg %p117
      %p234 = pneg %p114
      %p235 = pneg %p138
      %p236 = pneg %p135
      %p237 = pneg %p166
      %p238 = pneg %p163
      %p239 = scmp.lt.s32.totalorder %s20, 1
      %s240 = scalar_select %p239, %s20, 1
      %p241 = scmp.lt.s32.totalorder %s21, 13
      %s242 = scalar_select %p241, %s21, 13
      %s243 = smul.addr %s242, 2
      %s244 = smul.addr %s240, 28
      %s245 = sadd.s32 %s243, %s244
      %s246 = smul.addr %s245, 8
      %s247 = scalar_lea.vmem %s5, %s246
      %p248 = scmp.lt.s32.totalorder %s20, 1
      %s249 = scalar_select %p248, %s20, 1
      %s250 = smul.addr %s249, 32
      %s251 = smul.addr %s250, 8
      %s252 = scalar_lea.vmem %s0, %s251
      %p253 = scmp.lt.s32.totalorder %s20, 1
      %s254 = scalar_select %p253, %s20, 1
      %s255 = smul.addr %s254, 32
      %s256 = smul.addr %s255, 8
      %s257 = scalar_lea.vmem %s1, %s256
      %p258 = scmp.lt.s32.totalorder %s20, 1
      %s259 = scalar_select %p258, %s20, 1
      %p260 = scmp.lt.s32.totalorder %s21, 13
      %s261 = scalar_select %p260, %s21, 13
      %s262 = smul.addr %s261, 2
      %s263 = smul.addr %s259, 28
      %s264 = sadd.s32 %s262, %s263
      %s265 = smul.addr %s264, 8
      %s266 = scalar_lea.vmem %s5, %s265
      %s268 = smul.u32 %s21, 16
      %s269 = scalar_lea.vmem %s252, %s268
      %v270 = vld [vmem:[%s269] sm:$0xff]
      %v271 = vld [vmem:[%s269 + $0x8] sm:$0xff]
      %s272 = scalar_lea.vmem %s257, %s268
      %v273 = vld [vmem:[%s272] sm:$0xff]
      %v274 = vld [vmem:[%s272 + $0x8] sm:$0xff]
      %v275 = vpack.c.bf16 %v271, %v270
      %v276 = vld [vmem:[%s2] sm:$0xf]
      %v277 = vld [vmem:[%s2 + $0x4] sm:$0xf]
      %v278 = vpack.c.bf16 %v274, %v273
      %v279 = vld [vmem:[%s3] sm:$0xf]
      %v280 = vld [vmem:[%s3 + $0x4] sm:$0xf]
      %v283 = vunpack.c.l.b16 %v279
      %v284 = vunpack.c.l.b16 %v280
      %v285 = vpack.c.b16 %v284, %v283
      %vm287 = vcmask 130048
      %v289 = vsel %vm287, %v278, 0
      %291 = vmatprep.subr.bf16.mxu0 0
      %292 = vmatpush1.bf16.msra.mxu0 %v285
      %293 = vmatprep.subr.bf16.mxu0 0
      %294 = vmatpush1.bf16.msra.mxu0 0
      %295 = vmatprep.subr.bf16.mxu0 0
      %296 = vmatpush1.bf16.msra.mxu0 0
      %297 = vmatprep.subr.bf16.mxu0 0
      %298 = vmatpush1.bf16.msra.mxu0 0
      %299 = vmatprep.subr.bf16.mxu0 0
      %300 = vmatpush1.bf16.msra.mxu0 0
      %301 = vmatprep.subr.bf16.mxu0 0
      %302 = vmatpush1.bf16.msra.mxu0 0
      %303 = vmatprep.subr.bf16.mxu0 0
      %304 = vmatpush1.bf16.msra.mxu0 0
      %305 = vmatprep.subr.bf16.mxu0 0
      %306 = vmatpush1.bf16.msra.mxu0 0
      %307 = vmatprep.subr.bf16.mxu0 0
      %308 = vmatpush1.bf16.msra.mxu0 0
      %309 = vmatprep.subr.bf16.mxu0 0
      %310 = vmatpush1.bf16.msra.mxu0 0
      %311 = vmatprep.subr.bf16.mxu0 0
      %312 = vmatpush1.bf16.msra.mxu0 0
      %313 = vmatprep.subr.bf16.mxu0 0
      %314 = vmatpush1.bf16.msra.mxu0 0
      %315 = vmatprep.subr.bf16.mxu0 0
      %316 = vmatpush1.bf16.msra.mxu0 0
      %317 = vmatprep.subr.bf16.mxu0 0
      %318 = vmatpush1.bf16.msra.mxu0 0
      %319 = vmatprep.subr.bf16.mxu0 0
      %320 = vmatpush1.bf16.msra.mxu0 0
      %321 = vmatprep.subr.bf16.mxu0 0
      %322 = vmatpush1.bf16.msra.mxu0 0
      %323 = vmatprep.mubr.bf16.mxu0 0
      %324 = vmatmul.mubr.bf16.gmra.mrb[0].mxu0 %v289
      %v325 = vpop.f32.mrb[0].mxu0
      %v326 = vadd.f32 0.0, %v325
      %v327 = vpop.f32.mrb[0].mxu0
      %v328 = vpop.f32.mrb[0].mxu0
      %v329 = vadd.f32 0.0, %v328
      %v330 = vpop.f32.mrb[0].mxu0
      %331 = vdwg.mxu0
      %v334 = vunpack.c.l.b16 %v276
      %v335 = vunpack.c.l.b16 %v277
      %v336 = vpack.c.b16 %v335, %v334
      %v339 = vsel %vm287, %v275, 0
      %341 = vmatprep.subr.bf16.mxu0 0
      %342 = vmatpush1.bf16.msra.mxu0 %v336
      %343 = vmatprep.subr.bf16.mxu0 0
      %344 = vmatpush1.bf16.msra.mxu0 0
      %345 = vmatprep.subr.bf16.mxu0 0
      %346 = vmatpush1.bf16.msra.mxu0 0
      %347 = vmatprep.subr.bf16.mxu0 0
      %348 = vmatpush1.bf16.msra.mxu0 0
      %349 = vmatprep.subr.bf16.mxu0 0
      %350 = vmatpush1.bf16.msra.mxu0 0
      %351 = vmatprep.subr.bf16.mxu0 0
      %352 = vmatpush1.bf16.msra.mxu0 0
      %353 = vmatprep.subr.bf16.mxu0 0
      %354 = vmatpush1.bf16.msra.mxu0 0
      %355 = vmatprep.subr.bf16.mxu0 0
      %356 = vmatpush1.bf16.msra.mxu0 0
      %357 = vmatprep.subr.bf16.mxu0 0
      %358 = vmatpush1.bf16.msra.mxu0 0
      %359 = vmatprep.subr.bf16.mxu0 0
      %360 = vmatpush1.bf16.msra.mxu0 0
      %361 = vmatprep.subr.bf16.mxu0 0
      %362 = vmatpush1.bf16.msra.mxu0 0
      %363 = vmatprep.subr.bf16.mxu0 0
      %364 = vmatpush1.bf16.msra.mxu0 0
      %365 = vmatprep.subr.bf16.mxu0 0
      %366 = vmatpush1.bf16.msra.mxu0 0
      %367 = vmatprep.subr.bf16.mxu0 0
      %368 = vmatpush1.bf16.msra.mxu0 0
      %369 = vmatprep.subr.bf16.mxu0 0
      %370 = vmatpush1.bf16.msra.mxu0 0
      %371 = vmatprep.subr.bf16.mxu0 0
      %372 = vmatpush1.bf16.msra.mxu0 0
      %373 = vmatprep.mubr.bf16.mxu0 0
      %374 = vmatmul.mubr.bf16.gmra.mrb[0].mxu0 %v339
      %v375 = vpop.f32.mrb[0].mxu0
      %v376 = vadd.f32 %v326, %v375
      %v377 = vpop.f32.mrb[0].mxu0
      %v378 = vpop.f32.mrb[0].mxu0
      %v379 = vadd.f32 %v329, %v378
      %v380 = vpop.f32.mrb[0].mxu0
      %381 = vdwg.mxu0
      %s382 = scalar_lea.vmem %s2, 8
      %v383 = vld [vmem:[%s382] sm:$0xf]
      %v384 = vld [vmem:[%s382 + $0x4] sm:$0xf]
      %v385 = vshrl.u32 %v275, 16
      %v387 = vshll.u32 %v275, 16
      %v389 = vrot.slane %v387, 1
      %v390 = vor.u32 %v385, %v389
      %v393 = vunpack.c.l.b16 %v383
      %v394 = vunpack.c.l.b16 %v384
      %v395 = vpack.c.b16 %v394, %v393
      %v398 = vsel %vm287, %v390, 0
      %400 = vmatprep.subr.bf16.mxu0 0
      %401 = vmatpush1.bf16.msra.mxu0 %v395
      %402 = vmatprep.subr.bf16.mxu0 0
      %403 = vmatpush1.bf16.msra.mxu0 0
      %404 = vmatprep.subr.bf16.mxu0 0
      %405 = vmatpush1.bf16.msra.mxu0 0
      %406 = vmatprep.subr.bf16.mxu0 0
      %407 = vmatpush1.bf16.msra.mxu0 0
      %408 = vmatprep.subr.bf16.mxu0 0
      %409 = vmatpush1.bf16.msra.mxu0 0
      %410 = vmatprep.subr.bf16.mxu0 0
      %411 = vmatpush1.bf16.msra.mxu0 0
      %412 = vmatprep.subr.bf16.mxu0 0
      %413 = vmatpush1.bf16.msra.mxu0 0
      %414 = vmatprep.subr.bf16.mxu0 0
      %415 = vmatpush1.bf16.msra.mxu0 0
      %416 = vmatprep.subr.bf16.mxu0 0
      %417 = vmatpush1.bf16.msra.mxu0 0
      %418 = vmatprep.subr.bf16.mxu0 0
      %419 = vmatpush1.bf16.msra.mxu0 0
      %420 = vmatprep.subr.bf16.mxu0 0
      %421 = vmatpush1.bf16.msra.mxu0 0
      %422 = vmatprep.subr.bf16.mxu0 0
      %423 = vmatpush1.bf16.msra.mxu0 0
      %424 = vmatprep.subr.bf16.mxu0 0
      %425 = vmatpush1.bf16.msra.mxu0 0
      %426 = vmatprep.subr.bf16.mxu0 0
      %427 = vmatpush1.bf16.msra.mxu0 0
      %428 = vmatprep.subr.bf16.mxu0 0
      %429 = vmatpush1.bf16.msra.mxu0 0
      %430 = vmatprep.subr.bf16.mxu0 0
      %431 = vmatpush1.bf16.msra.mxu0 0
      %432 = vmatprep.mubr.bf16.mxu0 0
      %433 = vmatmul.mubr.bf16.gmra.mrb[0].mxu0 %v398
      %v434 = vpop.f32.mrb[0].mxu0
      %v435 = vadd.f32 0.0, %v434
      %v436 = vpop.f32.mrb[0].mxu0
      %v437 = vpop.f32.mrb[0].mxu0
      %v438 = vadd.f32 0.0, %v437
      %v439 = vpop.f32.mrb[0].mxu0
      %440 = vdwg.mxu0
      %v441 = vadd.f32 %v376, %v435
      %v442 = vadd.f32 %v379, %v438
      %s443 = scalar_lea.vmem %s3, 8
      %v444 = vld [vmem:[%s443] sm:$0xf]
      %v445 = vld [vmem:[%s443 + $0x4] sm:$0xf]
      %v446 = vshrl.u32 %v278, 16
      %v448 = vshll.u32 %v278, 16
      %v450 = vrot.slane %v448, 1
      %v451 = vor.u32 %v446, %v450
      %v454 = vunpack.c.l.b16 %v444
      %v455 = vunpack.c.l.b16 %v445
      %v456 = vpack.c.b16 %v455, %v454
      %v459 = vsel %vm287, %v451, 0
      %461 = vmatprep.subr.bf16.mxu0 0
      %462 = vmatpush1.bf16.msra.mxu0 %v456
      %463 = vmatprep.subr.bf16.mxu0 0
      %464 = vmatpush1.bf16.msra.mxu0 0
      %465 = vmatprep.subr.bf16.mxu0 0
      %466 = vmatpush1.bf16.msra.mxu0 0
      %467 = vmatprep.subr.bf16.mxu0 0
      %468 = vmatpush1.bf16.msra.mxu0 0
      %469 = vmatprep.subr.bf16.mxu0 0
      %470 = vmatpush1.bf16.msra.mxu0 0
      %471 = vmatprep.subr.bf16.mxu0 0
      %472 = vmatpush1.bf16.msra.mxu0 0
      %473 = vmatprep.subr.bf16.mxu0 0
      %474 = vmatpush1.bf16.msra.mxu0 0
      %475 = vmatprep.subr.bf16.mxu0 0
      %476 = vmatpush1.bf16.msra.mxu0 0
      %477 = vmatprep.subr.bf16.mxu0 0
      %478 = vmatpush1.bf16.msra.mxu0 0
      %479 = vmatprep.subr.bf16.mxu0 0
      %480 = vmatpush1.bf16.msra.mxu0 0
      %481 = vmatprep.subr.bf16.mxu0 0
      %482 = vmatpush1.bf16.msra.mxu0 0
      %483 = vmatprep.subr.bf16.mxu0 0
      %484 = vmatpush1.bf16.msra.mxu0 0
      %485 = vmatprep.subr.bf16.mxu0 0
      %486 = vmatpush1.bf16.msra.mxu0 0
      %487 = vmatprep.subr.bf16.mxu0 0
      %488 = vmatpush1.bf16.msra.mxu0 0
      %489 = vmatprep.subr.bf16.mxu0 0
      %490 = vmatpush1.bf16.msra.mxu0 0
      %491 = vmatprep.subr.bf16.mxu0 0
      %492 = vmatpush1.bf16.msra.mxu0 0
      %493 = vmatprep.mubr.bf16.mxu0 0
      %494 = vmatmul.mubr.bf16.gmra.mrb[0].mxu0 %v459
      %v495 = vpop.f32.mrb[0].mxu0
      %v496 = vadd.f32 0.0, %v495
      %v497 = vpop.f32.mrb[0].mxu0
      %v498 = vpop.f32.mrb[0].mxu0
      %v499 = vadd.f32 0.0, %v498
      %v500 = vpop.f32.mrb[0].mxu0
      %501 = vdwg.mxu0
      %v502 = vadd.f32 %v441, %v496
      %v503 = vadd.f32 %v442, %v499
      %s504 = scalar_lea.vmem %s2, 16
      %v505 = vld [vmem:[%s504] sm:$0xf]
      %v506 = vld [vmem:[%s504 + $0x4] sm:$0xf]
      %v508 = vrot.slane %v275, 1
      %v511 = vunpack.c.l.b16 %v505
      %v512 = vunpack.c.l.b16 %v506
      %v513 = vpack.c.b16 %v512, %v511
      %v516 = vsel %vm287, %v508, 0
      %518 = vmatprep.subr.bf16.mxu0 0
      %519 = vmatpush1.bf16.msra.mxu0 %v513
      %520 = vmatprep.subr.bf16.mxu0 0
      %521 = vmatpush1.bf16.msra.mxu0 0
      %522 = vmatprep.subr.bf16.mxu0 0
      %523 = vmatpush1.bf16.msra.mxu0 0
      %524 = vmatprep.subr.bf16.mxu0 0
      %525 = vmatpush1.bf16.msra.mxu0 0
      %526 = vmatprep.subr.bf16.mxu0 0
      %527 = vmatpush1.bf16.msra.mxu0 0
      %528 = vmatprep.subr.bf16.mxu0 0
      %529 = vmatpush1.bf16.msra.mxu0 0
      %530 = vmatprep.subr.bf16.mxu0 0
      %531 = vmatpush1.bf16.msra.mxu0 0
      %532 = vmatprep.subr.bf16.mxu0 0
      %533 = vmatpush1.bf16.msra.mxu0 0
      %534 = vmatprep.subr.bf16.mxu0 0
      %535 = vmatpush1.bf16.msra.mxu0 0
      %536 = vmatprep.subr.bf16.mxu0 0
      %537 = vmatpush1.bf16.msra.mxu0 0
      %538 = vmatprep.subr.bf16.mxu0 0
      %539 = vmatpush1.bf16.msra.mxu0 0
      %540 = vmatprep.subr.bf16.mxu0 0
      %541 = vmatpush1.bf16.msra.mxu0 0
      %542 = vmatprep.subr.bf16.mxu0 0
      %543 = vmatpush1.bf16.msra.mxu0 0
      %544 = vmatprep.subr.bf16.mxu0 0
      %545 = vmatpush1.bf16.msra.mxu0 0
      %546 = vmatprep.subr.bf16.mxu0 0
      %547 = vmatpush1.bf16.msra.mxu0 0
      %548 = vmatprep.subr.bf16.mxu0 0
      %549 = vmatpush1.bf16.msra.mxu0 0
      %550 = vmatprep.mubr.bf16.mxu0 0
      %551 = vmatmul.mubr.bf16.gmra.mrb[0].mxu0 %v516
      %v552 = vpop.f32.mrb[0].mxu0
      %v553 = vadd.f32 0.0, %v552
      %v554 = vpop.f32.mrb[0].mxu0
      %v555 = vpop.f32.mrb[0].mxu0
      %v556 = vadd.f32 0.0, %v555
      %v557 = vpop.f32.mrb[0].mxu0
      %558 = vdwg.mxu0
      %v559 = vadd.f32 %v502, %v553
      %v560 = vadd.f32 %v503, %v556
      %s561 = scalar_lea.vmem %s3, 16
      %v562 = vld [vmem:[%s561] sm:$0xf]
      %v563 = vld [vmem:[%s561 + $0x4] sm:$0xf]
      %v565 = vrot.slane %v278, 1
      %v568 = vunpack.c.l.b16 %v562
      %v569 = vunpack.c.l.b16 %v563
      %v570 = vpack.c.b16 %v569, %v568
      %v573 = vsel %vm287, %v565, 0
      %575 = vmatprep.subr.bf16.mxu0 0
      %576 = vmatpush1.bf16.msra.mxu0 %v570
      %577 = vmatprep.subr.bf16.mxu0 0
      %578 = vmatpush1.bf16.msra.mxu0 0
      %579 = vmatprep.subr.bf16.mxu0 0
      %580 = vmatpush1.bf16.msra.mxu0 0
      %581 = vmatprep.subr.bf16.mxu0 0
      %582 = vmatpush1.bf16.msra.mxu0 0
      %583 = vmatprep.subr.bf16.mxu0 0
      %584 = vmatpush1.bf16.msra.mxu0 0
      %585 = vmatprep.subr.bf16.mxu0 0
      %586 = vmatpush1.bf16.msra.mxu0 0
      %587 = vmatprep.subr.bf16.mxu0 0
      %588 = vmatpush1.bf16.msra.mxu0 0
      %589 = vmatprep.subr.bf16.mxu0 0
      %590 = vmatpush1.bf16.msra.mxu0 0
      %591 = vmatprep.subr.bf16.mxu0 0
      %592 = vmatpush1.bf16.msra.mxu0 0
      %593 = vmatprep.subr.bf16.mxu0 0
      %594 = vmatpush1.bf16.msra.mxu0 0
      %595 = vmatprep.subr.bf16.mxu0 0
      %596 = vmatpush1.bf16.msra.mxu0 0
      %597 = vmatprep.subr.bf16.mxu0 0
      %598 = vmatpush1.bf16.msra.mxu0 0
      %599 = vmatprep.subr.bf16.mxu0 0
      %600 = vmatpush1.bf16.msra.mxu0 0
      %601 = vmatprep.subr.bf16.mxu0 0
      %602 = vmatpush1.bf16.msra.mxu0 0
      %603 = vmatprep.subr.bf16.mxu0 0
      %604 = vmatpush1.bf16.msra.mxu0 0
      %605 = vmatprep.subr.bf16.mxu0 0
      %606 = vmatpush1.bf16.msra.mxu0 0
      %607 = vmatprep.mubr.bf16.mxu0 0
      %608 = vmatmul.mubr.bf16.gmra.mrb[0].mxu0 %v573
      %v609 = vpop.f32.mrb[0].mxu0
      %v610 = vadd.f32 0.0, %v609
      %v611 = vpop.f32.mrb[0].mxu0
      %v612 = vpop.f32.mrb[0].mxu0
      %v613 = vadd.f32 0.0, %v612
      %v614 = vpop.f32.mrb[0].mxu0
      %615 = vdwg.mxu0
      %v616 = vadd.f32 %v559, %v610
      %v617 = vadd.f32 %v560, %v613
      %s618 = sadd.s32 %s21, 1
      %s619 = smul.u32 %s618, 16
      %s620 = scalar_lea.vmem %s252, %s619
      %v621 = vld [vmem:[%s620] sm:$0xff]
      %v622 = vld [vmem:[%s620 + $0x8] sm:$0xff]
      %s623 = scalar_lea.vmem %s257, %s619
      %v624 = vld [vmem:[%s623] sm:$0xff]
      %v625 = vld [vmem:[%s623 + $0x8] sm:$0xff]
      %v626 = vpack.c.bf16 %v622, %v621
      %s627 = scalar_lea.vmem %s2, 24
      %v628 = vld [vmem:[%s627] sm:$0xf]
      %v629 = vld [vmem:[%s627 + $0x4] sm:$0xf]
      %v632 = vunpack.c.l.b16 %v628
      %v633 = vunpack.c.l.b16 %v629
      %v634 = vpack.c.b16 %v633, %v632
      %v637 = vsel %vm287, %v626, 0
      %639 = vmatprep.subr.bf16.mxu0 0
      %640 = vmatpush1.bf16.msra.mxu0 %v634
      %641 = vmatprep.subr.bf16.mxu0 0
      %642 = vmatpush1.bf16.msra.mxu0 0
      %643 = vmatprep.subr.bf16.mxu0 0
      %644 = vmatpush1.bf16.msra.mxu0 0
      %645 = vmatprep.subr.bf16.mxu0 0
      %646 = vmatpush1.bf16.msra.mxu0 0
      %647 = vmatprep.subr.bf16.mxu0 0
      %648 = vmatpush1.bf16.msra.mxu0 0
      %649 = vmatprep.subr.bf16.mxu0 0
      %650 = vmatpush1.bf16.msra.mxu0 0
      %651 = vmatprep.subr.bf16.mxu0 0
      %652 = vmatpush1.bf16.msra.mxu0 0
      %653 = vmatprep.subr.bf16.mxu0 0
      %654 = vmatpush1.bf16.msra.mxu0 0
      %655 = vmatprep.subr.bf16.mxu0 0
      %656 = vmatpush1.bf16.msra.mxu0 0
      %657 = vmatprep.subr.bf16.mxu0 0
      %658 = vmatpush1.bf16.msra.mxu0 0
      %659 = vmatprep.subr.bf16.mxu0 0
      %660 = vmatpush1.bf16.msra.mxu0 0
      %661 = vmatprep.subr.bf16.mxu0 0
      %662 = vmatpush1.bf16.msra.mxu0 0
      %663 = vmatprep.subr.bf16.mxu0 0
      %664 = vmatpush1.bf16.msra.mxu0 0
      %665 = vmatprep.subr.bf16.mxu0 0
      %666 = vmatpush1.bf16.msra.mxu0 0
      %667 = vmatprep.subr.bf16.mxu0 0
      %668 = vmatpush1.bf16.msra.mxu0 0
      %669 = vmatprep.subr.bf16.mxu0 0
      %670 = vmatpush1.bf16.msra.mxu0 0
      %671 = vmatprep.mubr.bf16.mxu0 0
      %672 = vmatmul.mubr.bf16.gmra.mrb[0].mxu0 %v637
      %v673 = vpop.f32.mrb[0].mxu0
      %v674 = vadd.f32 0.0, %v673
      %v675 = vpop.f32.mrb[0].mxu0
      %v676 = vpop.f32.mrb[0].mxu0
      %v677 = vadd.f32 0.0, %v676
      %v678 = vpop.f32.mrb[0].mxu0
      %679 = vdwg.mxu0
      %v680 = vadd.f32 %v616, %v674
      %v681 = vadd.f32 %v617, %v677
      %v682 = vpack.c.bf16 %v625, %v624
      %s683 = scalar_lea.vmem %s3, 24
      %v684 = vld [vmem:[%s683] sm:$0xf]
      %v685 = vld [vmem:[%s683 + $0x4] sm:$0xf]
      %v688 = vunpack.c.l.b16 %v684
      %v689 = vunpack.c.l.b16 %v685
      %v690 = vpack.c.b16 %v689, %v688
      %v693 = vsel %vm287, %v682, 0
      %695 = vmatprep.subr.bf16.mxu0 0
      %696 = vmatpush1.bf16.msra.mxu0 %v690
      %697 = vmatprep.subr.bf16.mxu0 0
      %698 = vmatpush1.bf16.msra.mxu0 0
      %699 = vmatprep.subr.bf16.mxu0 0
      %700 = vmatpush1.bf16.msra.mxu0 0
      %701 = vmatprep.subr.bf16.mxu0 0
      %702 = vmatpush1.bf16.msra.mxu0 0
      %703 = vmatprep.subr.bf16.mxu0 0
      %704 = vmatpush1.bf16.msra.mxu0 0
      %705 = vmatprep.subr.bf16.mxu0 0
      %706 = vmatpush1.bf16.msra.mxu0 0
      %707 = vmatprep.subr.bf16.mxu0 0
      %708 = vmatpush1.bf16.msra.mxu0 0
      %709 = vmatprep.subr.bf16.mxu0 0
      %710 = vmatpush1.bf16.msra.mxu0 0
      %711 = vmatprep.subr.bf16.mxu0 0
      %712 = vmatpush1.bf16.msra.mxu0 0
      %713 = vmatprep.subr.bf16.mxu0 0
      %714 = vmatpush1.bf16.msra.mxu0 0
      %715 = vmatprep.subr.bf16.mxu0 0
      %716 = vmatpush1.bf16.msra.mxu0 0
      %717 = vmatprep.subr.bf16.mxu0 0
      %718 = vmatpush1.bf16.msra.mxu0 0
      %719 = vmatprep.subr.bf16.mxu0 0
      %720 = vmatpush1.bf16.msra.mxu0 0
      %721 = vmatprep.subr.bf16.mxu0 0
      %722 = vmatpush1.bf16.msra.mxu0 0
      %723 = vmatprep.subr.bf16.mxu0 0
      %724 = vmatpush1.bf16.msra.mxu0 0
      %725 = vmatprep.subr.bf16.mxu0 0
      %726 = vmatpush1.bf16.msra.mxu0 0
      %727 = vmatprep.mubr.bf16.mxu0 0
      %728 = vmatmul.mubr.bf16.gmra.mrb[0].mxu0 %v693
      %v729 = vpop.f32.mrb[0].mxu0
      %v730 = vadd.f32 0.0, %v729
      %v731 = vpop.f32.mrb[0].mxu0
      %v732 = vpop.f32.mrb[0].mxu0
      %v733 = vadd.f32 0.0, %v732
      %v734 = vpop.f32.mrb[0].mxu0
      %735 = vdwg.mxu0
      %v736 = vadd.f32 %v680, %v730
      %v737 = vadd.f32 %v681, %v733
      %s738 = scalar_lea.vmem %s2, 32
      %v739 = vld [vmem:[%s738] sm:$0xf]
      %v740 = vld [vmem:[%s738 + $0x4] sm:$0xf]
      %v741 = vshrl.u32 %v626, 16
      %v743 = vshll.u32 %v626, 16
      %v745 = vrot.slane %v743, 1
      %v746 = vor.u32 %v741, %v745
      %v749 = vunpack.c.l.b16 %v739
      %v750 = vunpack.c.l.b16 %v740
      %v751 = vpack.c.b16 %v750, %v749
      %v754 = vsel %vm287, %v746, 0
      %756 = vmatprep.subr.bf16.mxu0 0
      %757 = vmatpush1.bf16.msra.mxu0 %v751
      %758 = vmatprep.subr.bf16.mxu0 0
      %759 = vmatpush1.bf16.msra.mxu0 0
      %760 = vmatprep.subr.bf16.mxu0 0
      %761 = vmatpush1.bf16.msra.mxu0 0
      %762 = vmatprep.subr.bf16.mxu0 0
      %763 = vmatpush1.bf16.msra.mxu0 0
      %764 = vmatprep.subr.bf16.mxu0 0
      %765 = vmatpush1.bf16.msra.mxu0 0
      %766 = vmatprep.subr.bf16.mxu0 0
      %767 = vmatpush1.bf16.msra.mxu0 0
      %768 = vmatprep.subr.bf16.mxu0 0
      %769 = vmatpush1.bf16.msra.mxu0 0
      %770 = vmatprep.subr.bf16.mxu0 0
      %771 = vmatpush1.bf16.msra.mxu0 0
      %772 = vmatprep.subr.bf16.mxu0 0
      %773 = vmatpush1.bf16.msra.mxu0 0
      %774 = vmatprep.subr.bf16.mxu0 0
      %775 = vmatpush1.bf16.msra.mxu0 0
      %776 = vmatprep.subr.bf16.mxu0 0
      %777 = vmatpush1.bf16.msra.mxu0 0
      %778 = vmatprep.subr.bf16.mxu0 0
      %779 = vmatpush1.bf16.msra.mxu0 0
      %780 = vmatprep.subr.bf16.mxu0 0
      %781 = vmatpush1.bf16.msra.mxu0 0
      %782 = vmatprep.subr.bf16.mxu0 0
      %783 = vmatpush1.bf16.msra.mxu0 0
      %784 = vmatprep.subr.bf16.mxu0 0
      %785 = vmatpush1.bf16.msra.mxu0 0
      %786 = vmatprep.subr.bf16.mxu0 0
      %787 = vmatpush1.bf16.msra.mxu0 0
      %788 = vmatprep.mubr.bf16.mxu0 0
      %789 = vmatmul.mubr.bf16.gmra.mrb[0].mxu0 %v754
      %v790 = vpop.f32.mrb[0].mxu0
      %v791 = vadd.f32 0.0, %v790
      %v792 = vpop.f32.mrb[0].mxu0
      %v793 = vpop.f32.mrb[0].mxu0
      %v794 = vadd.f32 0.0, %v793
      %v795 = vpop.f32.mrb[0].mxu0
      %796 = vdwg.mxu0
      %v797 = vadd.f32 %v736, %v791
      %v798 = vadd.f32 %v737, %v794
      %s799 = scalar_lea.vmem %s3, 32
      %v800 = vld [vmem:[%s799] sm:$0xf]
      %v801 = vld [vmem:[%s799 + $0x4] sm:$0xf]
      %v802 = vshrl.u32 %v682, 16
      %v804 = vshll.u32 %v682, 16
      %v806 = vrot.slane %v804, 1
      %v807 = vor.u32 %v802, %v806
      %v810 = vunpack.c.l.b16 %v800
      %v811 = vunpack.c.l.b16 %v801
      %v812 = vpack.c.b16 %v811, %v810
      %v815 = vsel %vm287, %v807, 0
      %817 = vmatprep.subr.bf16.mxu0 0
      %818 = vmatpush1.bf16.msra.mxu0 %v812
      %819 = vmatprep.subr.bf16.mxu0 0
      %820 = vmatpush1.bf16.msra.mxu0 0
      %821 = vmatprep.subr.bf16.mxu0 0
      %822 = vmatpush1.bf16.msra.mxu0 0
      %823 = vmatprep.subr.bf16.mxu0 0
      %824 = vmatpush1.bf16.msra.mxu0 0
      %825 = vmatprep.subr.bf16.mxu0 0
      %826 = vmatpush1.bf16.msra.mxu0 0
      %827 = vmatprep.subr.bf16.mxu0 0
      %828 = vmatpush1.bf16.msra.mxu0 0
      %829 = vmatprep.subr.bf16.mxu0 0
      %830 = vmatpush1.bf16.msra.mxu0 0
      %831 = vmatprep.subr.bf16.mxu0 0
      %832 = vmatpush1.bf16.msra.mxu0 0
      %833 = vmatprep.subr.bf16.mxu0 0
      %834 = vmatpush1.bf16.msra.mxu0 0
      %835 = vmatprep.subr.bf16.mxu0 0
      %836 = vmatpush1.bf16.msra.mxu0 0
      %837 = vmatprep.subr.bf16.mxu0 0
      %838 = vmatpush1.bf16.msra.mxu0 0
      %839 = vmatprep.subr.bf16.mxu0 0
      %840 = vmatpush1.bf16.msra.mxu0 0
      %841 = vmatprep.subr.bf16.mxu0 0
      %842 = vmatpush1.bf16.msra.mxu0 0
      %843 = vmatprep.subr.bf16.mxu0 0
      %844 = vmatpush1.bf16.msra.mxu0 0
      %845 = vmatprep.subr.bf16.mxu0 0
      %846 = vmatpush1.bf16.msra.mxu0 0
      %847 = vmatprep.subr.bf16.mxu0 0
      %848 = vmatpush1.bf16.msra.mxu0 0
      %849 = vmatprep.mubr.bf16.mxu0 0
      %850 = vmatmul.mubr.bf16.gmra.mrb[0].mxu0 %v815
      %v851 = vpop.f32.mrb[0].mxu0
      %v852 = vadd.f32 0.0, %v851
      %v853 = vpop.f32.mrb[0].mxu0
      %v854 = vpop.f32.mrb[0].mxu0
      %v855 = vadd.f32 0.0, %v854
      %v856 = vpop.f32.mrb[0].mxu0
      %857 = vdwg.mxu0
      %v858 = vadd.f32 %v797, %v852
      %v859 = vadd.f32 %v798, %v855
      %s860 = scalar_lea.vmem %s2, 40
      %v861 = vld [vmem:[%s860] sm:$0xf]
      %v862 = vld [vmem:[%s860 + $0x4] sm:$0xf]
      %v864 = vrot.slane %v626, 1
      %v867 = vunpack.c.l.b16 %v861
      %v868 = vunpack.c.l.b16 %v862
      %v869 = vpack.c.b16 %v868, %v867
      %v872 = vsel %vm287, %v864, 0
      %874 = vmatprep.subr.bf16.mxu0 0
      %875 = vmatpush1.bf16.msra.mxu0 %v869
      %876 = vmatprep.subr.bf16.mxu0 0
      %877 = vmatpush1.bf16.msra.mxu0 0
      %878 = vmatprep.subr.bf16.mxu0 0
      %879 = vmatpush1.bf16.msra.mxu0 0
      %880 = vmatprep.subr.bf16.mxu0 0
      %881 = vmatpush1.bf16.msra.mxu0 0
      %882 = vmatprep.subr.bf16.mxu0 0
      %883 = vmatpush1.bf16.msra.mxu0 0
      %884 = vmatprep.subr.bf16.mxu0 0
      %885 = vmatpush1.bf16.msra.mxu0 0
      %886 = vmatprep.subr.bf16.mxu0 0
      %887 = vmatpush1.bf16.msra.mxu0 0
      %888 = vmatprep.subr.bf16.mxu0 0
      %889 = vmatpush1.bf16.msra.mxu0 0
      %890 = vmatprep.subr.bf16.mxu0 0
      %891 = vmatpush1.bf16.msra.mxu0 0
      %892 = vmatprep.subr.bf16.mxu0 0
      %893 = vmatpush1.bf16.msra.mxu0 0
      %894 = vmatprep.subr.bf16.mxu0 0
      %895 = vmatpush1.bf16.msra.mxu0 0
      %896 = vmatprep.subr.bf16.mxu0 0
      %897 = vmatpush1.bf16.msra.mxu0 0
      %898 = vmatprep.subr.bf16.mxu0 0
      %899 = vmatpush1.bf16.msra.mxu0 0
      %900 = vmatprep.subr.bf16.mxu0 0
      %901 = vmatpush1.bf16.msra.mxu0 0
      %902 = vmatprep.subr.bf16.mxu0 0
      %903 = vmatpush1.bf16.msra.mxu0 0
      %904 = vmatprep.subr.bf16.mxu0 0
      %905 = vmatpush1.bf16.msra.mxu0 0
      %906 = vmatprep.mubr.bf16.mxu0 0
      %907 = vmatmul.mubr.bf16.gmra.mrb[0].mxu0 %v872
      %v908 = vpop.f32.mrb[0].mxu0
      %v909 = vadd.f32 0.0, %v908
      %v910 = vpop.f32.mrb[0].mxu0
      %v911 = vpop.f32.mrb[0].mxu0
      %v912 = vadd.f32 0.0, %v911
      %v913 = vpop.f32.mrb[0].mxu0
      %914 = vdwg.mxu0
      %v915 = vadd.f32 %v858, %v909
      %v916 = vadd.f32 %v859, %v912
      %s917 = scalar_lea.vmem %s3, 40
      %v918 = vld [vmem:[%s917] sm:$0xf]
      %v919 = vld [vmem:[%s917 + $0x4] sm:$0xf]
      %v921 = vrot.slane %v682, 1
      %v924 = vunpack.c.l.b16 %v918
      %v925 = vunpack.c.l.b16 %v919
      %v926 = vpack.c.b16 %v925, %v924
      %v929 = vsel %vm287, %v921, 0
      %931 = vmatprep.subr.bf16.mxu0 0
      %932 = vmatpush1.bf16.msra.mxu0 %v926
      %933 = vmatprep.subr.bf16.mxu0 0
      %934 = vmatpush1.bf16.msra.mxu0 0
      %935 = vmatprep.subr.bf16.mxu0 0
      %936 = vmatpush1.bf16.msra.mxu0 0
      %937 = vmatprep.subr.bf16.mxu0 0
      %938 = vmatpush1.bf16.msra.mxu0 0
      %939 = vmatprep.subr.bf16.mxu0 0
      %940 = vmatpush1.bf16.msra.mxu0 0
      %941 = vmatprep.subr.bf16.mxu0 0
      %942 = vmatpush1.bf16.msra.mxu0 0
      %943 = vmatprep.subr.bf16.mxu0 0
      %944 = vmatpush1.bf16.msra.mxu0 0
      %945 = vmatprep.subr.bf16.mxu0 0
      %946 = vmatpush1.bf16.msra.mxu0 0
      %947 = vmatprep.subr.bf16.mxu0 0
      %948 = vmatpush1.bf16.msra.mxu0 0
      %949 = vmatprep.subr.bf16.mxu0 0
      %950 = vmatpush1.bf16.msra.mxu0 0
      %951 = vmatprep.subr.bf16.mxu0 0
      %952 = vmatpush1.bf16.msra.mxu0 0
      %953 = vmatprep.subr.bf16.mxu0 0
      %954 = vmatpush1.bf16.msra.mxu0 0
      %955 = vmatprep.subr.bf16.mxu0 0
      %956 = vmatpush1.bf16.msra.mxu0 0
      %957 = vmatprep.subr.bf16.mxu0 0
      %958 = vmatpush1.bf16.msra.mxu0 0
      %959 = vmatprep.subr.bf16.mxu0 0
      %960 = vmatpush1.bf16.msra.mxu0 0
      %961 = vmatprep.subr.bf16.mxu0 0
      %962 = vmatpush1.bf16.msra.mxu0 0
      %963 = vmatprep.mubr.bf16.mxu0 0
      %964 = vmatmul.mubr.bf16.gmra.mrb[0].mxu0 %v929
      %v965 = vpop.f32.mrb[0].mxu0
      %v966 = vadd.f32 0.0, %v965
      %v967 = vpop.f32.mrb[0].mxu0
      %v968 = vpop.f32.mrb[0].mxu0
      %v969 = vadd.f32 0.0, %v968
      %v970 = vpop.f32.mrb[0].mxu0
      %971 = vdwg.mxu0
      %v972 = vadd.f32 %v915, %v966
      %v973 = vadd.f32 %v916, %v969
      %s974 = sadd.s32 %s21, 2
      %s975 = smul.u32 %s974, 16
      %s976 = scalar_lea.vmem %s252, %s975
      %v977 = vld [vmem:[%s976] sm:$0xff]
      %v978 = vld [vmem:[%s976 + $0x8] sm:$0xff]
      %s979 = scalar_lea.vmem %s257, %s975
      %v980 = vld [vmem:[%s979] sm:$0xff]
      %v981 = vld [vmem:[%s979 + $0x8] sm:$0xff]
      %v982 = vpack.c.bf16 %v978, %v977
      %s983 = scalar_lea.vmem %s2, 48
      %v984 = vld [vmem:[%s983] sm:$0xf]
      %v985 = vld [vmem:[%s983 + $0x4] sm:$0xf]
      %v988 = vunpack.c.l.b16 %v984
      %v989 = vunpack.c.l.b16 %v985
      %v990 = vpack.c.b16 %v989, %v988
      %v993 = vsel %vm287, %v982, 0
      %995 = vmatprep.subr.bf16.mxu0 0
      %996 = vmatpush1.bf16.msra.mxu0 %v990
      %997 = vmatprep.subr.bf16.mxu0 0
      %998 = vmatpush1.bf16.msra.mxu0 0
      %999 = vmatprep.subr.bf16.mxu0 0
      %1000 = vmatpush1.bf16.msra.mxu0 0
      %1001 = vmatprep.subr.bf16.mxu0 0
      %1002 = vmatpush1.bf16.msra.mxu0 0
      %1003 = vmatprep.subr.bf16.mxu0 0
      %1004 = vmatpush1.bf16.msra.mxu0 0
      %1005 = vmatprep.subr.bf16.mxu0 0
      %1006 = vmatpush1.bf16.msra.mxu0 0
      %1007 = vmatprep.subr.bf16.mxu0 0
      %1008 = vmatpush1.bf16.msra.mxu0 0
      %1009 = vmatprep.subr.bf16.mxu0 0
      %1010 = vmatpush1.bf16.msra.mxu0 0
      %1011 = vmatprep.subr.bf16.mxu0 0
      %1012 = vmatpush1.bf16.msra.mxu0 0
      %1013 = vmatprep.subr.bf16.mxu0 0
      %1014 = vmatpush1.bf16.msra.mxu0 0
      %1015 = vmatprep.subr.bf16.mxu0 0
      %1016 = vmatpush1.bf16.msra.mxu0 0
      %1017 = vmatprep.subr.bf16.mxu0 0
      %1018 = vmatpush1.bf16.msra.mxu0 0
      %1019 = vmatprep.subr.bf16.mxu0 0
      %1020 = vmatpush1.bf16.msra.mxu0 0
      %1021 = vmatprep.subr.bf16.mxu0 0
      %1022 = vmatpush1.bf16.msra.mxu0 0
      %1023 = vmatprep.subr.bf16.mxu0 0
      %1024 = vmatpush1.bf16.msra.mxu0 0
      %1025 = vmatprep.subr.bf16.mxu0 0
      %1026 = vmatpush1.bf16.msra.mxu0 0
      %1027 = vmatprep.mubr.bf16.mxu0 0
      %1028 = vmatmul.mubr.bf16.gmra.mrb[0].mxu0 %v993
      %v1029 = vpop.f32.mrb[0].mxu0
      %v1030 = vadd.f32 0.0, %v1029
      %v1031 = vpop.f32.mrb[0].mxu0
      %v1032 = vpop.f32.mrb[0].mxu0
      %v1033 = vadd.f32 0.0, %v1032
      %v1034 = vpop.f32.mrb[0].mxu0
      %1035 = vdwg.mxu0
      %v1036 = vadd.f32 %v972, %v1030
      %v1037 = vadd.f32 %v973, %v1033
      %v1038 = vpack.c.bf16 %v981, %v980
      %s1039 = scalar_lea.vmem %s3, 48
      %v1040 = vld [vmem:[%s1039] sm:$0xf]
      %v1041 = vld [vmem:[%s1039 + $0x4] sm:$0xf]
      %v1044 = vunpack.c.l.b16 %v1040
      %v1045 = vunpack.c.l.b16 %v1041
      %v1046 = vpack.c.b16 %v1045, %v1044
      %v1049 = vsel %vm287, %v1038, 0
      %1051 = vmatprep.subr.bf16.mxu0 0
      %1052 = vmatpush1.bf16.msra.mxu0 %v1046
      %1053 = vmatprep.subr.bf16.mxu0 0
      %1054 = vmatpush1.bf16.msra.mxu0 0
      %1055 = vmatprep.subr.bf16.mxu0 0
      %1056 = vmatpush1.bf16.msra.mxu0 0
      %1057 = vmatprep.subr.bf16.mxu0 0
      %1058 = vmatpush1.bf16.msra.mxu0 0
      %1059 = vmatprep.subr.bf16.mxu0 0
      %1060 = vmatpush1.bf16.msra.mxu0 0
      %1061 = vmatprep.subr.bf16.mxu0 0
      %1062 = vmatpush1.bf16.msra.mxu0 0
      %1063 = vmatprep.subr.bf16.mxu0 0
      %1064 = vmatpush1.bf16.msra.mxu0 0
      %1065 = vmatprep.subr.bf16.mxu0 0
      %1066 = vmatpush1.bf16.msra.mxu0 0
      %1067 = vmatprep.subr.bf16.mxu0 0
      %1068 = vmatpush1.bf16.msra.mxu0 0
      %1069 = vmatprep.subr.bf16.mxu0 0
      %1070 = vmatpush1.bf16.msra.mxu0 0
      %1071 = vmatprep.subr.bf16.mxu0 0
      %1072 = vmatpush1.bf16.msra.mxu0 0
      %1073 = vmatprep.subr.bf16.mxu0 0
      %1074 = vmatpush1.bf16.msra.mxu0 0
      %1075 = vmatprep.subr.bf16.mxu0 0
      %1076 = vmatpush1.bf16.msra.mxu0 0
      %1077 = vmatprep.subr.bf16.mxu0 0
      %1078 = vmatpush1.bf16.msra.mxu0 0
      %1079 = vmatprep.subr.bf16.mxu0 0
      %1080 = vmatpush1.bf16.msra.mxu0 0
      %1081 = vmatprep.subr.bf16.mxu0 0
      %1082 = vmatpush1.bf16.msra.mxu0 0
      %1083 = vmatprep.mubr.bf16.mxu0 0
      %1084 = vmatmul.mubr.bf16.gmra.mrb[0].mxu0 %v1049
      %v1085 = vpop.f32.mrb[0].mxu0
      %v1086 = vadd.f32 0.0, %v1085
      %v1087 = vpop.f32.mrb[0].mxu0
      %v1088 = vpop.f32.mrb[0].mxu0
      %v1089 = vadd.f32 0.0, %v1088
      %v1090 = vpop.f32.mrb[0].mxu0
      %1091 = vdwg.mxu0
      %v1092 = vadd.f32 %v1036, %v1086
      %v1093 = vadd.f32 %v1037, %v1089
      %s1094 = scalar_lea.vmem %s2, 56
      %v1095 = vld [vmem:[%s1094] sm:$0xf]
      %v1096 = vld [vmem:[%s1094 + $0x4] sm:$0xf]
      %v1097 = vshrl.u32 %v982, 16
      %v1099 = vshll.u32 %v982, 16
      %v1101 = vrot.slane %v1099, 1
      %v1102 = vor.u32 %v1097, %v1101
      %v1105 = vunpack.c.l.b16 %v1095
      %v1106 = vunpack.c.l.b16 %v1096
      %v1107 = vpack.c.b16 %v1106, %v1105
      %v1110 = vsel %vm287, %v1102, 0
      %1112 = vmatprep.subr.bf16.mxu0 0
      %1113 = vmatpush1.bf16.msra.mxu0 %v1107
      %1114 = vmatprep.subr.bf16.mxu0 0
      %1115 = vmatpush1.bf16.msra.mxu0 0
      %1116 = vmatprep.subr.bf16.mxu0 0
      %1117 = vmatpush1.bf16.msra.mxu0 0
      %1118 = vmatprep.subr.bf16.mxu0 0
      %1119 = vmatpush1.bf16.msra.mxu0 0
      %1120 = vmatprep.subr.bf16.mxu0 0
      %1121 = vmatpush1.bf16.msra.mxu0 0
      %1122 = vmatprep.subr.bf16.mxu0 0
      %1123 = vmatpush1.bf16.msra.mxu0 0
      %1124 = vmatprep.subr.bf16.mxu0 0
      %1125 = vmatpush1.bf16.msra.mxu0 0
      %1126 = vmatprep.subr.bf16.mxu0 0
      %1127 = vmatpush1.bf16.msra.mxu0 0
      %1128 = vmatprep.subr.bf16.mxu0 0
      %1129 = vmatpush1.bf16.msra.mxu0 0
      %1130 = vmatprep.subr.bf16.mxu0 0
      %1131 = vmatpush1.bf16.msra.mxu0 0
      %1132 = vmatprep.subr.bf16.mxu0 0
      %1133 = vmatpush1.bf16.msra.mxu0 0
      %1134 = vmatprep.subr.bf16.mxu0 0
      %1135 = vmatpush1.bf16.msra.mxu0 0
      %1136 = vmatprep.subr.bf16.mxu0 0
      %1137 = vmatpush1.bf16.msra.mxu0 0
      %1138 = vmatprep.subr.bf16.mxu0 0
      %1139 = vmatpush1.bf16.msra.mxu0 0
      %1140 = vmatprep.subr.bf16.mxu0 0
      %1141 = vmatpush1.bf16.msra.mxu0 0
      %1142 = vmatprep.subr.bf16.mxu0 0
      %1143 = vmatpush1.bf16.msra.mxu0 0
      %1144 = vmatprep.mubr.bf16.mxu0 0
      %1145 = vmatmul.mubr.bf16.gmra.mrb[0].mxu0 %v1110
      %v1146 = vpop.f32.mrb[0].mxu0
      %v1147 = vadd.f32 0.0, %v1146
      %v1148 = vpop.f32.mrb[0].mxu0
      %v1149 = vpop.f32.mrb[0].mxu0
      %v1150 = vadd.f32 0.0, %v1149
      %v1151 = vpop.f32.mrb[0].mxu0
      %1152 = vdwg.mxu0
      %v1153 = vadd.f32 %v1092, %v1147
      %v1154 = vadd.f32 %v1093, %v1150
      %s1155 = scalar_lea.vmem %s3, 56
      %v1156 = vld [vmem:[%s1155] sm:$0xf]
      %v1157 = vld [vmem:[%s1155 + $0x4] sm:$0xf]
      %v1158 = vshrl.u32 %v1038, 16
      %v1160 = vshll.u32 %v1038, 16
      %v1162 = vrot.slane %v1160, 1
      %v1163 = vor.u32 %v1158, %v1162
      %v1166 = vunpack.c.l.b16 %v1156
      %v1167 = vunpack.c.l.b16 %v1157
      %v1168 = vpack.c.b16 %v1167, %v1166
      %v1171 = vsel %vm287, %v1163, 0
      %1173 = vmatprep.subr.bf16.mxu0 0
      %1174 = vmatpush1.bf16.msra.mxu0 %v1168
      %1175 = vmatprep.subr.bf16.mxu0 0
      %1176 = vmatpush1.bf16.msra.mxu0 0
      %1177 = vmatprep.subr.bf16.mxu0 0
      %1178 = vmatpush1.bf16.msra.mxu0 0
      %1179 = vmatprep.subr.bf16.mxu0 0
      %1180 = vmatpush1.bf16.msra.mxu0 0
      %1181 = vmatprep.subr.bf16.mxu0 0
      %1182 = vmatpush1.bf16.msra.mxu0 0
      %1183 = vmatprep.subr.bf16.mxu0 0
      %1184 = vmatpush1.bf16.msra.mxu0 0
      %1185 = vmatprep.subr.bf16.mxu0 0
      %1186 = vmatpush1.bf16.msra.mxu0 0
      %1187 = vmatprep.subr.bf16.mxu0 0
      %1188 = vmatpush1.bf16.msra.mxu0 0
      %1189 = vmatprep.subr.bf16.mxu0 0
      %1190 = vmatpush1.bf16.msra.mxu0 0
      %1191 = vmatprep.subr.bf16.mxu0 0
      %1192 = vmatpush1.bf16.msra.mxu0 0
      %1193 = vmatprep.subr.bf16.mxu0 0
      %1194 = vmatpush1.bf16.msra.mxu0 0
      %1195 = vmatprep.subr.bf16.mxu0 0
      %1196 = vmatpush1.bf16.msra.mxu0 0
      %1197 = vmatprep.subr.bf16.mxu0 0
      %1198 = vmatpush1.bf16.msra.mxu0 0
      %1199 = vmatprep.subr.bf16.mxu0 0
      %1200 = vmatpush1.bf16.msra.mxu0 0
      %1201 = vmatprep.subr.bf16.mxu0 0
      %1202 = vmatpush1.bf16.msra.mxu0 0
      %1203 = vmatprep.subr.bf16.mxu0 0
      %1204 = vmatpush1.bf16.msra.mxu0 0
      %1205 = vmatprep.mubr.bf16.mxu0 0
      %1206 = vmatmul.mubr.bf16.gmra.mrb[0].mxu0 %v1171
      %v1207 = vpop.f32.mrb[0].mxu0
      %v1208 = vadd.f32 0.0, %v1207
      %v1209 = vpop.f32.mrb[0].mxu0
      %v1210 = vpop.f32.mrb[0].mxu0
      %v1211 = vadd.f32 0.0, %v1210
      %v1212 = vpop.f32.mrb[0].mxu0
      %1213 = vdwg.mxu0
      %v1214 = vadd.f32 %v1153, %v1208
      %v1215 = vadd.f32 %v1154, %v1211
      %s1216 = scalar_lea.vmem %s2, 64
      %v1217 = vld [vmem:[%s1216] sm:$0xf]
      %v1218 = vld [vmem:[%s1216 + $0x4] sm:$0xf]
      %v1220 = vrot.slane %v982, 1
      %v1223 = vunpack.c.l.b16 %v1217
      %v1224 = vunpack.c.l.b16 %v1218
      %v1225 = vpack.c.b16 %v1224, %v1223
      %v1228 = vsel %vm287, %v1220, 0
      %1230 = vmatprep.subr.bf16.mxu0 0
      %1231 = vmatpush1.bf16.msra.mxu0 %v1225
      %1232 = vmatprep.subr.bf16.mxu0 0
      %1233 = vmatpush1.bf16.msra.mxu0 0
      %1234 = vmatprep.subr.bf16.mxu0 0
      %1235 = vmatpush1.bf16.msra.mxu0 0
      %1236 = vmatprep.subr.bf16.mxu0 0
      %1237 = vmatpush1.bf16.msra.mxu0 0
      %1238 = vmatprep.subr.bf16.mxu0 0
      %1239 = vmatpush1.bf16.msra.mxu0 0
      %1240 = vmatprep.subr.bf16.mxu0 0
      %1241 = vmatpush1.bf16.msra.mxu0 0
      %1242 = vmatprep.subr.bf16.mxu0 0
      %1243 = vmatpush1.bf16.msra.mxu0 0
      %1244 = vmatprep.subr.bf16.mxu0 0
      %1245 = vmatpush1.bf16.msra.mxu0 0
      %1246 = vmatprep.subr.bf16.mxu0 0
      %1247 = vmatpush1.bf16.msra.mxu0 0
      %1248 = vmatprep.subr.bf16.mxu0 0
      %1249 = vmatpush1.bf16.msra.mxu0 0
      %1250 = vmatprep.subr.bf16.mxu0 0
      %1251 = vmatpush1.bf16.msra.mxu0 0
      %1252 = vmatprep.subr.bf16.mxu0 0
      %1253 = vmatpush1.bf16.msra.mxu0 0
      %1254 = vmatprep.subr.bf16.mxu0 0
      %1255 = vmatpush1.bf16.msra.mxu0 0
      %1256 = vmatprep.subr.bf16.mxu0 0
      %1257 = vmatpush1.bf16.msra.mxu0 0
      %1258 = vmatprep.subr.bf16.mxu0 0
      %1259 = vmatpush1.bf16.msra.mxu0 0
      %1260 = vmatprep.subr.bf16.mxu0 0
      %1261 = vmatpush1.bf16.msra.mxu0 0
      %1262 = vmatprep.mubr.bf16.mxu0 0
      %1263 = vmatmul.mubr.bf16.gmra.mrb[0].mxu0 %v1228
      %v1264 = vpop.f32.mrb[0].mxu0
      %v1265 = vadd.f32 0.0, %v1264
      %v1266 = vpop.f32.mrb[0].mxu0
      %v1267 = vpop.f32.mrb[0].mxu0
      %v1268 = vadd.f32 0.0, %v1267
      %v1269 = vpop.f32.mrb[0].mxu0
      %1270 = vdwg.mxu0
      %v1271 = vadd.f32 %v1214, %v1265
      %v1272 = vadd.f32 %v1215, %v1268
      %s1273 = scalar_lea.vmem %s3, 64
      %v1274 = vld [vmem:[%s1273] sm:$0xf]
      %v1275 = vld [vmem:[%s1273 + $0x4] sm:$0xf]
      %v1277 = vrot.slane %v1038, 1
      %v1280 = vunpack.c.l.b16 %v1274
      %v1281 = vunpack.c.l.b16 %v1275
      %v1282 = vpack.c.b16 %v1281, %v1280
      %v1285 = vsel %vm287, %v1277, 0
      %1287 = vmatprep.subr.bf16.mxu0 0
      %1288 = vmatpush1.bf16.msra.mxu0 %v1282
      %1289 = vmatprep.subr.bf16.mxu0 0
      %1290 = vmatpush1.bf16.msra.mxu0 0
      %1291 = vmatprep.subr.bf16.mxu0 0
      %1292 = vmatpush1.bf16.msra.mxu0 0
      %1293 = vmatprep.subr.bf16.mxu0 0
      %1294 = vmatpush1.bf16.msra.mxu0 0
      %1295 = vmatprep.subr.bf16.mxu0 0
      %1296 = vmatpush1.bf16.msra.mxu0 0
      %1297 = vmatprep.subr.bf16.mxu0 0
      %1298 = vmatpush1.bf16.msra.mxu0 0
      %1299 = vmatprep.subr.bf16.mxu0 0
      %1300 = vmatpush1.bf16.msra.mxu0 0
      %1301 = vmatprep.subr.bf16.mxu0 0
      %1302 = vmatpush1.bf16.msra.mxu0 0
      %1303 = vmatprep.subr.bf16.mxu0 0
      %1304 = vmatpush1.bf16.msra.mxu0 0
      %1305 = vmatprep.subr.bf16.mxu0 0
      %1306 = vmatpush1.bf16.msra.mxu0 0
      %1307 = vmatprep.subr.bf16.mxu0 0
      %1308 = vmatpush1.bf16.msra.mxu0 0
      %1309 = vmatprep.subr.bf16.mxu0 0
      %1310 = vmatpush1.bf16.msra.mxu0 0
      %1311 = vmatprep.subr.bf16.mxu0 0
      %1312 = vmatpush1.bf16.msra.mxu0 0
      %1313 = vmatprep.subr.bf16.mxu0 0
      %1314 = vmatpush1.bf16.msra.mxu0 0
      %1315 = vmatprep.subr.bf16.mxu0 0
      %1316 = vmatpush1.bf16.msra.mxu0 0
      %1317 = vmatprep.subr.bf16.mxu0 0
      %1318 = vmatpush1.bf16.msra.mxu0 0
      %1319 = vmatprep.mubr.bf16.mxu0 0
      %1320 = vmatmul.mubr.bf16.gmra.mrb[0].mxu0 %v1285
      %v1321 = vpop.f32.mrb[0].mxu0
      %v1322 = vadd.f32 0.0, %v1321
      %v1323 = vpop.f32.mrb[0].mxu0
      %v1324 = vpop.f32.mrb[0].mxu0
      %v1325 = vadd.f32 0.0, %v1324
      %v1326 = vpop.f32.mrb[0].mxu0
      %1327 = vdwg.mxu0
      %v1328 = vadd.f32 %v1271, %v1322
      %v1329 = vadd.f32 %v1272, %v1325
      %v1330 = vld [vmem:[%s4] sm:$0x1]
      %v1332 = vlaneseq
      %v1333 = vshrl.u32 %v1332, 7
      %v1334 = vsub.s32 0, %v1333
      %v1335 = vrot.slane %v1330, %v1334
      %v1337 = vadd.f32 %v1328, %v1335
      %v1338 = vadd.f32 %v1329, %v1335
      %v1339 = vxor.u32 %v1337, 2147483648
      %v1340 = vxor.u32 %v1338, 2147483648
      %v1341 = vmul.f32 %v1339, 1.442695
      %v1342 = vpow.pop %v1341
      %v1343 = vmul.f32 %v1340, 1.442695
      %v1344 = vpow.pop %v1343
      %v1345 = vadd.f32 %v1342, 1.0
      %v1346 = vadd.f32 %v1344, 1.0
      %v1347 = vrcp.pop %v1345
      %v1348 = vmul.f32 1.0, %v1347
      %v1349 = vrcp.pop %v1346
      %v1350 = vmul.f32 1.0, %v1349
      %v1351 = vmul.f32 %v1337, %v1348
      %v1352 = vmul.f32 %v1338, %v1350
      %1353 = vst.msk [vmem:[%s266] sm:$0xff] %vm287, %v1351
      %vm1354 = vcmask 128000
      %1355 = vst.msk [vmem:[%s266 + $0x8] sm:$0x3f] %vm1354, %v1352
      %p1356 = scmp.lt.s32.totalorder %s20, 1
      %s1357 = scalar_select %p1356, %s20, 1
      %p1358 = scmp.lt.s32.totalorder %s21, 13
      %s1359 = scalar_select %p1358, %s21, 13
      %s1360 = smul.addr %s1359, 2
      %s1361 = smul.addr %s1357, 28
      %s1362 = sadd.s32 %s1360, %s1361
      %s1363 = smul.addr %s1362, 8
      %s1364 = scalar_lea.vmem %s5, %s1363
      // Predicated region
      $region41: #{forward.5} parent=39 // pred_check
        %p1365 = pneg %p163
      $region42: #{forward.5} parent=39 // pred_check_branch
        %1367 = sbr.rel (%p1365) target = $region44
      $region43: #{forward.5} parent=39 // pred_region
        _
      $region44: #{forward.5} parent=39 // pred_fallthru
        _
    $region40: #{forward.5} parent=5 // pred_fallthru
      _
    %p1368 = scmp.le.s32.totalorder 2, %s11
    // Predicated region
    $region45: #{forward.5} parent=5 // pred_check
      %p1369 = pneg %p1368
    $region46: #{forward.5} parent=5 // pred_check_branch
      %1371 = sbr.rel (%p1369) target = $region48
    $region47: #{forward.5} parent=5 // pred_region
      %s1372 = ssub.s32 %s11, 2
      // Predicated region
      $region49: #{forward.5} parent=47 // pred_check
        %p1373 = pneg %p169
      $region50: #{forward.5} parent=47 // pred_check_branch
        %1375 = sbr.rel (%p1373) target = $region52
      $region51: #{forward.5} parent=47 // pred_region
        %p1376 = scmp.lt.s32.totalorder %s22, 1
        %s1377 = scalar_select %p1376, %s22, 1
        %p1378 = scmp.lt.s32.totalorder %s23, 13
        %s1379 = scalar_select %p1378, %s23, 13
        %s1380 = smul.addr %s1379, 2
        %s1381 = smul.addr %s1377, 28
        %s1382 = sadd.s32 %s1380, %s1381
        %s1383 = smul.addr %s1382, 8
        %s1384 = scalar_lea.vmem %s5, %s1383
      $region52: #{forward.5} parent=47 // pred_fallthru
        _
    $region48: #{forward.5} parent=5 // pred_fallthru
      _
  $region6: #{forward.5} parent=0 // loop_footer
    %s15 = sadd.s32 1, %s11
  $region7: #{forward.5} parent=0 // loop_footer_branch
    %10 = sbr.rel target = $region3
  $region8: #{forward.5} parent=0 // loop_exit
    _

// kernel: forward.4
$region0: #{forward.4}
  #allocation0 [shape = 'u32[]', space=smem, size = 0x4, offset = 0x4, fixed_abs, tag = 'smem constant byte address 0x4 - core index']
  #allocation1 [shape = 'u32[144,128]{1,0:T(1,128)}', space=vmem, size = 0x12000, scoped, tag = 'internal scratch']
  %s0 = inlined_call_operand.vmem [shape: f32[8,64,32], index: 0, kind: input, shape index: {}]
  %s1 = inlined_call_operand.vmem [shape: f32[2,1,32], index: 1, kind: input, shape index: {}]
  %s2 = inlined_call_operand.vmem [shape: f32[2,1,32], index: 2, kind: input, shape index: {}]
  %s3 = inlined_call_operand.vmem [shape: bf16[2,4,32,8], index: 3, kind: input, shape index: {}]
  %s4 = inlined_call_operand.vmem [shape: f32[2,4,1,8], index: 4, kind: input, shape index: {}]
  %s5 = inlined_call_operand.vmem [shape: bf16[2,4,32,8], index: 5, kind: input, shape index: {}]
  %s6 = inlined_call_operand.vmem [shape: f32[2,4,1,8], index: 6, kind: input, shape index: {}]
  %s7 = inlined_call_operand.vmem [shape: bf16[2,4,32,8], index: 7, kind: input, shape index: {}]
  %s8 = inlined_call_operand.vmem [shape: f32[2,4,1,8], index: 8, kind: input, shape index: {}]
  %s9 = inlined_call_operand.vmem [shape: bf16[2,4,8,32], index: 9, kind: input, shape index: {}]
  %s10 = inlined_call_operand.vmem [shape: f32[2,1,32], index: 10, kind: input, shape index: {}]
  %s11 = inlined_call_operand.vmem [shape: f32[2,1,32], index: 11, kind: input, shape index: {}]
  %s12 = inlined_call_operand.vmem [shape: f32[2,1,32], index: 12, kind: input, shape index: {}]
  %s13 = inlined_call_operand.vmem [shape: bf16[2,32,64], index: 13, kind: input, shape index: {}]
  %s14 = inlined_call_operand.vmem [shape: f32[2,1,64], index: 14, kind: input, shape index: {}]
  %s15 = inlined_call_operand.vmem [shape: bf16[2,64,32], index: 15, kind: input, shape index: {}]
  %s16 = inlined_call_operand.vmem [shape: f32[2,1,32], index: 16, kind: input, shape index: {}]
  %s17 = inlined_call_operand.vmem [shape: f32[1,32], index: 17, kind: input, shape index: {}]
  %s18 = inlined_call_operand.vmem [shape: f32[1,32], index: 18, kind: input, shape index: {}]
  %s19 = inlined_call_operand.vmem [shape: bf16[32,16], index: 19, kind: input, shape index: {}]
  %s20 = inlined_call_operand.vmem [shape: f32[1,16], index: 20, kind: input, shape index: {}]
  %s21 = inlined_call_operand.vmem [shape: f32[8,64,16], index: 21, kind: output, shape index: {}]
  %s22 = sld [smem:[#allocation0]]
  $region117: #{forward.4} parent=0
    _
  %s24 = ssub.s32 1, %s22
  %s25 = scalar_select 0, %s24, %s22
  loop: start=0, step=1, limit=10
  $region2: #{forward.4} parent=0 // loop_pre_header
    _
  $region3: #{forward.4} parent=0 // loop_header
    %s27 = sphi 0, %s31
    %p28 = scmp.ge.s32.totalorder %s27, 10
    %s37 = sphi 0, %s39
    %s40 = sphi 0, %s37
    %s41 = sphi 0, %s40
    %s57 = sphi 0, %s41
    %s61 = sphi 0, %s61
    %s63 = sphi 0, %s61
    %s64 = sphi 0, %s63
    %s78 = sphi 0, %s64
    %s82 = sphi 0, %s82
    %s84 = sphi 0, %s82
    %s85 = sphi 0, %s84
    %s99 = sphi 0, %s85
    %s103 = sphi 0, %s103
    %s105 = sphi 0, %s103
    %s106 = sphi 0, %s105
    %s120 = sphi 0, %s106
    %s124 = sphi 0, %s124
    %s126 = sphi 0, %s124
    %s127 = sphi 0, %s126
    %s141 = sphi 0, %s127
    %s145 = sphi 0, %s145
    %s147 = sphi 0, %s145
    %s148 = sphi 0, %s147
    %s162 = sphi 0, %s148
    %s166 = sphi 0, %s166
    %s168 = sphi 0, %s166
    %s169 = sphi 0, %s168
    %s183 = sphi 0, %s169
    %s187 = sphi 0, %s187
    %s189 = sphi 0, %s187
    %s190 = sphi 0, %s189
    %s204 = sphi 0, %s190
    %s208 = sphi 0, %s208
    %s210 = sphi 0, %s208
    %s211 = sphi 0, %s210
    %s225 = sphi 0, %s211
    %s229 = sphi 0, %s229
    %s231 = sphi 0, %s229
    %s232 = sphi 0, %s231
    %s246 = sphi 0, %s232
    %s250 = sphi 0, %s250
    %s252 = sphi 0, %s250
    %s253 = sphi 0, %s252
    %s267 = sphi 0, %s253
    %s271 = sphi 0, %s271
    %s273 = sphi 0, %s271
    %s274 = sphi 0, %s273
    %s288 = sphi 0, %s274
    %s292 = sphi 0, %s292
    %s294 = sphi 0, %s292
    %s295 = sphi 0, %s294
    %s309 = sphi 0, %s295
    %s313 = sphi 0, %s313
    %s315 = sphi 0, %s313
    %s316 = sphi 0, %s315
    %s330 = sphi 0, %s316
    %s334 = sphi 0, %s334
    %s336 = sphi 0, %s334
    %s337 = sphi 0, %s336
    %s351 = sphi 0, %s337
    %s355 = sphi 0, %s355
    %s357 = sphi 0, %s355
    %s358 = sphi 0, %s357
    %s372 = sphi 0, %s358
    %s376 = sphi 0, %s376
    %s378 = sphi 0, %s376
    %s379 = sphi 0, %s378
    %s393 = sphi 0, %s379
    %s397 = sphi 0, %s397
    %s399 = sphi 0, %s397
    %s400 = sphi 0, %s399
    %s414 = sphi 0, %s400
    %s418 = sphi 0, %s418
    %s420 = sphi 0, %s418
    %s421 = sphi 0, %s420
    %s435 = sphi 0, %s421
    %s439 = sphi 0, %s439
    %s441 = sphi 0, %s439
    %s442 = sphi 0, %s441
    %s456 = sphi 0, %s442
    %s460 = sphi 0, %s460
    %s462 = sphi 0, %s460
    %s463 = sphi 0, %s462
    %s477 = sphi 0, %s463
    %s483 = sphi 0, %s485
    %s486 = sphi 0, %s483
    %s487 = sphi 0, %s486
    %s503 = sphi 0, %s487
  $region4: #{forward.4} parent=0 // loop_header_branch
    %30 = sbr.rel (%p28) target = $region8
  $region5: #{forward.4} parent=0 // loop_body
    %s32 = ssub.s32 %s27, 1
    %s33 = ssub.s32 %s27, 2
    %s34 = sadd.s32 %s27, 1
    %s35 = ssub.s32 %s27, %s34
    %p36 = scmp.eq.s32.totalorder %s35, 0
    %s38 = sadd.s32 %s37, 1
    %s39 = scalar_select %p36, %s37, %s38
    %p42 = pneg %p36
    %p43 = scmp.eq.s32.totalorder %s27, 7
    %p44 = por %p42, %p43
    %p45 = scmp.ne.s32.totalorder %s37, %s40
    %p46 = scmp.eq.s32.totalorder %s27, 0
    %p47 = por %p45, %p46
    %p48 = scmp.ne.s32.totalorder %s37, %s40
    %p49 = scmp.eq.s32.totalorder %s32, 7
    %p50 = por %p48, %p49
    %p51 = scmp.ne.s32.totalorder %s40, %s41
    %p52 = scmp.eq.s32.totalorder %s32, 0
    %p53 = por %p51, %p52
    %p54 = scmp.ne.s32.totalorder %s40, %s41
    %p55 = scmp.eq.s32.totalorder %s33, 7
    %p56 = por %p54, %p55
    %p58 = scmp.ne.s32.totalorder %s41, %s57
    %p59 = scmp.eq.s32.totalorder %s33, 0
    %p60 = por %p58, %p59
    %s62 = sadd.s32 %s61, 1
    %p65 = scmp.eq.s32.totalorder %s27, 7
    %p66 = scmp.ne.s32.totalorder %s61, %s63
    %p67 = scmp.eq.s32.totalorder %s27, 0
    %p68 = por %p66, %p67
    %p69 = scmp.ne.s32.totalorder %s61, %s63
    %p70 = scmp.eq.s32.totalorder %s32, 7
    %p71 = por %p69, %p70
    %p72 = scmp.ne.s32.totalorder %s63, %s64
    %p73 = scmp.eq.s32.totalorder %s32, 0
    %p74 = por %p72, %p73
    %p75 = scmp.ne.s32.totalorder %s63, %s64
    %p76 = scmp.eq.s32.totalorder %s33, 7
    %p77 = por %p75, %p76
    %p79 = scmp.ne.s32.totalorder %s64, %s78
    %p80 = scmp.eq.s32.totalorder %s33, 0
    %p81 = por %p79, %p80
    %s83 = sadd.s32 %s82, 1
    %p86 = scmp.eq.s32.totalorder %s27, 7
    %p87 = scmp.ne.s32.totalorder %s82, %s84
    %p88 = scmp.eq.s32.totalorder %s27, 0
    %p89 = por %p87, %p88
    %p90 = scmp.ne.s32.totalorder %s82, %s84
    %p91 = scmp.eq.s32.totalorder %s32, 7
    %p92 = por %p90, %p91
    %p93 = scmp.ne.s32.totalorder %s84, %s85
    %p94 = scmp.eq.s32.totalorder %s32, 0
    %p95 = por %p93, %p94
    %p96 = scmp.ne.s32.totalorder %s84, %s85
    %p97 = scmp.eq.s32.totalorder %s33, 7
    %p98 = por %p96, %p97
    %p100 = scmp.ne.s32.totalorder %s85, %s99
    %p101 = scmp.eq.s32.totalorder %s33, 0
    %p102 = por %p100, %p101
    %s104 = sadd.s32 %s103, 1
    %p107 = scmp.eq.s32.totalorder %s27, 7
    %p108 = scmp.ne.s32.totalorder %s103, %s105
    %p109 = scmp.eq.s32.totalorder %s27, 0
    %p110 = por %p108, %p109
    %p111 = scmp.ne.s32.totalorder %s103, %s105
    %p112 = scmp.eq.s32.totalorder %s32, 7
    %p113 = por %p111, %p112
    %p114 = scmp.ne.s32.totalorder %s105, %s106
    %p115 = scmp.eq.s32.totalorder %s32, 0
    %p116 = por %p114, %p115
    %p117 = scmp.ne.s32.totalorder %s105, %s106
    %p118 = scmp.eq.s32.totalorder %s33, 7
    %p119 = por %p117, %p118
    %p121 = scmp.ne.s32.totalorder %s106, %s120
    %p122 = scmp.eq.s32.totalorder %s33, 0
    %p123 = por %p121, %p122
    %s125 = sadd.s32 %s124, 1
    %p128 = scmp.eq.s32.totalorder %s27, 7
    %p129 = scmp.ne.s32.totalorder %s124, %s126
    %p130 = scmp.eq.s32.totalorder %s27, 0
    %p131 = por %p129, %p130
    %p132 = scmp.ne.s32.totalorder %s124, %s126
    %p133 = scmp.eq.s32.totalorder %s32, 7
    %p134 = por %p132, %p133
    %p135 = scmp.ne.s32.totalorder %s126, %s127
    %p136 = scmp.eq.s32.totalorder %s32, 0
    %p137 = por %p135, %p136
    %p138 = scmp.ne.s32.totalorder %s126, %s127
    %p139 = scmp.eq.s32.totalorder %s33, 7
    %p140 = por %p138, %p139
    %p142 = scmp.ne.s32.totalorder %s127, %s141
    %p143 = scmp.eq.s32.totalorder %s33, 0
    %p144 = por %p142, %p143
    %s146 = sadd.s32 %s145, 1
    %p149 = scmp.eq.s32.totalorder %s27, 7
    %p150 = scmp.ne.s32.totalorder %s145, %s147
    %p151 = scmp.eq.s32.totalorder %s27, 0
    %p152 = por %p150, %p151
    %p153 = scmp.ne.s32.totalorder %s145, %s147
    %p154 = scmp.eq.s32.totalorder %s32, 7
    %p155 = por %p153, %p154
    %p156 = scmp.ne.s32.totalorder %s147, %s148
    %p157 = scmp.eq.s32.totalorder %s32, 0
    %p158 = por %p156, %p157
    %p159 = scmp.ne.s32.totalorder %s147, %s148
    %p160 = scmp.eq.s32.totalorder %s33, 7
    %p161 = por %p159, %p160
    %p163 = scmp.ne.s32.totalorder %s148, %s162
    %p164 = scmp.eq.s32.totalorder %s33, 0
    %p165 = por %p163, %p164
    %s167 = sadd.s32 %s166, 1
    %p170 = scmp.eq.s32.totalorder %s27, 7
    %p171 = scmp.ne.s32.totalorder %s166, %s168
    %p172 = scmp.eq.s32.totalorder %s27, 0
    %p173 = por %p171, %p172
    %p174 = scmp.ne.s32.totalorder %s166, %s168
    %p175 = scmp.eq.s32.totalorder %s32, 7
    %p176 = por %p174, %p175
    %p177 = scmp.ne.s32.totalorder %s168, %s169
    %p178 = scmp.eq.s32.totalorder %s32, 0
    %p179 = por %p177, %p178
    %p180 = scmp.ne.s32.totalorder %s168, %s169
    %p181 = scmp.eq.s32.totalorder %s33, 7
    %p182 = por %p180, %p181
    %p184 = scmp.ne.s32.totalorder %s169, %s183
    %p185 = scmp.eq.s32.totalorder %s33, 0
    %p186 = por %p184, %p185
    %s188 = sadd.s32 %s187, 1
    %p191 = scmp.eq.s32.totalorder %s27, 7
    %p192 = scmp.ne.s32.totalorder %s187, %s189
    %p193 = scmp.eq.s32.totalorder %s27, 0
    %p194 = por %p192, %p193
    %p195 = scmp.ne.s32.totalorder %s187, %s189
    %p196 = scmp.eq.s32.totalorder %s32, 7
    %p197 = por %p195, %p196
    %p198 = scmp.ne.s32.totalorder %s189, %s190
    %p199 = scmp.eq.s32.totalorder %s32, 0
    %p200 = por %p198, %p199
    %p201 = scmp.ne.s32.totalorder %s189, %s190
    %p202 = scmp.eq.s32.totalorder %s33, 7
    %p203 = por %p201, %p202
    %p205 = scmp.ne.s32.totalorder %s190, %s204
    %p206 = scmp.eq.s32.totalorder %s33, 0
    %p207 = por %p205, %p206
    %s209 = sadd.s32 %s208, 1
    %p212 = scmp.eq.s32.totalorder %s27, 7
    %p213 = scmp.ne.s32.totalorder %s208, %s210
    %p214 = scmp.eq.s32.totalorder %s27, 0
    %p215 = por %p213, %p214
    %p216 = scmp.ne.s32.totalorder %s208, %s210
    %p217 = scmp.eq.s32.totalorder %s32, 7
    %p218 = por %p216, %p217
    %p219 = scmp.ne.s32.totalorder %s210, %s211
    %p220 = scmp.eq.s32.totalorder %s32, 0
    %p221 = por %p219, %p220
    %p222 = scmp.ne.s32.totalorder %s210, %s211
    %p223 = scmp.eq.s32.totalorder %s33, 7
    %p224 = por %p222, %p223
    %p226 = scmp.ne.s32.totalorder %s211, %s225
    %p227 = scmp.eq.s32.totalorder %s33, 0
    %p228 = por %p226, %p227
    %s230 = sadd.s32 %s229, 1
    %p233 = scmp.eq.s32.totalorder %s27, 7
    %p234 = scmp.ne.s32.totalorder %s229, %s231
    %p235 = scmp.eq.s32.totalorder %s27, 0
    %p236 = por %p234, %p235
    %p237 = scmp.ne.s32.totalorder %s229, %s231
    %p238 = scmp.eq.s32.totalorder %s32, 7
    %p239 = por %p237, %p238
    %p240 = scmp.ne.s32.totalorder %s231, %s232
    %p241 = scmp.eq.s32.totalorder %s32, 0
    %p242 = por %p240, %p241
    %p243 = scmp.ne.s32.totalorder %s231, %s232
    %p244 = scmp.eq.s32.totalorder %s33, 7
    %p245 = por %p243, %p244
    %p247 = scmp.ne.s32.totalorder %s232, %s246
    %p248 = scmp.eq.s32.totalorder %s33, 0
    %p249 = por %p247, %p248
    %s251 = sadd.s32 %s250, 1
    %p254 = scmp.eq.s32.totalorder %s27, 7
    %p255 = scmp.ne.s32.totalorder %s250, %s252
    %p256 = scmp.eq.s32.totalorder %s27, 0
    %p257 = por %p255, %p256
    %p258 = scmp.ne.s32.totalorder %s250, %s252
    %p259 = scmp.eq.s32.totalorder %s32, 7
    %p260 = por %p258, %p259
    %p261 = scmp.ne.s32.totalorder %s252, %s253
    %p262 = scmp.eq.s32.totalorder %s32, 0
    %p263 = por %p261, %p262
    %p264 = scmp.ne.s32.totalorder %s252, %s253
    %p265 = scmp.eq.s32.totalorder %s33, 7
    %p266 = por %p264, %p265
    %p268 = scmp.ne.s32.totalorder %s253, %s267
    %p269 = scmp.eq.s32.totalorder %s33, 0
    %p270 = por %p268, %p269
    %s272 = sadd.s32 %s271, 1
    %p275 = scmp.eq.s32.totalorder %s27, 7
    %p276 = scmp.ne.s32.totalorder %s271, %s273
    %p277 = scmp.eq.s32.totalorder %s27, 0
    %p278 = por %p276, %p277
    %p279 = scmp.ne.s32.totalorder %s271, %s273
    %p280 = scmp.eq.s32.totalorder %s32, 7
    %p281 = por %p279, %p280
    %p282 = scmp.ne.s32.totalorder %s273, %s274
    %p283 = scmp.eq.s32.totalorder %s32, 0
    %p284 = por %p282, %p283
    %p285 = scmp.ne.s32.totalorder %s273, %s274
    %p286 = scmp.eq.s32.totalorder %s33, 7
    %p287 = por %p285, %p286
    %p289 = scmp.ne.s32.totalorder %s274, %s288
    %p290 = scmp.eq.s32.totalorder %s33, 0
    %p291 = por %p289, %p290
    %s293 = sadd.s32 %s292, 1
    %p296 = scmp.eq.s32.totalorder %s27, 7
    %p297 = scmp.ne.s32.totalorder %s292, %s294
    %p298 = scmp.eq.s32.totalorder %s27, 0
    %p299 = por %p297, %p298
    %p300 = scmp.ne.s32.totalorder %s292, %s294
    %p301 = scmp.eq.s32.totalorder %s32, 7
    %p302 = por %p300, %p301
    %p303 = scmp.ne.s32.totalorder %s294, %s295
    %p304 = scmp.eq.s32.totalorder %s32, 0
    %p305 = por %p303, %p304
    %p306 = scmp.ne.s32.totalorder %s294, %s295
    %p307 = scmp.eq.s32.totalorder %s33, 7
    %p308 = por %p306, %p307
    %p310 = scmp.ne.s32.totalorder %s295, %s309
    %p311 = scmp.eq.s32.totalorder %s33, 0
    %p312 = por %p310, %p311
    %s314 = sadd.s32 %s313, 1
    %p317 = scmp.eq.s32.totalorder %s27, 7
    %p318 = scmp.ne.s32.totalorder %s313, %s315
    %p319 = scmp.eq.s32.totalorder %s27, 0
    %p320 = por %p318, %p319
    %p321 = scmp.ne.s32.totalorder %s313, %s315
    %p322 = scmp.eq.s32.totalorder %s32, 7
    %p323 = por %p321, %p322
    %p324 = scmp.ne.s32.totalorder %s315, %s316
    %p325 = scmp.eq.s32.totalorder %s32, 0
    %p326 = por %p324, %p325
    %p327 = scmp.ne.s32.totalorder %s315, %s316
    %p328 = scmp.eq.s32.totalorder %s33, 7
    %p329 = por %p327, %p328
    %p331 = scmp.ne.s32.totalorder %s316, %s330
    %p332 = scmp.eq.s32.totalorder %s33, 0
    %p333 = por %p331, %p332
    %s335 = sadd.s32 %s334, 1
    %p338 = scmp.eq.s32.totalorder %s27, 7
    %p339 = scmp.ne.s32.totalorder %s334, %s336
    %p340 = scmp.eq.s32.totalorder %s27, 0
    %p341 = por %p339, %p340
    %p342 = scmp.ne.s32.totalorder %s334, %s336
    %p343 = scmp.eq.s32.totalorder %s32, 7
    %p344 = por %p342, %p343
    %p345 = scmp.ne.s32.totalorder %s336, %s337
    %p346 = scmp.eq.s32.totalorder %s32, 0
    %p347 = por %p345, %p346
    %p348 = scmp.ne.s32.totalorder %s336, %s337
    %p349 = scmp.eq.s32.totalorder %s33, 7
    %p350 = por %p348, %p349
    %p352 = scmp.ne.s32.totalorder %s337, %s351
    %p353 = scmp.eq.s32.totalorder %s33, 0
    %p354 = por %p352, %p353
    %s356 = sadd.s32 %s355, 1
    %p359 = scmp.eq.s32.totalorder %s27, 7
    %p360 = scmp.ne.s32.totalorder %s355, %s357
    %p361 = scmp.eq.s32.totalorder %s27, 0
    %p362 = por %p360, %p361
    %p363 = scmp.ne.s32.totalorder %s355, %s357
    %p364 = scmp.eq.s32.totalorder %s32, 7
    %p365 = por %p363, %p364
    %p366 = scmp.ne.s32.totalorder %s357, %s358
    %p367 = scmp.eq.s32.totalorder %s32, 0
    %p368 = por %p366, %p367
    %p369 = scmp.ne.s32.totalorder %s357, %s358
    %p370 = scmp.eq.s32.totalorder %s33, 7
    %p371 = por %p369, %p370
    %p373 = scmp.ne.s32.totalorder %s358, %s372
    %p374 = scmp.eq.s32.totalorder %s33, 0
    %p375 = por %p373, %p374
    %s377 = sadd.s32 %s376, 1
    %p380 = scmp.eq.s32.totalorder %s27, 7
    %p381 = scmp.ne.s32.totalorder %s376, %s378
    %p382 = scmp.eq.s32.totalorder %s27, 0
    %p383 = por %p381, %p382
    %p384 = scmp.ne.s32.totalorder %s376, %s378
    %p385 = scmp.eq.s32.totalorder %s32, 7
    %p386 = por %p384, %p385
    %p387 = scmp.ne.s32.totalorder %s378, %s379
    %p388 = scmp.eq.s32.totalorder %s32, 0
    %p389 = por %p387, %p388
    %p390 = scmp.ne.s32.totalorder %s378, %s379
    %p391 = scmp.eq.s32.totalorder %s33, 7
    %p392 = por %p390, %p391
    %p394 = scmp.ne.s32.totalorder %s379, %s393
    %p395 = scmp.eq.s32.totalorder %s33, 0
    %p396 = por %p394, %p395
    %s398 = sadd.s32 %s397, 1
    %p401 = scmp.eq.s32.totalorder %s27, 7
    %p402 = scmp.ne.s32.totalorder %s397, %s399
    %p403 = scmp.eq.s32.totalorder %s27, 0
    %p404 = por %p402, %p403
    %p405 = scmp.ne.s32.totalorder %s397, %s399
    %p406 = scmp.eq.s32.totalorder %s32, 7
    %p407 = por %p405, %p406
    %p408 = scmp.ne.s32.totalorder %s399, %s400
    %p409 = scmp.eq.s32.totalorder %s32, 0
    %p410 = por %p408, %p409
    %p411 = scmp.ne.s32.totalorder %s399, %s400
    %p412 = scmp.eq.s32.totalorder %s33, 7
    %p413 = por %p411, %p412
    %p415 = scmp.ne.s32.totalorder %s400, %s414
    %p416 = scmp.eq.s32.totalorder %s33, 0
    %p417 = por %p415, %p416
    %s419 = sadd.s32 %s418, 1
    %p422 = scmp.eq.s32.totalorder %s27, 7
    %p423 = scmp.ne.s32.totalorder %s418, %s420
    %p424 = scmp.eq.s32.totalorder %s27, 0
    %p425 = por %p423, %p424
    %p426 = scmp.ne.s32.totalorder %s418, %s420
    %p427 = scmp.eq.s32.totalorder %s32, 7
    %p428 = por %p426, %p427
    %p429 = scmp.ne.s32.totalorder %s420, %s421
    %p430 = scmp.eq.s32.totalorder %s32, 0
    %p431 = por %p429, %p430
    %p432 = scmp.ne.s32.totalorder %s420, %s421
    %p433 = scmp.eq.s32.totalorder %s33, 7
    %p434 = por %p432, %p433
    %p436 = scmp.ne.s32.totalorder %s421, %s435
    %p437 = scmp.eq.s32.totalorder %s33, 0
    %p438 = por %p436, %p437
    %s440 = sadd.s32 %s439, 1
    %p443 = scmp.eq.s32.totalorder %s27, 7
    %p444 = scmp.ne.s32.totalorder %s439, %s441
    %p445 = scmp.eq.s32.totalorder %s27, 0
    %p446 = por %p444, %p445
    %p447 = scmp.ne.s32.totalorder %s439, %s441
    %p448 = scmp.eq.s32.totalorder %s32, 7
    %p449 = por %p447, %p448
    %p450 = scmp.ne.s32.totalorder %s441, %s442
    %p451 = scmp.eq.s32.totalorder %s32, 0
    %p452 = por %p450, %p451
    %p453 = scmp.ne.s32.totalorder %s441, %s442
    %p454 = scmp.eq.s32.totalorder %s33, 7
    %p455 = por %p453, %p454
    %p457 = scmp.ne.s32.totalorder %s442, %s456
    %p458 = scmp.eq.s32.totalorder %s33, 0
    %p459 = por %p457, %p458
    %s461 = sadd.s32 %s460, 1
    %p464 = scmp.eq.s32.totalorder %s27, 7
    %p465 = scmp.ne.s32.totalorder %s460, %s462
    %p466 = scmp.eq.s32.totalorder %s27, 0
    %p467 = por %p465, %p466
    %p468 = scmp.ne.s32.totalorder %s460, %s462
    %p469 = scmp.eq.s32.totalorder %s32, 7
    %p470 = por %p468, %p469
    %p471 = scmp.ne.s32.totalorder %s462, %s463
    %p472 = scmp.eq.s32.totalorder %s32, 0
    %p473 = por %p471, %p472
    %p474 = scmp.ne.s32.totalorder %s462, %s463
    %p475 = scmp.eq.s32.totalorder %s33, 7
    %p476 = por %p474, %p475
    %p478 = scmp.ne.s32.totalorder %s463, %s477
    %p479 = scmp.eq.s32.totalorder %s33, 0
    %p480 = por %p478, %p479
    %s481 = ssub.s32 %s27, %s34
    %p482 = scmp.eq.s32.totalorder %s481, 0
    %s484 = sadd.s32 %s483, 1
    %s485 = scalar_select %p482, %s483, %s484
    %p488 = pneg %p482
    %p489 = scmp.eq.s32.totalorder %s27, 7
    %p490 = por %p488, %p489
    %p491 = scmp.ne.s32.totalorder %s483, %s486
    %p492 = scmp.eq.s32.totalorder %s27, 0
    %p493 = por %p491, %p492
    %p494 = scmp.ne.s32.totalorder %s483, %s486
    %p495 = scmp.eq.s32.totalorder %s32, 7
    %p496 = por %p494, %p495
    %p497 = scmp.ne.s32.totalorder %s486, %s487
    %p498 = scmp.eq.s32.totalorder %s32, 0
    %p499 = por %p497, %p498
    %p500 = scmp.ne.s32.totalorder %s486, %s487
    %p501 = scmp.eq.s32.totalorder %s33, 7
    %p502 = por %p500, %p501
    %p504 = scmp.ne.s32.totalorder %s487, %s503
    %p505 = scmp.eq.s32.totalorder %s33, 0
    %p506 = por %p504, %p505
    %p507 = scmp.le.s32.totalorder 1, %s27
    %p508 = scmp.lt.s32.totalorder %s27, 9
    %p509 = pnand %p507, %p508
    %p510 = pneg %p509
    // Predicated region
    $region9: #{forward.4} parent=5 // pred_check
      _
    $region10: #{forward.4} parent=5 // pred_check_branch
      %512 = sbr.rel (%p509) target = $region12
    $region11: #{forward.4} parent=5 // pred_region
      %s513 = ssub.s32 %s27, 1
      // Predicated region
      $region13: #{forward.4} parent=11 // pred_check
        %p514 = pneg %p74
      $region14: #{forward.4} parent=11 // pred_check_branch
        %516 = sbr.rel (%p514) target = $region16
      $region15: #{forward.4} parent=11 // pred_region
        _
      $region16: #{forward.4} parent=11 // pred_fallthru
        _
      // Predicated region
      $region17: #{forward.4} parent=11 // pred_check
        %p517 = pneg %p95
      $region18: #{forward.4} parent=11 // pred_check_branch
        %519 = sbr.rel (%p517) target = $region20
      $region19: #{forward.4} parent=11 // pred_region
        _
      $region20: #{forward.4} parent=11 // pred_fallthru
        _
      // Predicated region
      $region21: #{forward.4} parent=11 // pred_check
        %p520 = pneg %p116
      $region22: #{forward.4} parent=11 // pred_check_branch
        %522 = sbr.rel (%p520) target = $region24
      $region23: #{forward.4} parent=11 // pred_region
        _
      $region24: #{forward.4} parent=11 // pred_fallthru
        _
      // Predicated region
      $region25: #{forward.4} parent=11 // pred_check
        %p523 = pneg %p137
      $region26: #{forward.4} parent=11 // pred_check_branch
        %525 = sbr.rel (%p523) target = $region28
      $region27: #{forward.4} parent=11 // pred_region
        _
      $region28: #{forward.4} parent=11 // pred_fallthru
        _
      // Predicated region
      $region29: #{forward.4} parent=11 // pred_check
        %p526 = pneg %p158
      $region30: #{forward.4} parent=11 // pred_check_branch
        %528 = sbr.rel (%p526) target = $region32
      $region31: #{forward.4} parent=11 // pred_region
        _
      $region32: #{forward.4} parent=11 // pred_fallthru
        _
      // Predicated region
      $region33: #{forward.4} parent=11 // pred_check
        %p529 = pneg %p179
      $region34: #{forward.4} parent=11 // pred_check_branch
        %531 = sbr.rel (%p529) target = $region36
      $region35: #{forward.4} parent=11 // pred_region
        _
      $region36: #{forward.4} parent=11 // pred_fallthru
        _
      // Predicated region
      $region37: #{forward.4} parent=11 // pred_check
        %p532 = pneg %p200
      $region38: #{forward.4} parent=11 // pred_check_branch
        %534 = sbr.rel (%p532) target = $region40
      $region39: #{forward.4} parent=11 // pred_region
        _
      $region40: #{forward.4} parent=11 // pred_fallthru
        _
      // Predicated region
      $region41: #{forward.4} parent=11 // pred_check
        %p535 = pneg %p221
      $region42: #{forward.4} parent=11 // pred_check_branch
        %537 = sbr.rel (%p535) target = $region44
      $region43: #{forward.4} parent=11 // pred_region
        _
      $region44: #{forward.4} parent=11 // pred_fallthru
        _
      // Predicated region
      $region45: #{forward.4} parent=11 // pred_check
        %p538 = pneg %p242
      $region46: #{forward.4} parent=11 // pred_check_branch
        %540 = sbr.rel (%p538) target = $region48
      $region47: #{forward.4} parent=11 // pred_region
        _
      $region48: #{forward.4} parent=11 // pred_fallthru
        _
      // Predicated region
      $region49: #{forward.4} parent=11 // pred_check
        %p541 = pneg %p263
      $region50: #{forward.4} parent=11 // pred_check_branch
        %543 = sbr.rel (%p541) target = $region52
      $region51: #{forward.4} parent=11 // pred_region
        _
      $region52: #{forward.4} parent=11 // pred_fallthru
        _
      // Predicated region
      $region53: #{forward.4} parent=11 // pred_check
        %p544 = pneg %p284
      $region54: #{forward.4} parent=11 // pred_check_branch
        %546 = sbr.rel (%p544) target = $region56
      $region55: #{forward.4} parent=11 // pred_region
        _
      $region56: #{forward.4} parent=11 // pred_fallthru
        _
      // Predicated region
      $region57: #{forward.4} parent=11 // pred_check
        %p547 = pneg %p305
      $region58: #{forward.4} parent=11 // pred_check_branch
        %549 = sbr.rel (%p547) target = $region60
      $region59: #{forward.4} parent=11 // pred_region
        _
      $region60: #{forward.4} parent=11 // pred_fallthru
        _
      // Predicated region
      $region61: #{forward.4} parent=11 // pred_check
        %p550 = pneg %p326
      $region62: #{forward.4} parent=11 // pred_check_branch
        %552 = sbr.rel (%p550) target = $region64
      $region63: #{forward.4} parent=11 // pred_region
        _
      $region64: #{forward.4} parent=11 // pred_fallthru
        _
      // Predicated region
      $region65: #{forward.4} parent=11 // pred_check
        %p553 = pneg %p347
      $region66: #{forward.4} parent=11 // pred_check_branch
        %555 = sbr.rel (%p553) target = $region68
      $region67: #{forward.4} parent=11 // pred_region
        _
      $region68: #{forward.4} parent=11 // pred_fallthru
        _
      // Predicated region
      $region69: #{forward.4} parent=11 // pred_check
        %p556 = pneg %p368
      $region70: #{forward.4} parent=11 // pred_check_branch
        %558 = sbr.rel (%p556) target = $region72
      $region71: #{forward.4} parent=11 // pred_region
        _
      $region72: #{forward.4} parent=11 // pred_fallthru
        _
      // Predicated region
      $region73: #{forward.4} parent=11 // pred_check
        %p559 = pneg %p389
      $region74: #{forward.4} parent=11 // pred_check_branch
        %561 = sbr.rel (%p559) target = $region76
      $region75: #{forward.4} parent=11 // pred_region
        _
      $region76: #{forward.4} parent=11 // pred_fallthru
        _
      // Predicated region
      $region77: #{forward.4} parent=11 // pred_check
        %p562 = pneg %p410
      $region78: #{forward.4} parent=11 // pred_check_branch
        %564 = sbr.rel (%p562) target = $region80
      $region79: #{forward.4} parent=11 // pred_region
        _
      $region80: #{forward.4} parent=11 // pred_fallthru
        _
      // Predicated region
      $region81: #{forward.4} parent=11 // pred_check
        %p565 = pneg %p431
      $region82: #{forward.4} parent=11 // pred_check_branch
        %567 = sbr.rel (%p565) target = $region84
      $region83: #{forward.4} parent=11 // pred_region
        _
      $region84: #{forward.4} parent=11 // pred_fallthru
        _
      // Predicated region
      $region85: #{forward.4} parent=11 // pred_check
        %p568 = pneg %p452
      $region86: #{forward.4} parent=11 // pred_check_branch
        %570 = sbr.rel (%p568) target = $region88
      $region87: #{forward.4} parent=11 // pred_region
        _
      $region88: #{forward.4} parent=11 // pred_fallthru
        _
      // Predicated region
      $region89: #{forward.4} parent=11 // pred_check
        %p571 = pneg %p473
      $region90: #{forward.4} parent=11 // pred_check_branch
        %573 = sbr.rel (%p571) target = $region92
      $region91: #{forward.4} parent=11 // pred_region
        _
      $region92: #{forward.4} parent=11 // pred_fallthru
        _
    $region12: #{forward.4} parent=5 // pred_fallthru
      _
    %p574 = scmp.lt.s32.totalorder %s27, 8
    // Predicated region
    $region93: #{forward.4} parent=5 // pred_check
      %p575 = pneg %p574
    $region94: #{forward.4} parent=5 // pred_check_branch
      %577 = sbr.rel (%p575) target = $region96
    $region95: #{forward.4} parent=5 // pred_region
      // Predicated region
      $region97: #{forward.4} parent=95 // pred_check
        %p578 = pneg %p47
      $region98: #{forward.4} parent=95 // pred_check_branch
        %580 = sbr.rel (%p578) target = $region100
      $region99: #{forward.4} parent=95 // pred_region
        %p581 = scmp.lt.s32.totalorder %s27, 7
        %s582 = scalar_select %p581, %s27, 7
        %s583 = smul.addr %s582, 8
        %s584 = smul.addr %s583, 8
        %s585 = scalar_lea.vmem %s0, %s584
      $region100: #{forward.4} parent=95 // pred_fallthru
        _
    $region96: #{forward.4} parent=5 // pred_fallthru
      _
    %p586 = scmp.le.s32.totalorder 1, %s27
    %p587 = scmp.lt.s32.totalorder %s27, 9
    %p588 = pnand %p586, %p587
    %p589 = pneg %p588
    // Predicated region
    $region101: #{forward.4} parent=5 // pred_check
      _
    $region102: #{forward.4} parent=5 // pred_check_branch
      %591 = sbr.rel (%p588) target = $region104
    $region103: #{forward.4} parent=5 // pred_region
      %s592 = ssub.s32 %s27, 1
      %p593 = scmp.lt.s32.totalorder %s32, 7
      %s594 = scalar_select %p593, %s32, 7
      %s595 = smul.addr %s594, 8
      %s596 = smul.addr %s595, 8
      %s597 = scalar_lea.vmem %s0, %s596
      %p598 = pneg %p53
      %p599 = pneg %p50
      %p600 = pneg %p74
      %p601 = pneg %p71
      %p602 = pneg %p95
      %p603 = pneg %p92
      %p604 = pneg %p116
      %p605 = pneg %p113
      %p606 = pneg %p137
      %p607 = pneg %p134
      %p608 = pneg %p158
      %p609 = pneg %p155
      %p610 = pneg %p179
      %p611 = pneg %p176
      %p612 = pneg %p200
      %p613 = pneg %p197
      %p614 = pneg %p221
      %p615 = pneg %p218
      %p616 = pneg %p242
      %p617 = pneg %p239
      %p618 = pneg %p263
      %p619 = pneg %p260
      %p620 = pneg %p284
      %p621 = pneg %p281
      %p622 = pneg %p305
      %p623 = pneg %p302
      %p624 = pneg %p326
      %p625 = pneg %p323
      %p626 = pneg %p347
      %p627 = pneg %p344
      %p628 = pneg %p368
      %p629 = pneg %p365
      %p630 = pneg %p389
      %p631 = pneg %p386
      %p632 = pneg %p410
      %p633 = pneg %p407
      %p634 = pneg %p431
      %p635 = pneg %p428
      %p636 = pneg %p452
      %p637 = pneg %p449
      %p638 = pneg %p473
      %p639 = pneg %p470
      %p640 = pneg %p499
      %p641 = pneg %p496
      %p642 = scmp.lt.s32.totalorder %s32, 7
      %s643 = scalar_select %p642, %s32, 7
      %s644 = smul.addr %s643, 8
      %s645 = smul.addr %s644, 8
      %s646 = scalar_lea.vmem %s21, %s645
      %p647 = scmp.lt.s32.totalorder %s32, 7
      %s648 = scalar_select %p647, %s32, 7
      %s649 = smul.addr %s648, 8
      %s650 = smul.addr %s649, 8
      %s651 = scalar_lea.vmem %s0, %s650
      %p652 = scmp.lt.s32.totalorder %s32, 7
      %s653 = scalar_select %p652, %s32, 7
      %s654 = smul.addr %s653, 8
      %s655 = smul.addr %s654, 8
      %s656 = scalar_lea.vmem %s21, %s655
      %v658 = vld [vmem:[%s651] sm:$0xff]
      %v659 = vld [vmem:[%s651 + $0x8] sm:$0xff]
      %v660 = vld [vmem:[%s651 + $0x10] sm:$0xff]
      %v661 = vld [vmem:[%s651 + $0x18] sm:$0xff]
      %v662 = vld [vmem:[%s651 + $0x20] sm:$0xff]
      %v663 = vld [vmem:[%s651 + $0x28] sm:$0xff]
      %v664 = vld [vmem:[%s651 + $0x30] sm:$0xff]
      %v665 = vld [vmem:[%s651 + $0x38] sm:$0xff]
      %v666 = vld [vmem:[%s1] sm:$0x1]
      %v667 = vld [vmem:[%s2] sm:$0x1]
      %vm668 = vcmask 261120
      %v669 = vsel %vm668, %v658, 0.0
      %670 = vadd.xlane.f32.xlu0 %v669
      %v671 = vpop.xlane.xlu0 %670
      %v672 = vsel %vm668, %v659, 0.0
      %673 = vadd.xlane.f32.xlu0 %v672
      %v674 = vpop.xlane.xlu0 %673
      %v675 = vsel %vm668, %v660, 0.0
      %676 = vadd.xlane.f32.xlu0 %v675
      %v677 = vpop.xlane.xlu0 %676
      %v678 = vsel %vm668, %v661, 0.0
      %679 = vadd.xlane.f32.xlu0 %v678
      %v680 = vpop.xlane.xlu0 %679
      %v681 = vsel %vm668, %v662, 0.0
      %682 = vadd.xlane.f32.xlu0 %v681
      %v683 = vpop.xlane.xlu0 %682
      %v684 = vsel %vm668, %v663, 0.0
      %685 = vadd.xlane.f32.xlu0 %v684
      %v686 = vpop.xlane.xlu0 %685
      %v687 = vsel %vm668, %v664, 0.0
      %688 = vadd.xlane.f32.xlu0 %v687
      %v689 = vpop.xlane.xlu0 %688
      %v690 = vsel %vm668, %v665, 0.0
      %691 = vadd.xlane.f32.xlu0 %v690
      %v692 = vpop.xlane.xlu0 %691
      %v693 = vrcp.pop 32.0
      %v694 = vmul.f32 %v671, %v693
      %v695 = vmul.f32 %v674, %v693
      %v696 = vmul.f32 %v677, %v693
      %v697 = vmul.f32 %v680, %v693
      %v698 = vmul.f32 %v683, %v693
      %v699 = vmul.f32 %v686, %v693
      %v700 = vmul.f32 %v689, %v693
      %v701 = vmul.f32 %v692, %v693
      %v702 = vsub.f32 %v658, %v694
      %v703 = vsub.f32 %v659, %v695
      %v704 = vsub.f32 %v660, %v696
      %v705 = vsub.f32 %v661, %v697
      %v706 = vsub.f32 %v662, %v698
      %v707 = vsub.f32 %v663, %v699
      %v708 = vsub.f32 %v664, %v700
      %v709 = vsub.f32 %v665, %v701
      %v710 = vmul.f32 %v702, %v702
      %v711 = vmul.f32 %v703, %v703
      %v712 = vmul.f32 %v704, %v704
      %v713 = vmul.f32 %v705, %v705
      %v714 = vmul.f32 %v706, %v706
      %v715 = vmul.f32 %v707, %v707
      %v716 = vmul.f32 %v708, %v708
      %v717 = vmul.f32 %v709, %v709
      %v718 = vsel %vm668, %v710, 0.0
      %719 = vadd.xlane.f32.xlu0 %v718
      %v720 = vpop.xlane.xlu0 %719
      %v721 = vsel %vm668, %v711, 0.0
      %722 = vadd.xlane.f32.xlu0 %v721
      %v723 = vpop.xlane.xlu0 %722
      %v724 = vsel %vm668, %v712, 0.0
      %725 = vadd.xlane.f32.xlu0 %v724
      %v726 = vpop.xlane.xlu0 %725
      %v727 = vsel %vm668, %v713, 0.0
      %728 = vadd.xlane.f32.xlu0 %v727
      %v729 = vpop.xlane.xlu0 %728
      %v730 = vsel %vm668, %v714, 0.0
      %731 = vadd.xlane.f32.xlu0 %v730
      %v732 = vpop.xlane.xlu0 %731
      %v733 = vsel %vm668, %v715, 0.0
      %734 = vadd.xlane.f32.xlu0 %v733
      %v735 = vpop.xlane.xlu0 %734
      %v736 = vsel %vm668, %v716, 0.0
      %737 = vadd.xlane.f32.xlu0 %v736
      %v738 = vpop.xlane.xlu0 %737
      %v739 = vsel %vm668, %v717, 0.0
      %740 = vadd.xlane.f32.xlu0 %v739
      %v741 = vpop.xlane.xlu0 %740
      %v742 = vmul.f32 %v720, %v693
      %v743 = vmul.f32 %v723, %v693
      %v744 = vmul.f32 %v726, %v693
      %v745 = vmul.f32 %v729, %v693
      %v746 = vmul.f32 %v732, %v693
      %v747 = vmul.f32 %v735, %v693
      %v748 = vmul.f32 %v738, %v693
      %v749 = vmul.f32 %v741, %v693
      %v750 = vadd.f32 %v742, 1e-05
      %v751 = vadd.f32 %v743, 1e-05
      %v752 = vadd.f32 %v744, 1e-05
      %v753 = vadd.f32 %v745, 1e-05
      %v754 = vadd.f32 %v746, 1e-05
      %v755 = vadd.f32 %v747, 1e-05
      %v756 = vadd.f32 %v748, 1e-05
      %v757 = vadd.f32 %v749, 1e-05
      %v758 = vrsqrt.pop %v750
      %v759 = vrsqrt.pop %v751
      %v760 = vrsqrt.pop %v752
      %v761 = vrsqrt.pop %v753
      %v762 = vrsqrt.pop %v754
      %v763 = vrsqrt.pop %v755
      %v764 = vrsqrt.pop %v756
      %v765 = vrsqrt.pop %v757
      %v766 = vmul.f32 %v702, %v758
      %v767 = vmul.f32 %v703, %v759
      %v768 = vmul.f32 %v704, %v760
      %v769 = vmul.f32 %v705, %v761
      %v770 = vmul.f32 %v706, %v762
      %v771 = vmul.f32 %v707, %v763
      %v772 = vmul.f32 %v708, %v764
      %v773 = vmul.f32 %v709, %v765
      %v775 = vlaneseq
      %v776 = vshrl.u32 %v775, 7
      %v777 = vsub.s32 0, %v776
      %v778 = vrot.slane %v666, %v777
      %v780 = vmul.f32 %v766, %v778
      %v781 = vmul.f32 %v767, %v778
      %v782 = vmul.f32 %v768, %v778
      %v783 = vmul.f32 %v769, %v778
      %v784 = vmul.f32 %v770, %v778
      %v785 = vmul.f32 %v771, %v778
      %v786 = vmul.f32 %v772, %v778
      %v787 = vmul.f32 %v773, %v778
      %v789 = vlaneseq
      %v790 = vshrl.u32 %v789, 7
      %v791 = vsub.s32 0, %v790
      %v792 = vrot.slane %v667, %v791
      %v794 = vadd.f32 %v780, %v792
      %v795 = vadd.f32 %v781, %v792
      %v796 = vadd.f32 %v782, %v792
      %v797 = vadd.f32 %v783, %v792
      %v798 = vadd.f32 %v784, %v792
      %v799 = vadd.f32 %v785, %v792
      %v800 = vadd.f32 %v786, %v792
      %v801 = vadd.f32 %v787, %v792
      %v802 = vpack.c.bf16 %v795, %v794
      %v803 = vpack.c.bf16 %v797, %v796
      %v804 = vpack.c.bf16 %v799, %v798
      %v805 = vpack.c.bf16 %v801, %v800
      %v806 = vld [vmem:[%s3] sm:$0xf]
      %v807 = vld [vmem:[%s3 + $0x4] sm:$0xf]
      %v808 = vld [vmem:[%s3 + $0x8] sm:$0xf]
      %v809 = vld [vmem:[%s3 + $0xc] sm:$0xf]
      %v810 = vld [vmem:[%s4] sm:$0x1]
      %v812 = vlaneseq
      %v813 = vshrl.u32 %v812, 7
      %v814 = vsub.s32 0, %v813
      %v815 = vrot.slane %v810, %v814
      %v821 = vunpack.c.l.b16 %v806
      %v822 = vunpack.c.l.b16 %v807
      %v823 = vunpack.c.l.b16 %v808
      %v824 = vunpack.c.l.b16 %v809
      %v825 = vpack.c.b16 %v822, %v821
      %v826 = vpack.c.b16 %v824, %v823
      %v830 = vsel %vm668, %v802, 0
      %v833 = vsel %vm668, %v803, 0
      %v836 = vsel %vm668, %v804, 0
      %v839 = vsel %vm668, %v805, 0
      %841 = vmatprep.subr.bf16.mxu0 0
      %842 = vmatpush1.bf16.msra.mxu0 %v825
      %843 = vmatprep.subr.bf16.mxu0 0
      %844 = vmatpush1.bf16.msra.mxu0 %v826
      %845 = vmatprep.subr.bf16.mxu0 0
      %846 = vmatpush1.bf16.msra.mxu0 0
      %847 = vmatprep.subr.bf16.mxu0 0
      %848 = vmatpush1.bf16.msra.mxu0 0
      %849 = vmatprep.subr.bf16.mxu0 0
      %850 = vmatpush1.bf16.msra.mxu0 0
      %851 = vmatprep.subr.bf16.mxu0 0
      %852 = vmatpush1.bf16.msra.mxu0 0
      %853 = vmatprep.subr.bf16.mxu0 0
      %854 = vmatpush1.bf16.msra.mxu0 0
      %855 = vmatprep.subr.bf16.mxu0 0
      %856 = vmatpush1.bf16.msra.mxu0 0
      %857 = vmatprep.subr.bf16.mxu0 0
      %858 = vmatpush1.bf16.msra.mxu0 0
      %859 = vmatprep.subr.bf16.mxu0 0
      %860 = vmatpush1.bf16.msra.mxu0 0
      %861 = vmatprep.subr.bf16.mxu0 0
      %862 = vmatpush1.bf16.msra.mxu0 0
      %863 = vmatprep.subr.bf16.mxu0 0
      %864 = vmatpush1.bf16.msra.mxu0 0
      %865 = vmatprep.subr.bf16.mxu0 0
      %866 = vmatpush1.bf16.msra.mxu0 0
      %867 = vmatprep.subr.bf16.mxu0 0
      %868 = vmatpush1.bf16.msra.mxu0 0
      %869 = vmatprep.subr.bf16.mxu0 0
      %870 = vmatpush1.bf16.msra.mxu0 0
      %871 = vmatprep.subr.bf16.mxu0 0
      %872 = vmatpush1.bf16.msra.mxu0 0
      %873 = vmatprep.mubr.bf16.mxu0 0
      %874 = vmatmul.mubr.bf16.gmra.mrb[0].mxu0 %v830
      %v875 = vpop.f32.mrb[0].mxu0
      %v876 = vadd.f32 %v815, %v875
      %v877 = vpop.f32.mrb[0].mxu0
      %v878 = vpop.f32.mrb[0].mxu0
      %v879 = vadd.f32 %v815, %v878
      %v880 = vpop.f32.mrb[0].mxu0
      %881 = vmatprep.mubr.bf16.mxu0 0
      %882 = vmatmul.mubr.bf16.gmra.mrb[0].mxu0 %v833
      %v883 = vpop.f32.mrb[0].mxu0
      %v884 = vadd.f32 %v815, %v883
      %v885 = vpop.f32.mrb[0].mxu0
      %v886 = vpop.f32.mrb[0].mxu0
      %v887 = vadd.f32 %v815, %v886
      %v888 = vpop.f32.mrb[0].mxu0
      %889 = vmatprep.mubr.bf16.mxu0 0
      %890 = vmatmul.mubr.bf16.gmra.mrb[0].mxu0 %v836
      %v891 = vpop.f32.mrb[0].mxu0
      %v892 = vadd.f32 %v815, %v891
      %v893 = vpop.f32.mrb[0].mxu0
      %v894 = vpop.f32.mrb[0].mxu0
      %v895 = vadd.f32 %v815, %v894
      %v896 = vpop.f32.mrb[0].mxu0
      %897 = vmatprep.mubr.bf16.mxu0 0
      %898 = vmatmul.mubr.bf16.gmra.mrb[0].mxu0 %v839
      %v899 = vpop.f32.mrb[0].mxu0
      %v900 = vadd.f32 %v815, %v899
      %v901 = vpop.f32.mrb[0].mxu0
      %v902 = vpop.f32.mrb[0].mxu0
      %v903 = vadd.f32 %v815, %v902
      %v904 = vpop.f32.mrb[0].mxu0
      %905 = vdwg.mxu0
      %v906 = vld [vmem:[%s5] sm:$0xf]
      %v907 = vld [vmem:[%s5 + $0x4] sm:$0xf]
      %v908 = vld [vmem:[%s5 + $0x8] sm:$0xf]
      %v909 = vld [vmem:[%s5 + $0xc] sm:$0xf]
      %v910 = vld [vmem:[%s6] sm:$0x1]
      %v912 = vlaneseq
      %v913 = vshrl.u32 %v912, 7
      %v914 = vsub.s32 0, %v913
      %v915 = vrot.slane %v910, %v914
      %v921 = vunpack.c.l.b16 %v906
      %v922 = vunpack.c.l.b16 %v907
      %v923 = vunpack.c.l.b16 %v908
      %v924 = vunpack.c.l.b16 %v909
      %v925 = vpack.c.b16 %v922, %v921
      %v926 = vpack.c.b16 %v924, %v923
      %929 = vmatprep.subr.bf16.mxu0 0
      %930 = vmatpush1.bf16.msra.mxu0 %v925
      %931 = vmatprep.subr.bf16.mxu0 0
      %932 = vmatpush1.bf16.msra.mxu0 %v926
      %933 = vmatprep.subr.bf16.mxu0 0
      %934 = vmatpush1.bf16.msra.mxu0 0
      %935 = vmatprep.subr.bf16.mxu0 0
      %936 = vmatpush1.bf16.msra.mxu0 0
      %937 = vmatprep.subr.bf16.mxu0 0
      %938 = vmatpush1.bf16.msra.mxu0 0
      %939 = vmatprep.subr.bf16.mxu0 0
      %940 = vmatpush1.bf16.msra.mxu0 0
      %941 = vmatprep.subr.bf16.mxu0 0
      %942 = vmatpush1.bf16.msra.mxu0 0
      %943 = vmatprep.subr.bf16.mxu0 0
      %944 = vmatpush1.bf16.msra.mxu0 0
      %945 = vmatprep.subr.bf16.mxu0 0
      %946 = vmatpush1.bf16.msra.mxu0 0
      %947 = vmatprep.subr.bf16.mxu0 0
      %948 = vmatpush1.bf16.msra.mxu0 0
      %949 = vmatprep.subr.bf16.mxu0 0
      %950 = vmatpush1.bf16.msra.mxu0 0
      %951 = vmatprep.subr.bf16.mxu0 0
      %952 = vmatpush1.bf16.msra.mxu0 0
      %953 = vmatprep.subr.bf16.mxu0 0
      %954 = vmatpush1.bf16.msra.mxu0 0
      %955 = vmatprep.subr.bf16.mxu0 0
      %956 = vmatpush1.bf16.msra.mxu0 0
      %957 = vmatprep.subr.bf16.mxu0 0
      %958 = vmatpush1.bf16.msra.mxu0 0
      %959 = vmatprep.subr.bf16.mxu0 0
      %960 = vmatpush1.bf16.msra.mxu0 0
      %961 = vmatprep.mubr.bf16.mxu0 0
      %962 = vmatmul.mubr.bf16.gmra.mrb[0].mxu0 %v830
      %v963 = vpop.f32.mrb[0].mxu0
      %v964 = vadd.f32 %v915, %v963
      %v965 = vpop.f32.mrb[0].mxu0
      %v966 = vpop.f32.mrb[0].mxu0
      %v967 = vadd.f32 %v915, %v966
      %v968 = vpop.f32.mrb[0].mxu0
      %969 = vmatprep.mubr.bf16.mxu0 0
      %970 = vmatmul.mubr.bf16.gmra.mrb[0].mxu0 %v833
      %v971 = vpop.f32.mrb[0].mxu0
      %v972 = vadd.f32 %v915, %v971
      %v973 = vpop.f32.mrb[0].mxu0
      %v974 = vpop.f32.mrb[0].mxu0
      %v975 = vadd.f32 %v915, %v974
      %v976 = vpop.f32.mrb[0].mxu0
      %977 = vmatprep.mubr.bf16.mxu0 0
      %978 = vmatmul.mubr.bf16.gmra.mrb[0].mxu0 %v836
      %v979 = vpop.f32.mrb[0].mxu0
      %v980 = vadd.f32 %v915, %v979
      %v981 = vpop.f32.mrb[0].mxu0
      %v982 = vpop.f32.mrb[0].mxu0
      %v983 = vadd.f32 %v915, %v982
      %v984 = vpop.f32.mrb[0].mxu0
      %985 = vmatprep.mubr.bf16.mxu0 0
      %986 = vmatmul.mubr.bf16.gmra.mrb[0].mxu0 %v839
      %v987 = vpop.f32.mrb[0].mxu0
      %v988 = vadd.f32 %v915, %v987
      %v989 = vpop.f32.mrb[0].mxu0
      %v990 = vpop.f32.mrb[0].mxu0
      %v991 = vadd.f32 %v915, %v990
      %v992 = vpop.f32.mrb[0].mxu0
      %993 = vdwg.mxu0
      %v994 = vld [vmem:[%s7] sm:$0xf]
      %v995 = vld [vmem:[%s7 + $0x4] sm:$0xf]
      %v996 = vld [vmem:[%s7 + $0x8] sm:$0xf]
      %v997 = vld [vmem:[%s7 + $0xc] sm:$0xf]
      %v998 = vld [vmem:[%s8] sm:$0x1]
      %v1000 = vlaneseq
      %v1001 = vshrl.u32 %v1000, 7
      %v1002 = vsub.s32 0, %v1001
      %v1003 = vrot.slane %v998, %v1002
      %v1009 = vunpack.c.l.b16 %v994
      %v1010 = vunpack.c.l.b16 %v995
      %v1011 = vunpack.c.l.b16 %v996
      %v1012 = vunpack.c.l.b16 %v997
      %v1013 = vpack.c.b16 %v1010, %v1009
      %v1014 = vpack.c.b16 %v1012, %v1011
      %1017 = vmatprep.subr.bf16.mxu0 0
      %1018 = vmatpush1.bf16.msra.mxu0 %v1013
      %1019 = vmatprep.subr.bf16.mxu0 0
      %1020 = vmatpush1.bf16.msra.mxu0 %v1014
      %1021 = vmatprep.subr.bf16.mxu0 0
      %1022 = vmatpush1.bf16.msra.mxu0 0
      %1023 = vmatprep.subr.bf16.mxu0 0
      %1024 = vmatpush1.bf16.msra.mxu0 0
      %1025 = vmatprep.subr.bf16.mxu0 0
      %1026 = vmatpush1.bf16.msra.mxu0 0
      %1027 = vmatprep.subr.bf16.mxu0 0
      %1028 = vmatpush1.bf16.msra.mxu0 0
      %1029 = vmatprep.subr.bf16.mxu0 0
      %1030 = vmatpush1.bf16.msra.mxu0 0
      %1031 = vmatprep.subr.bf16.mxu0 0
      %1032 = vmatpush1.bf16.msra.mxu0 0
      %1033 = vmatprep.subr.bf16.mxu0 0
      %1034 = vmatpush1.bf16.msra.mxu0 0
      %1035 = vmatprep.subr.bf16.mxu0 0
      %1036 = vmatpush1.bf16.msra.mxu0 0
      %1037 = vmatprep.subr.bf16.mxu0 0
      %1038 = vmatpush1.bf16.msra.mxu0 0
      %1039 = vmatprep.subr.bf16.mxu0 0
      %1040 = vmatpush1.bf16.msra.mxu0 0
      %1041 = vmatprep.subr.bf16.mxu0 0
      %1042 = vmatpush1.bf16.msra.mxu0 0
      %1043 = vmatprep.subr.bf16.mxu0 0
      %1044 = vmatpush1.bf16.msra.mxu0 0
      %1045 = vmatprep.subr.bf16.mxu0 0
      %1046 = vmatpush1.bf16.msra.mxu0 0
      %1047 = vmatprep.subr.bf16.mxu0 0
      %1048 = vmatpush1.bf16.msra.mxu0 0
      %1049 = vmatprep.mubr.bf16.mxu0 0
      %1050 = vmatmul.mubr.bf16.gmra.mrb[0].mxu0 %v830
      %v1051 = vpop.f32.mrb[0].mxu0
      %v1052 = vadd.f32 %v1003, %v1051
      %v1053 = vpop.f32.mrb[0].mxu0
      %v1054 = vpop.f32.mrb[0].mxu0
      %v1055 = vadd.f32 %v1003, %v1054
      %v1056 = vpop.f32.mrb[0].mxu0
      %1057 = vmatprep.mubr.bf16.mxu0 0
      %1058 = vmatmul.mubr.bf16.gmra.mrb[0].mxu0 %v833
      %v1059 = vpop.f32.mrb[0].mxu0
      %v1060 = vadd.f32 %v1003, %v1059
      %v1061 = vpop.f32.mrb[0].mxu0
      %v1062 = vpop.f32.mrb[0].mxu0
      %v1063 = vadd.f32 %v1003, %v1062
      %v1064 = vpop.f32.mrb[0].mxu0
      %1065 = vmatprep.mubr.bf16.mxu0 0
      %1066 = vmatmul.mubr.bf16.gmra.mrb[0].mxu0 %v836
      %v1067 = vpop.f32.mrb[0].mxu0
      %v1068 = vadd.f32 %v1003, %v1067
      %v1069 = vpop.f32.mrb[0].mxu0
      %v1070 = vpop.f32.mrb[0].mxu0
      %v1071 = vadd.f32 %v1003, %v1070
      %v1072 = vpop.f32.mrb[0].mxu0
      %1073 = vmatprep.mubr.bf16.mxu0 0
      %1074 = vmatmul.mubr.bf16.gmra.mrb[0].mxu0 %v839
      %v1075 = vpop.f32.mrb[0].mxu0
      %v1076 = vadd.f32 %v1003, %v1075
      %v1077 = vpop.f32.mrb[0].mxu0
      %v1078 = vpop.f32.mrb[0].mxu0
      %v1079 = vadd.f32 %v1003, %v1078
      %v1080 = vpop.f32.mrb[0].mxu0
      %1081 = vdwg.mxu0
      %v1082 = vmul.f32 %v876, 0.35355338
      %v1083 = vmul.f32 %v879, 0.35355338
      %v1084 = vmul.f32 %v884, 0.35355338
      %v1085 = vmul.f32 %v887, 0.35355338
      %v1086 = vmul.f32 %v892, 0.35355338
      %v1087 = vmul.f32 %v895, 0.35355338
      %v1088 = vmul.f32 %v900, 0.35355338
      %v1089 = vmul.f32 %v903, 0.35355338
      %v1090 = vpack.c.bf16 %v1083, %v1082
      %v1091 = vpack.c.bf16 %v1085, %v1084
      %v1092 = vpack.c.bf16 %v1087, %v1086
      %v1093 = vpack.c.bf16 %v1089, %v1088
      %v1094 = vpack.c.bf16 %v967, %v964
      %v1095 = vpack.c.bf16 %v975, %v972
      %v1096 = vpack.c.bf16 %v983, %v980
      %v1097 = vpack.c.bf16 %v991, %v988
      %vm1098 = vcmask 64512
      %v1100 = vsel %vm1098, %v1090, 0
      %v1103 = vsel %vm1098, %v1091, 0
      %v1106 = vsel %vm1098, %v1092, 0
      %v1109 = vsel %vm1098, %v1093, 0
      %v1112 = vsel %vm1098, %v1094, 0
      %v1115 = vsel %vm1098, %v1095, 0
      %v1118 = vsel %vm1098, %v1096, 0
      %v1121 = vsel %vm1098, %v1097, 0
      %1123 = vmatprep.subr.bf16.mxu0 0
      %1124 = vmatpush1.bf16.xpose.msra.mxu0 %v1112
      %1125 = vmatprep.subr.bf16.mxu0 0
      %1126 = vmatpush1.bf16.xpose.msra.mxu0 %v1115
      %1127 = vmatprep.subr.bf16.mxu0 0
      %1128 = vmatpush1.bf16.xpose.msra.mxu0 %v1118
      %1129 = vmatprep.subr.bf16.mxu0 0
      %1130 = vmatpush1.bf16.xpose.msra.mxu0 %v1121
      %1131 = vmatprep.subr.bf16.mxu0 0
      %1132 = vmatpush1.bf16.xpose.msra.mxu0 0
      %1133 = vmatprep.subr.bf16.mxu0 0
      %1134 = vmatpush1.bf16.xpose.msra.mxu0 0
      %1135 = vmatprep.subr.bf16.mxu0 0
      %1136 = vmatpush1.bf16.xpose.msra.mxu0 0
      %1137 = vmatprep.subr.bf16.mxu0 0
      %1138 = vmatpush1.bf16.xpose.msra.mxu0 0
      %1139 = vmatprep.subr.bf16.mxu0 0
      %1140 = vmatpush1.bf16.xpose.msra.mxu0 0
      %1141 = vmatprep.subr.bf16.mxu0 0
      %1142 = vmatpush1.bf16.xpose.msra.mxu0 0
      %1143 = vmatprep.subr.bf16.mxu0 0
      %1144 = vmatpush1.bf16.xpose.msra.mxu0 0
      %1145 = vmatprep.subr.bf16.mxu0 0
      %1146 = vmatpush1.bf16.xpose.msra.mxu0 0
      %1147 = vmatprep.subr.bf16.mxu0 0
      %1148 = vmatpush1.bf16.xpose.msra.mxu0 0
      %1149 = vmatprep.subr.bf16.mxu0 0
      %1150 = vmatpush1.bf16.xpose.msra.mxu0 0
      %1151 = vmatprep.subr.bf16.mxu0 0
      %1152 = vmatpush1.bf16.xpose.msra.mxu0 0
      %1153 = vmatprep.subr.bf16.mxu0 0
      %1154 = vmatpush1.bf16.xpose.msra.mxu0 0
      %1155 = vmatprep.mubr.bf16.mxu0 0
      %1156 = vmatmul.mubr.bf16.gmra.mrb[0].mxu0 %v1100
      %v1157 = vpop.f32.mrb[0].mxu0
      %v1158 = vadd.f32 0.0, %v1157
      %v1159 = vpop.f32.mrb[0].mxu0
      %v1160 = vpop.f32.mrb[0].mxu0
      %v1161 = vadd.f32 0.0, %v1160
      %v1162 = vpop.f32.mrb[0].mxu0
      %1163 = vmatprep.mubr.bf16.mxu0 0
      %1164 = vmatmul.mubr.bf16.gmra.mrb[0].mxu0 %v1103
      %v1165 = vpop.f32.mrb[0].mxu0
      %v1166 = vadd.f32 0.0, %v1165
      %v1167 = vpop.f32.mrb[0].mxu0
      %v1168 = vpop.f32.mrb[0].mxu0
      %v1169 = vadd.f32 0.0, %v1168
      %v1170 = vpop.f32.mrb[0].mxu0
      %1171 = vmatprep.mubr.bf16.mxu0 0
      %1172 = vmatmul.mubr.bf16.gmra.mrb[0].mxu0 %v1106
      %v1173 = vpop.f32.mrb[0].mxu0
      %v1174 = vadd.f32 0.0, %v1173
      %v1175 = vpop.f32.mrb[0].mxu0
      %v1176 = vpop.f32.mrb[0].mxu0
      %v1177 = vadd.f32 0.0, %v1176
      %v1178 = vpop.f32.mrb[0].mxu0
      %1179 = vmatprep.mubr.bf16.mxu0 0
      %1180 = vmatmul.mubr.bf16.gmra.mrb[0].mxu0 %v1109
      %v1181 = vpop.f32.mrb[0].mxu0
      %v1182 = vadd.f32 0.0, %v1181
      %v1183 = vpop.f32.mrb[0].mxu0
      %v1184 = vpop.f32.mrb[0].mxu0
      %v1185 = vadd.f32 0.0, %v1184
      %v1186 = vpop.f32.mrb[0].mxu0
      %1187 = vdwg.mxu0
      %vm1188 = vcmask 523264
      %v1189 = vsel %vm1188, %v1158, -inf
      %1190 = vmax.xlane.f32.xlu0 %v1189
      %v1191 = vpop.xlane.xlu0 %1190
      %v1192 = vsel %vm1188, %v1161, -inf
      %1193 = vmax.xlane.f32.xlu0 %v1192
      %v1194 = vpop.xlane.xlu0 %1193
      %v1195 = vsel %vm1188, %v1166, -inf
      %1196 = vmax.xlane.f32.xlu0 %v1195
      %v1197 = vpop.xlane.xlu0 %1196
      %v1198 = vsel %vm1188, %v1169, -inf
      %1199 = vmax.xlane.f32.xlu0 %v1198
      %v1200 = vpop.xlane.xlu0 %1199
      %v1201 = vsel %vm1188, %v1174, -inf
      %1202 = vmax.xlane.f32.xlu0 %v1201
      %v1203 = vpop.xlane.xlu0 %1202
      %v1204 = vsel %vm1188, %v1177, -inf
      %1205 = vmax.xlane.f32.xlu0 %v1204
      %v1206 = vpop.xlane.xlu0 %1205
      %v1207 = vsel %vm1188, %v1182, -inf
      %1208 = vmax.xlane.f32.xlu0 %v1207
      %v1209 = vpop.xlane.xlu0 %1208
      %v1210 = vsel %vm1188, %v1185, -inf
      %1211 = vmax.xlane.f32.xlu0 %v1210
      %v1212 = vpop.xlane.xlu0 %1211
      %v1213 = vsub.f32 %v1158, %v1191
      %v1214 = vsub.f32 %v1161, %v1194
      %v1215 = vsub.f32 %v1166, %v1197
      %v1216 = vsub.f32 %v1169, %v1200
      %v1217 = vsub.f32 %v1174, %v1203
      %v1218 = vsub.f32 %v1177, %v1206
      %v1219 = vsub.f32 %v1182, %v1209
      %v1220 = vsub.f32 %v1185, %v1212
      %v1221 = vmul.f32 %v1213, 1.442695
      %v1222 = vpow.pop %v1221
      %v1223 = vmul.f32 %v1214, 1.442695
      %v1224 = vpow.pop %v1223
      %v1225 = vmul.f32 %v1215, 1.442695
      %v1226 = vpow.pop %v1225
      %v1227 = vmul.f32 %v1216, 1.442695
      %v1228 = vpow.pop %v1227
      %v1229 = vmul.f32 %v1217, 1.442695
      %v1230 = vpow.pop %v1229
      %v1231 = vmul.f32 %v1218, 1.442695
      %v1232 = vpow.pop %v1231
      %v1233 = vmul.f32 %v1219, 1.442695
      %v1234 = vpow.pop %v1233
      %v1235 = vmul.f32 %v1220, 1.442695
      %v1236 = vpow.pop %v1235
      %v1237 = vsel %vm1188, %v1222, 0.0
      %1238 = vadd.xlane.f32.xlu0 %v1237
      %v1239 = vpop.xlane.xlu0 %1238
      %v1240 = vsel %vm1188, %v1224, 0.0
      %1241 = vadd.xlane.f32.xlu0 %v1240
      %v1242 = vpop.xlane.xlu0 %1241
      %v1243 = vsel %vm1188, %v1226, 0.0
      %1244 = vadd.xlane.f32.xlu0 %v1243
      %v1245 = vpop.xlane.xlu0 %1244
      %v1246 = vsel %vm1188, %v1228, 0.0
      %1247 = vadd.xlane.f32.xlu0 %v1246
      %v1248 = vpop.xlane.xlu0 %1247
      %v1249 = vsel %vm1188, %v1230, 0.0
      %1250 = vadd.xlane.f32.xlu0 %v1249
      %v1251 = vpop.xlane.xlu0 %1250
      %v1252 = vsel %vm1188, %v1232, 0.0
      %1253 = vadd.xlane.f32.xlu0 %v1252
      %v1254 = vpop.xlane.xlu0 %1253
      %v1255 = vsel %vm1188, %v1234, 0.0
      %1256 = vadd.xlane.f32.xlu0 %v1255
      %v1257 = vpop.xlane.xlu0 %1256
      %v1258 = vsel %vm1188, %v1236, 0.0
      %1259 = vadd.xlane.f32.xlu0 %v1258
      %v1260 = vpop.xlane.xlu0 %1259
      %v1261 = vrcp.pop %v1239
      %v1262 = vrcp.pop %v1242
      %v1263 = vrcp.pop %v1245
      %v1264 = vrcp.pop %v1248
      %v1265 = vrcp.pop %v1251
      %v1266 = vrcp.pop %v1254
      %v1267 = vrcp.pop %v1257
      %v1268 = vrcp.pop %v1260
      %v1269 = vmul.f32 %v1222, %v1261
      %v1270 = vmul.f32 %v1224, %v1262
      %v1271 = vmul.f32 %v1226, %v1263
      %v1272 = vmul.f32 %v1228, %v1264
      %v1273 = vmul.f32 %v1230, %v1265
      %v1274 = vmul.f32 %v1232, %v1266
      %v1275 = vmul.f32 %v1234, %v1267
      %v1276 = vmul.f32 %v1236, %v1268
      %v1277 = vpack.c.bf16 %v1270, %v1269
      %v1278 = vpack.c.bf16 %v1272, %v1271
      %v1279 = vpack.c.bf16 %v1274, %v1273
      %v1280 = vpack.c.bf16 %v1276, %v1275
      %v1281 = vpack.c.bf16 %v1055, %v1052
      %v1282 = vpack.c.bf16 %v1063, %v1060
      %v1283 = vpack.c.bf16 %v1071, %v1068
      %v1284 = vpack.c.bf16 %v1079, %v1076
      %v1286 = vsel %vm1188, %v1277, 0
      %v1289 = vsel %vm1188, %v1278, 0
      %v1292 = vsel %vm1188, %v1279, 0
      %v1295 = vsel %vm1188, %v1280, 0
      %1297 = vmatprep.subr.bf16.mxu0 0
      %1298 = vmatpush1.bf16.msra.mxu0 %v1281
      %1299 = vmatprep.subr.bf16.mxu0 0
      %1300 = vmatpush1.bf16.msra.mxu0 %v1282
      %1301 = vmatprep.subr.bf16.mxu0 0
      %1302 = vmatpush1.bf16.msra.mxu0 %v1283
      %1303 = vmatprep.subr.bf16.mxu0 0
      %1304 = vmatpush1.bf16.msra.mxu0 %v1284
      %1305 = vmatprep.subr.bf16.mxu0 0
      %1306 = vmatpush1.bf16.msra.mxu0 0
      %1307 = vmatprep.subr.bf16.mxu0 0
      %1308 = vmatpush1.bf16.msra.mxu0 0
      %1309 = vmatprep.subr.bf16.mxu0 0
      %1310 = vmatpush1.bf16.msra.mxu0 0
      %1311 = vmatprep.subr.bf16.mxu0 0
      %1312 = vmatpush1.bf16.msra.mxu0 0
      %1313 = vmatprep.subr.bf16.mxu0 0
      %1314 = vmatpush1.bf16.msra.mxu0 0
      %1315 = vmatprep.subr.bf16.mxu0 0
      %1316 = vmatpush1.bf16.msra.mxu0 0
      %1317 = vmatprep.subr.bf16.mxu0 0
      %1318 = vmatpush1.bf16.msra.mxu0 0
      %1319 = vmatprep.subr.bf16.mxu0 0
      %1320 = vmatpush1.bf16.msra.mxu0 0
      %1321 = vmatprep.subr.bf16.mxu0 0
      %1322 = vmatpush1.bf16.msra.mxu0 0
      %1323 = vmatprep.subr.bf16.mxu0 0
      %1324 = vmatpush1.bf16.msra.mxu0 0
      %1325 = vmatprep.subr.bf16.mxu0 0
      %1326 = vmatpush1.bf16.msra.mxu0 0
      %1327 = vmatprep.subr.bf16.mxu0 0
      %1328 = vmatpush1.bf16.msra.mxu0 0
      %1329 = vmatprep.mubr.bf16.mxu0 0
      %1330 = vmatmul.mubr.bf16.gmra.mrb[0].mxu0 %v1286
      %v1331 = vpop.f32.mrb[0].mxu0
      %v1332 = vadd.f32 0.0, %v1331
      %v1333 = vpop.f32.mrb[0].mxu0
      %v1334 = vpop.f32.mrb[0].mxu0
      %v1335 = vadd.f32 0.0, %v1334
      %v1336 = vpop.f32.mrb[0].mxu0
      %1337 = vmatprep.mubr.bf16.mxu0 0
      %1338 = vmatmul.mubr.bf16.gmra.mrb[0].mxu0 %v1289
      %v1339 = vpop.f32.mrb[0].mxu0
      %v1340 = vadd.f32 0.0, %v1339
      %v1341 = vpop.f32.mrb[0].mxu0
      %v1342 = vpop.f32.mrb[0].mxu0
      %v1343 = vadd.f32 0.0, %v1342
      %v1344 = vpop.f32.mrb[0].mxu0
      %1345 = vmatprep.mubr.bf16.mxu0 0
      %1346 = vmatmul.mubr.bf16.gmra.mrb[0].mxu0 %v1292
      %v1347 = vpop.f32.mrb[0].mxu0
      %v1348 = vadd.f32 0.0, %v1347
      %v1349 = vpop.f32.mrb[0].mxu0
      %v1350 = vpop.f32.mrb[0].mxu0
      %v1351 = vadd.f32 0.0, %v1350
      %v1352 = vpop.f32.mrb[0].mxu0
      %1353 = vmatprep.mubr.bf16.mxu0 0
      %1354 = vmatmul.mubr.bf16.gmra.mrb[0].mxu0 %v1295
      %v1355 = vpop.f32.mrb[0].mxu0
      %v1356 = vadd.f32 0.0, %v1355
      %v1357 = vpop.f32.mrb[0].mxu0
      %v1358 = vpop.f32.mrb[0].mxu0
      %v1359 = vadd.f32 0.0, %v1358
      %v1360 = vpop.f32.mrb[0].mxu0
      %1361 = vdwg.mxu0
      %v1362 = vpack.c.bf16 %v1335, %v1332
      %v1363 = vpack.c.bf16 %v1343, %v1340
      %v1364 = vpack.c.bf16 %v1351, %v1348
      %v1365 = vpack.c.bf16 %v1359, %v1356
      %v1366 = vld [vmem:[%s9] sm:$0xf]
      %s1367 = scalar_lea.vmem %s3, 16
      %v1368 = vld [vmem:[%s1367] sm:$0xf]
      %v1369 = vld [vmem:[%s1367 + $0x4] sm:$0xf]
      %v1370 = vld [vmem:[%s1367 + $0x8] sm:$0xf]
      %v1371 = vld [vmem:[%s1367 + $0xc] sm:$0xf]
      %s1372 = scalar_lea.vmem %s4, 1
      %v1373 = vld [vmem:[%s1372] sm:$0x1]
      %v1375 = vlaneseq
      %v1376 = vshrl.u32 %v1375, 7
      %v1377 = vsub.s32 0, %v1376
      %v1378 = vrot.slane %v1373, %v1377
      %v1384 = vunpack.c.l.b16 %v1368
      %v1385 = vunpack.c.l.b16 %v1369
      %v1386 = vunpack.c.l.b16 %v1370
      %v1387 = vunpack.c.l.b16 %v1371
      %v1388 = vpack.c.b16 %v1385, %v1384
      %v1389 = vpack.c.b16 %v1387, %v1386
      %1392 = vmatprep.subr.bf16.mxu0 0
      %1393 = vmatpush1.bf16.msra.mxu0 %v1388
      %1394 = vmatprep.subr.bf16.mxu0 0
      %1395 = vmatpush1.bf16.msra.mxu0 %v1389
      %1396 = vmatprep.subr.bf16.mxu0 0
      %1397 = vmatpush1.bf16.msra.mxu0 0
      %1398 = vmatprep.subr.bf16.mxu0 0
      %1399 = vmatpush1.bf16.msra.mxu0 0
      %1400 = vmatprep.subr.bf16.mxu0 0
      %1401 = vmatpush1.bf16.msra.mxu0 0
      %1402 = vmatprep.subr.bf16.mxu0 0
      %1403 = vmatpush1.bf16.msra.mxu0 0
      %1404 = vmatprep.subr.bf16.mxu0 0
      %1405 = vmatpush1.bf16.msra.mxu0 0
      %1406 = vmatprep.subr.bf16.mxu0 0
      %1407 = vmatpush1.bf16.msra.mxu0 0
      %1408 = vmatprep.subr.bf16.mxu0 0
      %1409 = vmatpush1.bf16.msra.mxu0 0
      %1410 = vmatprep.subr.bf16.mxu0 0
      %1411 = vmatpush1.bf16.msra.mxu0 0
      %1412 = vmatprep.subr.bf16.mxu0 0
      %1413 = vmatpush1.bf16.msra.mxu0 0
      %1414 = vmatprep.subr.bf16.mxu0 0
      %1415 = vmatpush1.bf16.msra.mxu0 0
      %1416 = vmatprep.subr.bf16.mxu0 0
      %1417 = vmatpush1.bf16.msra.mxu0 0
      %1418 = vmatprep.subr.bf16.mxu0 0
      %1419 = vmatpush1.bf16.msra.mxu0 0
      %1420 = vmatprep.subr.bf16.mxu0 0
      %1421 = vmatpush1.bf16.msra.mxu0 0
      %1422 = vmatprep.subr.bf16.mxu0 0
      %1423 = vmatpush1.bf16.msra.mxu0 0
      %1424 = vmatprep.mubr.bf16.mxu0 0
      %1425 = vmatmul.mubr.bf16.gmra.mrb[0].mxu0 %v830
      %v1426 = vpop.f32.mrb[0].mxu0
      %v1427 = vadd.f32 %v1378, %v1426
      %v1428 = vpop.f32.mrb[0].mxu0
      %v1429 = vpop.f32.mrb[0].mxu0
      %v1430 = vadd.f32 %v1378, %v1429
      %v1431 = vpop.f32.mrb[0].mxu0
      %1432 = vmatprep.mubr.bf16.mxu0 0
      %1433 = vmatmul.mubr.bf16.gmra.mrb[0].mxu0 %v833
      %v1434 = vpop.f32.mrb[0].mxu0
      %v1435 = vadd.f32 %v1378, %v1434
      %v1436 = vpop.f32.mrb[0].mxu0
      %v1437 = vpop.f32.mrb[0].mxu0
      %v1438 = vadd.f32 %v1378, %v1437
      %v1439 = vpop.f32.mrb[0].mxu0
      %1440 = vmatprep.mubr.bf16.mxu0 0
      %1441 = vmatmul.mubr.bf16.gmra.mrb[0].mxu0 %v836
      %v1442 = vpop.f32.mrb[0].mxu0
      %v1443 = vadd.f32 %v1378, %v1442
      %v1444 = vpop.f32.mrb[0].mxu0
      %v1445 = vpop.f32.mrb[0].mxu0
      %v1446 = vadd.f32 %v1378, %v1445
      %v1447 = vpop.f32.mrb[0].mxu0
      %1448 = vmatprep.mubr.bf16.mxu0 0
      %1449 = vmatmul.mubr.bf16.gmra.mrb[0].mxu0 %v839
      %v1450 = vpop.f32.mrb[0].mxu0
      %v1451 = vadd.f32 %v1378, %v1450
      %v1452 = vpop.f32.mrb[0].mxu0
      %v1453 = vpop.f32.mrb[0].mxu0
      %v1454 = vadd.f32 %v1378, %v1453
      %v1455 = vpop.f32.mrb[0].mxu0
      %1456 = vdwg.mxu0
      %s1457 = scalar_lea.vmem %s5, 16
      %v1458 = vld [vmem:[%s1457] sm:$0xf]
      %v1459 = vld [vmem:[%s1457 + $0x4] sm:$0xf]
      %v1460 = vld [vmem:[%s1457 + $0x8] sm:$0xf]
      %v1461 = vld [vmem:[%s1457 + $0xc] sm:$0xf]
      %s1462 = scalar_lea.vmem %s6, 1
      %v1463 = vld [vmem:[%s1462] sm:$0x1]
      %v1465 = vlaneseq
      %v1466 = vshrl.u32 %v1465, 7
      %v1467 = vsub.s32 0, %v1466
      %v1468 = vrot.slane %v1463, %v1467
      %v1474 = vunpack.c.l.b16 %v1458
      %v1475 = vunpack.c.l.b16 %v1459
      %v1476 = vunpack.c.l.b16 %v1460
      %v1477 = vunpack.c.l.b16 %v1461
      %v1478 = vpack.c.b16 %v1475, %v1474
      %v1479 = vpack.c.b16 %v1477, %v1476
      %1482 = vmatprep.subr.bf16.mxu0 0
      %1483 = vmatpush1.bf16.msra.mxu0 %v1478
      %1484 = vmatprep.subr.bf16.mxu0 0
      %1485 = vmatpush1.bf16.msra.mxu0 %v1479
      %1486 = vmatprep.subr.bf16.mxu0 0
      %1487 = vmatpush1.bf16.msra.mxu0 0
      %1488 = vmatprep.subr.bf16.mxu0 0
      %1489 = vmatpush1.bf16.msra.mxu0 0
      %1490 = vmatprep.subr.bf16.mxu0 0
      %1491 = vmatpush1.bf16.msra.mxu0 0
      %1492 = vmatprep.subr.bf16.mxu0 0
      %1493 = vmatpush1.bf16.msra.mxu0 0
      %1494 = vmatprep.subr.bf16.mxu0 0
      %1495 = vmatpush1.bf16.msra.mxu0 0
      %1496 = vmatprep.subr.bf16.mxu0 0
      %1497 = vmatpush1.bf16.msra.mxu0 0
      %1498 = vmatprep.subr.bf16.mxu0 0
      %1499 = vmatpush1.bf16.msra.mxu0 0
      %1500 = vmatprep.subr.bf16.mxu0 0
      %1501 = vmatpush1.bf16.msra.mxu0 0
      %1502 = vmatprep.subr.bf16.mxu0 0
      %1503 = vmatpush1.bf16.msra.mxu0 0
      %1504 = vmatprep.subr.bf16.mxu0 0
      %1505 = vmatpush1.bf16.msra.mxu0 0
      %1506 = vmatprep.subr.bf16.mxu0 0
      %1507 = vmatpush1.bf16.msra.mxu0 0
      %1508 = vmatprep.subr.bf16.mxu0 0
      %1509 = vmatpush1.bf16.msra.mxu0 0
      %1510 = vmatprep.subr.bf16.mxu0 0
      %1511 = vmatpush1.bf16.msra.mxu0 0
      %1512 = vmatprep.subr.bf16.mxu0 0
      %1513 = vmatpush1.bf16.msra.mxu0 0
      %1514 = vmatprep.mubr.bf16.mxu0 0
      %1515 = vmatmul.mubr.bf16.gmra.mrb[0].mxu0 %v830
      %v1516 = vpop.f32.mrb[0].mxu0
      %v1517 = vadd.f32 %v1468, %v1516
      %v1518 = vpop.f32.mrb[0].mxu0
      %v1519 = vpop.f32.mrb[0].mxu0
      %v1520 = vadd.f32 %v1468, %v1519
      %v1521 = vpop.f32.mrb[0].mxu0
      %1522 = vmatprep.mubr.bf16.mxu0 0
      %1523 = vmatmul.mubr.bf16.gmra.mrb[0].mxu0 %v833
      %v1524 = vpop.f32.mrb[0].mxu0
      %v1525 = vadd.f32 %v1468, %v1524
      %v1526 = vpop.f32.mrb[0].mxu0
      %v1527 = vpop.f32.mrb[0].mxu0
      %v1528 = vadd.f32 %v1468, %v1527
      %v1529 = vpop.f32.mrb[0].mxu0
      %1530 = vmatprep.mubr.bf16.mxu0 0
      %1531 = vmatmul.mubr.bf16.gmra.mrb[0].mxu0 %v836
      %v1532 = vpop.f32.mrb[0].mxu0
      %v1533 = vadd.f32 %v1468, %v1532
      %v1534 = vpop.f32.mrb[0].mxu0
      %v1535 = vpop.f32.mrb[0].mxu0
      %v1536 = vadd.f32 %v1468, %v1535
      %v1537 = vpop.f32.mrb[0].mxu0
      %1538 = vmatprep.mubr.bf16.mxu0 0
      %1539 = vmatmul.mubr.bf16.gmra.mrb[0].mxu0 %v839
      %v1540 = vpop.f32.mrb[0].mxu0
      %v1541 = vadd.f32 %v1468, %v1540
      %v1542 = vpop.f32.mrb[0].mxu0
      %v1543 = vpop.f32.mrb[0].mxu0
      %v1544 = vadd.f32 %v1468, %v1543
      %v1545 = vpop.f32.mrb[0].mxu0
      %1546 = vdwg.mxu0
      %s1547 = scalar_lea.vmem %s7, 16
      %v1548 = vld [vmem:[%s1547] sm:$0xf]
      %v1549 = vld [vmem:[%s1547 + $0x4] sm:$0xf]
      %v1550 = vld [vmem:[%s1547 + $0x8] sm:$0xf]
      %v1551 = vld [vmem:[%s1547 + $0xc] sm:$0xf]
      %s1552 = scalar_lea.vmem %s8, 1
      %v1553 = vld [vmem:[%s1552] sm:$0x1]
      %v1555 = vlaneseq
      %v1556 = vshrl.u32 %v1555, 7
      %v1557 = vsub.s32 0, %v1556
      %v1558 = vrot.slane %v1553, %v1557
      %v1564 = vunpack.c.l.b16 %v1548
      %v1565 = vunpack.c.l.b16 %v1549
      %v1566 = vunpack.c.l.b16 %v1550
      %v1567 = vunpack.c.l.b16 %v1551
      %v1568 = vpack.c.b16 %v1565, %v1564
      %v1569 = vpack.c.b16 %v1567, %v1566
      %1572 = vmatprep.subr.bf16.mxu0 0
      %1573 = vmatpush1.bf16.msra.mxu0 %v1568
      %1574 = vmatprep.subr.bf16.mxu0 0
      %1575 = vmatpush1.bf16.msra.mxu0 %v1569
      %1576 = vmatprep.subr.bf16.mxu0 0
      %1577 = vmatpush1.bf16.msra.mxu0 0
      %1578 = vmatprep.subr.bf16.mxu0 0
      %1579 = vmatpush1.bf16.msra.mxu0 0
      %1580 = vmatprep.subr.bf16.mxu0 0
      %1581 = vmatpush1.bf16.msra.mxu0 0
      %1582 = vmatprep.subr.bf16.mxu0 0
      %1583 = vmatpush1.bf16.msra.mxu0 0
      %1584 = vmatprep.subr.bf16.mxu0 0
      %1585 = vmatpush1.bf16.msra.mxu0 0
      %1586 = vmatprep.subr.bf16.mxu0 0
      %1587 = vmatpush1.bf16.msra.mxu0 0
      %1588 = vmatprep.subr.bf16.mxu0 0
      %1589 = vmatpush1.bf16.msra.mxu0 0
      %1590 = vmatprep.subr.bf16.mxu0 0
      %1591 = vmatpush1.bf16.msra.mxu0 0
      %1592 = vmatprep.subr.bf16.mxu0 0
      %1593 = vmatpush1.bf16.msra.mxu0 0
      %1594 = vmatprep.subr.bf16.mxu0 0
      %1595 = vmatpush1.bf16.msra.mxu0 0
      %1596 = vmatprep.subr.bf16.mxu0 0
      %1597 = vmatpush1.bf16.msra.mxu0 0
      %1598 = vmatprep.subr.bf16.mxu0 0
      %1599 = vmatpush1.bf16.msra.mxu0 0
      %1600 = vmatprep.subr.bf16.mxu0 0
      %1601 = vmatpush1.bf16.msra.mxu0 0
      %1602 = vmatprep.subr.bf16.mxu0 0
      %1603 = vmatpush1.bf16.msra.mxu0 0
      %1604 = vmatprep.mubr.bf16.mxu0 0
      %1605 = vmatmul.mubr.bf16.gmra.mrb[0].mxu0 %v830
      %v1606 = vpop.f32.mrb[0].mxu0
      %v1607 = vadd.f32 %v1558, %v1606
      %v1608 = vpop.f32.mrb[0].mxu0
      %v1609 = vpop.f32.mrb[0].mxu0
      %v1610 = vadd.f32 %v1558, %v1609
      %v1611 = vpop.f32.mrb[0].mxu0
      %1612 = vmatprep.mubr.bf16.mxu0 0
      %1613 = vmatmul.mubr.bf16.gmra.mrb[0].mxu0 %v833
      %v1614 = vpop.f32.mrb[0].mxu0
      %v1615 = vadd.f32 %v1558, %v1614
      %v1616 = vpop.f32.mrb[0].mxu0
      %v1617 = vpop.f32.mrb[0].mxu0
      %v1618 = vadd.f32 %v1558, %v1617
      %v1619 = vpop.f32.mrb[0].mxu0
      %1620 = vmatprep.mubr.bf16.mxu0 0
      %1621 = vmatmul.mubr.bf16.gmra.mrb[0].mxu0 %v836
      %v1622 = vpop.f32.mrb[0].mxu0
      %v1623 = vadd.f32 %v1558, %v1622
      %v1624 = vpop.f32.mrb[0].mxu0
      %v1625 = vpop.f32.mrb[0].mxu0
      %v1626 = vadd.f32 %v1558, %v1625
      %v1627 = vpop.f32.mrb[0].mxu0
      %1628 = vmatprep.mubr.bf16.mxu0 0
      %1629 = vmatmul.mubr.bf16.gmra.mrb[0].mxu0 %v839
      %v1630 = vpop.f32.mrb[0].mxu0
      %v1631 = vadd.f32 %v1558, %v1630
      %v1632 = vpop.f32.mrb[0].mxu0
      %v1633 = vpop.f32.mrb[0].mxu0
      %v1634 = vadd.f32 %v1558, %v1633
      %v1635 = vpop.f32.mrb[0].mxu0
      %1636 = vdwg.mxu0
      %v1637 = vmul.f32 %v1427, 0.35355338
      %v1638 = vmul.f32 %v1430, 0.35355338
      %v1639 = vmul.f32 %v1435, 0.35355338
      %v1640 = vmul.f32 %v1438, 0.35355338
      %v1641 = vmul.f32 %v1443, 0.35355338
      %v1642 = vmul.f32 %v1446, 0.35355338
      %v1643 = vmul.f32 %v1451, 0.35355338
      %v1644 = vmul.f32 %v1454, 0.35355338
      %v1645 = vpack.c.bf16 %v1638, %v1637
      %v1646 = vpack.c.bf16 %v1640, %v1639
      %v1647 = vpack.c.bf16 %v1642, %v1641
      %v1648 = vpack.c.bf16 %v1644, %v1643
      %v1649 = vpack.c.bf16 %v1520, %v1517
      %v1650 = vpack.c.bf16 %v1528, %v1525
      %v1651 = vpack.c.bf16 %v1536, %v1533
      %v1652 = vpack.c.bf16 %v1544, %v1541
      %v1654 = vsel %vm1098, %v1645, 0
      %v1657 = vsel %vm1098, %v1646, 0
      %v1660 = vsel %vm1098, %v1647, 0
      %v1663 = vsel %vm1098, %v1648, 0
      %v1666 = vsel %vm1098, %v1649, 0
      %v1669 = vsel %vm1098, %v1650, 0
      %v1672 = vsel %vm1098, %v1651, 0
      %v1675 = vsel %vm1098, %v1652, 0
      %1677 = vmatprep.subr.bf16.mxu0 0
      %1678 = vmatpush1.bf16.xpose.msra.mxu0 %v1666
      %1679 = vmatprep.subr.bf16.mxu0 0
      %1680 = vmatpush1.bf16.xpose.msra.mxu0 %v1669
      %1681 = vmatprep.subr.bf16.mxu0 0
      %1682 = vmatpush1.bf16.xpose.msra.mxu0 %v1672
      %1683 = vmatprep.subr.bf16.mxu0 0
      %1684 = vmatpush1.bf16.xpose.msra.mxu0 %v1675
      %1685 = vmatprep.subr.bf16.mxu0 0
      %1686 = vmatpush1.bf16.xpose.msra.mxu0 0
      %1687 = vmatprep.subr.bf16.mxu0 0
      %1688 = vmatpush1.bf16.xpose.msra.mxu0 0
      %1689 = vmatprep.subr.bf16.mxu0 0
      %1690 = vmatpush1.bf16.xpose.msra.mxu0 0
      %1691 = vmatprep.subr.bf16.mxu0 0
      %1692 = vmatpush1.bf16.xpose.msra.mxu0 0
      %1693 = vmatprep.subr.bf16.mxu0 0
      %1694 = vmatpush1.bf16.xpose.msra.mxu0 0
      %1695 = vmatprep.subr.bf16.mxu0 0
      %1696 = vmatpush1.bf16.xpose.msra.mxu0 0
      %1697 = vmatprep.subr.bf16.mxu0 0
      %1698 = vmatpush1.bf16.xpose.msra.mxu0 0
      %1699 = vmatprep.subr.bf16.mxu0 0
      %1700 = vmatpush1.bf16.xpose.msra.mxu0 0
      %1701 = vmatprep.subr.bf16.mxu0 0
      %1702 = vmatpush1.bf16.xpose.msra.mxu0 0
      %1703 = vmatprep.subr.bf16.mxu0 0
      %1704 = vmatpush1.bf16.xpose.msra.mxu0 0
      %1705 = vmatprep.subr.bf16.mxu0 0
      %1706 = vmatpush1.bf16.xpose.msra.mxu0 0
      %1707 = vmatprep.subr.bf16.mxu0 0
      %1708 = vmatpush1.bf16.xpose.msra.mxu0 0
      %1709 = vmatprep.mubr.bf16.mxu0 0
      %1710 = vmatmul.mubr.bf16.gmra.mrb[0].mxu0 %v1654
      %v1711 = vpop.f32.mrb[0].mxu0
      %v1712 = vadd.f32 0.0, %v1711
      %v1713 = vpop.f32.mrb[0].mxu0
      %v1714 = vpop.f32.mrb[0].mxu0
      %v1715 = vadd.f32 0.0, %v1714
      %v1716 = vpop.f32.mrb[0].mxu0
      %1717 = vmatprep.mubr.bf16.mxu0 0
      %1718 = vmatmul.mubr.bf16.gmra.mrb[0].mxu0 %v1657
      %v1719 = vpop.f32.mrb[0].mxu0
      %v1720 = vadd.f32 0.0, %v1719
      %v1721 = vpop.f32.mrb[0].mxu0
      %v1722 = vpop.f32.mrb[0].mxu0
      %v1723 = vadd.f32 0.0, %v1722
      %v1724 = vpop.f32.mrb[0].mxu0
      %1725 = vmatprep.mubr.bf16.mxu0 0
      %1726 = vmatmul.mubr.bf16.gmra.mrb[0].mxu0 %v1660
      %v1727 = vpop.f32.mrb[0].mxu0
      %v1728 = vadd.f32 0.0, %v1727
      %v1729 = vpop.f32.mrb[0].mxu0
      %v1730 = vpop.f32.mrb[0].mxu0
      %v1731 = vadd.f32 0.0, %v1730
      %v1732 = vpop.f32.mrb[0].mxu0
      %1733 = vmatprep.mubr.bf16.mxu0 0
      %1734 = vmatmul.mubr.bf16.gmra.mrb[0].mxu0 %v1663
      %v1735 = vpop.f32.mrb[0].mxu0
      %v1736 = vadd.f32 0.0, %v1735
      %v1737 = vpop.f32.mrb[0].mxu0
      %v1738 = vpop.f32.mrb[0].mxu0
      %v1739 = vadd.f32 0.0, %v1738
      %v1740 = vpop.f32.mrb[0].mxu0
      %1741 = vdwg.mxu0
      %v1742 = vsel %vm1188, %v1712, -inf
      %1743 = vmax.xlane.f32.xlu0 %v1742
      %v1744 = vpop.xlane.xlu0 %1743
      %v1745 = vsel %vm1188, %v1715, -inf
      %1746 = vmax.xlane.f32.xlu0 %v1745
      %v1747 = vpop.xlane.xlu0 %1746
      %v1748 = vsel %vm1188, %v1720, -inf
      %1749 = vmax.xlane.f32.xlu0 %v1748
      %v1750 = vpop.xlane.xlu0 %1749
      %v1751 = vsel %vm1188, %v1723, -inf
      %1752 = vmax.xlane.f32.xlu0 %v1751
      %v1753 = vpop.xlane.xlu0 %1752
      %v1754 = vsel %vm1188, %v1728, -inf
      %1755 = vmax.xlane.f32.xlu0 %v1754
      %v1756 = vpop.xlane.xlu0 %1755
      %v1757 = vsel %vm1188, %v1731, -inf
      %1758 = vmax.xlane.f32.xlu0 %v1757
      %v1759 = vpop.xlane.xlu0 %1758
      %v1760 = vsel %vm1188, %v1736, -inf
      %1761 = vmax.xlane.f32.xlu0 %v1760
      %v1762 = vpop.xlane.xlu0 %1761
      %v1763 = vsel %vm1188, %v1739, -inf
      %1764 = vmax.xlane.f32.xlu0 %v1763
      %v1765 = vpop.xlane.xlu0 %1764
      %v1766 = vsub.f32 %v1712, %v1744
      %v1767 = vsub.f32 %v1715, %v1747
      %v1768 = vsub.f32 %v1720, %v1750
      %v1769 = vsub.f32 %v1723, %v1753
      %v1770 = vsub.f32 %v1728, %v1756
      %v1771 = vsub.f32 %v1731, %v1759
      %v1772 = vsub.f32 %v1736, %v1762
      %v1773 = vsub.f32 %v1739, %v1765
      %v1774 = vmul.f32 %v1766, 1.442695
      %v1775 = vpow.pop %v1774
      %v1776 = vmul.f32 %v1767, 1.442695
      %v1777 = vpow.pop %v1776
      %v1778 = vmul.f32 %v1768, 1.442695
      %v1779 = vpow.pop %v1778
      %v1780 = vmul.f32 %v1769, 1.442695
      %v1781 = vpow.pop %v1780
      %v1782 = vmul.f32 %v1770, 1.442695
      %v1783 = vpow.pop %v1782
      %v1784 = vmul.f32 %v1771, 1.442695
      %v1785 = vpow.pop %v1784
      %v1786 = vmul.f32 %v1772, 1.442695
      %v1787 = vpow.pop %v1786
      %v1788 = vmul.f32 %v1773, 1.442695
      %v1789 = vpow.pop %v1788
      %v1790 = vsel %vm1188, %v1775, 0.0
      %1791 = vadd.xlane.f32.xlu0 %v1790
      %v1792 = vpop.xlane.xlu0 %1791
      %v1793 = vsel %vm1188, %v1777, 0.0
      %1794 = vadd.xlane.f32.xlu0 %v1793
      %v1795 = vpop.xlane.xlu0 %1794
      %v1796 = vsel %vm1188, %v1779, 0.0
      %1797 = vadd.xlane.f32.xlu0 %v1796
      %v1798 = vpop.xlane.xlu0 %1797
      %v1799 = vsel %vm1188, %v1781, 0.0
      %1800 = vadd.xlane.f32.xlu0 %v1799
      %v1801 = vpop.xlane.xlu0 %1800
      %v1802 = vsel %vm1188, %v1783, 0.0
      %1803 = vadd.xlane.f32.xlu0 %v1802
      %v1804 = vpop.xlane.xlu0 %1803
      %v1805 = vsel %vm1188, %v1785, 0.0
      %1806 = vadd.xlane.f32.xlu0 %v1805
      %v1807 = vpop.xlane.xlu0 %1806
      %v1808 = vsel %vm1188, %v1787, 0.0
      %1809 = vadd.xlane.f32.xlu0 %v1808
      %v1810 = vpop.xlane.xlu0 %1809
      %v1811 = vsel %vm1188, %v1789, 0.0
      %1812 = vadd.xlane.f32.xlu0 %v1811
      %v1813 = vpop.xlane.xlu0 %1812
      %v1814 = vrcp.pop %v1792
      %v1815 = vrcp.pop %v1795
      %v1816 = vrcp.pop %v1798
      %v1817 = vrcp.pop %v1801
      %v1818 = vrcp.pop %v1804
      %v1819 = vrcp.pop %v1807
      %v1820 = vrcp.pop %v1810
      %v1821 = vrcp.pop %v1813
      %v1822 = vmul.f32 %v1775, %v1814
      %v1823 = vmul.f32 %v1777, %v1815
      %v1824 = vmul.f32 %v1779, %v1816
      %v1825 = vmul.f32 %v1781, %v1817
      %v1826 = vmul.f32 %v1783, %v1818
      %v1827 = vmul.f32 %v1785, %v1819
      %v1828 = vmul.f32 %v1787, %v1820
      %v1829 = vmul.f32 %v1789, %v1821
      %v1830 = vpack.c.bf16 %v1823, %v1822
      %v1831 = vpack.c.bf16 %v1825, %v1824
      %v1832 = vpack.c.bf16 %v1827, %v1826
      %v1833 = vpack.c.bf16 %v1829, %v1828
      %v1834 = vpack.c.bf16 %v1610, %v1607
      %v1835 = vpack.c.bf16 %v1618, %v1615
      %v1836 = vpack.c.bf16 %v1626, %v1623
      %v1837 = vpack.c.bf16 %v1634, %v1631
      %v1839 = vsel %vm1188, %v1830, 0
      %v1842 = vsel %vm1188, %v1831, 0
      %v1845 = vsel %vm1188, %v1832, 0
      %v1848 = vsel %vm1188, %v1833, 0
      %1850 = vmatprep.subr.bf16.mxu0 0
      %1851 = vmatpush1.bf16.msra.mxu0 %v1834
      %1852 = vmatprep.subr.bf16.mxu0 0
      %1853 = vmatpush1.bf16.msra.mxu0 %v1835
      %1854 = vmatprep.subr.bf16.mxu0 0
      %1855 = vmatpush1.bf16.msra.mxu0 %v1836
      %1856 = vmatprep.subr.bf16.mxu0 0
      %1857 = vmatpush1.bf16.msra.mxu0 %v1837
      %1858 = vmatprep.subr.bf16.mxu0 0
      %1859 = vmatpush1.bf16.msra.mxu0 0
      %1860 = vmatprep.subr.bf16.mxu0 0
      %1861 = vmatpush1.bf16.msra.mxu0 0
      %1862 = vmatprep.subr.bf16.mxu0 0
      %1863 = vmatpush1.bf16.msra.mxu0 0
      %1864 = vmatprep.subr.bf16.mxu0 0
      %1865 = vmatpush1.bf16.msra.mxu0 0
      %1866 = vmatprep.subr.bf16.mxu0 0
      %1867 = vmatpush1.bf16.msra.mxu0 0
      %1868 = vmatprep.subr.bf16.mxu0 0
      %1869 = vmatpush1.bf16.msra.mxu0 0
      %1870 = vmatprep.subr.bf16.mxu0 0
      %1871 = vmatpush1.bf16.msra.mxu0 0
      %1872 = vmatprep.subr.bf16.mxu0 0
      %1873 = vmatpush1.bf16.msra.mxu0 0
      %1874 = vmatprep.subr.bf16.mxu0 0
      %1875 = vmatpush1.bf16.msra.mxu0 0
      %1876 = vmatprep.subr.bf16.mxu0 0
      %1877 = vmatpush1.bf16.msra.mxu0 0
      %1878 = vmatprep.subr.bf16.mxu0 0
      %1879 = vmatpush1.bf16.msra.mxu0 0
      %1880 = vmatprep.subr.bf16.mxu0 0
      %1881 = vmatpush1.bf16.msra.mxu0 0
      %1882 = vmatprep.mubr.bf16.mxu0 0
      %1883 = vmatmul.mubr.bf16.gmra.mrb[0].mxu0 %v1839
      %v1884 = vpop.f32.mrb[0].mxu0
      %v1885 = vadd.f32 0.0, %v1884
      %v1886 = vpop.f32.mrb[0].mxu0
      %v1887 = vpop.f32.mrb[0].mxu0
      %v1888 = vadd.f32 0.0, %v1887
      %v1889 = vpop.f32.mrb[0].mxu0
      %1890 = vmatprep.mubr.bf16.mxu0 0
      %1891 = vmatmul.mubr.bf16.gmra.mrb[0].mxu0 %v1842
      %v1892 = vpop.f32.mrb[0].mxu0
      %v1893 = vadd.f32 0.0, %v1892
      %v1894 = vpop.f32.mrb[0].mxu0
      %v1895 = vpop.f32.mrb[0].mxu0
      %v1896 = vadd.f32 0.0, %v1895
      %v1897 = vpop.f32.mrb[0].mxu0
      %1898 = vmatprep.mubr.bf16.mxu0 0
      %1899 = vmatmul.mubr.bf16.gmra.mrb[0].mxu0 %v1845
      %v1900 = vpop.f32.mrb[0].mxu0
      %v1901 = vadd.f32 0.0, %v1900
      %v1902 = vpop.f32.mrb[0].mxu0
      %v1903 = vpop.f32.mrb[0].mxu0
      %v1904 = vadd.f32 0.0, %v1903
      %v1905 = vpop.f32.mrb[0].mxu0
      %1906 = vmatprep.mubr.bf16.mxu0 0
      %1907 = vmatmul.mubr.bf16.gmra.mrb[0].mxu0 %v1848
      %v1908 = vpop.f32.mrb[0].mxu0
      %v1909 = vadd.f32 0.0, %v1908
      %v1910 = vpop.f32.mrb[0].mxu0
      %v1911 = vpop.f32.mrb[0].mxu0
      %v1912 = vadd.f32 0.0, %v1911
      %v1913 = vpop.f32.mrb[0].mxu0
      %1914 = vdwg.mxu0
      %v1915 = vpack.c.bf16 %v1888, %v1885
      %v1916 = vpack.c.bf16 %v1896, %v1893
      %v1917 = vpack.c.bf16 %v1904, %v1901
      %v1918 = vpack.c.bf16 %v1912, %v1909
      %s1919 = scalar_lea.vmem %s9, 4
      %v1920 = vld [vmem:[%s1919] sm:$0xf]
      %v1922 = vsel %vm1098, %v1915, 0
      %v1925 = vsel %vm1098, %v1916, 0
      %v1928 = vsel %vm1098, %v1917, 0
      %v1931 = vsel %vm1098, %v1918, 0
      %vm1933 = vcmask 1043456
      %v1935 = vsel %vm1933, %v1920, 0
      %1937 = vmatprep.subr.bf16.mxu0 0
      %1938 = vmatpush1.bf16.msra.mxu0 %v1935
      %1939 = vmatprep.subr.bf16.mxu0 0
      %1940 = vmatpush1.bf16.msra.mxu0 0
      %1941 = vmatprep.subr.bf16.mxu0 0
      %1942 = vmatpush1.bf16.msra.mxu0 0
      %1943 = vmatprep.subr.bf16.mxu0 0
      %1944 = vmatpush1.bf16.msra.mxu0 0
      %1945 = vmatprep.subr.bf16.mxu0 0
      %1946 = vmatpush1.bf16.msra.mxu0 0
      %1947 = vmatprep.subr.bf16.mxu0 0
      %1948 = vmatpush1.bf16.msra.mxu0 0
      %1949 = vmatprep.subr.bf16.mxu0 0
      %1950 = vmatpush1.bf16.msra.mxu0 0
      %1951 = vmatprep.subr.bf16.mxu0 0
      %1952 = vmatpush1.bf16.msra.mxu0 0
      %1953 = vmatprep.subr.bf16.mxu0 0
      %1954 = vmatpush1.bf16.msra.mxu0 0
      %1955 = vmatprep.subr.bf16.mxu0 0
      %1956 = vmatpush1.bf16.msra.mxu0 0
      %1957 = vmatprep.subr.bf16.mxu0 0
      %1958 = vmatpush1.bf16.msra.mxu0 0
      %1959 = vmatprep.subr.bf16.mxu0 0
      %1960 = vmatpush1.bf16.msra.mxu0 0
      %1961 = vmatprep.subr.bf16.mxu0 0
      %1962 = vmatpush1.bf16.msra.mxu0 0
      %1963 = vmatprep.subr.bf16.mxu0 0
      %1964 = vmatpush1.bf16.msra.mxu0 0
      %1965 = vmatprep.subr.bf16.mxu0 0
      %1966 = vmatpush1.bf16.msra.mxu0 0
      %1967 = vmatprep.subr.bf16.mxu0 0
      %1968 = vmatpush1.bf16.msra.mxu0 0
      %1969 = vmatprep.mubr.bf16.mxu0 0
      %1970 = vmatmul.mubr.bf16.gmra.mrb[0].mxu0 %v1922
      %v1971 = vpop.f32.mrb[0].mxu0
      %v1972 = vadd.f32 0.0, %v1971
      %v1973 = vpop.f32.mrb[0].mxu0
      %v1974 = vpop.f32.mrb[0].mxu0
      %v1975 = vadd.f32 0.0, %v1974
      %v1976 = vpop.f32.mrb[0].mxu0
      %1977 = vmatprep.mubr.bf16.mxu0 0
      %1978 = vmatmul.mubr.bf16.gmra.mrb[0].mxu0 %v1925
      %v1979 = vpop.f32.mrb[0].mxu0
      %v1980 = vadd.f32 0.0, %v1979
      %v1981 = vpop.f32.mrb[0].mxu0
      %v1982 = vpop.f32.mrb[0].mxu0
      %v1983 = vadd.f32 0.0, %v1982
      %v1984 = vpop.f32.mrb[0].mxu0
      %1985 = vmatprep.mubr.bf16.mxu0 0
      %1986 = vmatmul.mubr.bf16.gmra.mrb[0].mxu0 %v1928
      %v1987 = vpop.f32.mrb[0].mxu0
      %v1988 = vadd.f32 0.0, %v1987
      %v1989 = vpop.f32.mrb[0].mxu0
      %v1990 = vpop.f32.mrb[0].mxu0
      %v1991 = vadd.f32 0.0, %v1990
      %v1992 = vpop.f32.mrb[0].mxu0
      %1993 = vmatprep.mubr.bf16.mxu0 0
      %1994 = vmatmul.mubr.bf16.gmra.mrb[0].mxu0 %v1931
      %v1995 = vpop.f32.mrb[0].mxu0
      %v1996 = vadd.f32 0.0, %v1995
      %v1997 = vpop.f32.mrb[0].mxu0
      %v1998 = vpop.f32.mrb[0].mxu0
      %v1999 = vadd.f32 0.0, %v1998
      %v2000 = vpop.f32.mrb[0].mxu0
      %2001 = vdwg.mxu0
      %v2003 = vsel %vm1098, %v1362, 0
      %v2006 = vsel %vm1098, %v1363, 0
      %v2009 = vsel %vm1098, %v1364, 0
      %v2012 = vsel %vm1098, %v1365, 0
      %v2015 = vsel %vm1933, %v1366, 0
      %2017 = vmatprep.subr.bf16.mxu0 0
      %2018 = vmatpush1.bf16.msra.mxu0 %v2015
      %2019 = vmatprep.subr.bf16.mxu0 0
      %2020 = vmatpush1.bf16.msra.mxu0 0
      %2021 = vmatprep.subr.bf16.mxu0 0
      %2022 = vmatpush1.bf16.msra.mxu0 0
      %2023 = vmatprep.subr.bf16.mxu0 0
      %2024 = vmatpush1.bf16.msra.mxu0 0
      %2025 = vmatprep.subr.bf16.mxu0 0
      %2026 = vmatpush1.bf16.msra.mxu0 0
      %2027 = vmatprep.subr.bf16.mxu0 0
      %2028 = vmatpush1.bf16.msra.mxu0 0
      %2029 = vmatprep.subr.bf16.mxu0 0
      %2030 = vmatpush1.bf16.msra.mxu0 0
      %2031 = vmatprep.subr.bf16.mxu0 0
      %2032 = vmatpush1.bf16.msra.mxu0 0
      %2033 = vmatprep.subr.bf16.mxu0 0
      %2034 = vmatpush1.bf16.msra.mxu0 0
      %2035 = vmatprep.subr.bf16.mxu0 0
      %2036 = vmatpush1.bf16.msra.mxu0 0
      %2037 = vmatprep.subr.bf16.mxu0 0
      %2038 = vmatpush1.bf16.msra.mxu0 0
      %2039 = vmatprep.subr.bf16.mxu0 0
      %2040 = vmatpush1.bf16.msra.mxu0 0
      %2041 = vmatprep.subr.bf16.mxu0 0
      %2042 = vmatpush1.bf16.msra.mxu0 0
      %2043 = vmatprep.subr.bf16.mxu0 0
      %2044 = vmatpush1.bf16.msra.mxu0 0
      %2045 = vmatprep.subr.bf16.mxu0 0
      %2046 = vmatpush1.bf16.msra.mxu0 0
      %2047 = vmatprep.subr.bf16.mxu0 0
      %2048 = vmatpush1.bf16.msra.mxu0 0
      %2049 = vmatprep.mubr.bf16.mxu0 0
      %2050 = vmatmul.mubr.bf16.gmra.mrb[0].mxu0 %v2003
      %v2051 = vpop.f32.mrb[0].mxu0
      %v2052 = vadd.f32 %v1972, %v2051
      %v2053 = vpop.f32.mrb[0].mxu0
      %v2054 = vpop.f32.mrb[0].mxu0
      %v2055 = vadd.f32 %v1975, %v2054
      %v2056 = vpop.f32.mrb[0].mxu0
      %2057 = vmatprep.mubr.bf16.mxu0 0
      %2058 = vmatmul.mubr.bf16.gmra.mrb[0].mxu0 %v2006
      %v2059 = vpop.f32.mrb[0].mxu0
      %v2060 = vadd.f32 %v1980, %v2059
      %v2061 = vpop.f32.mrb[0].mxu0
      %v2062 = vpop.f32.mrb[0].mxu0
      %v2063 = vadd.f32 %v1983, %v2062
      %v2064 = vpop.f32.mrb[0].mxu0
      %2065 = vmatprep.mubr.bf16.mxu0 0
      %2066 = vmatmul.mubr.bf16.gmra.mrb[0].mxu0 %v2009
      %v2067 = vpop.f32.mrb[0].mxu0
      %v2068 = vadd.f32 %v1988, %v2067
      %v2069 = vpop.f32.mrb[0].mxu0
      %v2070 = vpop.f32.mrb[0].mxu0
      %v2071 = vadd.f32 %v1991, %v2070
      %v2072 = vpop.f32.mrb[0].mxu0
      %2073 = vmatprep.mubr.bf16.mxu0 0
      %2074 = vmatmul.mubr.bf16.gmra.mrb[0].mxu0 %v2012
      %v2075 = vpop.f32.mrb[0].mxu0
      %v2076 = vadd.f32 %v1996, %v2075
      %v2077 = vpop.f32.mrb[0].mxu0
      %v2078 = vpop.f32.mrb[0].mxu0
      %v2079 = vadd.f32 %v1999, %v2078
      %v2080 = vpop.f32.mrb[0].mxu0
      %2081 = vdwg.mxu0
      %s2082 = scalar_lea.vmem %s3, 32
      %v2083 = vld [vmem:[%s2082] sm:$0xf]
      %v2084 = vld [vmem:[%s2082 + $0x4] sm:$0xf]
      %v2085 = vld [vmem:[%s2082 + $0x8] sm:$0xf]
      %v2086 = vld [vmem:[%s2082 + $0xc] sm:$0xf]
      %s2087 = scalar_lea.vmem %s4, 2
      %v2088 = vld [vmem:[%s2087] sm:$0x1]
      %v2090 = vlaneseq
      %v2091 = vshrl.u32 %v2090, 7
      %v2092 = vsub.s32 0, %v2091
      %v2093 = vrot.slane %v2088, %v2092
      %v2099 = vunpack.c.l.b16 %v2083
      %v2100 = vunpack.c.l.b16 %v2084
      %v2101 = vunpack.c.l.b16 %v2085
      %v2102 = vunpack.c.l.b16 %v2086
      %v2103 = vpack.c.b16 %v2100, %v2099
      %v2104 = vpack.c.b16 %v2102, %v2101
      %2107 = vmatprep.subr.bf16.mxu0 0
      %2108 = vmatpush1.bf16.msra.mxu0 %v2103
      %2109 = vmatprep.subr.bf16.mxu0 0
      %2110 = vmatpush1.bf16.msra.mxu0 %v2104
      %2111 = vmatprep.subr.bf16.mxu0 0
      %2112 = vmatpush1.bf16.msra.mxu0 0
      %2113 = vmatprep.subr.bf16.mxu0 0
      %2114 = vmatpush1.bf16.msra.mxu0 0
      %2115 = vmatprep.subr.bf16.mxu0 0
      %2116 = vmatpush1.bf16.msra.mxu0 0
      %2117 = vmatprep.subr.bf16.mxu0 0
      %2118 = vmatpush1.bf16.msra.mxu0 0
      %2119 = vmatprep.subr.bf16.mxu0 0
      %2120 = vmatpush1.bf16.msra.mxu0 0
      %2121 = vmatprep.subr.bf16.mxu0 0
      %2122 = vmatpush1.bf16.msra.mxu0 0
      %2123 = vmatprep.subr.bf16.mxu0 0
      %2124 = vmatpush1.bf16.msra.mxu0 0
      %2125 = vmatprep.subr.bf16.mxu0 0
      %2126 = vmatpush1.bf16.msra.mxu0 0
      %2127 = vmatprep.subr.bf16.mxu0 0
      %2128 = vmatpush1.bf16.msra.mxu0 0
      %2129 = vmatprep.subr.bf16.mxu0 0
      %2130 = vmatpush1.bf16.msra.mxu0 0
      %2131 = vmatprep.subr.bf16.mxu0 0
      %2132 = vmatpush1.bf16.msra.mxu0 0
      %2133 = vmatprep.subr.bf16.mxu0 0
      %2134 = vmatpush1.bf16.msra.mxu0 0
      %2135 = vmatprep.subr.bf16.mxu0 0
      %2136 = vmatpush1.bf16.msra.mxu0 0
      %2137 = vmatprep.subr.bf16.mxu0 0
      %2138 = vmatpush1.bf16.msra.mxu0 0
      %2139 = vmatprep.mubr.bf16.mxu0 0
      %2140 = vmatmul.mubr.bf16.gmra.mrb[0].mxu0 %v830
      %v2141 = vpop.f32.mrb[0].mxu0
      %v2142 = vadd.f32 %v2093, %v2141
      %v2143 = vpop.f32.mrb[0].mxu0
      %v2144 = vpop.f32.mrb[0].mxu0
      %v2145 = vadd.f32 %v2093, %v2144
      %v2146 = vpop.f32.mrb[0].mxu0
      %2147 = vmatprep.mubr.bf16.mxu0 0
      %2148 = vmatmul.mubr.bf16.gmra.mrb[0].mxu0 %v833
      %v2149 = vpop.f32.mrb[0].mxu0
      %v2150 = vadd.f32 %v2093, %v2149
      %v2151 = vpop.f32.mrb[0].mxu0
      %v2152 = vpop.f32.mrb[0].mxu0
      %v2153 = vadd.f32 %v2093, %v2152
      %v2154 = vpop.f32.mrb[0].mxu0
      %2155 = vmatprep.mubr.bf16.mxu0 0
      %2156 = vmatmul.mubr.bf16.gmra.mrb[0].mxu0 %v836
      %v2157 = vpop.f32.mrb[0].mxu0
      %v2158 = vadd.f32 %v2093, %v2157
      %v2159 = vpop.f32.mrb[0].mxu0
      %v2160 = vpop.f32.mrb[0].mxu0
      %v2161 = vadd.f32 %v2093, %v2160
      %v2162 = vpop.f32.mrb[0].mxu0
      %2163 = vmatprep.mubr.bf16.mxu0 0
      %2164 = vmatmul.mubr.bf16.gmra.mrb[0].mxu0 %v839
      %v2165 = vpop.f32.mrb[0].mxu0
      %v2166 = vadd.f32 %v2093, %v2165
      %v2167 = vpop.f32.mrb[0].mxu0
      %v2168 = vpop.f32.mrb[0].mxu0
      %v2169 = vadd.f32 %v2093, %v2168
      %v2170 = vpop.f32.mrb[0].mxu0
      %2171 = vdwg.mxu0
      %s2172 = scalar_lea.vmem %s5, 32
      %v2173 = vld [vmem:[%s2172] sm:$0xf]
      %v2174 = vld [vmem:[%s2172 + $0x4] sm:$0xf]
      %v2175 = vld [vmem:[%s2172 + $0x8] sm:$0xf]
      %v2176 = vld [vmem:[%s2172 + $0xc] sm:$0xf]
      %s2177 = scalar_lea.vmem %s6, 2
      %v2178 = vld [vmem:[%s2177] sm:$0x1]
      %v2180 = vlaneseq
      %v2181 = vshrl.u32 %v2180, 7
      %v2182 = vsub.s32 0, %v2181
      %v2183 = vrot.slane %v2178, %v2182
      %v2189 = vunpack.c.l.b16 %v2173
      %v2190 = vunpack.c.l.b16 %v2174
      %v2191 = vunpack.c.l.b16 %v2175
      %v2192 = vunpack.c.l.b16 %v2176
      %v2193 = vpack.c.b16 %v2190, %v2189
      %v2194 = vpack.c.b16 %v2192, %v2191
      %2197 = vmatprep.subr.bf16.mxu0 0
      %2198 = vmatpush1.bf16.msra.mxu0 %v2193
      %2199 = vmatprep.subr.bf16.mxu0 0
      %2200 = vmatpush1.bf16.msra.mxu0 %v2194
      %2201 = vmatprep.subr.bf16.mxu0 0
      %2202 = vmatpush1.bf16.msra.mxu0 0
      %2203 = vmatprep.subr.bf16.mxu0 0
      %2204 = vmatpush1.bf16.msra.mxu0 0
      %2205 = vmatprep.subr.bf16.mxu0 0
      %2206 = vmatpush1.bf16.msra.mxu0 0
      %2207 = vmatprep.subr.bf16.mxu0 0
      %2208 = vmatpush1.bf16.msra.mxu0 0
      %2209 = vmatprep.subr.bf16.mxu0 0
      %2210 = vmatpush1.bf16.msra.mxu0 0
      %2211 = vmatprep.subr.bf16.mxu0 0
      %2212 = vmatpush1.bf16.msra.mxu0 0
      %2213 = vmatprep.subr.bf16.mxu0 0
      %2214 = vmatpush1.bf16.msra.mxu0 0
      %2215 = vmatprep.subr.bf16.mxu0 0
      %2216 = vmatpush1.bf16.msra.mxu0 0
      %2217 = vmatprep.subr.bf16.mxu0 0
      %2218 = vmatpush1.bf16.msra.mxu0 0
      %2219 = vmatprep.subr.bf16.mxu0 0
      %2220 = vmatpush1.bf16.msra.mxu0 0
      %2221 = vmatprep.subr.bf16.mxu0 0
      %2222 = vmatpush1.bf16.msra.mxu0 0
      %2223 = vmatprep.subr.bf16.mxu0 0
      %2224 = vmatpush1.bf16.msra.mxu0 0
      %2225 = vmatprep.subr.bf16.mxu0 0
      %2226 = vmatpush1.bf16.msra.mxu0 0
      %2227 = vmatprep.subr.bf16.mxu0 0
      %2228 = vmatpush1.bf16.msra.mxu0 0
      %2229 = vmatprep.mubr.bf16.mxu0 0
      %2230 = vmatmul.mubr.bf16.gmra.mrb[0].mxu0 %v830
      %v2231 = vpop.f32.mrb[0].mxu0
      %v2232 = vadd.f32 %v2183, %v2231
      %v2233 = vpop.f32.mrb[0].mxu0
      %v2234 = vpop.f32.mrb[0].mxu0
      %v2235 = vadd.f32 %v2183, %v2234
      %v2236 = vpop.f32.mrb[0].mxu0
      %2237 = vmatprep.mubr.bf16.mxu0 0
      %2238 = vmatmul.mubr.bf16.gmra.mrb[0].mxu0 %v833
      %v2239 = vpop.f32.mrb[0].mxu0
      %v2240 = vadd.f32 %v2183, %v2239
      %v2241 = vpop.f32.mrb[0].mxu0
      %v2242 = vpop.f32.mrb[0].mxu0
      %v2243 = vadd.f32 %v2183, %v2242
      %v2244 = vpop.f32.mrb[0].mxu0
      %2245 = vmatprep.mubr.bf16.mxu0 0
      %2246 = vmatmul.mubr.bf16.gmra.mrb[0].mxu0 %v836
      %v2247 = vpop.f32.mrb[0].mxu0
      %v2248 = vadd.f32 %v2183, %v2247
      %v2249 = vpop.f32.mrb[0].mxu0
      %v2250 = vpop.f32.mrb[0].mxu0
      %v2251 = vadd.f32 %v2183, %v2250
      %v2252 = vpop.f32.mrb[0].mxu0
      %2253 = vmatprep.mubr.bf16.mxu0 0
      %2254 = vmatmul.mubr.bf16.gmra.mrb[0].mxu0 %v839
      %v2255 = vpop.f32.mrb[0].mxu0
      %v2256 = vadd.f32 %v2183, %v2255
      %v2257 = vpop.f32.mrb[0].mxu0
      %v2258 = vpop.f32.mrb[0].mxu0
      %v2259 = vadd.f32 %v2183, %v2258
      %v2260 = vpop.f32.mrb[0].mxu0
      %2261 = vdwg.mxu0
      %s2262 = scalar_lea.vmem %s7, 32
      %v2263 = vld [vmem:[%s2262] sm:$0xf]
      %v2264 = vld [vmem:[%s2262 + $0x4] sm:$0xf]
      %v2265 = vld [vmem:[%s2262 + $0x8] sm:$0xf]
      %v2266 = vld [vmem:[%s2262 + $0xc] sm:$0xf]
      %s2267 = scalar_lea.vmem %s8, 2
      %v2268 = vld [vmem:[%s2267] sm:$0x1]
      %v2270 = vlaneseq
      %v2271 = vshrl.u32 %v2270, 7
      %v2272 = vsub.s32 0, %v2271
      %v2273 = vrot.slane %v2268, %v2272
      %v2279 = vunpack.c.l.b16 %v2263
      %v2280 = vunpack.c.l.b16 %v2264
      %v2281 = vunpack.c.l.b16 %v2265
      %v2282 = vunpack.c.l.b16 %v2266
      %v2283 = vpack.c.b16 %v2280, %v2279
      %v2284 = vpack.c.b16 %v2282, %v2281
      %2287 = vmatprep.subr.bf16.mxu0 0
      %2288 = vmatpush1.bf16.msra.mxu0 %v2283
      %2289 = vmatprep.subr.bf16.mxu0 0
      %2290 = vmatpush1.bf16.msra.mxu0 %v2284
      %2291 = vmatprep.subr.bf16.mxu0 0
      %2292 = vmatpush1.bf16.msra.mxu0 0
      %2293 = vmatprep.subr.bf16.mxu0 0
      %2294 = vmatpush1.bf16.msra.mxu0 0
      %2295 = vmatprep.subr.bf16.mxu0 0
      %2296 = vmatpush1.bf16.msra.mxu0 0
      %2297 = vmatprep.subr.bf16.mxu0 0
      %2298 = vmatpush1.bf16.msra.mxu0 0
      %2299 = vmatprep.subr.bf16.mxu0 0
      %2300 = vmatpush1.bf16.msra.mxu0 0
      %2301 = vmatprep.subr.bf16.mxu0 0
      %2302 = vmatpush1.bf16.msra.mxu0 0
      %2303 = vmatprep.subr.bf16.mxu0 0
      %2304 = vmatpush1.bf16.msra.mxu0 0
      %2305 = vmatprep.subr.bf16.mxu0 0
      %2306 = vmatpush1.bf16.msra.mxu0 0
      %2307 = vmatprep.subr.bf16.mxu0 0
      %2308 = vmatpush1.bf16.msra.mxu0 0
      %2309 = vmatprep.subr.bf16.mxu0 0
      %2310 = vmatpush1.bf16.msra.mxu0 0
      %2311 = vmatprep.subr.bf16.mxu0 0
      %2312 = vmatpush1.bf16.msra.mxu0 0
      %2313 = vmatprep.subr.bf16.mxu0 0
      %2314 = vmatpush1.bf16.msra.mxu0 0
      %2315 = vmatprep.subr.bf16.mxu0 0
      %2316 = vmatpush1.bf16.msra.mxu0 0
      %2317 = vmatprep.subr.bf16.mxu0 0
      %2318 = vmatpush1.bf16.msra.mxu0 0
      %2319 = vmatprep.mubr.bf16.mxu0 0
      %2320 = vmatmul.mubr.bf16.gmra.mrb[0].mxu0 %v830
      %v2321 = vpop.f32.mrb[0].mxu0
      %v2322 = vadd.f32 %v2273, %v2321
      %v2323 = vpop.f32.mrb[0].mxu0
      %v2324 = vpop.f32.mrb[0].mxu0
      %v2325 = vadd.f32 %v2273, %v2324
      %v2326 = vpop.f32.mrb[0].mxu0
      %2327 = vmatprep.mubr.bf16.mxu0 0
      %2328 = vmatmul.mubr.bf16.gmra.mrb[0].mxu0 %v833
      %v2329 = vpop.f32.mrb[0].mxu0
      %v2330 = vadd.f32 %v2273, %v2329
      %v2331 = vpop.f32.mrb[0].mxu0
      %v2332 = vpop.f32.mrb[0].mxu0
      %v2333 = vadd.f32 %v2273, %v2332
      %v2334 = vpop.f32.mrb[0].mxu0
      %2335 = vmatprep.mubr.bf16.mxu0 0
      %2336 = vmatmul.mubr.bf16.gmra.mrb[0].mxu0 %v836
      %v2337 = vpop.f32.mrb[0].mxu0
      %v2338 = vadd.f32 %v2273, %v2337
      %v2339 = vpop.f32.mrb[0].mxu0
      %v2340 = vpop.f32.mrb[0].mxu0
      %v2341 = vadd.f32 %v2273, %v2340
      %v2342 = vpop.f32.mrb[0].mxu0
      %2343 = vmatprep.mubr.bf16.mxu0 0
      %2344 = vmatmul.mubr.bf16.gmra.mrb[0].mxu0 %v839
      %v2345 = vpop.f32.mrb[0].mxu0
      %v2346 = vadd.f32 %v2273, %v2345
      %v2347 = vpop.f32.mrb[0].mxu0
      %v2348 = vpop.f32.mrb[0].mxu0
      %v2349 = vadd.f32 %v2273, %v2348
      %v2350 = vpop.f32.mrb[0].mxu0
      %2351 = vdwg.mxu0
      %v2352 = vmul.f32 %v2142, 0.35355338
      %v2353 = vmul.f32 %v2145, 0.35355338
      %v2354 = vmul.f32 %v2150, 0.35355338
      %v2355 = vmul.f32 %v2153, 0.35355338
      %v2356 = vmul.f32 %v2158, 0.35355338
      %v2357 = vmul.f32 %v2161, 0.35355338
      %v2358 = vmul.f32 %v2166, 0.35355338
      %v2359 = vmul.f32 %v2169, 0.35355338
      %v2360 = vpack.c.bf16 %v2353, %v2352
      %v2361 = vpack.c.bf16 %v2355, %v2354
      %v2362 = vpack.c.bf16 %v2357, %v2356
      %v2363 = vpack.c.bf16 %v2359, %v2358
      %v2364 = vpack.c.bf16 %v2235, %v2232
      %v2365 = vpack.c.bf16 %v2243, %v2240
      %v2366 = vpack.c.bf16 %v2251, %v2248
      %v2367 = vpack.c.bf16 %v2259, %v2256
      %v2369 = vsel %vm1098, %v2360, 0
      %v2372 = vsel %vm1098, %v2361, 0
      %v2375 = vsel %vm1098, %v2362, 0
      %v2378 = vsel %vm1098, %v2363, 0
      %v2381 = vsel %vm1098, %v2364, 0
      %v2384 = vsel %vm1098, %v2365, 0
      %v2387 = vsel %vm1098, %v2366, 0
      %v2390 = vsel %vm1098, %v2367, 0
      %2392 = vmatprep.subr.bf16.mxu0 0
      %2393 = vmatpush1.bf16.xpose.msra.mxu0 %v2381
      %2394 = vmatprep.subr.bf16.mxu0 0
      %2395 = vmatpush1.bf16.xpose.msra.mxu0 %v2384
      %2396 = vmatprep.subr.bf16.mxu0 0
      %2397 = vmatpush1.bf16.xpose.msra.mxu0 %v2387
      %2398 = vmatprep.subr.bf16.mxu0 0
      %2399 = vmatpush1.bf16.xpose.msra.mxu0 %v2390
      %2400 = vmatprep.subr.bf16.mxu0 0
      %2401 = vmatpush1.bf16.xpose.msra.mxu0 0
      %2402 = vmatprep.subr.bf16.mxu0 0
      %2403 = vmatpush1.bf16.xpose.msra.mxu0 0
      %2404 = vmatprep.subr.bf16.mxu0 0
      %2405 = vmatpush1.bf16.xpose.msra.mxu0 0
      %2406 = vmatprep.subr.bf16.mxu0 0
      %2407 = vmatpush1.bf16.xpose.msra.mxu0 0
      %2408 = vmatprep.subr.bf16.mxu0 0
      %2409 = vmatpush1.bf16.xpose.msra.mxu0 0
      %2410 = vmatprep.subr.bf16.mxu0 0
      %2411 = vmatpush1.bf16.xpose.msra.mxu0 0
      %2412 = vmatprep.subr.bf16.mxu0 0
      %2413 = vmatpush1.bf16.xpose.msra.mxu0 0
      %2414 = vmatprep.subr.bf16.mxu0 0
      %2415 = vmatpush1.bf16.xpose.msra.mxu0 0
      %2416 = vmatprep.subr.bf16.mxu0 0
      %2417 = vmatpush1.bf16.xpose.msra.mxu0 0
      %2418 = vmatprep.subr.bf16.mxu0 0
      %2419 = vmatpush1.bf16.xpose.msra.mxu0 0
      %2420 = vmatprep.subr.bf16.mxu0 0
      %2421 = vmatpush1.bf16.xpose.msra.mxu0 0
      %2422 = vmatprep.subr.bf16.mxu0 0
      %2423 = vmatpush1.bf16.xpose.msra.mxu0 0
      %2424 = vmatprep.mubr.bf16.mxu0 0
      %2425 = vmatmul.mubr.bf16.gmra.mrb[0].mxu0 %v2369
      %v2426 = vpop.f32.mrb[0].mxu0
      %v2427 = vadd.f32 0.0, %v2426
      %v2428 = vpop.f32.mrb[0].mxu0
      %v2429 = vpop.f32.mrb[0].mxu0
      %v2430 = vadd.f32 0.0, %v2429
      %v2431 = vpop.f32.mrb[0].mxu0
      %2432 = vmatprep.mubr.bf16.mxu0 0
      %2433 = vmatmul.mubr.bf16.gmra.mrb[0].mxu0 %v2372
      %v2434 = vpop.f32.mrb[0].mxu0
      %v2435 = vadd.f32 0.0, %v2434
      %v2436 = vpop.f32.mrb[0].mxu0
      %v2437 = vpop.f32.mrb[0].mxu0
      %v2438 = vadd.f32 0.0, %v2437
      %v2439 = vpop.f32.mrb[0].mxu0
      %2440 = vmatprep.mubr.bf16.mxu0 0
      %2441 = vmatmul.mubr.bf16.gmra.mrb[0].mxu0 %v2375
      %v2442 = vpop.f32.mrb[0].mxu0
      %v2443 = vadd.f32 0.0, %v2442
      %v2444 = vpop.f32.mrb[0].mxu0
      %v2445 = vpop.f32.mrb[0].mxu0
      %v2446 = vadd.f32 0.0, %v2445
      %v2447 = vpop.f32.mrb[0].mxu0
      %2448 = vmatprep.mubr.bf16.mxu0 0
      %2449 = vmatmul.mubr.bf16.gmra.mrb[0].mxu0 %v2378
      %v2450 = vpop.f32.mrb[0].mxu0
      %v2451 = vadd.f32 0.0, %v2450
      %v2452 = vpop.f32.mrb[0].mxu0
      %v2453 = vpop.f32.mrb[0].mxu0
      %v2454 = vadd.f32 0.0, %v2453
      %v2455 = vpop.f32.mrb[0].mxu0
      %2456 = vdwg.mxu0
      %v2457 = vsel %vm1188, %v2427, -inf
      %2458 = vmax.xlane.f32.xlu0 %v2457
      %v2459 = vpop.xlane.xlu0 %2458
      %v2460 = vsel %vm1188, %v2430, -inf
      %2461 = vmax.xlane.f32.xlu0 %v2460
      %v2462 = vpop.xlane.xlu0 %2461
      %v2463 = vsel %vm1188, %v2435, -inf
      %2464 = vmax.xlane.f32.xlu0 %v2463
      %v2465 = vpop.xlane.xlu0 %2464
      %v2466 = vsel %vm1188, %v2438, -inf
      %2467 = vmax.xlane.f32.xlu0 %v2466
      %v2468 = vpop.xlane.xlu0 %2467
      %v2469 = vsel %vm1188, %v2443, -inf
      %2470 = vmax.xlane.f32.xlu0 %v2469
      %v2471 = vpop.xlane.xlu0 %2470
      %v2472 = vsel %vm1188, %v2446, -inf
      %2473 = vmax.xlane.f32.xlu0 %v2472
      %v2474 = vpop.xlane.xlu0 %2473
      %v2475 = vsel %vm1188, %v2451, -inf
      %2476 = vmax.xlane.f32.xlu0 %v2475
      %v2477 = vpop.xlane.xlu0 %2476
      %v2478 = vsel %vm1188, %v2454, -inf
      %2479 = vmax.xlane.f32.xlu0 %v2478
      %v2480 = vpop.xlane.xlu0 %2479
      %v2481 = vsub.f32 %v2427, %v2459
      %v2482 = vsub.f32 %v2430, %v2462
      %v2483 = vsub.f32 %v2435, %v2465
      %v2484 = vsub.f32 %v2438, %v2468
      %v2485 = vsub.f32 %v2443, %v2471
      %v2486 = vsub.f32 %v2446, %v2474
      %v2487 = vsub.f32 %v2451, %v2477
      %v2488 = vsub.f32 %v2454, %v2480
      %v2489 = vmul.f32 %v2481, 1.442695
      %v2490 = vpow.pop %v2489
      %v2491 = vmul.f32 %v2482, 1.442695
      %v2492 = vpow.pop %v2491
      %v2493 = vmul.f32 %v2483, 1.442695
      %v2494 = vpow.pop %v2493
      %v2495 = vmul.f32 %v2484, 1.442695
      %v2496 = vpow.pop %v2495
      %v2497 = vmul.f32 %v2485, 1.442695
      %v2498 = vpow.pop %v2497
      %v2499 = vmul.f32 %v2486, 1.442695
      %v2500 = vpow.pop %v2499
      %v2501 = vmul.f32 %v2487, 1.442695
      %v2502 = vpow.pop %v2501
      %v2503 = vmul.f32 %v2488, 1.442695
      %v2504 = vpow.pop %v2503
      %v2505 = vsel %vm1188, %v2490, 0.0
      %2506 = vadd.xlane.f32.xlu0 %v2505
      %v2507 = vpop.xlane.xlu0 %2506
      %v2508 = vsel %vm1188, %v2492, 0.0
      %2509 = vadd.xlane.f32.xlu0 %v2508
      %v2510 = vpop.xlane.xlu0 %2509
      %v2511 = vsel %vm1188, %v2494, 0.0
      %2512 = vadd.xlane.f32.xlu0 %v2511
      %v2513 = vpop.xlane.xlu0 %2512
      %v2514 = vsel %vm1188, %v2496, 0.0
      %2515 = vadd.xlane.f32.xlu0 %v2514
      %v2516 = vpop.xlane.xlu0 %2515
      %v2517 = vsel %vm1188, %v2498, 0.0
      %2518 = vadd.xlane.f32.xlu0 %v2517
      %v2519 = vpop.xlane.xlu0 %2518
      %v2520 = vsel %vm1188, %v2500, 0.0
      %2521 = vadd.xlane.f32.xlu0 %v2520
      %v2522 = vpop.xlane.xlu0 %2521
      %v2523 = vsel %vm1188, %v2502, 0.0
      %2524 = vadd.xlane.f32.xlu0 %v2523
      %v2525 = vpop.xlane.xlu0 %2524
      %v2526 = vsel %vm1188, %v2504, 0.0
      %2527 = vadd.xlane.f32.xlu0 %v2526
      %v2528 = vpop.xlane.xlu0 %2527
      %v2529 = vrcp.pop %v2507
      %v2530 = vrcp.pop %v2510
      %v2531 = vrcp.pop %v2513
      %v2532 = vrcp.pop %v2516
      %v2533 = vrcp.pop %v2519
      %v2534 = vrcp.pop %v2522
      %v2535 = vrcp.pop %v2525
      %v2536 = vrcp.pop %v2528
      %v2537 = vmul.f32 %v2490, %v2529
      %v2538 = vmul.f32 %v2492, %v2530
      %v2539 = vmul.f32 %v2494, %v2531
      %v2540 = vmul.f32 %v2496, %v2532
      %v2541 = vmul.f32 %v2498, %v2533
      %v2542 = vmul.f32 %v2500, %v2534
      %v2543 = vmul.f32 %v2502, %v2535
      %v2544 = vmul.f32 %v2504, %v2536
      %v2545 = vpack.c.bf16 %v2538, %v2537
      %v2546 = vpack.c.bf16 %v2540, %v2539
      %v2547 = vpack.c.bf16 %v2542, %v2541
      %v2548 = vpack.c.bf16 %v2544, %v2543
      %v2549 = vpack.c.bf16 %v2325, %v2322
      %v2550 = vpack.c.bf16 %v2333, %v2330
      %v2551 = vpack.c.bf16 %v2341, %v2338
      %v2552 = vpack.c.bf16 %v2349, %v2346
      %v2554 = vsel %vm1188, %v2545, 0
      %v2557 = vsel %vm1188, %v2546, 0
      %v2560 = vsel %vm1188, %v2547, 0
      %v2563 = vsel %vm1188, %v2548, 0
      %2565 = vmatprep.subr.bf16.mxu0 0
      %2566 = vmatpush1.bf16.msra.mxu0 %v2549
      %2567 = vmatprep.subr.bf16.mxu0 0
      %2568 = vmatpush1.bf16.msra.mxu0 %v2550
      %2569 = vmatprep.subr.bf16.mxu0 0
      %2570 = vmatpush1.bf16.msra.mxu0 %v2551
      %2571 = vmatprep.subr.bf16.mxu0 0
      %2572 = vmatpush1.bf16.msra.mxu0 %v2552
      %2573 = vmatprep.subr.bf16.mxu0 0
      %2574 = vmatpush1.bf16.msra.mxu0 0
      %2575 = vmatprep.subr.bf16.mxu0 0
      %2576 = vmatpush1.bf16.msra.mxu0 0
      %2577 = vmatprep.subr.bf16.mxu0 0
      %2578 = vmatpush1.bf16.msra.mxu0 0
      %2579 = vmatprep.subr.bf16.mxu0 0
      %2580 = vmatpush1.bf16.msra.mxu0 0
      %2581 = vmatprep.subr.bf16.mxu0 0
      %2582 = vmatpush1.bf16.msra.mxu0 0
      %2583 = vmatprep.subr.bf16.mxu0 0
      %2584 = vmatpush1.bf16.msra.mxu0 0
      %2585 = vmatprep.subr.bf16.mxu0 0
      %2586 = vmatpush1.bf16.msra.mxu0 0
      %2587 = vmatprep.subr.bf16.mxu0 0
      %2588 = vmatpush1.bf16.msra.mxu0 0
      %2589 = vmatprep.subr.bf16.mxu0 0
      %2590 = vmatpush1.bf16.msra.mxu0 0
      %2591 = vmatprep.subr.bf16.mxu0 0
      %2592 = vmatpush1.bf16.msra.mxu0 0
      %2593 = vmatprep.subr.bf16.mxu0 0
      %2594 = vmatpush1.bf16.msra.mxu0 0
      %2595 = vmatprep.subr.bf16.mxu0 0
      %2596 = vmatpush1.bf16.msra.mxu0 0
      %2597 = vmatprep.mubr.bf16.mxu0 0
      %2598 = vmatmul.mubr.bf16.gmra.mrb[0].mxu0 %v2554
      %v2599 = vpop.f32.mrb[0].mxu0
      %v2600 = vadd.f32 0.0, %v2599
      %v2601 = vpop.f32.mrb[0].mxu0
      %v2602 = vpop.f32.mrb[0].mxu0
      %v2603 = vadd.f32 0.0, %v2602
      %v2604 = vpop.f32.mrb[0].mxu0
      %2605 = vmatprep.mubr.bf16.mxu0 0
      %2606 = vmatmul.mubr.bf16.gmra.mrb[0].mxu0 %v2557
      %v2607 = vpop.f32.mrb[0].mxu0
      %v2608 = vadd.f32 0.0, %v2607
      %v2609 = vpop.f32.mrb[0].mxu0
      %v2610 = vpop.f32.mrb[0].mxu0
      %v2611 = vadd.f32 0.0, %v2610
      %v2612 = vpop.f32.mrb[0].mxu0
      %2613 = vmatprep.mubr.bf16.mxu0 0
      %2614 = vmatmul.mubr.bf16.gmra.mrb[0].mxu0 %v2560
      %v2615 = vpop.f32.mrb[0].mxu0
      %v2616 = vadd.f32 0.0, %v2615
      %v2617 = vpop.f32.mrb[0].mxu0
      %v2618 = vpop.f32.mrb[0].mxu0
      %v2619 = vadd.f32 0.0, %v2618
      %v2620 = vpop.f32.mrb[0].mxu0
      %2621 = vmatprep.mubr.bf16.mxu0 0
      %2622 = vmatmul.mubr.bf16.gmra.mrb[0].mxu0 %v2563
      %v2623 = vpop.f32.mrb[0].mxu0
      %v2624 = vadd.f32 0.0, %v2623
      %v2625 = vpop.f32.mrb[0].mxu0
      %v2626 = vpop.f32.mrb[0].mxu0
      %v2627 = vadd.f32 0.0, %v2626
      %v2628 = vpop.f32.mrb[0].mxu0
      %2629 = vdwg.mxu0
      %v2630 = vpack.c.bf16 %v2603, %v2600
      %v2631 = vpack.c.bf16 %v2611, %v2608
      %v2632 = vpack.c.bf16 %v2619, %v2616
      %v2633 = vpack.c.bf16 %v2627, %v2624
      %s2634 = scalar_lea.vmem %s9, 8
      %v2635 = vld [vmem:[%s2634] sm:$0xf]
      %v2637 = vsel %vm1098, %v2630, 0
      %v2640 = vsel %vm1098, %v2631, 0
      %v2643 = vsel %vm1098, %v2632, 0
      %v2646 = vsel %vm1098, %v2633, 0
      %v2649 = vsel %vm1933, %v2635, 0
      %2651 = vmatprep.subr.bf16.mxu0 0
      %2652 = vmatpush1.bf16.msra.mxu0 %v2649
      %2653 = vmatprep.subr.bf16.mxu0 0
      %2654 = vmatpush1.bf16.msra.mxu0 0
      %2655 = vmatprep.subr.bf16.mxu0 0
      %2656 = vmatpush1.bf16.msra.mxu0 0
      %2657 = vmatprep.subr.bf16.mxu0 0
      %2658 = vmatpush1.bf16.msra.mxu0 0
      %2659 = vmatprep.subr.bf16.mxu0 0
      %2660 = vmatpush1.bf16.msra.mxu0 0
      %2661 = vmatprep.subr.bf16.mxu0 0
      %2662 = vmatpush1.bf16.msra.mxu0 0
      %2663 = vmatprep.subr.bf16.mxu0 0
      %2664 = vmatpush1.bf16.msra.mxu0 0
      %2665 = vmatprep.subr.bf16.mxu0 0
      %2666 = vmatpush1.bf16.msra.mxu0 0
      %2667 = vmatprep.subr.bf16.mxu0 0
      %2668 = vmatpush1.bf16.msra.mxu0 0
      %2669 = vmatprep.subr.bf16.mxu0 0
      %2670 = vmatpush1.bf16.msra.mxu0 0
      %2671 = vmatprep.subr.bf16.mxu0 0
      %2672 = vmatpush1.bf16.msra.mxu0 0
      %2673 = vmatprep.subr.bf16.mxu0 0
      %2674 = vmatpush1.bf16.msra.mxu0 0
      %2675 = vmatprep.subr.bf16.mxu0 0
      %2676 = vmatpush1.bf16.msra.mxu0 0
      %2677 = vmatprep.subr.bf16.mxu0 0
      %2678 = vmatpush1.bf16.msra.mxu0 0
      %2679 = vmatprep.subr.bf16.mxu0 0
      %2680 = vmatpush1.bf16.msra.mxu0 0
      %2681 = vmatprep.subr.bf16.mxu0 0
      %2682 = vmatpush1.bf16.msra.mxu0 0
      %2683 = vmatprep.mubr.bf16.mxu0 0
      %2684 = vmatmul.mubr.bf16.gmra.mrb[0].mxu0 %v2637
      %v2685 = vpop.f32.mrb[0].mxu0
      %v2686 = vadd.f32 0.0, %v2685
      %v2687 = vpop.f32.mrb[0].mxu0
      %v2688 = vpop.f32.mrb[0].mxu0
      %v2689 = vadd.f32 0.0, %v2688
      %v2690 = vpop.f32.mrb[0].mxu0
      %2691 = vmatprep.mubr.bf16.mxu0 0
      %2692 = vmatmul.mubr.bf16.gmra.mrb[0].mxu0 %v2640
      %v2693 = vpop.f32.mrb[0].mxu0
      %v2694 = vadd.f32 0.0, %v2693
      %v2695 = vpop.f32.mrb[0].mxu0
      %v2696 = vpop.f32.mrb[0].mxu0
      %v2697 = vadd.f32 0.0, %v2696
      %v2698 = vpop.f32.mrb[0].mxu0
      %2699 = vmatprep.mubr.bf16.mxu0 0
      %2700 = vmatmul.mubr.bf16.gmra.mrb[0].mxu0 %v2643
      %v2701 = vpop.f32.mrb[0].mxu0
      %v2702 = vadd.f32 0.0, %v2701
      %v2703 = vpop.f32.mrb[0].mxu0
      %v2704 = vpop.f32.mrb[0].mxu0
      %v2705 = vadd.f32 0.0, %v2704
      %v2706 = vpop.f32.mrb[0].mxu0
      %2707 = vmatprep.mubr.bf16.mxu0 0
      %2708 = vmatmul.mubr.bf16.gmra.mrb[0].mxu0 %v2646
      %v2709 = vpop.f32.mrb[0].mxu0
      %v2710 = vadd.f32 0.0, %v2709
      %v2711 = vpop.f32.mrb[0].mxu0
      %v2712 = vpop.f32.mrb[0].mxu0
      %v2713 = vadd.f32 0.0, %v2712
      %v2714 = vpop.f32.mrb[0].mxu0
      %2715 = vdwg.mxu0
      %v2716 = vadd.f32 %v2052, %v2686
      %v2717 = vadd.f32 %v2055, %v2689
      %v2718 = vadd.f32 %v2060, %v2694
      %v2719 = vadd.f32 %v2063, %v2697
      %v2720 = vadd.f32 %v2068, %v2702
      %v2721 = vadd.f32 %v2071, %v2705
      %v2722 = vadd.f32 %v2076, %v2710
      %v2723 = vadd.f32 %v2079, %v2713
      %s2724 = scalar_lea.vmem %s3, 48
      %v2725 = vld [vmem:[%s2724] sm:$0xf]
      %v2726 = vld [vmem:[%s2724 + $0x4] sm:$0xf]
      %v2727 = vld [vmem:[%s2724 + $0x8] sm:$0xf]
      %v2728 = vld [vmem:[%s2724 + $0xc] sm:$0xf]
      %s2729 = scalar_lea.vmem %s4, 3
      %v2730 = vld [vmem:[%s2729] sm:$0x1]
      %v2732 = vlaneseq
      %v2733 = vshrl.u32 %v2732, 7
      %v2734 = vsub.s32 0, %v2733
      %v2735 = vrot.slane %v2730, %v2734
      %v2741 = vunpack.c.l.b16 %v2725
      %v2742 = vunpack.c.l.b16 %v2726
      %v2743 = vunpack.c.l.b16 %v2727
      %v2744 = vunpack.c.l.b16 %v2728
      %v2745 = vpack.c.b16 %v2742, %v2741
      %v2746 = vpack.c.b16 %v2744, %v2743
      %2749 = vmatprep.subr.bf16.mxu0 0
      %2750 = vmatpush1.bf16.msra.mxu0 %v2745
      %2751 = vmatprep.subr.bf16.mxu0 0
      %2752 = vmatpush1.bf16.msra.mxu0 %v2746
      %2753 = vmatprep.subr.bf16.mxu0 0
      %2754 = vmatpush1.bf16.msra.mxu0 0
      %2755 = vmatprep.subr.bf16.mxu0 0
      %2756 = vmatpush1.bf16.msra.mxu0 0
      %2757 = vmatprep.subr.bf16.mxu0 0
      %2758 = vmatpush1.bf16.msra.mxu0 0
      %2759 = vmatprep.subr.bf16.mxu0 0
      %2760 = vmatpush1.bf16.msra.mxu0 0
      %2761 = vmatprep.subr.bf16.mxu0 0
      %2762 = vmatpush1.bf16.msra.mxu0 0
      %2763 = vmatprep.subr.bf16.mxu0 0
      %2764 = vmatpush1.bf16.msra.mxu0 0
      %2765 = vmatprep.subr.bf16.mxu0 0
      %2766 = vmatpush1.bf16.msra.mxu0 0
      %2767 = vmatprep.subr.bf16.mxu0 0
      %2768 = vmatpush1.bf16.msra.mxu0 0
      %2769 = vmatprep.subr.bf16.mxu0 0
      %2770 = vmatpush1.bf16.msra.mxu0 0
      %2771 = vmatprep.subr.bf16.mxu0 0
      %2772 = vmatpush1.bf16.msra.mxu0 0
      %2773 = vmatprep.subr.bf16.mxu0 0
      %2774 = vmatpush1.bf16.msra.mxu0 0
      %2775 = vmatprep.subr.bf16.mxu0 0
      %2776 = vmatpush1.bf16.msra.mxu0 0
      %2777 = vmatprep.subr.bf16.mxu0 0
      %2778 = vmatpush1.bf16.msra.mxu0 0
      %2779 = vmatprep.subr.bf16.mxu0 0
      %2780 = vmatpush1.bf16.msra.mxu0 0
      %2781 = vmatprep.mubr.bf16.mxu0 0
      %2782 = vmatmul.mubr.bf16.gmra.mrb[0].mxu0 %v830
      %v2783 = vpop.f32.mrb[0].mxu0
      %v2784 = vadd.f32 %v2735, %v2783
      %v2785 = vpop.f32.mrb[0].mxu0
      %v2786 = vpop.f32.mrb[0].mxu0
      %v2787 = vadd.f32 %v2735, %v2786
      %v2788 = vpop.f32.mrb[0].mxu0
      %2789 = vmatprep.mubr.bf16.mxu0 0
      %2790 = vmatmul.mubr.bf16.gmra.mrb[0].mxu0 %v833
      %v2791 = vpop.f32.mrb[0].mxu0
      %v2792 = vadd.f32 %v2735, %v2791
      %v2793 = vpop.f32.mrb[0].mxu0
      %v2794 = vpop.f32.mrb[0].mxu0
      %v2795 = vadd.f32 %v2735, %v2794
      %v2796 = vpop.f32.mrb[0].mxu0
      %2797 = vmatprep.mubr.bf16.mxu0 0
      %2798 = vmatmul.mubr.bf16.gmra.mrb[0].mxu0 %v836
      %v2799 = vpop.f32.mrb[0].mxu0
      %v2800 = vadd.f32 %v2735, %v2799
      %v2801 = vpop.f32.mrb[0].mxu0
      %v2802 = vpop.f32.mrb[0].mxu0
      %v2803 = vadd.f32 %v2735, %v2802
      %v2804 = vpop.f32.mrb[0].mxu0
      %2805 = vmatprep.mubr.bf16.mxu0 0
      %2806 = vmatmul.mubr.bf16.gmra.mrb[0].mxu0 %v839
      %v2807 = vpop.f32.mrb[0].mxu0
      %v2808 = vadd.f32 %v2735, %v2807
      %v2809 = vpop.f32.mrb[0].mxu0
      %v2810 = vpop.f32.mrb[0].mxu0
      %v2811 = vadd.f32 %v2735, %v2810
      %v2812 = vpop.f32.mrb[0].mxu0
      %2813 = vdwg.mxu0
      %s2814 = scalar_lea.vmem %s5, 48
      %v2815 = vld [vmem:[%s2814] sm:$0xf]
      %v2816 = vld [vmem:[%s2814 + $0x4] sm:$0xf]
      %v2817 = vld [vmem:[%s2814 + $0x8] sm:$0xf]
      %v2818 = vld [vmem:[%s2814 + $0xc] sm:$0xf]
      %s2819 = scalar_lea.vmem %s6, 3
      %v2820 = vld [vmem:[%s2819] sm:$0x1]
      %v2822 = vlaneseq
      %v2823 = vshrl.u32 %v2822, 7
      %v2824 = vsub.s32 0, %v2823
      %v2825 = vrot.slane %v2820, %v2824
      %v2831 = vunpack.c.l.b16 %v2815
      %v2832 = vunpack.c.l.b16 %v2816
      %v2833 = vunpack.c.l.b16 %v2817
      %v2834 = vunpack.c.l.b16 %v2818
      %v2835 = vpack.c.b16 %v2832, %v2831
      %v2836 = vpack.c.b16 %v2834, %v2833
      %2839 = vmatprep.subr.bf16.mxu0 0
      %2840 = vmatpush1.bf16.msra.mxu0 %v2835
      %2841 = vmatprep.subr.bf16.mxu0 0
      %2842 = vmatpush1.bf16.msra.mxu0 %v2836
      %2843 = vmatprep.subr.bf16.mxu0 0
      %2844 = vmatpush1.bf16.msra.mxu0 0
      %2845 = vmatprep.subr.bf16.mxu0 0
      %2846 = vmatpush1.bf16.msra.mxu0 0
      %2847 = vmatprep.subr.bf16.mxu0 0
      %2848 = vmatpush1.bf16.msra.mxu0 0
      %2849 = vmatprep.subr.bf16.mxu0 0
      %2850 = vmatpush1.bf16.msra.mxu0 0
      %2851 = vmatprep.subr.bf16.mxu0 0
      %2852 = vmatpush1.bf16.msra.mxu0 0
      %2853 = vmatprep.subr.bf16.mxu0 0
      %2854 = vmatpush1.bf16.msra.mxu0 0
      %2855 = vmatprep.subr.bf16.mxu0 0
      %2856 = vmatpush1.bf16.msra.mxu0 0
      %2857 = vmatprep.subr.bf16.mxu0 0
      %2858 = vmatpush1.bf16.msra.mxu0 0
      %2859 = vmatprep.subr.bf16.mxu0 0
      %2860 = vmatpush1.bf16.msra.mxu0 0
      %2861 = vmatprep.subr.bf16.mxu0 0
      %2862 = vmatpush1.bf16.msra.mxu0 0
      %2863 = vmatprep.subr.bf16.mxu0 0
      %2864 = vmatpush1.bf16.msra.mxu0 0
      %2865 = vmatprep.subr.bf16.mxu0 0
      %2866 = vmatpush1.bf16.msra.mxu0 0
      %2867 = vmatprep.subr.bf16.mxu0 0
      %2868 = vmatpush1.bf16.msra.mxu0 0
      %2869 = vmatprep.subr.bf16.mxu0 0
      %2870 = vmatpush1.bf16.msra.mxu0 0
      %2871 = vmatprep.mubr.bf16.mxu0 0
      %2872 = vmatmul.mubr.bf16.gmra.mrb[0].mxu0 %v830
      %v2873 = vpop.f32.mrb[0].mxu0
      %v2874 = vadd.f32 %v2825, %v2873
      %v2875 = vpop.f32.mrb[0].mxu0
      %v2876 = vpop.f32.mrb[0].mxu0
      %v2877 = vadd.f32 %v2825, %v2876
      %v2878 = vpop.f32.mrb[0].mxu0
      %2879 = vmatprep.mubr.bf16.mxu0 0
      %2880 = vmatmul.mubr.bf16.gmra.mrb[0].mxu0 %v833
      %v2881 = vpop.f32.mrb[0].mxu0
      %v2882 = vadd.f32 %v2825, %v2881
      %v2883 = vpop.f32.mrb[0].mxu0
      %v2884 = vpop.f32.mrb[0].mxu0
      %v2885 = vadd.f32 %v2825, %v2884
      %v2886 = vpop.f32.mrb[0].mxu0
      %2887 = vmatprep.mubr.bf16.mxu0 0
      %2888 = vmatmul.mubr.bf16.gmra.mrb[0].mxu0 %v836
      %v2889 = vpop.f32.mrb[0].mxu0
      %v2890 = vadd.f32 %v2825, %v2889
      %v2891 = vpop.f32.mrb[0].mxu0
      %v2892 = vpop.f32.mrb[0].mxu0
      %v2893 = vadd.f32 %v2825, %v2892
      %v2894 = vpop.f32.mrb[0].mxu0
      %2895 = vmatprep.mubr.bf16.mxu0 0
      %2896 = vmatmul.mubr.bf16.gmra.mrb[0].mxu0 %v839
      %v2897 = vpop.f32.mrb[0].mxu0
      %v2898 = vadd.f32 %v2825, %v2897
      %v2899 = vpop.f32.mrb[0].mxu0
      %v2900 = vpop.f32.mrb[0].mxu0
      %v2901 = vadd.f32 %v2825, %v2900
      %v2902 = vpop.f32.mrb[0].mxu0
      %2903 = vdwg.mxu0
      %s2904 = scalar_lea.vmem %s7, 48
      %v2905 = vld [vmem:[%s2904] sm:$0xf]
      %v2906 = vld [vmem:[%s2904 + $0x4] sm:$0xf]
      %v2907 = vld [vmem:[%s2904 + $0x8] sm:$0xf]
      %v2908 = vld [vmem:[%s2904 + $0xc] sm:$0xf]
      %s2909 = scalar_lea.vmem %s8, 3
      %v2910 = vld [vmem:[%s2909] sm:$0x1]
      %v2912 = vlaneseq
      %v2913 = vshrl.u32 %v2912, 7
      %v2914 = vsub.s32 0, %v2913
      %v2915 = vrot.slane %v2910, %v2914
      %v2921 = vunpack.c.l.b16 %v2905
      %v2922 = vunpack.c.l.b16 %v2906
      %v2923 = vunpack.c.l.b16 %v2907
      %v2924 = vunpack.c.l.b16 %v2908
      %v2925 = vpack.c.b16 %v2922, %v2921
      %v2926 = vpack.c.b16 %v2924, %v2923
      %2929 = vmatprep.subr.bf16.mxu0 0
      %2930 = vmatpush1.bf16.msra.mxu0 %v2925
      %2931 = vmatprep.subr.bf16.mxu0 0
      %2932 = vmatpush1.bf16.msra.mxu0 %v2926
      %2933 = vmatprep.subr.bf16.mxu0 0
      %2934 = vmatpush1.bf16.msra.mxu0 0
      %2935 = vmatprep.subr.bf16.mxu0 0
      %2936 = vmatpush1.bf16.msra.mxu0 0
      %2937 = vmatprep.subr.bf16.mxu0 0
      %2938 = vmatpush1.bf16.msra.mxu0 0
      %2939 = vmatprep.subr.bf16.mxu0 0
      %2940 = vmatpush1.bf16.msra.mxu0 0
      %2941 = vmatprep.subr.bf16.mxu0 0
      %2942 = vmatpush1.bf16.msra.mxu0 0
      %2943 = vmatprep.subr.bf16.mxu0 0
      %2944 = vmatpush1.bf16.msra.mxu0 0
      %2945 = vmatprep.subr.bf16.mxu0 0
      %2946 = vmatpush1.bf16.msra.mxu0 0
      %2947 = vmatprep.subr.bf16.mxu0 0
      %2948 = vmatpush1.bf16.msra.mxu0 0
      %2949 = vmatprep.subr.bf16.mxu0 0
      %2950 = vmatpush1.bf16.msra.mxu0 0
      %2951 = vmatprep.subr.bf16.mxu0 0
      %2952 = vmatpush1.bf16.msra.mxu0 0
      %2953 = vmatprep.subr.bf16.mxu0 0
      %2954 = vmatpush1.bf16.msra.mxu0 0
      %2955 = vmatprep.subr.bf16.mxu0 0
      %2956 = vmatpush1.bf16.msra.mxu0 0
      %2957 = vmatprep.subr.bf16.mxu0 0
      %2958 = vmatpush1.bf16.msra.mxu0 0
      %2959 = vmatprep.subr.bf16.mxu0 0
      %2960 = vmatpush1.bf16.msra.mxu0 0
      %2961 = vmatprep.mubr.bf16.mxu0 0
      %2962 = vmatmul.mubr.bf16.gmra.mrb[0].mxu0 %v830
      %v2963 = vpop.f32.mrb[0].mxu0
      %v2964 = vadd.f32 %v2915, %v2963
      %v2965 = vpop.f32.mrb[0].mxu0
      %v2966 = vpop.f32.mrb[0].mxu0
      %v2967 = vadd.f32 %v2915, %v2966
      %v2968 = vpop.f32.mrb[0].mxu0
      %2969 = vmatprep.mubr.bf16.mxu0 0
      %2970 = vmatmul.mubr.bf16.gmra.mrb[0].mxu0 %v833
      %v2971 = vpop.f32.mrb[0].mxu0
      %v2972 = vadd.f32 %v2915, %v2971
      %v2973 = vpop.f32.mrb[0].mxu0
      %v2974 = vpop.f32.mrb[0].mxu0
      %v2975 = vadd.f32 %v2915, %v2974
      %v2976 = vpop.f32.mrb[0].mxu0
      %2977 = vmatprep.mubr.bf16.mxu0 0
      %2978 = vmatmul.mubr.bf16.gmra.mrb[0].mxu0 %v836
      %v2979 = vpop.f32.mrb[0].mxu0
      %v2980 = vadd.f32 %v2915, %v2979
      %v2981 = vpop.f32.mrb[0].mxu0
      %v2982 = vpop.f32.mrb[0].mxu0
      %v2983 = vadd.f32 %v2915, %v2982
      %v2984 = vpop.f32.mrb[0].mxu0
      %2985 = vmatprep.mubr.bf16.mxu0 0
      %2986 = vmatmul.mubr.bf16.gmra.mrb[0].mxu0 %v839
      %v2987 = vpop.f32.mrb[0].mxu0
      %v2988 = vadd.f32 %v2915, %v2987
      %v2989 = vpop.f32.mrb[0].mxu0
      %v2990 = vpop.f32.mrb[0].mxu0
      %v2991 = vadd.f32 %v2915, %v2990
      %v2992 = vpop.f32.mrb[0].mxu0
      %2993 = vdwg.mxu0
      %v2994 = vmul.f32 %v2784, 0.35355338
      %v2995 = vmul.f32 %v2787, 0.35355338
      %v2996 = vmul.f32 %v2792, 0.35355338
      %v2997 = vmul.f32 %v2795, 0.35355338
      %v2998 = vmul.f32 %v2800, 0.35355338
      %v2999 = vmul.f32 %v2803, 0.35355338
      %v3000 = vmul.f32 %v2808, 0.35355338
      %v3001 = vmul.f32 %v2811, 0.35355338
      %v3002 = vpack.c.bf16 %v2995, %v2994
      %v3003 = vpack.c.bf16 %v2997, %v2996
      %v3004 = vpack.c.bf16 %v2999, %v2998
      %v3005 = vpack.c.bf16 %v3001, %v3000
      %v3006 = vpack.c.bf16 %v2877, %v2874
      %v3007 = vpack.c.bf16 %v2885, %v2882
      %v3008 = vpack.c.bf16 %v2893, %v2890
      %v3009 = vpack.c.bf16 %v2901, %v2898
      %v3011 = vsel %vm1098, %v3002, 0
      %v3014 = vsel %vm1098, %v3003, 0
      %v3017 = vsel %vm1098, %v3004, 0
      %v3020 = vsel %vm1098, %v3005, 0
      %v3023 = vsel %vm1098, %v3006, 0
      %v3026 = vsel %vm1098, %v3007, 0
      %v3029 = vsel %vm1098, %v3008, 0
      %v3032 = vsel %vm1098, %v3009, 0
      %3034 = vmatprep.subr.bf16.mxu0 0
      %3035 = vmatpush1.bf16.xpose.msra.mxu0 %v3023
      %3036 = vmatprep.subr.bf16.mxu0 0
      %3037 = vmatpush1.bf16.xpose.msra.mxu0 %v3026
      %3038 = vmatprep.subr.bf16.mxu0 0
      %3039 = vmatpush1.bf16.xpose.msra.mxu0 %v3029
      %3040 = vmatprep.subr.bf16.mxu0 0
      %3041 = vmatpush1.bf16.xpose.msra.mxu0 %v3032
      %3042 = vmatprep.subr.bf16.mxu0 0
      %3043 = vmatpush1.bf16.xpose.msra.mxu0 0
      %3044 = vmatprep.subr.bf16.mxu0 0
      %3045 = vmatpush1.bf16.xpose.msra.mxu0 0
      %3046 = vmatprep.subr.bf16.mxu0 0
      %3047 = vmatpush1.bf16.xpose.msra.mxu0 0
      %3048 = vmatprep.subr.bf16.mxu0 0
      %3049 = vmatpush1.bf16.xpose.msra.mxu0 0
      %3050 = vmatprep.subr.bf16.mxu0 0
      %3051 = vmatpush1.bf16.xpose.msra.mxu0 0
      %3052 = vmatprep.subr.bf16.mxu0 0
      %3053 = vmatpush1.bf16.xpose.msra.mxu0 0
      %3054 = vmatprep.subr.bf16.mxu0 0
      %3055 = vmatpush1.bf16.xpose.msra.mxu0 0
      %3056 = vmatprep.subr.bf16.mxu0 0
      %3057 = vmatpush1.bf16.xpose.msra.mxu0 0
      %3058 = vmatprep.subr.bf16.mxu0 0
      %3059 = vmatpush1.bf16.xpose.msra.mxu0 0
      %3060 = vmatprep.subr.bf16.mxu0 0
      %3061 = vmatpush1.bf16.xpose.msra.mxu0 0
      %3062 = vmatprep.subr.bf16.mxu0 0
      %3063 = vmatpush1.bf16.xpose.msra.mxu0 0
      %3064 = vmatprep.subr.bf16.mxu0 0
      %3065 = vmatpush1.bf16.xpose.msra.mxu0 0
      %3066 = vmatprep.mubr.bf16.mxu0 0
      %3067 = vmatmul.mubr.bf16.gmra.mrb[0].mxu0 %v3011
      %v3068 = vpop.f32.mrb[0].mxu0
      %v3069 = vadd.f32 0.0, %v3068
      %v3070 = vpop.f32.mrb[0].mxu0
      %v3071 = vpop.f32.mrb[0].mxu0
      %v3072 = vadd.f32 0.0, %v3071
      %v3073 = vpop.f32.mrb[0].mxu0
      %3074 = vmatprep.mubr.bf16.mxu0 0
      %3075 = vmatmul.mubr.bf16.gmra.mrb[0].mxu0 %v3014
      %v3076 = vpop.f32.mrb[0].mxu0
      %v3077 = vadd.f32 0.0, %v3076
      %v3078 = vpop.f32.mrb[0].mxu0
      %v3079 = vpop.f32.mrb[0].mxu0
      %v3080 = vadd.f32 0.0, %v3079
      %v3081 = vpop.f32.mrb[0].mxu0
      %3082 = vmatprep.mubr.bf16.mxu0 0
      %3083 = vmatmul.mubr.bf16.gmra.mrb[0].mxu0 %v3017
      %v3084 = vpop.f32.mrb[0].mxu0
      %v3085 = vadd.f32 0.0, %v3084
      %v3086 = vpop.f32.mrb[0].mxu0
      %v3087 = vpop.f32.mrb[0].mxu0
      %v3088 = vadd.f32 0.0, %v3087
      %v3089 = vpop.f32.mrb[0].mxu0
      %3090 = vmatprep.mubr.bf16.mxu0 0
      %3091 = vmatmul.mubr.bf16.gmra.mrb[0].mxu0 %v3020
      %v3092 = vpop.f32.mrb[0].mxu0
      %v3093 = vadd.f32 0.0, %v3092
      %v3094 = vpop.f32.mrb[0].mxu0
      %v3095 = vpop.f32.mrb[0].mxu0
      %v3096 = vadd.f32 0.0, %v3095
      %v3097 = vpop.f32.mrb[0].mxu0
      %3098 = vdwg.mxu0
      %v3099 = vsel %vm1188, %v3069, -inf
      %3100 = vmax.xlane.f32.xlu0 %v3099
      %v3101 = vpop.xlane.xlu0 %3100
      %v3102 = vsel %vm1188, %v3072, -inf
      %3103 = vmax.xlane.f32.xlu0 %v3102
      %v3104 = vpop.xlane.xlu0 %3103
      %v3105 = vsel %vm1188, %v3077, -inf
      %3106 = vmax.xlane.f32.xlu0 %v3105
      %v3107 = vpop.xlane.xlu0 %3106
      %v3108 = vsel %vm1188, %v3080, -inf
      %3109 = vmax.xlane.f32.xlu0 %v3108
      %v3110 = vpop.xlane.xlu0 %3109
      %v3111 = vsel %vm1188, %v3085, -inf
      %3112 = vmax.xlane.f32.xlu0 %v3111
      %v3113 = vpop.xlane.xlu0 %3112
      %v3114 = vsel %vm1188, %v3088, -inf
      %3115 = vmax.xlane.f32.xlu0 %v3114
      %v3116 = vpop.xlane.xlu0 %3115
      %v3117 = vsel %vm1188, %v3093, -inf
      %3118 = vmax.xlane.f32.xlu0 %v3117
      %v3119 = vpop.xlane.xlu0 %3118
      %v3120 = vsel %vm1188, %v3096, -inf
      %3121 = vmax.xlane.f32.xlu0 %v3120
      %v3122 = vpop.xlane.xlu0 %3121
      %v3123 = vsub.f32 %v3069, %v3101
      %v3124 = vsub.f32 %v3072, %v3104
      %v3125 = vsub.f32 %v3077, %v3107
      %v3126 = vsub.f32 %v3080, %v3110
      %v3127 = vsub.f32 %v3085, %v3113
      %v3128 = vsub.f32 %v3088, %v3116
      %v3129 = vsub.f32 %v3093, %v3119
      %v3130 = vsub.f32 %v3096, %v3122
      %v3131 = vmul.f32 %v3123, 1.442695
      %v3132 = vpow.pop %v3131
      %v3133 = vmul.f32 %v3124, 1.442695
      %v3134 = vpow.pop %v3133
      %v3135 = vmul.f32 %v3125, 1.442695
      %v3136 = vpow.pop %v3135
      %v3137 = vmul.f32 %v3126, 1.442695
      %v3138 = vpow.pop %v3137
      %v3139 = vmul.f32 %v3127, 1.442695
      %v3140 = vpow.pop %v3139
      %v3141 = vmul.f32 %v3128, 1.442695
      %v3142 = vpow.pop %v3141
      %v3143 = vmul.f32 %v3129, 1.442695
      %v3144 = vpow.pop %v3143
      %v3145 = vmul.f32 %v3130, 1.442695
      %v3146 = vpow.pop %v3145
      %v3147 = vsel %vm1188, %v3132, 0.0
      %3148 = vadd.xlane.f32.xlu0 %v3147
      %v3149 = vpop.xlane.xlu0 %3148
      %v3150 = vsel %vm1188, %v3134, 0.0
      %3151 = vadd.xlane.f32.xlu0 %v3150
      %v3152 = vpop.xlane.xlu0 %3151
      %v3153 = vsel %vm1188, %v3136, 0.0
      %3154 = vadd.xlane.f32.xlu0 %v3153
      %v3155 = vpop.xlane.xlu0 %3154
      %v3156 = vsel %vm1188, %v3138, 0.0
      %3157 = vadd.xlane.f32.xlu0 %v3156
      %v3158 = vpop.xlane.xlu0 %3157
      %v3159 = vsel %vm1188, %v3140, 0.0
      %3160 = vadd.xlane.f32.xlu0 %v3159
      %v3161 = vpop.xlane.xlu0 %3160
      %v3162 = vsel %vm1188, %v3142, 0.0
      %3163 = vadd.xlane.f32.xlu0 %v3162
      %v3164 = vpop.xlane.xlu0 %3163
      %v3165 = vsel %vm1188, %v3144, 0.0
      %3166 = vadd.xlane.f32.xlu0 %v3165
      %v3167 = vpop.xlane.xlu0 %3166
      %v3168 = vsel %vm1188, %v3146, 0.0
      %3169 = vadd.xlane.f32.xlu0 %v3168
      %v3170 = vpop.xlane.xlu0 %3169
      %v3171 = vrcp.pop %v3149
      %v3172 = vrcp.pop %v3152
      %v3173 = vrcp.pop %v3155
      %v3174 = vrcp.pop %v3158
      %v3175 = vrcp.pop %v3161
      %v3176 = vrcp.pop %v3164
      %v3177 = vrcp.pop %v3167
      %v3178 = vrcp.pop %v3170
      %v3179 = vmul.f32 %v3132, %v3171
      %v3180 = vmul.f32 %v3134, %v3172
      %v3181 = vmul.f32 %v3136, %v3173
      %v3182 = vmul.f32 %v3138, %v3174
      %v3183 = vmul.f32 %v3140, %v3175
      %v3184 = vmul.f32 %v3142, %v3176
      %v3185 = vmul.f32 %v3144, %v3177
      %v3186 = vmul.f32 %v3146, %v3178
      %v3187 = vpack.c.bf16 %v3180, %v3179
      %v3188 = vpack.c.bf16 %v3182, %v3181
      %v3189 = vpack.c.bf16 %v3184, %v3183
      %v3190 = vpack.c.bf16 %v3186, %v3185
      %v3191 = vpack.c.bf16 %v2967, %v2964
      %v3192 = vpack.c.bf16 %v2975, %v2972
      %v3193 = vpack.c.bf16 %v2983, %v2980
      %v3194 = vpack.c.bf16 %v2991, %v2988
      %v3196 = vsel %vm1188, %v3187, 0
      %v3199 = vsel %vm1188, %v3188, 0
      %v3202 = vsel %vm1188, %v3189, 0
      %v3205 = vsel %vm1188, %v3190, 0
      %3207 = vmatprep.subr.bf16.mxu0 0
      %3208 = vmatpush1.bf16.msra.mxu0 %v3191
      %3209 = vmatprep.subr.bf16.mxu0 0
      %3210 = vmatpush1.bf16.msra.mxu0 %v3192
      %3211 = vmatprep.subr.bf16.mxu0 0
      %3212 = vmatpush1.bf16.msra.mxu0 %v3193
      %3213 = vmatprep.subr.bf16.mxu0 0
      %3214 = vmatpush1.bf16.msra.mxu0 %v3194
      %3215 = vmatprep.subr.bf16.mxu0 0
      %3216 = vmatpush1.bf16.msra.mxu0 0
      %3217 = vmatprep.subr.bf16.mxu0 0
      %3218 = vmatpush1.bf16.msra.mxu0 0
      %3219 = vmatprep.subr.bf16.mxu0 0
      %3220 = vmatpush1.bf16.msra.mxu0 0
      %3221 = vmatprep.subr.bf16.mxu0 0
      %3222 = vmatpush1.bf16.msra.mxu0 0
      %3223 = vmatprep.subr.bf16.mxu0 0
      %3224 = vmatpush1.bf16.msra.mxu0 0
      %3225 = vmatprep.subr.bf16.mxu0 0
      %3226 = vmatpush1.bf16.msra.mxu0 0
      %3227 = vmatprep.subr.bf16.mxu0 0
      %3228 = vmatpush1.bf16.msra.mxu0 0
      %3229 = vmatprep.subr.bf16.mxu0 0
      %3230 = vmatpush1.bf16.msra.mxu0 0
      %3231 = vmatprep.subr.bf16.mxu0 0
      %3232 = vmatpush1.bf16.msra.mxu0 0
      %3233 = vmatprep.subr.bf16.mxu0 0
      %3234 = vmatpush1.bf16.msra.mxu0 0
      %3235 = vmatprep.subr.bf16.mxu0 0
      %3236 = vmatpush1.bf16.msra.mxu0 0
      %3237 = vmatprep.subr.bf16.mxu0 0
      %3238 = vmatpush1.bf16.msra.mxu0 0
      %3239 = vmatprep.mubr.bf16.mxu0 0
      %3240 = vmatmul.mubr.bf16.gmra.mrb[0].mxu0 %v3196
      %v3241 = vpop.f32.mrb[0].mxu0
      %v3242 = vadd.f32 0.0, %v3241
      %v3243 = vpop.f32.mrb[0].mxu0
      %v3244 = vpop.f32.mrb[0].mxu0
      %v3245 = vadd.f32 0.0, %v3244
      %v3246 = vpop.f32.mrb[0].mxu0
      %3247 = vmatprep.mubr.bf16.mxu0 0
      %3248 = vmatmul.mubr.bf16.gmra.mrb[0].mxu0 %v3199
      %v3249 = vpop.f32.mrb[0].mxu0
      %v3250 = vadd.f32 0.0, %v3249
      %v3251 = vpop.f32.mrb[0].mxu0
      %v3252 = vpop.f32.mrb[0].mxu0
      %v3253 = vadd.f32 0.0, %v3252
      %v3254 = vpop.f32.mrb[0].mxu0
      %3255 = vmatprep.mubr.bf16.mxu0 0
      %3256 = vmatmul.mubr.bf16.gmra.mrb[0].mxu0 %v3202
      %v3257 = vpop.f32.mrb[0].mxu0
      %v3258 = vadd.f32 0.0, %v3257
      %v3259 = vpop.f32.mrb[0].mxu0
      %v3260 = vpop.f32.mrb[0].mxu0
      %v3261 = vadd.f32 0.0, %v3260
      %v3262 = vpop.f32.mrb[0].mxu0
      %3263 = vmatprep.mubr.bf16.mxu0 0
      %3264 = vmatmul.mubr.bf16.gmra.mrb[0].mxu0 %v3205
      %v3265 = vpop.f32.mrb[0].mxu0
      %v3266 = vadd.f32 0.0, %v3265
      %v3267 = vpop.f32.mrb[0].mxu0
      %v3268 = vpop.f32.mrb[0].mxu0
      %v3269 = vadd.f32 0.0, %v3268
      %v3270 = vpop.f32.mrb[0].mxu0
      %3271 = vdwg.mxu0
      %v3272 = vpack.c.bf16 %v3245, %v3242
      %v3273 = vpack.c.bf16 %v3253, %v3250
      %v3274 = vpack.c.bf16 %v3261, %v3258
      %v3275 = vpack.c.bf16 %v3269, %v3266
      %s3276 = scalar_lea.vmem %s9, 12
      %v3277 = vld [vmem:[%s3276] sm:$0xf]
      %v3279 = vsel %vm1098, %v3272, 0
      %v3282 = vsel %vm1098, %v3273, 0
      %v3285 = vsel %vm1098, %v3274, 0
      %v3288 = vsel %vm1098, %v3275, 0
      %v3291 = vsel %vm1933, %v3277, 0
      %3293 = vmatprep.subr.bf16.mxu0 0
      %3294 = vmatpush1.bf16.msra.mxu0 %v3291
      %3295 = vmatprep.subr.bf16.mxu0 0
      %3296 = vmatpush1.bf16.msra.mxu0 0
      %3297 = vmatprep.subr.bf16.mxu0 0
      %3298 = vmatpush1.bf16.msra.mxu0 0
      %3299 = vmatprep.subr.bf16.mxu0 0
      %3300 = vmatpush1.bf16.msra.mxu0 0
      %3301 = vmatprep.subr.bf16.mxu0 0
      %3302 = vmatpush1.bf16.msra.mxu0 0
      %3303 = vmatprep.subr.bf16.mxu0 0
      %3304 = vmatpush1.bf16.msra.mxu0 0
      %3305 = vmatprep.subr.bf16.mxu0 0
      %3306 = vmatpush1.bf16.msra.mxu0 0
      %3307 = vmatprep.subr.bf16.mxu0 0
      %3308 = vmatpush1.bf16.msra.mxu0 0
      %3309 = vmatprep.subr.bf16.mxu0 0
      %3310 = vmatpush1.bf16.msra.mxu0 0
      %3311 = vmatprep.subr.bf16.mxu0 0
      %3312 = vmatpush1.bf16.msra.mxu0 0
      %3313 = vmatprep.subr.bf16.mxu0 0
      %3314 = vmatpush1.bf16.msra.mxu0 0
      %3315 = vmatprep.subr.bf16.mxu0 0
      %3316 = vmatpush1.bf16.msra.mxu0 0
      %3317 = vmatprep.subr.bf16.mxu0 0
      %3318 = vmatpush1.bf16.msra.mxu0 0
      %3319 = vmatprep.subr.bf16.mxu0 0
      %3320 = vmatpush1.bf16.msra.mxu0 0
      %3321 = vmatprep.subr.bf16.mxu0 0
      %3322 = vmatpush1.bf16.msra.mxu0 0
      %3323 = vmatprep.subr.bf16.mxu0 0
      %3324 = vmatpush1.bf16.msra.mxu0 0
      %3325 = vmatprep.mubr.bf16.mxu0 0
      %3326 = vmatmul.mubr.bf16.gmra.mrb[0].mxu0 %v3279
      %v3327 = vpop.f32.mrb[0].mxu0
      %v3328 = vadd.f32 0.0, %v3327
      %v3329 = vpop.f32.mrb[0].mxu0
      %v3330 = vpop.f32.mrb[0].mxu0
      %v3331 = vadd.f32 0.0, %v3330
      %v3332 = vpop.f32.mrb[0].mxu0
      %3333 = vmatprep.mubr.bf16.mxu0 0
      %3334 = vmatmul.mubr.bf16.gmra.mrb[0].mxu0 %v3282
      %v3335 = vpop.f32.mrb[0].mxu0
      %v3336 = vadd.f32 0.0, %v3335
      %v3337 = vpop.f32.mrb[0].mxu0
      %v3338 = vpop.f32.mrb[0].mxu0
      %v3339 = vadd.f32 0.0, %v3338
      %v3340 = vpop.f32.mrb[0].mxu0
      %3341 = vmatprep.mubr.bf16.mxu0 0
      %3342 = vmatmul.mubr.bf16.gmra.mrb[0].mxu0 %v3285
      %v3343 = vpop.f32.mrb[0].mxu0
      %v3344 = vadd.f32 0.0, %v3343
      %v3345 = vpop.f32.mrb[0].mxu0
      %v3346 = vpop.f32.mrb[0].mxu0
      %v3347 = vadd.f32 0.0, %v3346
      %v3348 = vpop.f32.mrb[0].mxu0
      %3349 = vmatprep.mubr.bf16.mxu0 0
      %3350 = vmatmul.mubr.bf16.gmra.mrb[0].mxu0 %v3288
      %v3351 = vpop.f32.mrb[0].mxu0
      %v3352 = vadd.f32 0.0, %v3351
      %v3353 = vpop.f32.mrb[0].mxu0
      %v3354 = vpop.f32.mrb[0].mxu0
      %v3355 = vadd.f32 0.0, %v3354
      %v3356 = vpop.f32.mrb[0].mxu0
      %3357 = vdwg.mxu0
      %v3358 = vadd.f32 %v2716, %v3328
      %v3359 = vadd.f32 %v2717, %v3331
      %v3360 = vadd.f32 %v2718, %v3336
      %v3361 = vadd.f32 %v2719, %v3339
      %v3362 = vadd.f32 %v2720, %v3344
      %v3363 = vadd.f32 %v2721, %v3347
      %v3364 = vadd.f32 %v2722, %v3352
      %v3365 = vadd.f32 %v2723, %v3355
      %v3366 = vadd.f32 %v658, %v3358
      %v3367 = vadd.f32 %v659, %v3359
      %v3368 = vadd.f32 %v660, %v3360
      %v3369 = vadd.f32 %v661, %v3361
      %v3370 = vadd.f32 %v662, %v3362
      %v3371 = vadd.f32 %v663, %v3363
      %v3372 = vadd.f32 %v664, %v3364
      %v3373 = vadd.f32 %v665, %v3365
      %v3374 = vld [vmem:[%s10] sm:$0x1]
      %v3376 = vlaneseq
      %v3377 = vshrl.u32 %v3376, 7
      %v3378 = vsub.s32 0, %v3377
      %v3379 = vrot.slane %v3374, %v3378
      %v3381 = vadd.f32 %v3366, %v3379
      %v3382 = vadd.f32 %v3367, %v3379
      %v3383 = vadd.f32 %v3368, %v3379
      %v3384 = vadd.f32 %v3369, %v3379
      %v3385 = vadd.f32 %v3370, %v3379
      %v3386 = vadd.f32 %v3371, %v3379
      %v3387 = vadd.f32 %v3372, %v3379
      %v3388 = vadd.f32 %v3373, %v3379
      %v3389 = vld [vmem:[%s11] sm:$0x1]
      %v3390 = vld [vmem:[%s12] sm:$0x1]
      %v3391 = vsel %vm668, %v3381, 0.0
      %3392 = vadd.xlane.f32.xlu0 %v3391
      %v3393 = vpop.xlane.xlu0 %3392
      %v3394 = vsel %vm668, %v3382, 0.0
      %3395 = vadd.xlane.f32.xlu0 %v3394
      %v3396 = vpop.xlane.xlu0 %3395
      %v3397 = vsel %vm668, %v3383, 0.0
      %3398 = vadd.xlane.f32.xlu0 %v3397
      %v3399 = vpop.xlane.xlu0 %3398
      %v3400 = vsel %vm668, %v3384, 0.0
      %3401 = vadd.xlane.f32.xlu0 %v3400
      %v3402 = vpop.xlane.xlu0 %3401
      %v3403 = vsel %vm668, %v3385, 0.0
      %3404 = vadd.xlane.f32.xlu0 %v3403
      %v3405 = vpop.xlane.xlu0 %3404
      %v3406 = vsel %vm668, %v3386, 0.0
      %3407 = vadd.xlane.f32.xlu0 %v3406
      %v3408 = vpop.xlane.xlu0 %3407
      %v3409 = vsel %vm668, %v3387, 0.0
      %3410 = vadd.xlane.f32.xlu0 %v3409
      %v3411 = vpop.xlane.xlu0 %3410
      %v3412 = vsel %vm668, %v3388, 0.0
      %3413 = vadd.xlane.f32.xlu0 %v3412
      %v3414 = vpop.xlane.xlu0 %3413
      %v3415 = vmul.f32 %v3393, %v693
      %v3416 = vmul.f32 %v3396, %v693
      %v3417 = vmul.f32 %v3399, %v693
      %v3418 = vmul.f32 %v3402, %v693
      %v3419 = vmul.f32 %v3405, %v693
      %v3420 = vmul.f32 %v3408, %v693
      %v3421 = vmul.f32 %v3411, %v693
      %v3422 = vmul.f32 %v3414, %v693
      %v3423 = vsub.f32 %v3381, %v3415
      %v3424 = vsub.f32 %v3382, %v3416
      %v3425 = vsub.f32 %v3383, %v3417
      %v3426 = vsub.f32 %v3384, %v3418
      %v3427 = vsub.f32 %v3385, %v3419
      %v3428 = vsub.f32 %v3386, %v3420
      %v3429 = vsub.f32 %v3387, %v3421
      %v3430 = vsub.f32 %v3388, %v3422
      %v3431 = vmul.f32 %v3423, %v3423
      %v3432 = vmul.f32 %v3424, %v3424
      %v3433 = vmul.f32 %v3425, %v3425
      %v3434 = vmul.f32 %v3426, %v3426
      %v3435 = vmul.f32 %v3427, %v3427
      %v3436 = vmul.f32 %v3428, %v3428
      %v3437 = vmul.f32 %v3429, %v3429
      %v3438 = vmul.f32 %v3430, %v3430
      %v3439 = vsel %vm668, %v3431, 0.0
      %3440 = vadd.xlane.f32.xlu0 %v3439
      %v3441 = vpop.xlane.xlu0 %3440
      %v3442 = vsel %vm668, %v3432, 0.0
      %3443 = vadd.xlane.f32.xlu0 %v3442
      %v3444 = vpop.xlane.xlu0 %3443
      %v3445 = vsel %vm668, %v3433, 0.0
      %3446 = vadd.xlane.f32.xlu0 %v3445
      %v3447 = vpop.xlane.xlu0 %3446
      %v3448 = vsel %vm668, %v3434, 0.0
      %3449 = vadd.xlane.f32.xlu0 %v3448
      %v3450 = vpop.xlane.xlu0 %3449
      %v3451 = vsel %vm668, %v3435, 0.0
      %3452 = vadd.xlane.f32.xlu0 %v3451
      %v3453 = vpop.xlane.xlu0 %3452
      %v3454 = vsel %vm668, %v3436, 0.0
      %3455 = vadd.xlane.f32.xlu0 %v3454
      %v3456 = vpop.xlane.xlu0 %3455
      %v3457 = vsel %vm668, %v3437, 0.0
      %3458 = vadd.xlane.f32.xlu0 %v3457
      %v3459 = vpop.xlane.xlu0 %3458
      %v3460 = vsel %vm668, %v3438, 0.0
      %3461 = vadd.xlane.f32.xlu0 %v3460
      %v3462 = vpop.xlane.xlu0 %3461
      %v3463 = vmul.f32 %v3441, %v693
      %v3464 = vmul.f32 %v3444, %v693
      %v3465 = vmul.f32 %v3447, %v693
      %v3466 = vmul.f32 %v3450, %v693
      %v3467 = vmul.f32 %v3453, %v693
      %v3468 = vmul.f32 %v3456, %v693
      %v3469 = vmul.f32 %v3459, %v693
      %v3470 = vmul.f32 %v3462, %v693
      %v3471 = vadd.f32 %v3463, 1e-05
      %v3472 = vadd.f32 %v3464, 1e-05
      %v3473 = vadd.f32 %v3465, 1e-05
      %v3474 = vadd.f32 %v3466, 1e-05
      %v3475 = vadd.f32 %v3467, 1e-05
      %v3476 = vadd.f32 %v3468, 1e-05
      %v3477 = vadd.f32 %v3469, 1e-05
      %v3478 = vadd.f32 %v3470, 1e-05
      %v3479 = vrsqrt.pop %v3471
      %v3480 = vrsqrt.pop %v3472
      %v3481 = vrsqrt.pop %v3473
      %v3482 = vrsqrt.pop %v3474
      %v3483 = vrsqrt.pop %v3475
      %v3484 = vrsqrt.pop %v3476
      %v3485 = vrsqrt.pop %v3477
      %v3486 = vrsqrt.pop %v3478
      %v3487 = vmul.f32 %v3423, %v3479
      %v3488 = vmul.f32 %v3424, %v3480
      %v3489 = vmul.f32 %v3425, %v3481
      %v3490 = vmul.f32 %v3426, %v3482
      %v3491 = vmul.f32 %v3427, %v3483
      %v3492 = vmul.f32 %v3428, %v3484
      %v3493 = vmul.f32 %v3429, %v3485
      %v3494 = vmul.f32 %v3430, %v3486
      %v3496 = vlaneseq
      %v3497 = vshrl.u32 %v3496, 7
      %v3498 = vsub.s32 0, %v3497
      %v3499 = vrot.slane %v3389, %v3498
      %v3501 = vmul.f32 %v3487, %v3499
      %v3502 = vmul.f32 %v3488, %v3499
      %v3503 = vmul.f32 %v3489, %v3499
      %v3504 = vmul.f32 %v3490, %v3499
      %v3505 = vmul.f32 %v3491, %v3499
      %v3506 = vmul.f32 %v3492, %v3499
      %v3507 = vmul.f32 %v3493, %v3499
      %v3508 = vmul.f32 %v3494, %v3499
      %v3510 = vlaneseq
      %v3511 = vshrl.u32 %v3510, 7
      %v3512 = vsub.s32 0, %v3511
      %v3513 = vrot.slane %v3390, %v3512
      %v3515 = vadd.f32 %v3501, %v3513
      %v3516 = vadd.f32 %v3502, %v3513
      %v3517 = vadd.f32 %v3503, %v3513
      %v3518 = vadd.f32 %v3504, %v3513
      %v3519 = vadd.f32 %v3505, %v3513
      %v3520 = vadd.f32 %v3506, %v3513
      %v3521 = vadd.f32 %v3507, %v3513
      %v3522 = vadd.f32 %v3508, %v3513
      %v3523 = vpack.c.bf16 %v3516, %v3515
      %v3524 = vpack.c.bf16 %v3518, %v3517
      %v3525 = vpack.c.bf16 %v3520, %v3519
      %v3526 = vpack.c.bf16 %v3522, %v3521
      %v3527 = vld [vmem:[%s13] sm:$0xf]
      %v3528 = vld [vmem:[%s13 + $0x4] sm:$0xf]
      %v3529 = vld [vmem:[%s13 + $0x8] sm:$0xf]
      %v3530 = vld [vmem:[%s13 + $0xc] sm:$0xf]
      %v3531 = vld [vmem:[%s14] sm:$0x1]
      %v3533 = vlaneseq
      %v3534 = vshrl.u32 %v3533, 7
      %v3535 = vsub.s32 0, %v3534
      %v3536 = vrot.slane %v3531, %v3535
      %v3542 = vunpack.c.l.b16 %v3527
      %v3543 = vunpack.c.l.b16 %v3528
      %v3544 = vunpack.c.l.b16 %v3529
      %v3545 = vunpack.c.l.b16 %v3530
      %v3546 = vpack.c.b16 %v3543, %v3542
      %v3547 = vpack.c.b16 %v3545, %v3544
      %v3551 = vsel %vm668, %v3523, 0
      %v3554 = vsel %vm668, %v3524, 0
      %v3557 = vsel %vm668, %v3525, 0
      %v3560 = vsel %vm668, %v3526, 0
      %3562 = vmatprep.subr.bf16.mxu0 0
      %3563 = vmatpush1.bf16.msra.mxu0 %v3546
      %3564 = vmatprep.subr.bf16.mxu0 0
      %3565 = vmatpush1.bf16.msra.mxu0 %v3547
      %3566 = vmatprep.subr.bf16.mxu0 0
      %3567 = vmatpush1.bf16.msra.mxu0 0
      %3568 = vmatprep.subr.bf16.mxu0 0
      %3569 = vmatpush1.bf16.msra.mxu0 0
      %3570 = vmatprep.subr.bf16.mxu0 0
      %3571 = vmatpush1.bf16.msra.mxu0 0
      %3572 = vmatprep.subr.bf16.mxu0 0
      %3573 = vmatpush1.bf16.msra.mxu0 0
      %3574 = vmatprep.subr.bf16.mxu0 0
      %3575 = vmatpush1.bf16.msra.mxu0 0
      %3576 = vmatprep.subr.bf16.mxu0 0
      %3577 = vmatpush1.bf16.msra.mxu0 0
      %3578 = vmatprep.subr.bf16.mxu0 0
      %3579 = vmatpush1.bf16.msra.mxu0 0
      %3580 = vmatprep.subr.bf16.mxu0 0
      %3581 = vmatpush1.bf16.msra.mxu0 0
      %3582 = vmatprep.subr.bf16.mxu0 0
      %3583 = vmatpush1.bf16.msra.mxu0 0
      %3584 = vmatprep.subr.bf16.mxu0 0
      %3585 = vmatpush1.bf16.msra.mxu0 0
      %3586 = vmatprep.subr.bf16.mxu0 0
      %3587 = vmatpush1.bf16.msra.mxu0 0
      %3588 = vmatprep.subr.bf16.mxu0 0
      %3589 = vmatpush1.bf16.msra.mxu0 0
      %3590 = vmatprep.subr.bf16.mxu0 0
      %3591 = vmatpush1.bf16.msra.mxu0 0
      %3592 = vmatprep.subr.bf16.mxu0 0
      %3593 = vmatpush1.bf16.msra.mxu0 0
      %3594 = vmatprep.mubr.bf16.mxu0 0
      %3595 = vmatmul.mubr.bf16.gmra.mrb[0].mxu0 %v3551
      %v3596 = vpop.f32.mrb[0].mxu0
      %v3597 = vadd.f32 %v3536, %v3596
      %v3598 = vpop.f32.mrb[0].mxu0
      %v3599 = vpop.f32.mrb[0].mxu0
      %v3600 = vadd.f32 %v3536, %v3599
      %v3601 = vpop.f32.mrb[0].mxu0
      %3602 = vmatprep.mubr.bf16.mxu0 0
      %3603 = vmatmul.mubr.bf16.gmra.mrb[0].mxu0 %v3554
      %v3604 = vpop.f32.mrb[0].mxu0
      %v3605 = vadd.f32 %v3536, %v3604
      %v3606 = vpop.f32.mrb[0].mxu0
      %v3607 = vpop.f32.mrb[0].mxu0
      %v3608 = vadd.f32 %v3536, %v3607
      %v3609 = vpop.f32.mrb[0].mxu0
      %3610 = vmatprep.mubr.bf16.mxu0 0
      %3611 = vmatmul.mubr.bf16.gmra.mrb[0].mxu0 %v3557
      %v3612 = vpop.f32.mrb[0].mxu0
      %v3613 = vadd.f32 %v3536, %v3612
      %v3614 = vpop.f32.mrb[0].mxu0
      %v3615 = vpop.f32.mrb[0].mxu0
      %v3616 = vadd.f32 %v3536, %v3615
      %v3617 = vpop.f32.mrb[0].mxu0
      %3618 = vmatprep.mubr.bf16.mxu0 0
      %3619 = vmatmul.mubr.bf16.gmra.mrb[0].mxu0 %v3560
      %v3620 = vpop.f32.mrb[0].mxu0
      %v3621 = vadd.f32 %v3536, %v3620
      %v3622 = vpop.f32.mrb[0].mxu0
      %v3623 = vpop.f32.mrb[0].mxu0
      %v3624 = vadd.f32 %v3536, %v3623
      %v3625 = vpop.f32.mrb[0].mxu0
      %3626 = vdwg.mxu0
      %v3627 = vxor.u32 %v3597, 2147483648
      %v3628 = vxor.u32 %v3600, 2147483648
      %v3629 = vxor.u32 %v3605, 2147483648
      %v3630 = vxor.u32 %v3608, 2147483648
      %v3631 = vxor.u32 %v3613, 2147483648
      %v3632 = vxor.u32 %v3616, 2147483648
      %v3633 = vxor.u32 %v3621, 2147483648
      %v3634 = vxor.u32 %v3624, 2147483648
      %v3635 = vmul.f32 %v3627, 1.442695
      %v3636 = vpow.pop %v3635
      %v3637 = vmul.f32 %v3628, 1.442695
      %v3638 = vpow.pop %v3637
      %v3639 = vmul.f32 %v3629, 1.442695
      %v3640 = vpow.pop %v3639
      %v3641 = vmul.f32 %v3630, 1.442695
      %v3642 = vpow.pop %v3641
      %v3643 = vmul.f32 %v3631, 1.442695
      %v3644 = vpow.pop %v3643
      %v3645 = vmul.f32 %v3632, 1.442695
      %v3646 = vpow.pop %v3645
      %v3647 = vmul.f32 %v3633, 1.442695
      %v3648 = vpow.pop %v3647
      %v3649 = vmul.f32 %v3634, 1.442695
      %v3650 = vpow.pop %v3649
      %v3651 = vadd.f32 %v3636, 1.0
      %v3652 = vadd.f32 %v3638, 1.0
      %v3653 = vadd.f32 %v3640, 1.0
      %v3654 = vadd.f32 %v3642, 1.0
      %v3655 = vadd.f32 %v3644, 1.0
      %v3656 = vadd.f32 %v3646, 1.0
      %v3657 = vadd.f32 %v3648, 1.0
      %v3658 = vadd.f32 %v3650, 1.0
      %v3659 = vrcp.pop %v3651
      %v3660 = vmul.f32 1.0, %v3659
      %v3661 = vrcp.pop %v3652
      %v3662 = vmul.f32 1.0, %v3661
      %v3663 = vrcp.pop %v3653
      %v3664 = vmul.f32 1.0, %v3663
      %v3665 = vrcp.pop %v3654
      %v3666 = vmul.f32 1.0, %v3665
      %v3667 = vrcp.pop %v3655
      %v3668 = vmul.f32 1.0, %v3667
      %v3669 = vrcp.pop %v3656
      %v3670 = vmul.f32 1.0, %v3669
      %v3671 = vrcp.pop %v3657
      %v3672 = vmul.f32 1.0, %v3671
      %v3673 = vrcp.pop %v3658
      %v3674 = vmul.f32 1.0, %v3673
      %v3675 = vmul.f32 %v3597, %v3660
      %v3676 = vmul.f32 %v3600, %v3662
      %v3677 = vmul.f32 %v3605, %v3664
      %v3678 = vmul.f32 %v3608, %v3666
      %v3679 = vmul.f32 %v3613, %v3668
      %v3680 = vmul.f32 %v3616, %v3670
      %v3681 = vmul.f32 %v3621, %v3672
      %v3682 = vmul.f32 %v3624, %v3674
      %v3683 = vpack.c.bf16 %v3676, %v3675
      %v3684 = vpack.c.bf16 %v3678, %v3677
      %v3685 = vpack.c.bf16 %v3680, %v3679
      %v3686 = vpack.c.bf16 %v3682, %v3681
      %v3687 = vld [vmem:[%s15] sm:$0xf]
      %v3688 = vld [vmem:[%s15 + $0x4] sm:$0xf]
      %v3689 = vld [vmem:[%s15 + $0x8] sm:$0xf]
      %v3690 = vld [vmem:[%s15 + $0xc] sm:$0xf]
      %v3691 = vld [vmem:[%s15 + $0x10] sm:$0xf]
      %v3692 = vld [vmem:[%s15 + $0x14] sm:$0xf]
      %v3693 = vld [vmem:[%s15 + $0x18] sm:$0xf]
      %v3694 = vld [vmem:[%s15 + $0x1c] sm:$0xf]
      %v3695 = vld [vmem:[%s16] sm:$0x1]
      %v3697 = vlaneseq
      %v3698 = vshrl.u32 %v3697, 7
      %v3699 = vsub.s32 0, %v3698
      %v3700 = vrot.slane %v3695, %v3699
      %v3710 = vunpack.c.l.b16 %v3687
      %v3711 = vunpack.c.l.b16 %v3688
      %v3712 = vunpack.c.l.b16 %v3689
      %v3713 = vunpack.c.l.b16 %v3690
      %v3714 = vunpack.c.l.b16 %v3691
      %v3715 = vunpack.c.l.b16 %v3692
      %v3716 = vunpack.c.l.b16 %v3693
      %v3717 = vunpack.c.l.b16 %v3694
      %v3718 = vpack.c.b16 %v3711, %v3710
      %v3719 = vpack.c.b16 %v3713, %v3712
      %v3720 = vpack.c.b16 %v3715, %v3714
      %v3721 = vpack.c.b16 %v3717, %v3716
      %v3727 = vsel %vm1188, %v3683, 0
      %v3730 = vsel %vm1188, %v3684, 0
      %v3733 = vsel %vm1188, %v3685, 0
      %v3736 = vsel %vm1188, %v3686, 0
      %3738 = vmatprep.subr.bf16.mxu0 0
      %3739 = vmatpush1.bf16.msra.mxu0 %v3718
      %3740 = vmatprep.subr.bf16.mxu0 0
      %3741 = vmatpush1.bf16.msra.mxu0 %v3719
      %3742 = vmatprep.subr.bf16.mxu0 0
      %3743 = vmatpush1.bf16.msra.mxu0 %v3720
      %3744 = vmatprep.subr.bf16.mxu0 0
      %3745 = vmatpush1.bf16.msra.mxu0 %v3721
      %3746 = vmatprep.subr.bf16.mxu0 0
      %3747 = vmatpush1.bf16.msra.mxu0 0
      %3748 = vmatprep.subr.bf16.mxu0 0
      %3749 = vmatpush1.bf16.msra.mxu0 0
      %3750 = vmatprep.subr.bf16.mxu0 0
      %3751 = vmatpush1.bf16.msra.mxu0 0
      %3752 = vmatprep.subr.bf16.mxu0 0
      %3753 = vmatpush1.bf16.msra.mxu0 0
      %3754 = vmatprep.subr.bf16.mxu0 0
      %3755 = vmatpush1.bf16.msra.mxu0 0
      %3756 = vmatprep.subr.bf16.mxu0 0
      %3757 = vmatpush1.bf16.msra.mxu0 0
      %3758 = vmatprep.subr.bf16.mxu0 0
      %3759 = vmatpush1.bf16.msra.mxu0 0
      %3760 = vmatprep.subr.bf16.mxu0 0
      %3761 = vmatpush1.bf16.msra.mxu0 0
      %3762 = vmatprep.subr.bf16.mxu0 0
      %3763 = vmatpush1.bf16.msra.mxu0 0
      %3764 = vmatprep.subr.bf16.mxu0 0
      %3765 = vmatpush1.bf16.msra.mxu0 0
      %3766 = vmatprep.subr.bf16.mxu0 0
      %3767 = vmatpush1.bf16.msra.mxu0 0
      %3768 = vmatprep.subr.bf16.mxu0 0
      %3769 = vmatpush1.bf16.msra.mxu0 0
      %3770 = vmatprep.mubr.bf16.mxu0 0
      %3771 = vmatmul.mubr.bf16.gmra.mrb[0].mxu0 %v3727
      %v3772 = vpop.f32.mrb[0].mxu0
      %v3773 = vadd.f32 %v3700, %v3772
      %v3774 = vpop.f32.mrb[0].mxu0
      %v3775 = vpop.f32.mrb[0].mxu0
      %v3776 = vadd.f32 %v3700, %v3775
      %v3777 = vpop.f32.mrb[0].mxu0
      %3778 = vmatprep.mubr.bf16.mxu0 0
      %3779 = vmatmul.mubr.bf16.gmra.mrb[0].mxu0 %v3730
      %v3780 = vpop.f32.mrb[0].mxu0
      %v3781 = vadd.f32 %v3700, %v3780
      %v3782 = vpop.f32.mrb[0].mxu0
      %v3783 = vpop.f32.mrb[0].mxu0
      %v3784 = vadd.f32 %v3700, %v3783
      %v3785 = vpop.f32.mrb[0].mxu0
      %3786 = vmatprep.mubr.bf16.mxu0 0
      %3787 = vmatmul.mubr.bf16.gmra.mrb[0].mxu0 %v3733
      %v3788 = vpop.f32.mrb[0].mxu0
      %v3789 = vadd.f32 %v3700, %v3788
      %v3790 = vpop.f32.mrb[0].mxu0
      %v3791 = vpop.f32.mrb[0].mxu0
      %v3792 = vadd.f32 %v3700, %v3791
      %v3793 = vpop.f32.mrb[0].mxu0
      %3794 = vmatprep.mubr.bf16.mxu0 0
      %3795 = vmatmul.mubr.bf16.gmra.mrb[0].mxu0 %v3736
      %v3796 = vpop.f32.mrb[0].mxu0
      %v3797 = vadd.f32 %v3700, %v3796
      %v3798 = vpop.f32.mrb[0].mxu0
      %v3799 = vpop.f32.mrb[0].mxu0
      %v3800 = vadd.f32 %v3700, %v3799
      %v3801 = vpop.f32.mrb[0].mxu0
      %3802 = vdwg.mxu0
      %v3803 = vadd.f32 %v3381, %v3773
      %v3804 = vadd.f32 %v3382, %v3776
      %v3805 = vadd.f32 %v3383, %v3781
      %v3806 = vadd.f32 %v3384, %v3784
      %v3807 = vadd.f32 %v3385, %v3789
      %v3808 = vadd.f32 %v3386, %v3792
      %v3809 = vadd.f32 %v3387, %v3797
      %v3810 = vadd.f32 %v3388, %v3800
      %s3811 = scalar_lea.vmem %s1, 1
      %v3812 = vld [vmem:[%s3811] sm:$0x1]
      %s3813 = scalar_lea.vmem %s2, 1
      %v3814 = vld [vmem:[%s3813] sm:$0x1]
      %v3815 = vsel %vm668, %v3803, 0.0
      %3816 = vadd.xlane.f32.xlu0 %v3815
      %v3817 = vpop.xlane.xlu0 %3816
      %v3818 = vsel %vm668, %v3804, 0.0
      %3819 = vadd.xlane.f32.xlu0 %v3818
      %v3820 = vpop.xlane.xlu0 %3819
      %v3821 = vsel %vm668, %v3805, 0.0
      %3822 = vadd.xlane.f32.xlu0 %v3821
      %v3823 = vpop.xlane.xlu0 %3822
      %v3824 = vsel %vm668, %v3806, 0.0
      %3825 = vadd.xlane.f32.xlu0 %v3824
      %v3826 = vpop.xlane.xlu0 %3825
      %v3827 = vsel %vm668, %v3807, 0.0
      %3828 = vadd.xlane.f32.xlu0 %v3827
      %v3829 = vpop.xlane.xlu0 %3828
      %v3830 = vsel %vm668, %v3808, 0.0
      %3831 = vadd.xlane.f32.xlu0 %v3830
      %v3832 = vpop.xlane.xlu0 %3831
      %v3833 = vsel %vm668, %v3809, 0.0
      %3834 = vadd.xlane.f32.xlu0 %v3833
      %v3835 = vpop.xlane.xlu0 %3834
      %v3836 = vsel %vm668, %v3810, 0.0
      %3837 = vadd.xlane.f32.xlu0 %v3836
      %v3838 = vpop.xlane.xlu0 %3837
      %v3839 = vmul.f32 %v3817, %v693
      %v3840 = vmul.f32 %v3820, %v693
      %v3841 = vmul.f32 %v3823, %v693
      %v3842 = vmul.f32 %v3826, %v693
      %v3843 = vmul.f32 %v3829, %v693
      %v3844 = vmul.f32 %v3832, %v693
      %v3845 = vmul.f32 %v3835, %v693
      %v3846 = vmul.f32 %v3838, %v693
      %v3847 = vsub.f32 %v3803, %v3839
      %v3848 = vsub.f32 %v3804, %v3840
      %v3849 = vsub.f32 %v3805, %v3841
      %v3850 = vsub.f32 %v3806, %v3842
      %v3851 = vsub.f32 %v3807, %v3843
      %v3852 = vsub.f32 %v3808, %v3844
      %v3853 = vsub.f32 %v3809, %v3845
      %v3854 = vsub.f32 %v3810, %v3846
      %v3855 = vmul.f32 %v3847, %v3847
      %v3856 = vmul.f32 %v3848, %v3848
      %v3857 = vmul.f32 %v3849, %v3849
      %v3858 = vmul.f32 %v3850, %v3850
      %v3859 = vmul.f32 %v3851, %v3851
      %v3860 = vmul.f32 %v3852, %v3852
      %v3861 = vmul.f32 %v3853, %v3853
      %v3862 = vmul.f32 %v3854, %v3854
      %v3863 = vsel %vm668, %v3855, 0.0
      %3864 = vadd.xlane.f32.xlu0 %v3863
      %v3865 = vpop.xlane.xlu0 %3864
      %v3866 = vsel %vm668, %v3856, 0.0
      %3867 = vadd.xlane.f32.xlu0 %v3866
      %v3868 = vpop.xlane.xlu0 %3867
      %v3869 = vsel %vm668, %v3857, 0.0
      %3870 = vadd.xlane.f32.xlu0 %v3869
      %v3871 = vpop.xlane.xlu0 %3870
      %v3872 = vsel %vm668, %v3858, 0.0
      %3873 = vadd.xlane.f32.xlu0 %v3872
      %v3874 = vpop.xlane.xlu0 %3873
      %v3875 = vsel %vm668, %v3859, 0.0
      %3876 = vadd.xlane.f32.xlu0 %v3875
      %v3877 = vpop.xlane.xlu0 %3876
      %v3878 = vsel %vm668, %v3860, 0.0
      %3879 = vadd.xlane.f32.xlu0 %v3878
      %v3880 = vpop.xlane.xlu0 %3879
      %v3881 = vsel %vm668, %v3861, 0.0
      %3882 = vadd.xlane.f32.xlu0 %v3881
      %v3883 = vpop.xlane.xlu0 %3882
      %v3884 = vsel %vm668, %v3862, 0.0
      %3885 = vadd.xlane.f32.xlu0 %v3884
      %v3886 = vpop.xlane.xlu0 %3885
      %v3887 = vmul.f32 %v3865, %v693
      %v3888 = vmul.f32 %v3868, %v693
      %v3889 = vmul.f32 %v3871, %v693
      %v3890 = vmul.f32 %v3874, %v693
      %v3891 = vmul.f32 %v3877, %v693
      %v3892 = vmul.f32 %v3880, %v693
      %v3893 = vmul.f32 %v3883, %v693
      %v3894 = vmul.f32 %v3886, %v693
      %v3895 = vadd.f32 %v3887, 1e-05
      %v3896 = vadd.f32 %v3888, 1e-05
      %v3897 = vadd.f32 %v3889, 1e-05
      %v3898 = vadd.f32 %v3890, 1e-05
      %v3899 = vadd.f32 %v3891, 1e-05
      %v3900 = vadd.f32 %v3892, 1e-05
      %v3901 = vadd.f32 %v3893, 1e-05
      %v3902 = vadd.f32 %v3894, 1e-05
      %v3903 = vrsqrt.pop %v3895
      %v3904 = vrsqrt.pop %v3896
      %v3905 = vrsqrt.pop %v3897
      %v3906 = vrsqrt.pop %v3898
      %v3907 = vrsqrt.pop %v3899
      %v3908 = vrsqrt.pop %v3900
      %v3909 = vrsqrt.pop %v3901
      %v3910 = vrsqrt.pop %v3902
      %v3911 = vmul.f32 %v3847, %v3903
      %v3912 = vmul.f32 %v3848, %v3904
      %v3913 = vmul.f32 %v3849, %v3905
      %v3914 = vmul.f32 %v3850, %v3906
      %v3915 = vmul.f32 %v3851, %v3907
      %v3916 = vmul.f32 %v3852, %v3908
      %v3917 = vmul.f32 %v3853, %v3909
      %v3918 = vmul.f32 %v3854, %v3910
      %v3920 = vlaneseq
      %v3921 = vshrl.u32 %v3920, 7
      %v3922 = vsub.s32 0, %v3921
      %v3923 = vrot.slane %v3812, %v3922
      %v3925 = vmul.f32 %v3911, %v3923
      %v3926 = vmul.f32 %v3912, %v3923
      %v3927 = vmul.f32 %v3913, %v3923
      %v3928 = vmul.f32 %v3914, %v3923
      %v3929 = vmul.f32 %v3915, %v3923
      %v3930 = vmul.f32 %v3916, %v3923
      %v3931 = vmul.f32 %v3917, %v3923
      %v3932 = vmul.f32 %v3918, %v3923
      %v3934 = vlaneseq
      %v3935 = vshrl.u32 %v3934, 7
      %v3936 = vsub.s32 0, %v3935
      %v3937 = vrot.slane %v3814, %v3936
      %v3939 = vadd.f32 %v3925, %v3937
      %v3940 = vadd.f32 %v3926, %v3937
      %v3941 = vadd.f32 %v3927, %v3937
      %v3942 = vadd.f32 %v3928, %v3937
      %v3943 = vadd.f32 %v3929, %v3937
      %v3944 = vadd.f32 %v3930, %v3937
      %v3945 = vadd.f32 %v3931, %v3937
      %v3946 = vadd.f32 %v3932, %v3937
      %v3947 = vpack.c.bf16 %v3940, %v3939
      %v3948 = vpack.c.bf16 %v3942, %v3941
      %v3949 = vpack.c.bf16 %v3944, %v3943
      %v3950 = vpack.c.bf16 %v3946, %v3945
      %s3951 = scalar_lea.vmem %s3, 64
      %v3952 = vld [vmem:[%s3951] sm:$0xf]
      %v3953 = vld [vmem:[%s3951 + $0x4] sm:$0xf]
      %v3954 = vld [vmem:[%s3951 + $0x8] sm:$0xf]
      %v3955 = vld [vmem:[%s3951 + $0xc] sm:$0xf]
      %s3956 = scalar_lea.vmem %s4, 4
      %v3957 = vld [vmem:[%s3956] sm:$0x1]
      %v3959 = vlaneseq
      %v3960 = vshrl.u32 %v3959, 7
      %v3961 = vsub.s32 0, %v3960
      %v3962 = vrot.slane %v3957, %v3961
      %v3968 = vunpack.c.l.b16 %v3952
      %v3969 = vunpack.c.l.b16 %v3953
      %v3970 = vunpack.c.l.b16 %v3954
      %v3971 = vunpack.c.l.b16 %v3955
      %v3972 = vpack.c.b16 %v3969, %v3968
      %v3973 = vpack.c.b16 %v3971, %v3970
      %v3977 = vsel %vm668, %v3947, 0
      %v3980 = vsel %vm668, %v3948, 0
      %v3983 = vsel %vm668, %v3949, 0
      %v3986 = vsel %vm668, %v3950, 0
      %3988 = vmatprep.subr.bf16.mxu0 0
      %3989 = vmatpush1.bf16.msra.mxu0 %v3972
      %3990 = vmatprep.subr.bf16.mxu0 0
      %3991 = vmatpush1.bf16.msra.mxu0 %v3973
      %3992 = vmatprep.subr.bf16.mxu0 0
      %3993 = vmatpush1.bf16.msra.mxu0 0
      %3994 = vmatprep.subr.bf16.mxu0 0
      %3995 = vmatpush1.bf16.msra.mxu0 0
      %3996 = vmatprep.subr.bf16.mxu0 0
      %3997 = vmatpush1.bf16.msra.mxu0 0
      %3998 = vmatprep.subr.bf16.mxu0 0
      %3999 = vmatpush1.bf16.msra.mxu0 0
      %4000 = vmatprep.subr.bf16.mxu0 0
      %4001 = vmatpush1.bf16.msra.mxu0 0
      %4002 = vmatprep.subr.bf16.mxu0 0
      %4003 = vmatpush1.bf16.msra.mxu0 0
      %4004 = vmatprep.subr.bf16.mxu0 0
      %4005 = vmatpush1.bf16.msra.mxu0 0
      %4006 = vmatprep.subr.bf16.mxu0 0
      %4007 = vmatpush1.bf16.msra.mxu0 0
      %4008 = vmatprep.subr.bf16.mxu0 0
      %4009 = vmatpush1.bf16.msra.mxu0 0
      %4010 = vmatprep.subr.bf16.mxu0 0
      %4011 = vmatpush1.bf16.msra.mxu0 0
      %4012 = vmatprep.subr.bf16.mxu0 0
      %4013 = vmatpush1.bf16.msra.mxu0 0
      %4014 = vmatprep.subr.bf16.mxu0 0
      %4015 = vmatpush1.bf16.msra.mxu0 0
      %4016 = vmatprep.subr.bf16.mxu0 0
      %4017 = vmatpush1.bf16.msra.mxu0 0
      %4018 = vmatprep.subr.bf16.mxu0 0
      %4019 = vmatpush1.bf16.msra.mxu0 0
      %4020 = vmatprep.mubr.bf16.mxu0 0
      %4021 = vmatmul.mubr.bf16.gmra.mrb[0].mxu0 %v3977
      %v4022 = vpop.f32.mrb[0].mxu0
      %v4023 = vadd.f32 %v3962, %v4022
      %v4024 = vpop.f32.mrb[0].mxu0
      %v4025 = vpop.f32.mrb[0].mxu0
      %v4026 = vadd.f32 %v3962, %v4025
      %v4027 = vpop.f32.mrb[0].mxu0
      %4028 = vmatprep.mubr.bf16.mxu0 0
      %4029 = vmatmul.mubr.bf16.gmra.mrb[0].mxu0 %v3980
      %v4030 = vpop.f32.mrb[0].mxu0
      %v4031 = vadd.f32 %v3962, %v4030
      %v4032 = vpop.f32.mrb[0].mxu0
      %v4033 = vpop.f32.mrb[0].mxu0
      %v4034 = vadd.f32 %v3962, %v4033
      %v4035 = vpop.f32.mrb[0].mxu0
      %4036 = vmatprep.mubr.bf16.mxu0 0
      %4037 = vmatmul.mubr.bf16.gmra.mrb[0].mxu0 %v3983
      %v4038 = vpop.f32.mrb[0].mxu0
      %v4039 = vadd.f32 %v3962, %v4038
      %v4040 = vpop.f32.mrb[0].mxu0
      %v4041 = vpop.f32.mrb[0].mxu0
      %v4042 = vadd.f32 %v3962, %v4041
      %v4043 = vpop.f32.mrb[0].mxu0
      %4044 = vmatprep.mubr.bf16.mxu0 0
      %4045 = vmatmul.mubr.bf16.gmra.mrb[0].mxu0 %v3986
      %v4046 = vpop.f32.mrb[0].mxu0
      %v4047 = vadd.f32 %v3962, %v4046
      %v4048 = vpop.f32.mrb[0].mxu0
      %v4049 = vpop.f32.mrb[0].mxu0
      %v4050 = vadd.f32 %v3962, %v4049
      %v4051 = vpop.f32.mrb[0].mxu0
      %4052 = vdwg.mxu0
      %s4053 = scalar_lea.vmem %s5, 64
      %v4054 = vld [vmem:[%s4053] sm:$0xf]
      %v4055 = vld [vmem:[%s4053 + $0x4] sm:$0xf]
      %v4056 = vld [vmem:[%s4053 + $0x8] sm:$0xf]
      %v4057 = vld [vmem:[%s4053 + $0xc] sm:$0xf]
      %s4058 = scalar_lea.vmem %s6, 4
      %v4059 = vld [vmem:[%s4058] sm:$0x1]
      %v4061 = vlaneseq
      %v4062 = vshrl.u32 %v4061, 7
      %v4063 = vsub.s32 0, %v4062
      %v4064 = vrot.slane %v4059, %v4063
      %v4070 = vunpack.c.l.b16 %v4054
      %v4071 = vunpack.c.l.b16 %v4055
      %v4072 = vunpack.c.l.b16 %v4056
      %v4073 = vunpack.c.l.b16 %v4057
      %v4074 = vpack.c.b16 %v4071, %v4070
      %v4075 = vpack.c.b16 %v4073, %v4072
      %4078 = vmatprep.subr.bf16.mxu0 0
      %4079 = vmatpush1.bf16.msra.mxu0 %v4074
      %4080 = vmatprep.subr.bf16.mxu0 0
      %4081 = vmatpush1.bf16.msra.mxu0 %v4075
      %4082 = vmatprep.subr.bf16.mxu0 0
      %4083 = vmatpush1.bf16.msra.mxu0 0
      %4084 = vmatprep.subr.bf16.mxu0 0
      %4085 = vmatpush1.bf16.msra.mxu0 0
      %4086 = vmatprep.subr.bf16.mxu0 0
      %4087 = vmatpush1.bf16.msra.mxu0 0
      %4088 = vmatprep.subr.bf16.mxu0 0
      %4089 = vmatpush1.bf16.msra.mxu0 0
      %4090 = vmatprep.subr.bf16.mxu0 0
      %4091 = vmatpush1.bf16.msra.mxu0 0
      %4092 = vmatprep.subr.bf16.mxu0 0
      %4093 = vmatpush1.bf16.msra.mxu0 0
      %4094 = vmatprep.subr.bf16.mxu0 0
      %4095 = vmatpush1.bf16.msra.mxu0 0
      %4096 = vmatprep.subr.bf16.mxu0 0
      %4097 = vmatpush1.bf16.msra.mxu0 0
      %4098 = vmatprep.subr.bf16.mxu0 0
      %4099 = vmatpush1.bf16.msra.mxu0 0
      %4100 = vmatprep.subr.bf16.mxu0 0
      %4101 = vmatpush1.bf16.msra.mxu0 0
      %4102 = vmatprep.subr.bf16.mxu0 0
      %4103 = vmatpush1.bf16.msra.mxu0 0
      %4104 = vmatprep.subr.bf16.mxu0 0
      %4105 = vmatpush1.bf16.msra.mxu0 0
      %4106 = vmatprep.subr.bf16.mxu0 0
      %4107 = vmatpush1.bf16.msra.mxu0 0
      %4108 = vmatprep.subr.bf16.mxu0 0
      %4109 = vmatpush1.bf16.msra.mxu0 0
      %4110 = vmatprep.mubr.bf16.mxu0 0
      %4111 = vmatmul.mubr.bf16.gmra.mrb[0].mxu0 %v3977
      %v4112 = vpop.f32.mrb[0].mxu0
      %v4113 = vadd.f32 %v4064, %v4112
      %v4114 = vpop.f32.mrb[0].mxu0
      %v4115 = vpop.f32.mrb[0].mxu0
      %v4116 = vadd.f32 %v4064, %v4115
      %v4117 = vpop.f32.mrb[0].mxu0
      %4118 = vmatprep.mubr.bf16.mxu0 0
      %4119 = vmatmul.mubr.bf16.gmra.mrb[0].mxu0 %v3980
      %v4120 = vpop.f32.mrb[0].mxu0
      %v4121 = vadd.f32 %v4064, %v4120
      %v4122 = vpop.f32.mrb[0].mxu0
      %v4123 = vpop.f32.mrb[0].mxu0
      %v4124 = vadd.f32 %v4064, %v4123
      %v4125 = vpop.f32.mrb[0].mxu0
      %4126 = vmatprep.mubr.bf16.mxu0 0
      %4127 = vmatmul.mubr.bf16.gmra.mrb[0].mxu0 %v3983
      %v4128 = vpop.f32.mrb[0].mxu0
      %v4129 = vadd.f32 %v4064, %v4128
      %v4130 = vpop.f32.mrb[0].mxu0
      %v4131 = vpop.f32.mrb[0].mxu0
      %v4132 = vadd.f32 %v4064, %v4131
      %v4133 = vpop.f32.mrb[0].mxu0
      %4134 = vmatprep.mubr.bf16.mxu0 0
      %4135 = vmatmul.mubr.bf16.gmra.mrb[0].mxu0 %v3986
      %v4136 = vpop.f32.mrb[0].mxu0
      %v4137 = vadd.f32 %v4064, %v4136
      %v4138 = vpop.f32.mrb[0].mxu0
      %v4139 = vpop.f32.mrb[0].mxu0
      %v4140 = vadd.f32 %v4064, %v4139
      %v4141 = vpop.f32.mrb[0].mxu0
      %4142 = vdwg.mxu0
      %s4143 = scalar_lea.vmem %s7, 64
      %v4144 = vld [vmem:[%s4143] sm:$0xf]
      %v4145 = vld [vmem:[%s4143 + $0x4] sm:$0xf]
      %v4146 = vld [vmem:[%s4143 + $0x8] sm:$0xf]
      %v4147 = vld [vmem:[%s4143 + $0xc] sm:$0xf]
      %s4148 = scalar_lea.vmem %s8, 4
      %v4149 = vld [vmem:[%s4148] sm:$0x1]
      %v4151 = vlaneseq
      %v4152 = vshrl.u32 %v4151, 7
      %v4153 = vsub.s32 0, %v4152
      %v4154 = vrot.slane %v4149, %v4153
      %v4160 = vunpack.c.l.b16 %v4144
      %v4161 = vunpack.c.l.b16 %v4145
      %v4162 = vunpack.c.l.b16 %v4146
      %v4163 = vunpack.c.l.b16 %v4147
      %v4164 = vpack.c.b16 %v4161, %v4160
      %v4165 = vpack.c.b16 %v4163, %v4162
      %4168 = vmatprep.subr.bf16.mxu0 0
      %4169 = vmatpush1.bf16.msra.mxu0 %v4164
      %4170 = vmatprep.subr.bf16.mxu0 0
      %4171 = vmatpush1.bf16.msra.mxu0 %v4165
      %4172 = vmatprep.subr.bf16.mxu0 0
      %4173 = vmatpush1.bf16.msra.mxu0 0
      %4174 = vmatprep.subr.bf16.mxu0 0
      %4175 = vmatpush1.bf16.msra.mxu0 0
      %4176 = vmatprep.subr.bf16.mxu0 0
      %4177 = vmatpush1.bf16.msra.mxu0 0
      %4178 = vmatprep.subr.bf16.mxu0 0
      %4179 = vmatpush1.bf16.msra.mxu0 0
      %4180 = vmatprep.subr.bf16.mxu0 0
      %4181 = vmatpush1.bf16.msra.mxu0 0
      %4182 = vmatprep.subr.bf16.mxu0 0
      %4183 = vmatpush1.bf16.msra.mxu0 0
      %4184 = vmatprep.subr.bf16.mxu0 0
      %4185 = vmatpush1.bf16.msra.mxu0 0
      %4186 = vmatprep.subr.bf16.mxu0 0
      %4187 = vmatpush1.bf16.msra.mxu0 0
      %4188 = vmatprep.subr.bf16.mxu0 0
      %4189 = vmatpush1.bf16.msra.mxu0 0
      %4190 = vmatprep.subr.bf16.mxu0 0
      %4191 = vmatpush1.bf16.msra.mxu0 0
      %4192 = vmatprep.subr.bf16.mxu0 0
      %4193 = vmatpush1.bf16.msra.mxu0 0
      %4194 = vmatprep.subr.bf16.mxu0 0
      %4195 = vmatpush1.bf16.msra.mxu0 0
      %4196 = vmatprep.subr.bf16.mxu0 0
      %4197 = vmatpush1.bf16.msra.mxu0 0
      %4198 = vmatprep.subr.bf16.mxu0 0
      %4199 = vmatpush1.bf16.msra.mxu0 0
      %4200 = vmatprep.mubr.bf16.mxu0 0
      %4201 = vmatmul.mubr.bf16.gmra.mrb[0].mxu0 %v3977
      %v4202 = vpop.f32.mrb[0].mxu0
      %v4203 = vadd.f32 %v4154, %v4202
      %v4204 = vpop.f32.mrb[0].mxu0
      %v4205 = vpop.f32.mrb[0].mxu0
      %v4206 = vadd.f32 %v4154, %v4205
      %v4207 = vpop.f32.mrb[0].mxu0
      %4208 = vmatprep.mubr.bf16.mxu0 0
      %4209 = vmatmul.mubr.bf16.gmra.mrb[0].mxu0 %v3980
      %v4210 = vpop.f32.mrb[0].mxu0
      %v4211 = vadd.f32 %v4154, %v4210
      %v4212 = vpop.f32.mrb[0].mxu0
      %v4213 = vpop.f32.mrb[0].mxu0
      %v4214 = vadd.f32 %v4154, %v4213
      %v4215 = vpop.f32.mrb[0].mxu0
      %4216 = vmatprep.mubr.bf16.mxu0 0
      %4217 = vmatmul.mubr.bf16.gmra.mrb[0].mxu0 %v3983
      %v4218 = vpop.f32.mrb[0].mxu0
      %v4219 = vadd.f32 %v4154, %v4218
      %v4220 = vpop.f32.mrb[0].mxu0
      %v4221 = vpop.f32.mrb[0].mxu0
      %v4222 = vadd.f32 %v4154, %v4221
      %v4223 = vpop.f32.mrb[0].mxu0
      %4224 = vmatprep.mubr.bf16.mxu0 0
      %4225 = vmatmul.mubr.bf16.gmra.mrb[0].mxu0 %v3986
      %v4226 = vpop.f32.mrb[0].mxu0
      %v4227 = vadd.f32 %v4154, %v4226
      %v4228 = vpop.f32.mrb[0].mxu0
      %v4229 = vpop.f32.mrb[0].mxu0
      %v4230 = vadd.f32 %v4154, %v4229
      %v4231 = vpop.f32.mrb[0].mxu0
      %4232 = vdwg.mxu0
      %v4233 = vmul.f32 %v4023, 0.35355338
      %v4234 = vmul.f32 %v4026, 0.35355338
      %v4235 = vmul.f32 %v4031, 0.35355338
      %v4236 = vmul.f32 %v4034, 0.35355338
      %v4237 = vmul.f32 %v4039, 0.35355338
      %v4238 = vmul.f32 %v4042, 0.35355338
      %v4239 = vmul.f32 %v4047, 0.35355338
      %v4240 = vmul.f32 %v4050, 0.35355338
      %v4241 = vpack.c.bf16 %v4234, %v4233
      %v4242 = vpack.c.bf16 %v4236, %v4235
      %v4243 = vpack.c.bf16 %v4238, %v4237
      %v4244 = vpack.c.bf16 %v4240, %v4239
      %v4245 = vpack.c.bf16 %v4116, %v4113
      %v4246 = vpack.c.bf16 %v4124, %v4121
      %v4247 = vpack.c.bf16 %v4132, %v4129
      %v4248 = vpack.c.bf16 %v4140, %v4137
      %v4250 = vsel %vm1098, %v4241, 0
      %v4253 = vsel %vm1098, %v4242, 0
      %v4256 = vsel %vm1098, %v4243, 0
      %v4259 = vsel %vm1098, %v4244, 0
      %v4262 = vsel %vm1098, %v4245, 0
      %v4265 = vsel %vm1098, %v4246, 0
      %v4268 = vsel %vm1098, %v4247, 0
      %v4271 = vsel %vm1098, %v4248, 0
      %4273 = vmatprep.subr.bf16.mxu0 0
      %4274 = vmatpush1.bf16.xpose.msra.mxu0 %v4262
      %4275 = vmatprep.subr.bf16.mxu0 0
      %4276 = vmatpush1.bf16.xpose.msra.mxu0 %v4265
      %4277 = vmatprep.subr.bf16.mxu0 0
      %4278 = vmatpush1.bf16.xpose.msra.mxu0 %v4268
      %4279 = vmatprep.subr.bf16.mxu0 0
      %4280 = vmatpush1.bf16.xpose.msra.mxu0 %v4271
      %4281 = vmatprep.subr.bf16.mxu0 0
      %4282 = vmatpush1.bf16.xpose.msra.mxu0 0
      %4283 = vmatprep.subr.bf16.mxu0 0
      %4284 = vmatpush1.bf16.xpose.msra.mxu0 0
      %4285 = vmatprep.subr.bf16.mxu0 0
      %4286 = vmatpush1.bf16.xpose.msra.mxu0 0
      %4287 = vmatprep.subr.bf16.mxu0 0
      %4288 = vmatpush1.bf16.xpose.msra.mxu0 0
      %4289 = vmatprep.subr.bf16.mxu0 0
      %4290 = vmatpush1.bf16.xpose.msra.mxu0 0
      %4291 = vmatprep.subr.bf16.mxu0 0
      %4292 = vmatpush1.bf16.xpose.msra.mxu0 0
      %4293 = vmatprep.subr.bf16.mxu0 0
      %4294 = vmatpush1.bf16.xpose.msra.mxu0 0
      %4295 = vmatprep.subr.bf16.mxu0 0
      %4296 = vmatpush1.bf16.xpose.msra.mxu0 0
      %4297 = vmatprep.subr.bf16.mxu0 0
      %4298 = vmatpush1.bf16.xpose.msra.mxu0 0
      %4299 = vmatprep.subr.bf16.mxu0 0
      %4300 = vmatpush1.bf16.xpose.msra.mxu0 0
      %4301 = vmatprep.subr.bf16.mxu0 0
      %4302 = vmatpush1.bf16.xpose.msra.mxu0 0
      %4303 = vmatprep.subr.bf16.mxu0 0
      %4304 = vmatpush1.bf16.xpose.msra.mxu0 0
      %4305 = vmatprep.mubr.bf16.mxu0 0
      %4306 = vmatmul.mubr.bf16.gmra.mrb[0].mxu0 %v4250
      %v4307 = vpop.f32.mrb[0].mxu0
      %v4308 = vadd.f32 0.0, %v4307
      %v4309 = vpop.f32.mrb[0].mxu0
      %v4310 = vpop.f32.mrb[0].mxu0
      %v4311 = vadd.f32 0.0, %v4310
      %v4312 = vpop.f32.mrb[0].mxu0
      %4313 = vmatprep.mubr.bf16.mxu0 0
      %4314 = vmatmul.mubr.bf16.gmra.mrb[0].mxu0 %v4253
      %v4315 = vpop.f32.mrb[0].mxu0
      %v4316 = vadd.f32 0.0, %v4315
      %v4317 = vpop.f32.mrb[0].mxu0
      %v4318 = vpop.f32.mrb[0].mxu0
      %v4319 = vadd.f32 0.0, %v4318
      %v4320 = vpop.f32.mrb[0].mxu0
      %4321 = vmatprep.mubr.bf16.mxu0 0
      %4322 = vmatmul.mubr.bf16.gmra.mrb[0].mxu0 %v4256
      %v4323 = vpop.f32.mrb[0].mxu0
      %v4324 = vadd.f32 0.0, %v4323
      %v4325 = vpop.f32.mrb[0].mxu0
      %v4326 = vpop.f32.mrb[0].mxu0
      %v4327 = vadd.f32 0.0, %v4326
      %v4328 = vpop.f32.mrb[0].mxu0
      %4329 = vmatprep.mubr.bf16.mxu0 0
      %4330 = vmatmul.mubr.bf16.gmra.mrb[0].mxu0 %v4259
      %v4331 = vpop.f32.mrb[0].mxu0
      %v4332 = vadd.f32 0.0, %v4331
      %v4333 = vpop.f32.mrb[0].mxu0
      %v4334 = vpop.f32.mrb[0].mxu0
      %v4335 = vadd.f32 0.0, %v4334
      %v4336 = vpop.f32.mrb[0].mxu0
      %4337 = vdwg.mxu0
      %v4338 = vsel %vm1188, %v4308, -inf
      %4339 = vmax.xlane.f32.xlu0 %v4338
      %v4340 = vpop.xlane.xlu0 %4339
      %v4341 = vsel %vm1188, %v4311, -inf
      %4342 = vmax.xlane.f32.xlu0 %v4341
      %v4343 = vpop.xlane.xlu0 %4342
      %v4344 = vsel %vm1188, %v4316, -inf
      %4345 = vmax.xlane.f32.xlu0 %v4344
      %v4346 = vpop.xlane.xlu0 %4345
      %v4347 = vsel %vm1188, %v4319, -inf
      %4348 = vmax.xlane.f32.xlu0 %v4347
      %v4349 = vpop.xlane.xlu0 %4348
      %v4350 = vsel %vm1188, %v4324, -inf
      %4351 = vmax.xlane.f32.xlu0 %v4350
      %v4352 = vpop.xlane.xlu0 %4351
      %v4353 = vsel %vm1188, %v4327, -inf
      %4354 = vmax.xlane.f32.xlu0 %v4353
      %v4355 = vpop.xlane.xlu0 %4354
      %v4356 = vsel %vm1188, %v4332, -inf
      %4357 = vmax.xlane.f32.xlu0 %v4356
      %v4358 = vpop.xlane.xlu0 %4357
      %v4359 = vsel %vm1188, %v4335, -inf
      %4360 = vmax.xlane.f32.xlu0 %v4359
      %v4361 = vpop.xlane.xlu0 %4360
      %v4362 = vsub.f32 %v4308, %v4340
      %v4363 = vsub.f32 %v4311, %v4343
      %v4364 = vsub.f32 %v4316, %v4346
      %v4365 = vsub.f32 %v4319, %v4349
      %v4366 = vsub.f32 %v4324, %v4352
      %v4367 = vsub.f32 %v4327, %v4355
      %v4368 = vsub.f32 %v4332, %v4358
      %v4369 = vsub.f32 %v4335, %v4361
      %v4370 = vmul.f32 %v4362, 1.442695
      %v4371 = vpow.pop %v4370
      %v4372 = vmul.f32 %v4363, 1.442695
      %v4373 = vpow.pop %v4372
      %v4374 = vmul.f32 %v4364, 1.442695
      %v4375 = vpow.pop %v4374
      %v4376 = vmul.f32 %v4365, 1.442695
      %v4377 = vpow.pop %v4376
      %v4378 = vmul.f32 %v4366, 1.442695
      %v4379 = vpow.pop %v4378
      %v4380 = vmul.f32 %v4367, 1.442695
      %v4381 = vpow.pop %v4380
      %v4382 = vmul.f32 %v4368, 1.442695
      %v4383 = vpow.pop %v4382
      %v4384 = vmul.f32 %v4369, 1.442695
      %v4385 = vpow.pop %v4384
      %v4386 = vsel %vm1188, %v4371, 0.0
      %4387 = vadd.xlane.f32.xlu0 %v4386
      %v4388 = vpop.xlane.xlu0 %4387
      %v4389 = vsel %vm1188, %v4373, 0.0
      %4390 = vadd.xlane.f32.xlu0 %v4389
      %v4391 = vpop.xlane.xlu0 %4390
      %v4392 = vsel %vm1188, %v4375, 0.0
      %4393 = vadd.xlane.f32.xlu0 %v4392
      %v4394 = vpop.xlane.xlu0 %4393
      %v4395 = vsel %vm1188, %v4377, 0.0
      %4396 = vadd.xlane.f32.xlu0 %v4395
      %v4397 = vpop.xlane.xlu0 %4396
      %v4398 = vsel %vm1188, %v4379, 0.0
      %4399 = vadd.xlane.f32.xlu0 %v4398
      %v4400 = vpop.xlane.xlu0 %4399
      %v4401 = vsel %vm1188, %v4381, 0.0
      %4402 = vadd.xlane.f32.xlu0 %v4401
      %v4403 = vpop.xlane.xlu0 %4402
      %v4404 = vsel %vm1188, %v4383, 0.0
      %4405 = vadd.xlane.f32.xlu0 %v4404
      %v4406 = vpop.xlane.xlu0 %4405
      %v4407 = vsel %vm1188, %v4385, 0.0
      %4408 = vadd.xlane.f32.xlu0 %v4407
      %v4409 = vpop.xlane.xlu0 %4408
      %v4410 = vrcp.pop %v4388
      %v4411 = vrcp.pop %v4391
      %v4412 = vrcp.pop %v4394
      %v4413 = vrcp.pop %v4397
      %v4414 = vrcp.pop %v4400
      %v4415 = vrcp.pop %v4403
      %v4416 = vrcp.pop %v4406
      %v4417 = vrcp.pop %v4409
      %v4418 = vmul.f32 %v4371, %v4410
      %v4419 = vmul.f32 %v4373, %v4411
      %v4420 = vmul.f32 %v4375, %v4412
      %v4421 = vmul.f32 %v4377, %v4413
      %v4422 = vmul.f32 %v4379, %v4414
      %v4423 = vmul.f32 %v4381, %v4415
      %v4424 = vmul.f32 %v4383, %v4416
      %v4425 = vmul.f32 %v4385, %v4417
      %v4426 = vpack.c.bf16 %v4419, %v4418
      %v4427 = vpack.c.bf16 %v4421, %v4420
      %v4428 = vpack.c.bf16 %v4423, %v4422
      %v4429 = vpack.c.bf16 %v4425, %v4424
      %v4430 = vpack.c.bf16 %v4206, %v4203
      %v4431 = vpack.c.bf16 %v4214, %v4211
      %v4432 = vpack.c.bf16 %v4222, %v4219
      %v4433 = vpack.c.bf16 %v4230, %v4227
      %v4435 = vsel %vm1188, %v4426, 0
      %v4438 = vsel %vm1188, %v4427, 0
      %v4441 = vsel %vm1188, %v4428, 0
      %v4444 = vsel %vm1188, %v4429, 0
      %4446 = vmatprep.subr.bf16.mxu0 0
      %4447 = vmatpush1.bf16.msra.mxu0 %v4430
      %4448 = vmatprep.subr.bf16.mxu0 0
      %4449 = vmatpush1.bf16.msra.mxu0 %v4431
      %4450 = vmatprep.subr.bf16.mxu0 0
      %4451 = vmatpush1.bf16.msra.mxu0 %v4432
      %4452 = vmatprep.subr.bf16.mxu0 0
      %4453 = vmatpush1.bf16.msra.mxu0 %v4433
      %4454 = vmatprep.subr.bf16.mxu0 0
      %4455 = vmatpush1.bf16.msra.mxu0 0
      %4456 = vmatprep.subr.bf16.mxu0 0
      %4457 = vmatpush1.bf16.msra.mxu0 0
      %4458 = vmatprep.subr.bf16.mxu0 0
      %4459 = vmatpush1.bf16.msra.mxu0 0
      %4460 = vmatprep.subr.bf16.mxu0 0
      %4461 = vmatpush1.bf16.msra.mxu0 0
      %4462 = vmatprep.subr.bf16.mxu0 0
      %4463 = vmatpush1.bf16.msra.mxu0 0
      %4464 = vmatprep.subr.bf16.mxu0 0
      %4465 = vmatpush1.bf16.msra.mxu0 0
      %4466 = vmatprep.subr.bf16.mxu0 0
      %4467 = vmatpush1.bf16.msra.mxu0 0
      %4468 = vmatprep.subr.bf16.mxu0 0
      %4469 = vmatpush1.bf16.msra.mxu0 0
      %4470 = vmatprep.subr.bf16.mxu0 0
      %4471 = vmatpush1.bf16.msra.mxu0 0
      %4472 = vmatprep.subr.bf16.mxu0 0
      %4473 = vmatpush1.bf16.msra.mxu0 0
      %4474 = vmatprep.subr.bf16.mxu0 0
      %4475 = vmatpush1.bf16.msra.mxu0 0
      %4476 = vmatprep.subr.bf16.mxu0 0
      %4477 = vmatpush1.bf16.msra.mxu0 0
      %4478 = vmatprep.mubr.bf16.mxu0 0
      %4479 = vmatmul.mubr.bf16.gmra.mrb[0].mxu0 %v4435
      %v4480 = vpop.f32.mrb[0].mxu0
      %v4481 = vadd.f32 0.0, %v4480
      %v4482 = vpop.f32.mrb[0].mxu0
      %v4483 = vpop.f32.mrb[0].mxu0
      %v4484 = vadd.f32 0.0, %v4483
      %v4485 = vpop.f32.mrb[0].mxu0
      %4486 = vmatprep.mubr.bf16.mxu0 0
      %4487 = vmatmul.mubr.bf16.gmra.mrb[0].mxu0 %v4438
      %v4488 = vpop.f32.mrb[0].mxu0
      %v4489 = vadd.f32 0.0, %v4488
      %v4490 = vpop.f32.mrb[0].mxu0
      %v4491 = vpop.f32.mrb[0].mxu0
      %v4492 = vadd.f32 0.0, %v4491
      %v4493 = vpop.f32.mrb[0].mxu0
      %4494 = vmatprep.mubr.bf16.mxu0 0
      %4495 = vmatmul.mubr.bf16.gmra.mrb[0].mxu0 %v4441
      %v4496 = vpop.f32.mrb[0].mxu0
      %v4497 = vadd.f32 0.0, %v4496
      %v4498 = vpop.f32.mrb[0].mxu0
      %v4499 = vpop.f32.mrb[0].mxu0
      %v4500 = vadd.f32 0.0, %v4499
      %v4501 = vpop.f32.mrb[0].mxu0
      %4502 = vmatprep.mubr.bf16.mxu0 0
      %4503 = vmatmul.mubr.bf16.gmra.mrb[0].mxu0 %v4444
      %v4504 = vpop.f32.mrb[0].mxu0
      %v4505 = vadd.f32 0.0, %v4504
      %v4506 = vpop.f32.mrb[0].mxu0
      %v4507 = vpop.f32.mrb[0].mxu0
      %v4508 = vadd.f32 0.0, %v4507
      %v4509 = vpop.f32.mrb[0].mxu0
      %4510 = vdwg.mxu0
      %v4511 = vpack.c.bf16 %v4484, %v4481
      %v4512 = vpack.c.bf16 %v4492, %v4489
      %v4513 = vpack.c.bf16 %v4500, %v4497
      %v4514 = vpack.c.bf16 %v4508, %v4505
      %s4515 = scalar_lea.vmem %s9, 16
      %v4516 = vld [vmem:[%s4515] sm:$0xf]
      %s4517 = scalar_lea.vmem %s3, 80
      %v4518 = vld [vmem:[%s4517] sm:$0xf]
      %v4519 = vld [vmem:[%s4517 + $0x4] sm:$0xf]
      %v4520 = vld [vmem:[%s4517 + $0x8] sm:$0xf]
      %v4521 = vld [vmem:[%s4517 + $0xc] sm:$0xf]
      %s4522 = scalar_lea.vmem %s4, 5
      %v4523 = vld [vmem:[%s4522] sm:$0x1]
      %v4525 = vlaneseq
      %v4526 = vshrl.u32 %v4525, 7
      %v4527 = vsub.s32 0, %v4526
      %v4528 = vrot.slane %v4523, %v4527
      %v4534 = vunpack.c.l.b16 %v4518
      %v4535 = vunpack.c.l.b16 %v4519
      %v4536 = vunpack.c.l.b16 %v4520
      %v4537 = vunpack.c.l.b16 %v4521
      %v4538 = vpack.c.b16 %v4535, %v4534
      %v4539 = vpack.c.b16 %v4537, %v4536
      %4542 = vmatprep.subr.bf16.mxu0 0
      %4543 = vmatpush1.bf16.msra.mxu0 %v4538
      %4544 = vmatprep.subr.bf16.mxu0 0
      %4545 = vmatpush1.bf16.msra.mxu0 %v4539
      %4546 = vmatprep.subr.bf16.mxu0 0
      %4547 = vmatpush1.bf16.msra.mxu0 0
      %4548 = vmatprep.subr.bf16.mxu0 0
      %4549 = vmatpush1.bf16.msra.mxu0 0
      %4550 = vmatprep.subr.bf16.mxu0 0
      %4551 = vmatpush1.bf16.msra.mxu0 0
      %4552 = vmatprep.subr.bf16.mxu0 0
      %4553 = vmatpush1.bf16.msra.mxu0 0
      %4554 = vmatprep.subr.bf16.mxu0 0
      %4555 = vmatpush1.bf16.msra.mxu0 0
      %4556 = vmatprep.subr.bf16.mxu0 0
      %4557 = vmatpush1.bf16.msra.mxu0 0
      %4558 = vmatprep.subr.bf16.mxu0 0
      %4559 = vmatpush1.bf16.msra.mxu0 0
      %4560 = vmatprep.subr.bf16.mxu0 0
      %4561 = vmatpush1.bf16.msra.mxu0 0
      %4562 = vmatprep.subr.bf16.mxu0 0
      %4563 = vmatpush1.bf16.msra.mxu0 0
      %4564 = vmatprep.subr.bf16.mxu0 0
      %4565 = vmatpush1.bf16.msra.mxu0 0
      %4566 = vmatprep.subr.bf16.mxu0 0
      %4567 = vmatpush1.bf16.msra.mxu0 0
      %4568 = vmatprep.subr.bf16.mxu0 0
      %4569 = vmatpush1.bf16.msra.mxu0 0
      %4570 = vmatprep.subr.bf16.mxu0 0
      %4571 = vmatpush1.bf16.msra.mxu0 0
      %4572 = vmatprep.subr.bf16.mxu0 0
      %4573 = vmatpush1.bf16.msra.mxu0 0
      %4574 = vmatprep.mubr.bf16.mxu0 0
      %4575 = vmatmul.mubr.bf16.gmra.mrb[0].mxu0 %v3977
      %v4576 = vpop.f32.mrb[0].mxu0
      %v4577 = vadd.f32 %v4528, %v4576
      %v4578 = vpop.f32.mrb[0].mxu0
      %v4579 = vpop.f32.mrb[0].mxu0
      %v4580 = vadd.f32 %v4528, %v4579
      %v4581 = vpop.f32.mrb[0].mxu0
      %4582 = vmatprep.mubr.bf16.mxu0 0
      %4583 = vmatmul.mubr.bf16.gmra.mrb[0].mxu0 %v3980
      %v4584 = vpop.f32.mrb[0].mxu0
      %v4585 = vadd.f32 %v4528, %v4584
      %v4586 = vpop.f32.mrb[0].mxu0
      %v4587 = vpop.f32.mrb[0].mxu0
      %v4588 = vadd.f32 %v4528, %v4587
      %v4589 = vpop.f32.mrb[0].mxu0
      %4590 = vmatprep.mubr.bf16.mxu0 0
      %4591 = vmatmul.mubr.bf16.gmra.mrb[0].mxu0 %v3983
      %v4592 = vpop.f32.mrb[0].mxu0
      %v4593 = vadd.f32 %v4528, %v4592
      %v4594 = vpop.f32.mrb[0].mxu0
      %v4595 = vpop.f32.mrb[0].mxu0
      %v4596 = vadd.f32 %v4528, %v4595
      %v4597 = vpop.f32.mrb[0].mxu0
      %4598 = vmatprep.mubr.bf16.mxu0 0
      %4599 = vmatmul.mubr.bf16.gmra.mrb[0].mxu0 %v3986
      %v4600 = vpop.f32.mrb[0].mxu0
      %v4601 = vadd.f32 %v4528, %v4600
      %v4602 = vpop.f32.mrb[0].mxu0
      %v4603 = vpop.f32.mrb[0].mxu0
      %v4604 = vadd.f32 %v4528, %v4603
      %v4605 = vpop.f32.mrb[0].mxu0
      %4606 = vdwg.mxu0
      %s4607 = scalar_lea.vmem %s5, 80
      %v4608 = vld [vmem:[%s4607] sm:$0xf]
      %v4609 = vld [vmem:[%s4607 + $0x4] sm:$0xf]
      %v4610 = vld [vmem:[%s4607 + $0x8] sm:$0xf]
      %v4611 = vld [vmem:[%s4607 + $0xc] sm:$0xf]
      %s4612 = scalar_lea.vmem %s6, 5
      %v4613 = vld [vmem:[%s4612] sm:$0x1]
      %v4615 = vlaneseq
      %v4616 = vshrl.u32 %v4615, 7
      %v4617 = vsub.s32 0, %v4616
      %v4618 = vrot.slane %v4613, %v4617
      %v4624 = vunpack.c.l.b16 %v4608
      %v4625 = vunpack.c.l.b16 %v4609
      %v4626 = vunpack.c.l.b16 %v4610
      %v4627 = vunpack.c.l.b16 %v4611
      %v4628 = vpack.c.b16 %v4625, %v4624
      %v4629 = vpack.c.b16 %v4627, %v4626
      %4632 = vmatprep.subr.bf16.mxu0 0
      %4633 = vmatpush1.bf16.msra.mxu0 %v4628
      %4634 = vmatprep.subr.bf16.mxu0 0
      %4635 = vmatpush1.bf16.msra.mxu0 %v4629
      %4636 = vmatprep.subr.bf16.mxu0 0
      %4637 = vmatpush1.bf16.msra.mxu0 0
      %4638 = vmatprep.subr.bf16.mxu0 0
      %4639 = vmatpush1.bf16.msra.mxu0 0
      %4640 = vmatprep.subr.bf16.mxu0 0
      %4641 = vmatpush1.bf16.msra.mxu0 0
      %4642 = vmatprep.subr.bf16.mxu0 0
      %4643 = vmatpush1.bf16.msra.mxu0 0
      %4644 = vmatprep.subr.bf16.mxu0 0
      %4645 = vmatpush1.bf16.msra.mxu0 0
      %4646 = vmatprep.subr.bf16.mxu0 0
      %4647 = vmatpush1.bf16.msra.mxu0 0
      %4648 = vmatprep.subr.bf16.mxu0 0
      %4649 = vmatpush1.bf16.msra.mxu0 0
      %4650 = vmatprep.subr.bf16.mxu0 0
      %4651 = vmatpush1.bf16.msra.mxu0 0
      %4652 = vmatprep.subr.bf16.mxu0 0
      %4653 = vmatpush1.bf16.msra.mxu0 0
      %4654 = vmatprep.subr.bf16.mxu0 0
      %4655 = vmatpush1.bf16.msra.mxu0 0
      %4656 = vmatprep.subr.bf16.mxu0 0
      %4657 = vmatpush1.bf16.msra.mxu0 0
      %4658 = vmatprep.subr.bf16.mxu0 0
      %4659 = vmatpush1.bf16.msra.mxu0 0
      %4660 = vmatprep.subr.bf16.mxu0 0
      %4661 = vmatpush1.bf16.msra.mxu0 0
      %4662 = vmatprep.subr.bf16.mxu0 0
      %4663 = vmatpush1.bf16.msra.mxu0 0
      %4664 = vmatprep.mubr.bf16.mxu0 0
      %4665 = vmatmul.mubr.bf16.gmra.mrb[0].mxu0 %v3977
      %v4666 = vpop.f32.mrb[0].mxu0
      %v4667 = vadd.f32 %v4618, %v4666
      %v4668 = vpop.f32.mrb[0].mxu0
      %v4669 = vpop.f32.mrb[0].mxu0
      %v4670 = vadd.f32 %v4618, %v4669
      %v4671 = vpop.f32.mrb[0].mxu0
      %4672 = vmatprep.mubr.bf16.mxu0 0
      %4673 = vmatmul.mubr.bf16.gmra.mrb[0].mxu0 %v3980
      %v4674 = vpop.f32.mrb[0].mxu0
      %v4675 = vadd.f32 %v4618, %v4674
      %v4676 = vpop.f32.mrb[0].mxu0
      %v4677 = vpop.f32.mrb[0].mxu0
      %v4678 = vadd.f32 %v4618, %v4677
      %v4679 = vpop.f32.mrb[0].mxu0
      %4680 = vmatprep.mubr.bf16.mxu0 0
      %4681 = vmatmul.mubr.bf16.gmra.mrb[0].mxu0 %v3983
      %v4682 = vpop.f32.mrb[0].mxu0
      %v4683 = vadd.f32 %v4618, %v4682
      %v4684 = vpop.f32.mrb[0].mxu0
      %v4685 = vpop.f32.mrb[0].mxu0
      %v4686 = vadd.f32 %v4618, %v4685
      %v4687 = vpop.f32.mrb[0].mxu0
      %4688 = vmatprep.mubr.bf16.mxu0 0
      %4689 = vmatmul.mubr.bf16.gmra.mrb[0].mxu0 %v3986
      %v4690 = vpop.f32.mrb[0].mxu0
      %v4691 = vadd.f32 %v4618, %v4690
      %v4692 = vpop.f32.mrb[0].mxu0
      %v4693 = vpop.f32.mrb[0].mxu0
      %v4694 = vadd.f32 %v4618, %v4693
      %v4695 = vpop.f32.mrb[0].mxu0
      %4696 = vdwg.mxu0
      %s4697 = scalar_lea.vmem %s7, 80
      %v4698 = vld [vmem:[%s4697] sm:$0xf]
      %v4699 = vld [vmem:[%s4697 + $0x4] sm:$0xf]
      %v4700 = vld [vmem:[%s4697 + $0x8] sm:$0xf]
      %v4701 = vld [vmem:[%s4697 + $0xc] sm:$0xf]
      %s4702 = scalar_lea.vmem %s8, 5
      %v4703 = vld [vmem:[%s4702] sm:$0x1]
      %v4705 = vlaneseq
      %v4706 = vshrl.u32 %v4705, 7
      %v4707 = vsub.s32 0, %v4706
      %v4708 = vrot.slane %v4703, %v4707
      %v4714 = vunpack.c.l.b16 %v4698
      %v4715 = vunpack.c.l.b16 %v4699
      %v4716 = vunpack.c.l.b16 %v4700
      %v4717 = vunpack.c.l.b16 %v4701
      %v4718 = vpack.c.b16 %v4715, %v4714
      %v4719 = vpack.c.b16 %v4717, %v4716
      %4722 = vmatprep.subr.bf16.mxu0 0
      %4723 = vmatpush1.bf16.msra.mxu0 %v4718
      %4724 = vmatprep.subr.bf16.mxu0 0
      %4725 = vmatpush1.bf16.msra.mxu0 %v4719
      %4726 = vmatprep.subr.bf16.mxu0 0
      %4727 = vmatpush1.bf16.msra.mxu0 0
      %4728 = vmatprep.subr.bf16.mxu0 0
      %4729 = vmatpush1.bf16.msra.mxu0 0
      %4730 = vmatprep.subr.bf16.mxu0 0
      %4731 = vmatpush1.bf16.msra.mxu0 0
      %4732 = vmatprep.subr.bf16.mxu0 0
      %4733 = vmatpush1.bf16.msra.mxu0 0
      %4734 = vmatprep.subr.bf16.mxu0 0
      %4735 = vmatpush1.bf16.msra.mxu0 0
      %4736 = vmatprep.subr.bf16.mxu0 0
      %4737 = vmatpush1.bf16.msra.mxu0 0
      %4738 = vmatprep.subr.bf16.mxu0 0
      %4739 = vmatpush1.bf16.msra.mxu0 0
      %4740 = vmatprep.subr.bf16.mxu0 0
      %4741 = vmatpush1.bf16.msra.mxu0 0
      %4742 = vmatprep.subr.bf16.mxu0 0
      %4743 = vmatpush1.bf16.msra.mxu0 0
      %4744 = vmatprep.subr.bf16.mxu0 0
      %4745 = vmatpush1.bf16.msra.mxu0 0
      %4746 = vmatprep.subr.bf16.mxu0 0
      %4747 = vmatpush1.bf16.msra.mxu0 0
      %4748 = vmatprep.subr.bf16.mxu0 0
      %4749 = vmatpush1.bf16.msra.mxu0 0
      %4750 = vmatprep.subr.bf16.mxu0 0
      %4751 = vmatpush1.bf16.msra.mxu0 0
      %4752 = vmatprep.subr.bf16.mxu0 0
      %4753 = vmatpush1.bf16.msra.mxu0 0
      %4754 = vmatprep.mubr.bf16.mxu0 0
      %4755 = vmatmul.mubr.bf16.gmra.mrb[0].mxu0 %v3977
      %v4756 = vpop.f32.mrb[0].mxu0
      %v4757 = vadd.f32 %v4708, %v4756
      %v4758 = vpop.f32.mrb[0].mxu0
      %v4759 = vpop.f32.mrb[0].mxu0
      %v4760 = vadd.f32 %v4708, %v4759
      %v4761 = vpop.f32.mrb[0].mxu0
      %4762 = vmatprep.mubr.bf16.mxu0 0
      %4763 = vmatmul.mubr.bf16.gmra.mrb[0].mxu0 %v3980
      %v4764 = vpop.f32.mrb[0].mxu0
      %v4765 = vadd.f32 %v4708, %v4764
      %v4766 = vpop.f32.mrb[0].mxu0
      %v4767 = vpop.f32.mrb[0].mxu0
      %v4768 = vadd.f32 %v4708, %v4767
      %v4769 = vpop.f32.mrb[0].mxu0
      %4770 = vmatprep.mubr.bf16.mxu0 0
      %4771 = vmatmul.mubr.bf16.gmra.mrb[0].mxu0 %v3983
      %v4772 = vpop.f32.mrb[0].mxu0
      %v4773 = vadd.f32 %v4708, %v4772
      %v4774 = vpop.f32.mrb[0].mxu0
      %v4775 = vpop.f32.mrb[0].mxu0
      %v4776 = vadd.f32 %v4708, %v4775
      %v4777 = vpop.f32.mrb[0].mxu0
      %4778 = vmatprep.mubr.bf16.mxu0 0
      %4779 = vmatmul.mubr.bf16.gmra.mrb[0].mxu0 %v3986
      %v4780 = vpop.f32.mrb[0].mxu0
      %v4781 = vadd.f32 %v4708, %v4780
      %v4782 = vpop.f32.mrb[0].mxu0
      %v4783 = vpop.f32.mrb[0].mxu0
      %v4784 = vadd.f32 %v4708, %v4783
      %v4785 = vpop.f32.mrb[0].mxu0
      %4786 = vdwg.mxu0
      %v4787 = vmul.f32 %v4577, 0.35355338
      %v4788 = vmul.f32 %v4580, 0.35355338
      %v4789 = vmul.f32 %v4585, 0.35355338
      %v4790 = vmul.f32 %v4588, 0.35355338
      %v4791 = vmul.f32 %v4593, 0.35355338
      %v4792 = vmul.f32 %v4596, 0.35355338
      %v4793 = vmul.f32 %v4601, 0.35355338
      %v4794 = vmul.f32 %v4604, 0.35355338
      %v4795 = vpack.c.bf16 %v4788, %v4787
      %v4796 = vpack.c.bf16 %v4790, %v4789
      %v4797 = vpack.c.bf16 %v4792, %v4791
      %v4798 = vpack.c.bf16 %v4794, %v4793
      %v4799 = vpack.c.bf16 %v4670, %v4667
      %v4800 = vpack.c.bf16 %v4678, %v4675
      %v4801 = vpack.c.bf16 %v4686, %v4683
      %v4802 = vpack.c.bf16 %v4694, %v4691
      %v4804 = vsel %vm1098, %v4795, 0
      %v4807 = vsel %vm1098, %v4796, 0
      %v4810 = vsel %vm1098, %v4797, 0
      %v4813 = vsel %vm1098, %v4798, 0
      %v4816 = vsel %vm1098, %v4799, 0
      %v4819 = vsel %vm1098, %v4800, 0
      %v4822 = vsel %vm1098, %v4801, 0
      %v4825 = vsel %vm1098, %v4802, 0
      %4827 = vmatprep.subr.bf16.mxu0 0
      %4828 = vmatpush1.bf16.xpose.msra.mxu0 %v4816
      %4829 = vmatprep.subr.bf16.mxu0 0
      %4830 = vmatpush1.bf16.xpose.msra.mxu0 %v4819
      %4831 = vmatprep.subr.bf16.mxu0 0
      %4832 = vmatpush1.bf16.xpose.msra.mxu0 %v4822
      %4833 = vmatprep.subr.bf16.mxu0 0
      %4834 = vmatpush1.bf16.xpose.msra.mxu0 %v4825
      %4835 = vmatprep.subr.bf16.mxu0 0
      %4836 = vmatpush1.bf16.xpose.msra.mxu0 0
      %4837 = vmatprep.subr.bf16.mxu0 0
      %4838 = vmatpush1.bf16.xpose.msra.mxu0 0
      %4839 = vmatprep.subr.bf16.mxu0 0
      %4840 = vmatpush1.bf16.xpose.msra.mxu0 0
      %4841 = vmatprep.subr.bf16.mxu0 0
      %4842 = vmatpush1.bf16.xpose.msra.mxu0 0
      %4843 = vmatprep.subr.bf16.mxu0 0
      %4844 = vmatpush1.bf16.xpose.msra.mxu0 0
      %4845 = vmatprep.subr.bf16.mxu0 0
      %4846 = vmatpush1.bf16.xpose.msra.mxu0 0
      %4847 = vmatprep.subr.bf16.mxu0 0
      %4848 = vmatpush1.bf16.xpose.msra.mxu0 0
      %4849 = vmatprep.subr.bf16.mxu0 0
      %4850 = vmatpush1.bf16.xpose.msra.mxu0 0
      %4851 = vmatprep.subr.bf16.mxu0 0
      %4852 = vmatpush1.bf16.xpose.msra.mxu0 0
      %4853 = vmatprep.subr.bf16.mxu0 0
      %4854 = vmatpush1.bf16.xpose.msra.mxu0 0
      %4855 = vmatprep.subr.bf16.mxu0 0
      %4856 = vmatpush1.bf16.xpose.msra.mxu0 0
      %4857 = vmatprep.subr.bf16.mxu0 0
      %4858 = vmatpush1.bf16.xpose.msra.mxu0 0
      %4859 = vmatprep.mubr.bf16.mxu0 0
      %4860 = vmatmul.mubr.bf16.gmra.mrb[0].mxu0 %v4804
      %v4861 = vpop.f32.mrb[0].mxu0
      %v4862 = vadd.f32 0.0, %v4861
      %v4863 = vpop.f32.mrb[0].mxu0
      %v4864 = vpop.f32.mrb[0].mxu0
      %v4865 = vadd.f32 0.0, %v4864
      %v4866 = vpop.f32.mrb[0].mxu0
      %4867 = vmatprep.mubr.bf16.mxu0 0
      %4868 = vmatmul.mubr.bf16.gmra.mrb[0].mxu0 %v4807
      %v4869 = vpop.f32.mrb[0].mxu0
      %v4870 = vadd.f32 0.0, %v4869
      %v4871 = vpop.f32.mrb[0].mxu0
      %v4872 = vpop.f32.mrb[0].mxu0
      %v4873 = vadd.f32 0.0, %v4872
      %v4874 = vpop.f32.mrb[0].mxu0
      %4875 = vmatprep.mubr.bf16.mxu0 0
      %4876 = vmatmul.mubr.bf16.gmra.mrb[0].mxu0 %v4810
      %v4877 = vpop.f32.mrb[0].mxu0
      %v4878 = vadd.f32 0.0, %v4877
      %v4879 = vpop.f32.mrb[0].mxu0
      %v4880 = vpop.f32.mrb[0].mxu0
      %v4881 = vadd.f32 0.0, %v4880
      %v4882 = vpop.f32.mrb[0].mxu0
      %4883 = vmatprep.mubr.bf16.mxu0 0
      %4884 = vmatmul.mubr.bf16.gmra.mrb[0].mxu0 %v4813
      %v4885 = vpop.f32.mrb[0].mxu0
      %v4886 = vadd.f32 0.0, %v4885
      %v4887 = vpop.f32.mrb[0].mxu0
      %v4888 = vpop.f32.mrb[0].mxu0
      %v4889 = vadd.f32 0.0, %v4888
      %v4890 = vpop.f32.mrb[0].mxu0
      %4891 = vdwg.mxu0
      %v4892 = vsel %vm1188, %v4862, -inf
      %4893 = vmax.xlane.f32.xlu0 %v4892
      %v4894 = vpop.xlane.xlu0 %4893
      %v4895 = vsel %vm1188, %v4865, -inf
      %4896 = vmax.xlane.f32.xlu0 %v4895
      %v4897 = vpop.xlane.xlu0 %4896
      %v4898 = vsel %vm1188, %v4870, -inf
      %4899 = vmax.xlane.f32.xlu0 %v4898
      %v4900 = vpop.xlane.xlu0 %4899
      %v4901 = vsel %vm1188, %v4873, -inf
      %4902 = vmax.xlane.f32.xlu0 %v4901
      %v4903 = vpop.xlane.xlu0 %4902
      %v4904 = vsel %vm1188, %v4878, -inf
      %4905 = vmax.xlane.f32.xlu0 %v4904
      %v4906 = vpop.xlane.xlu0 %4905
      %v4907 = vsel %vm1188, %v4881, -inf
      %4908 = vmax.xlane.f32.xlu0 %v4907
      %v4909 = vpop.xlane.xlu0 %4908
      %v4910 = vsel %vm1188, %v4886, -inf
      %4911 = vmax.xlane.f32.xlu0 %v4910
      %v4912 = vpop.xlane.xlu0 %4911
      %v4913 = vsel %vm1188, %v4889, -inf
      %4914 = vmax.xlane.f32.xlu0 %v4913
      %v4915 = vpop.xlane.xlu0 %4914
      %v4916 = vsub.f32 %v4862, %v4894
      %v4917 = vsub.f32 %v4865, %v4897
      %v4918 = vsub.f32 %v4870, %v4900
      %v4919 = vsub.f32 %v4873, %v4903
      %v4920 = vsub.f32 %v4878, %v4906
      %v4921 = vsub.f32 %v4881, %v4909
      %v4922 = vsub.f32 %v4886, %v4912
      %v4923 = vsub.f32 %v4889, %v4915
      %v4924 = vmul.f32 %v4916, 1.442695
      %v4925 = vpow.pop %v4924
      %v4926 = vmul.f32 %v4917, 1.442695
      %v4927 = vpow.pop %v4926
      %v4928 = vmul.f32 %v4918, 1.442695
      %v4929 = vpow.pop %v4928
      %v4930 = vmul.f32 %v4919, 1.442695
      %v4931 = vpow.pop %v4930
      %v4932 = vmul.f32 %v4920, 1.442695
      %v4933 = vpow.pop %v4932
      %v4934 = vmul.f32 %v4921, 1.442695
      %v4935 = vpow.pop %v4934
      %v4936 = vmul.f32 %v4922, 1.442695
      %v4937 = vpow.pop %v4936
      %v4938 = vmul.f32 %v4923, 1.442695
      %v4939 = vpow.pop %v4938
      %v4940 = vsel %vm1188, %v4925, 0.0
      %4941 = vadd.xlane.f32.xlu0 %v4940
      %v4942 = vpop.xlane.xlu0 %4941
      %v4943 = vsel %vm1188, %v4927, 0.0
      %4944 = vadd.xlane.f32.xlu0 %v4943
      %v4945 = vpop.xlane.xlu0 %4944
      %v4946 = vsel %vm1188, %v4929, 0.0
      %4947 = vadd.xlane.f32.xlu0 %v4946
      %v4948 = vpop.xlane.xlu0 %4947
      %v4949 = vsel %vm1188, %v4931, 0.0
      %4950 = vadd.xlane.f32.xlu0 %v4949
      %v4951 = vpop.xlane.xlu0 %4950
      %v4952 = vsel %vm1188, %v4933, 0.0
      %4953 = vadd.xlane.f32.xlu0 %v4952
      %v4954 = vpop.xlane.xlu0 %4953
      %v4955 = vsel %vm1188, %v4935, 0.0
      %4956 = vadd.xlane.f32.xlu0 %v4955
      %v4957 = vpop.xlane.xlu0 %4956
      %v4958 = vsel %vm1188, %v4937, 0.0
      %4959 = vadd.xlane.f32.xlu0 %v4958
      %v4960 = vpop.xlane.xlu0 %4959
      %v4961 = vsel %vm1188, %v4939, 0.0
      %4962 = vadd.xlane.f32.xlu0 %v4961
      %v4963 = vpop.xlane.xlu0 %4962
      %v4964 = vrcp.pop %v4942
      %v4965 = vrcp.pop %v4945
      %v4966 = vrcp.pop %v4948
      %v4967 = vrcp.pop %v4951
      %v4968 = vrcp.pop %v4954
      %v4969 = vrcp.pop %v4957
      %v4970 = vrcp.pop %v4960
      %v4971 = vrcp.pop %v4963
      %v4972 = vmul.f32 %v4925, %v4964
      %v4973 = vmul.f32 %v4927, %v4965
      %v4974 = vmul.f32 %v4929, %v4966
      %v4975 = vmul.f32 %v4931, %v4967
      %v4976 = vmul.f32 %v4933, %v4968
      %v4977 = vmul.f32 %v4935, %v4969
      %v4978 = vmul.f32 %v4937, %v4970
      %v4979 = vmul.f32 %v4939, %v4971
      %v4980 = vpack.c.bf16 %v4973, %v4972
      %v4981 = vpack.c.bf16 %v4975, %v4974
      %v4982 = vpack.c.bf16 %v4977, %v4976
      %v4983 = vpack.c.bf16 %v4979, %v4978
      %v4984 = vpack.c.bf16 %v4760, %v4757
      %v4985 = vpack.c.bf16 %v4768, %v4765
      %v4986 = vpack.c.bf16 %v4776, %v4773
      %v4987 = vpack.c.bf16 %v4784, %v4781
      %v4989 = vsel %vm1188, %v4980, 0
      %v4992 = vsel %vm1188, %v4981, 0
      %v4995 = vsel %vm1188, %v4982, 0
      %v4998 = vsel %vm1188, %v4983, 0
      %5000 = vmatprep.subr.bf16.mxu0 0
      %5001 = vmatpush1.bf16.msra.mxu0 %v4984
      %5002 = vmatprep.subr.bf16.mxu0 0
      %5003 = vmatpush1.bf16.msra.mxu0 %v4985
      %5004 = vmatprep.subr.bf16.mxu0 0
      %5005 = vmatpush1.bf16.msra.mxu0 %v4986
      %5006 = vmatprep.subr.bf16.mxu0 0
      %5007 = vmatpush1.bf16.msra.mxu0 %v4987
      %5008 = vmatprep.subr.bf16.mxu0 0
      %5009 = vmatpush1.bf16.msra.mxu0 0
      %5010 = vmatprep.subr.bf16.mxu0 0
      %5011 = vmatpush1.bf16.msra.mxu0 0
      %5012 = vmatprep.subr.bf16.mxu0 0
      %5013 = vmatpush1.bf16.msra.mxu0 0
      %5014 = vmatprep.subr.bf16.mxu0 0
      %5015 = vmatpush1.bf16.msra.mxu0 0
      %5016 = vmatprep.subr.bf16.mxu0 0
      %5017 = vmatpush1.bf16.msra.mxu0 0
      %5018 = vmatprep.subr.bf16.mxu0 0
      %5019 = vmatpush1.bf16.msra.mxu0 0
      %5020 = vmatprep.subr.bf16.mxu0 0
      %5021 = vmatpush1.bf16.msra.mxu0 0
      %5022 = vmatprep.subr.bf16.mxu0 0
      %5023 = vmatpush1.bf16.msra.mxu0 0
      %5024 = vmatprep.subr.bf16.mxu0 0
      %5025 = vmatpush1.bf16.msra.mxu0 0
      %5026 = vmatprep.subr.bf16.mxu0 0
      %5027 = vmatpush1.bf16.msra.mxu0 0
      %5028 = vmatprep.subr.bf16.mxu0 0
      %5029 = vmatpush1.bf16.msra.mxu0 0
      %5030 = vmatprep.subr.bf16.mxu0 0
      %5031 = vmatpush1.bf16.msra.mxu0 0
      %5032 = vmatprep.mubr.bf16.mxu0 0
      %5033 = vmatmul.mubr.bf16.gmra.mrb[0].mxu0 %v4989
      %v5034 = vpop.f32.mrb[0].mxu0
      %v5035 = vadd.f32 0.0, %v5034
      %v5036 = vpop.f32.mrb[0].mxu0
      %v5037 = vpop.f32.mrb[0].mxu0
      %v5038 = vadd.f32 0.0, %v5037
      %v5039 = vpop.f32.mrb[0].mxu0
      %5040 = vmatprep.mubr.bf16.mxu0 0
      %5041 = vmatmul.mubr.bf16.gmra.mrb[0].mxu0 %v4992
      %v5042 = vpop.f32.mrb[0].mxu0
      %v5043 = vadd.f32 0.0, %v5042
      %v5044 = vpop.f32.mrb[0].mxu0
      %v5045 = vpop.f32.mrb[0].mxu0
      %v5046 = vadd.f32 0.0, %v5045
      %v5047 = vpop.f32.mrb[0].mxu0
      %5048 = vmatprep.mubr.bf16.mxu0 0
      %5049 = vmatmul.mubr.bf16.gmra.mrb[0].mxu0 %v4995
      %v5050 = vpop.f32.mrb[0].mxu0
      %v5051 = vadd.f32 0.0, %v5050
      %v5052 = vpop.f32.mrb[0].mxu0
      %v5053 = vpop.f32.mrb[0].mxu0
      %v5054 = vadd.f32 0.0, %v5053
      %v5055 = vpop.f32.mrb[0].mxu0
      %5056 = vmatprep.mubr.bf16.mxu0 0
      %5057 = vmatmul.mubr.bf16.gmra.mrb[0].mxu0 %v4998
      %v5058 = vpop.f32.mrb[0].mxu0
      %v5059 = vadd.f32 0.0, %v5058
      %v5060 = vpop.f32.mrb[0].mxu0
      %v5061 = vpop.f32.mrb[0].mxu0
      %v5062 = vadd.f32 0.0, %v5061
      %v5063 = vpop.f32.mrb[0].mxu0
      %5064 = vdwg.mxu0
      %v5065 = vpack.c.bf16 %v5038, %v5035
      %v5066 = vpack.c.bf16 %v5046, %v5043
      %v5067 = vpack.c.bf16 %v5054, %v5051
      %v5068 = vpack.c.bf16 %v5062, %v5059
      %s5069 = scalar_lea.vmem %s9, 20
      %v5070 = vld [vmem:[%s5069] sm:$0xf]
      %v5072 = vsel %vm1098, %v5065, 0
      %v5075 = vsel %vm1098, %v5066, 0
      %v5078 = vsel %vm1098, %v5067, 0
      %v5081 = vsel %vm1098, %v5068, 0
      %v5084 = vsel %vm1933, %v5070, 0
      %5086 = vmatprep.subr.bf16.mxu0 0
      %5087 = vmatpush1.bf16.msra.mxu0 %v5084
      %5088 = vmatprep.subr.bf16.mxu0 0
      %5089 = vmatpush1.bf16.msra.mxu0 0
      %5090 = vmatprep.subr.bf16.mxu0 0
      %5091 = vmatpush1.bf16.msra.mxu0 0
      %5092 = vmatprep.subr.bf16.mxu0 0
      %5093 = vmatpush1.bf16.msra.mxu0 0
      %5094 = vmatprep.subr.bf16.mxu0 0
      %5095 = vmatpush1.bf16.msra.mxu0 0
      %5096 = vmatprep.subr.bf16.mxu0 0
      %5097 = vmatpush1.bf16.msra.mxu0 0
      %5098 = vmatprep.subr.bf16.mxu0 0
      %5099 = vmatpush1.bf16.msra.mxu0 0
      %5100 = vmatprep.subr.bf16.mxu0 0
      %5101 = vmatpush1.bf16.msra.mxu0 0
      %5102 = vmatprep.subr.bf16.mxu0 0
      %5103 = vmatpush1.bf16.msra.mxu0 0
      %5104 = vmatprep.subr.bf16.mxu0 0
      %5105 = vmatpush1.bf16.msra.mxu0 0
      %5106 = vmatprep.subr.bf16.mxu0 0
      %5107 = vmatpush1.bf16.msra.mxu0 0
      %5108 = vmatprep.subr.bf16.mxu0 0
      %5109 = vmatpush1.bf16.msra.mxu0 0
      %5110 = vmatprep.subr.bf16.mxu0 0
      %5111 = vmatpush1.bf16.msra.mxu0 0
      %5112 = vmatprep.subr.bf16.mxu0 0
      %5113 = vmatpush1.bf16.msra.mxu0 0
      %5114 = vmatprep.subr.bf16.mxu0 0
      %5115 = vmatpush1.bf16.msra.mxu0 0
      %5116 = vmatprep.subr.bf16.mxu0 0
      %5117 = vmatpush1.bf16.msra.mxu0 0
      %5118 = vmatprep.mubr.bf16.mxu0 0
      %5119 = vmatmul.mubr.bf16.gmra.mrb[0].mxu0 %v5072
      %v5120 = vpop.f32.mrb[0].mxu0
      %v5121 = vadd.f32 0.0, %v5120
      %v5122 = vpop.f32.mrb[0].mxu0
      %v5123 = vpop.f32.mrb[0].mxu0
      %v5124 = vadd.f32 0.0, %v5123
      %v5125 = vpop.f32.mrb[0].mxu0
      %5126 = vmatprep.mubr.bf16.mxu0 0
      %5127 = vmatmul.mubr.bf16.gmra.mrb[0].mxu0 %v5075
      %v5128 = vpop.f32.mrb[0].mxu0
      %v5129 = vadd.f32 0.0, %v5128
      %v5130 = vpop.f32.mrb[0].mxu0
      %v5131 = vpop.f32.mrb[0].mxu0
      %v5132 = vadd.f32 0.0, %v5131
      %v5133 = vpop.f32.mrb[0].mxu0
      %5134 = vmatprep.mubr.bf16.mxu0 0
      %5135 = vmatmul.mubr.bf16.gmra.mrb[0].mxu0 %v5078
      %v5136 = vpop.f32.mrb[0].mxu0
      %v5137 = vadd.f32 0.0, %v5136
      %v5138 = vpop.f32.mrb[0].mxu0
      %v5139 = vpop.f32.mrb[0].mxu0
      %v5140 = vadd.f32 0.0, %v5139
      %v5141 = vpop.f32.mrb[0].mxu0
      %5142 = vmatprep.mubr.bf16.mxu0 0
      %5143 = vmatmul.mubr.bf16.gmra.mrb[0].mxu0 %v5081
      %v5144 = vpop.f32.mrb[0].mxu0
      %v5145 = vadd.f32 0.0, %v5144
      %v5146 = vpop.f32.mrb[0].mxu0
      %v5147 = vpop.f32.mrb[0].mxu0
      %v5148 = vadd.f32 0.0, %v5147
      %v5149 = vpop.f32.mrb[0].mxu0
      %5150 = vdwg.mxu0
      %v5152 = vsel %vm1098, %v4511, 0
      %v5155 = vsel %vm1098, %v4512, 0
      %v5158 = vsel %vm1098, %v4513, 0
      %v5161 = vsel %vm1098, %v4514, 0
      %v5164 = vsel %vm1933, %v4516, 0
      %5166 = vmatprep.subr.bf16.mxu0 0
      %5167 = vmatpush1.bf16.msra.mxu0 %v5164
      %5168 = vmatprep.subr.bf16.mxu0 0
      %5169 = vmatpush1.bf16.msra.mxu0 0
      %5170 = vmatprep.subr.bf16.mxu0 0
      %5171 = vmatpush1.bf16.msra.mxu0 0
      %5172 = vmatprep.subr.bf16.mxu0 0
      %5173 = vmatpush1.bf16.msra.mxu0 0
      %5174 = vmatprep.subr.bf16.mxu0 0
      %5175 = vmatpush1.bf16.msra.mxu0 0
      %5176 = vmatprep.subr.bf16.mxu0 0
      %5177 = vmatpush1.bf16.msra.mxu0 0
      %5178 = vmatprep.subr.bf16.mxu0 0
      %5179 = vmatpush1.bf16.msra.mxu0 0
      %5180 = vmatprep.subr.bf16.mxu0 0
      %5181 = vmatpush1.bf16.msra.mxu0 0
      %5182 = vmatprep.subr.bf16.mxu0 0
      %5183 = vmatpush1.bf16.msra.mxu0 0
      %5184 = vmatprep.subr.bf16.mxu0 0
      %5185 = vmatpush1.bf16.msra.mxu0 0
      %5186 = vmatprep.subr.bf16.mxu0 0
      %5187 = vmatpush1.bf16.msra.mxu0 0
      %5188 = vmatprep.subr.bf16.mxu0 0
      %5189 = vmatpush1.bf16.msra.mxu0 0
      %5190 = vmatprep.subr.bf16.mxu0 0
      %5191 = vmatpush1.bf16.msra.mxu0 0
      %5192 = vmatprep.subr.bf16.mxu0 0
      %5193 = vmatpush1.bf16.msra.mxu0 0
      %5194 = vmatprep.subr.bf16.mxu0 0
      %5195 = vmatpush1.bf16.msra.mxu0 0
      %5196 = vmatprep.subr.bf16.mxu0 0
      %5197 = vmatpush1.bf16.msra.mxu0 0
      %5198 = vmatprep.mubr.bf16.mxu0 0
      %5199 = vmatmul.mubr.bf16.gmra.mrb[0].mxu0 %v5152
      %v5200 = vpop.f32.mrb[0].mxu0
      %v5201 = vadd.f32 %v5121, %v5200
      %v5202 = vpop.f32.mrb[0].mxu0
      %v5203 = vpop.f32.mrb[0].mxu0
      %v5204 = vadd.f32 %v5124, %v5203
      %v5205 = vpop.f32.mrb[0].mxu0
      %5206 = vmatprep.mubr.bf16.mxu0 0
      %5207 = vmatmul.mubr.bf16.gmra.mrb[0].mxu0 %v5155
      %v5208 = vpop.f32.mrb[0].mxu0
      %v5209 = vadd.f32 %v5129, %v5208
      %v5210 = vpop.f32.mrb[0].mxu0
      %v5211 = vpop.f32.mrb[0].mxu0
      %v5212 = vadd.f32 %v5132, %v5211
      %v5213 = vpop.f32.mrb[0].mxu0
      %5214 = vmatprep.mubr.bf16.mxu0 0
      %5215 = vmatmul.mubr.bf16.gmra.mrb[0].mxu0 %v5158
      %v5216 = vpop.f32.mrb[0].mxu0
      %v5217 = vadd.f32 %v5137, %v5216
      %v5218 = vpop.f32.mrb[0].mxu0
      %v5219 = vpop.f32.mrb[0].mxu0
      %v5220 = vadd.f32 %v5140, %v5219
      %v5221 = vpop.f32.mrb[0].mxu0
      %5222 = vmatprep.mubr.bf16.mxu0 0
      %5223 = vmatmul.mubr.bf16.gmra.mrb[0].mxu0 %v5161
      %v5224 = vpop.f32.mrb[0].mxu0
      %v5225 = vadd.f32 %v5145, %v5224
      %v5226 = vpop.f32.mrb[0].mxu0
      %v5227 = vpop.f32.mrb[0].mxu0
      %v5228 = vadd.f32 %v5148, %v5227
      %v5229 = vpop.f32.mrb[0].mxu0
      %5230 = vdwg.mxu0
      %s5231 = scalar_lea.vmem %s3, 96
      %v5232 = vld [vmem:[%s5231] sm:$0xf]
      %v5233 = vld [vmem:[%s5231 + $0x4] sm:$0xf]
      %v5234 = vld [vmem:[%s5231 + $0x8] sm:$0xf]
      %v5235 = vld [vmem:[%s5231 + $0xc] sm:$0xf]
      %s5236 = scalar_lea.vmem %s4, 6
      %v5237 = vld [vmem:[%s5236] sm:$0x1]
      %v5239 = vlaneseq
      %v5240 = vshrl.u32 %v5239, 7
      %v5241 = vsub.s32 0, %v5240
      %v5242 = vrot.slane %v5237, %v5241
      %v5248 = vunpack.c.l.b16 %v5232
      %v5249 = vunpack.c.l.b16 %v5233
      %v5250 = vunpack.c.l.b16 %v5234
      %v5251 = vunpack.c.l.b16 %v5235
      %v5252 = vpack.c.b16 %v5249, %v5248
      %v5253 = vpack.c.b16 %v5251, %v5250
      %5256 = vmatprep.subr.bf16.mxu0 0
      %5257 = vmatpush1.bf16.msra.mxu0 %v5252
      %5258 = vmatprep.subr.bf16.mxu0 0
      %5259 = vmatpush1.bf16.msra.mxu0 %v5253
      %5260 = vmatprep.subr.bf16.mxu0 0
      %5261 = vmatpush1.bf16.msra.mxu0 0
      %5262 = vmatprep.subr.bf16.mxu0 0
      %5263 = vmatpush1.bf16.msra.mxu0 0
      %5264 = vmatprep.subr.bf16.mxu0 0
      %5265 = vmatpush1.bf16.msra.mxu0 0
      %5266 = vmatprep.subr.bf16.mxu0 0
      %5267 = vmatpush1.bf16.msra.mxu0 0
      %5268 = vmatprep.subr.bf16.mxu0 0
      %5269 = vmatpush1.bf16.msra.mxu0 0
      %5270 = vmatprep.subr.bf16.mxu0 0
      %5271 = vmatpush1.bf16.msra.mxu0 0
      %5272 = vmatprep.subr.bf16.mxu0 0
      %5273 = vmatpush1.bf16.msra.mxu0 0
      %5274 = vmatprep.subr.bf16.mxu0 0
      %5275 = vmatpush1.bf16.msra.mxu0 0
      %5276 = vmatprep.subr.bf16.mxu0 0
      %5277 = vmatpush1.bf16.msra.mxu0 0
      %5278 = vmatprep.subr.bf16.mxu0 0
      %5279 = vmatpush1.bf16.msra.mxu0 0
      %5280 = vmatprep.subr.bf16.mxu0 0
      %5281 = vmatpush1.bf16.msra.mxu0 0
      %5282 = vmatprep.subr.bf16.mxu0 0
      %5283 = vmatpush1.bf16.msra.mxu0 0
      %5284 = vmatprep.subr.bf16.mxu0 0
      %5285 = vmatpush1.bf16.msra.mxu0 0
      %5286 = vmatprep.subr.bf16.mxu0 0
      %5287 = vmatpush1.bf16.msra.mxu0 0
      %5288 = vmatprep.mubr.bf16.mxu0 0
      %5289 = vmatmul.mubr.bf16.gmra.mrb[0].mxu0 %v3977
      %v5290 = vpop.f32.mrb[0].mxu0
      %v5291 = vadd.f32 %v5242, %v5290
      %v5292 = vpop.f32.mrb[0].mxu0
      %v5293 = vpop.f32.mrb[0].mxu0
      %v5294 = vadd.f32 %v5242, %v5293
      %v5295 = vpop.f32.mrb[0].mxu0
      %5296 = vmatprep.mubr.bf16.mxu0 0
      %5297 = vmatmul.mubr.bf16.gmra.mrb[0].mxu0 %v3980
      %v5298 = vpop.f32.mrb[0].mxu0
      %v5299 = vadd.f32 %v5242, %v5298
      %v5300 = vpop.f32.mrb[0].mxu0
      %v5301 = vpop.f32.mrb[0].mxu0
      %v5302 = vadd.f32 %v5242, %v5301
      %v5303 = vpop.f32.mrb[0].mxu0
      %5304 = vmatprep.mubr.bf16.mxu0 0
      %5305 = vmatmul.mubr.bf16.gmra.mrb[0].mxu0 %v3983
      %v5306 = vpop.f32.mrb[0].mxu0
      %v5307 = vadd.f32 %v5242, %v5306
      %v5308 = vpop.f32.mrb[0].mxu0
      %v5309 = vpop.f32.mrb[0].mxu0
      %v5310 = vadd.f32 %v5242, %v5309
      %v5311 = vpop.f32.mrb[0].mxu0
      %5312 = vmatprep.mubr.bf16.mxu0 0
      %5313 = vmatmul.mubr.bf16.gmra.mrb[0].mxu0 %v3986
      %v5314 = vpop.f32.mrb[0].mxu0
      %v5315 = vadd.f32 %v5242, %v5314
      %v5316 = vpop.f32.mrb[0].mxu0
      %v5317 = vpop.f32.mrb[0].mxu0
      %v5318 = vadd.f32 %v5242, %v5317
      %v5319 = vpop.f32.mrb[0].mxu0
      %5320 = vdwg.mxu0
      %s5321 = scalar_lea.vmem %s5, 96
      %v5322 = vld [vmem:[%s5321] sm:$0xf]
      %v5323 = vld [vmem:[%s5321 + $0x4] sm:$0xf]
      %v5324 = vld [vmem:[%s5321 + $0x8] sm:$0xf]
      %v5325 = vld [vmem:[%s5321 + $0xc] sm:$0xf]
      %s5326 = scalar_lea.vmem %s6, 6
      %v5327 = vld [vmem:[%s5326] sm:$0x1]
      %v5329 = vlaneseq
      %v5330 = vshrl.u32 %v5329, 7
      %v5331 = vsub.s32 0, %v5330
      %v5332 = vrot.slane %v5327, %v5331
      %v5338 = vunpack.c.l.b16 %v5322
      %v5339 = vunpack.c.l.b16 %v5323
      %v5340 = vunpack.c.l.b16 %v5324
      %v5341 = vunpack.c.l.b16 %v5325
      %v5342 = vpack.c.b16 %v5339, %v5338
      %v5343 = vpack.c.b16 %v5341, %v5340
      %5346 = vmatprep.subr.bf16.mxu0 0
      %5347 = vmatpush1.bf16.msra.mxu0 %v5342
      %5348 = vmatprep.subr.bf16.mxu0 0
      %5349 = vmatpush1.bf16.msra.mxu0 %v5343
      %5350 = vmatprep.subr.bf16.mxu0 0
      %5351 = vmatpush1.bf16.msra.mxu0 0
      %5352 = vmatprep.subr.bf16.mxu0 0
      %5353 = vmatpush1.bf16.msra.mxu0 0
      %5354 = vmatprep.subr.bf16.mxu0 0
      %5355 = vmatpush1.bf16.msra.mxu0 0
      %5356 = vmatprep.subr.bf16.mxu0 0
      %5357 = vmatpush1.bf16.msra.mxu0 0
      %5358 = vmatprep.subr.bf16.mxu0 0
      %5359 = vmatpush1.bf16.msra.mxu0 0
      %5360 = vmatprep.subr.bf16.mxu0 0
      %5361 = vmatpush1.bf16.msra.mxu0 0
      %5362 = vmatprep.subr.bf16.mxu0 0
      %5363 = vmatpush1.bf16.msra.mxu0 0
      %5364 = vmatprep.subr.bf16.mxu0 0
      %5365 = vmatpush1.bf16.msra.mxu0 0
      %5366 = vmatprep.subr.bf16.mxu0 0
      %5367 = vmatpush1.bf16.msra.mxu0 0
      %5368 = vmatprep.subr.bf16.mxu0 0
      %5369 = vmatpush1.bf16.msra.mxu0 0
      %5370 = vmatprep.subr.bf16.mxu0 0
      %5371 = vmatpush1.bf16.msra.mxu0 0
      %5372 = vmatprep.subr.bf16.mxu0 0
      %5373 = vmatpush1.bf16.msra.mxu0 0
      %5374 = vmatprep.subr.bf16.mxu0 0
      %5375 = vmatpush1.bf16.msra.mxu0 0
      %5376 = vmatprep.subr.bf16.mxu0 0
      %5377 = vmatpush1.bf16.msra.mxu0 0
      %5378 = vmatprep.mubr.bf16.mxu0 0
      %5379 = vmatmul.mubr.bf16.gmra.mrb[0].mxu0 %v3977
      %v5380 = vpop.f32.mrb[0].mxu0
      %v5381 = vadd.f32 %v5332, %v5380
      %v5382 = vpop.f32.mrb[0].mxu0
      %v5383 = vpop.f32.mrb[0].mxu0
      %v5384 = vadd.f32 %v5332, %v5383
      %v5385 = vpop.f32.mrb[0].mxu0
      %5386 = vmatprep.mubr.bf16.mxu0 0
      %5387 = vmatmul.mubr.bf16.gmra.mrb[0].mxu0 %v3980
      %v5388 = vpop.f32.mrb[0].mxu0
      %v5389 = vadd.f32 %v5332, %v5388
      %v5390 = vpop.f32.mrb[0].mxu0
      %v5391 = vpop.f32.mrb[0].mxu0
      %v5392 = vadd.f32 %v5332, %v5391
      %v5393 = vpop.f32.mrb[0].mxu0
      %5394 = vmatprep.mubr.bf16.mxu0 0
      %5395 = vmatmul.mubr.bf16.gmra.mrb[0].mxu0 %v3983
      %v5396 = vpop.f32.mrb[0].mxu0
      %v5397 = vadd.f32 %v5332, %v5396
      %v5398 = vpop.f32.mrb[0].mxu0
      %v5399 = vpop.f32.mrb[0].mxu0
      %v5400 = vadd.f32 %v5332, %v5399
      %v5401 = vpop.f32.mrb[0].mxu0
      %5402 = vmatprep.mubr.bf16.mxu0 0
      %5403 = vmatmul.mubr.bf16.gmra.mrb[0].mxu0 %v3986
      %v5404 = vpop.f32.mrb[0].mxu0
      %v5405 = vadd.f32 %v5332, %v5404
      %v5406 = vpop.f32.mrb[0].mxu0
      %v5407 = vpop.f32.mrb[0].mxu0
      %v5408 = vadd.f32 %v5332, %v5407
      %v5409 = vpop.f32.mrb[0].mxu0
      %5410 = vdwg.mxu0
      %s5411 = scalar_lea.vmem %s7, 96
      %v5412 = vld [vmem:[%s5411] sm:$0xf]
      %v5413 = vld [vmem:[%s5411 + $0x4] sm:$0xf]
      %v5414 = vld [vmem:[%s5411 + $0x8] sm:$0xf]
      %v5415 = vld [vmem:[%s5411 + $0xc] sm:$0xf]
      %s5416 = scalar_lea.vmem %s8, 6
      %v5417 = vld [vmem:[%s5416] sm:$0x1]
      %v5419 = vlaneseq
      %v5420 = vshrl.u32 %v5419, 7
      %v5421 = vsub.s32 0, %v5420
      %v5422 = vrot.slane %v5417, %v5421
      %v5428 = vunpack.c.l.b16 %v5412
      %v5429 = vunpack.c.l.b16 %v5413
      %v5430 = vunpack.c.l.b16 %v5414
      %v5431 = vunpack.c.l.b16 %v5415
      %v5432 = vpack.c.b16 %v5429, %v5428
      %v5433 = vpack.c.b16 %v5431, %v5430
      %5436 = vmatprep.subr.bf16.mxu0 0
      %5437 = vmatpush1.bf16.msra.mxu0 %v5432
      %5438 = vmatprep.subr.bf16.mxu0 0
      %5439 = vmatpush1.bf16.msra.mxu0 %v5433
      %5440 = vmatprep.subr.bf16.mxu0 0
      %5441 = vmatpush1.bf16.msra.mxu0 0
      %5442 = vmatprep.subr.bf16.mxu0 0
      %5443 = vmatpush1.bf16.msra.mxu0 0
      %5444 = vmatprep.subr.bf16.mxu0 0
      %5445 = vmatpush1.bf16.msra.mxu0 0
      %5446 = vmatprep.subr.bf16.mxu0 0
      %5447 = vmatpush1.bf16.msra.mxu0 0
      %5448 = vmatprep.subr.bf16.mxu0 0
      %5449 = vmatpush1.bf16.msra.mxu0 0
      %5450 = vmatprep.subr.bf16.mxu0 0
      %5451 = vmatpush1.bf16.msra.mxu0 0
      %5452 = vmatprep.subr.bf16.mxu0 0
      %5453 = vmatpush1.bf16.msra.mxu0 0
      %5454 = vmatprep.subr.bf16.mxu0 0
      %5455 = vmatpush1.bf16.msra.mxu0 0
      %5456 = vmatprep.subr.bf16.mxu0 0
      %5457 = vmatpush1.bf16.msra.mxu0 0
      %5458 = vmatprep.subr.bf16.mxu0 0
      %5459 = vmatpush1.bf16.msra.mxu0 0
      %5460 = vmatprep.subr.bf16.mxu0 0
      %5461 = vmatpush1.bf16.msra.mxu0 0
      %5462 = vmatprep.subr.bf16.mxu0 0
      %5463 = vmatpush1.bf16.msra.mxu0 0
      %5464 = vmatprep.subr.bf16.mxu0 0
      %5465 = vmatpush1.bf16.msra.mxu0 0
      %5466 = vmatprep.subr.bf16.mxu0 0
      %5467 = vmatpush1.bf16.msra.mxu0 0
      %5468 = vmatprep.mubr.bf16.mxu0 0
      %5469 = vmatmul.mubr.bf16.gmra.mrb[0].mxu0 %v3977
      %v5470 = vpop.f32.mrb[0].mxu0
      %v5471 = vadd.f32 %v5422, %v5470
      %v5472 = vpop.f32.mrb[0].mxu0
      %v5473 = vpop.f32.mrb[0].mxu0
      %v5474 = vadd.f32 %v5422, %v5473
      %v5475 = vpop.f32.mrb[0].mxu0
      %5476 = vmatprep.mubr.bf16.mxu0 0
      %5477 = vmatmul.mubr.bf16.gmra.mrb[0].mxu0 %v3980
      %v5478 = vpop.f32.mrb[0].mxu0
      %v5479 = vadd.f32 %v5422, %v5478
      %v5480 = vpop.f32.mrb[0].mxu0
      %v5481 = vpop.f32.mrb[0].mxu0
      %v5482 = vadd.f32 %v5422, %v5481
      %v5483 = vpop.f32.mrb[0].mxu0
      %5484 = vmatprep.mubr.bf16.mxu0 0
      %5485 = vmatmul.mubr.bf16.gmra.mrb[0].mxu0 %v3983
      %v5486 = vpop.f32.mrb[0].mxu0
      %v5487 = vadd.f32 %v5422, %v5486
      %v5488 = vpop.f32.mrb[0].mxu0
      %v5489 = vpop.f32.mrb[0].mxu0
      %v5490 = vadd.f32 %v5422, %v5489
      %v5491 = vpop.f32.mrb[0].mxu0
      %5492 = vmatprep.mubr.bf16.mxu0 0
      %5493 = vmatmul.mubr.bf16.gmra.mrb[0].mxu0 %v3986
      %v5494 = vpop.f32.mrb[0].mxu0
      %v5495 = vadd.f32 %v5422, %v5494
      %v5496 = vpop.f32.mrb[0].mxu0
      %v5497 = vpop.f32.mrb[0].mxu0
      %v5498 = vadd.f32 %v5422, %v5497
      %v5499 = vpop.f32.mrb[0].mxu0
      %5500 = vdwg.mxu0
      %v5501 = vmul.f32 %v5291, 0.35355338
      %v5502 = vmul.f32 %v5294, 0.35355338
      %v5503 = vmul.f32 %v5299, 0.35355338
      %v5504 = vmul.f32 %v5302, 0.35355338
      %v5505 = vmul.f32 %v5307, 0.35355338
      %v5506 = vmul.f32 %v5310, 0.35355338
      %v5507 = vmul.f32 %v5315, 0.35355338
      %v5508 = vmul.f32 %v5318, 0.35355338
      %v5509 = vpack.c.bf16 %v5502, %v5501
      %v5510 = vpack.c.bf16 %v5504, %v5503
      %v5511 = vpack.c.bf16 %v5506, %v5505
      %v5512 = vpack.c.bf16 %v5508, %v5507
      %v5513 = vpack.c.bf16 %v5384, %v5381
      %v5514 = vpack.c.bf16 %v5392, %v5389
      %v5515 = vpack.c.bf16 %v5400, %v5397
      %v5516 = vpack.c.bf16 %v5408, %v5405
      %v5518 = vsel %vm1098, %v5509, 0
      %v5521 = vsel %vm1098, %v5510, 0
      %v5524 = vsel %vm1098, %v5511, 0
      %v5527 = vsel %vm1098, %v5512, 0
      %v5530 = vsel %vm1098, %v5513, 0
      %v5533 = vsel %vm1098, %v5514, 0
      %v5536 = vsel %vm1098, %v5515, 0
      %v5539 = vsel %vm1098, %v5516, 0
      %5541 = vmatprep.subr.bf16.mxu0 0
      %5542 = vmatpush1.bf16.xpose.msra.mxu0 %v5530
      %5543 = vmatprep.subr.bf16.mxu0 0
      %5544 = vmatpush1.bf16.xpose.msra.mxu0 %v5533
      %5545 = vmatprep.subr.bf16.mxu0 0
      %5546 = vmatpush1.bf16.xpose.msra.mxu0 %v5536
      %5547 = vmatprep.subr.bf16.mxu0 0
      %5548 = vmatpush1.bf16.xpose.msra.mxu0 %v5539
      %5549 = vmatprep.subr.bf16.mxu0 0
      %5550 = vmatpush1.bf16.xpose.msra.mxu0 0
      %5551 = vmatprep.subr.bf16.mxu0 0
      %5552 = vmatpush1.bf16.xpose.msra.mxu0 0
      %5553 = vmatprep.subr.bf16.mxu0 0
      %5554 = vmatpush1.bf16.xpose.msra.mxu0 0
      %5555 = vmatprep.subr.bf16.mxu0 0
      %5556 = vmatpush1.bf16.xpose.msra.mxu0 0
      %5557 = vmatprep.subr.bf16.mxu0 0
      %5558 = vmatpush1.bf16.xpose.msra.mxu0 0
      %5559 = vmatprep.subr.bf16.mxu0 0
      %5560 = vmatpush1.bf16.xpose.msra.mxu0 0
      %5561 = vmatprep.subr.bf16.mxu0 0
      %5562 = vmatpush1.bf16.xpose.msra.mxu0 0
      %5563 = vmatprep.subr.bf16.mxu0 0
      %5564 = vmatpush1.bf16.xpose.msra.mxu0 0
      %5565 = vmatprep.subr.bf16.mxu0 0
      %5566 = vmatpush1.bf16.xpose.msra.mxu0 0
      %5567 = vmatprep.subr.bf16.mxu0 0
      %5568 = vmatpush1.bf16.xpose.msra.mxu0 0
      %5569 = vmatprep.subr.bf16.mxu0 0
      %5570 = vmatpush1.bf16.xpose.msra.mxu0 0
      %5571 = vmatprep.subr.bf16.mxu0 0
      %5572 = vmatpush1.bf16.xpose.msra.mxu0 0
      %5573 = vmatprep.mubr.bf16.mxu0 0
      %5574 = vmatmul.mubr.bf16.gmra.mrb[0].mxu0 %v5518
      %v5575 = vpop.f32.mrb[0].mxu0
      %v5576 = vadd.f32 0.0, %v5575
      %v5577 = vpop.f32.mrb[0].mxu0
      %v5578 = vpop.f32.mrb[0].mxu0
      %v5579 = vadd.f32 0.0, %v5578
      %v5580 = vpop.f32.mrb[0].mxu0
      %5581 = vmatprep.mubr.bf16.mxu0 0
      %5582 = vmatmul.mubr.bf16.gmra.mrb[0].mxu0 %v5521
      %v5583 = vpop.f32.mrb[0].mxu0
      %v5584 = vadd.f32 0.0, %v5583
      %v5585 = vpop.f32.mrb[0].mxu0
      %v5586 = vpop.f32.mrb[0].mxu0
      %v5587 = vadd.f32 0.0, %v5586
      %v5588 = vpop.f32.mrb[0].mxu0
      %5589 = vmatprep.mubr.bf16.mxu0 0
      %5590 = vmatmul.mubr.bf16.gmra.mrb[0].mxu0 %v5524
      %v5591 = vpop.f32.mrb[0].mxu0
      %v5592 = vadd.f32 0.0, %v5591
      %v5593 = vpop.f32.mrb[0].mxu0
      %v5594 = vpop.f32.mrb[0].mxu0
      %v5595 = vadd.f32 0.0, %v5594
      %v5596 = vpop.f32.mrb[0].mxu0
      %5597 = vmatprep.mubr.bf16.mxu0 0
      %5598 = vmatmul.mubr.bf16.gmra.mrb[0].mxu0 %v5527
      %v5599 = vpop.f32.mrb[0].mxu0
      %v5600 = vadd.f32 0.0, %v5599
      %v5601 = vpop.f32.mrb[0].mxu0
      %v5602 = vpop.f32.mrb[0].mxu0
      %v5603 = vadd.f32 0.0, %v5602
      %v5604 = vpop.f32.mrb[0].mxu0
      %5605 = vdwg.mxu0
      %v5606 = vsel %vm1188, %v5576, -inf
      %5607 = vmax.xlane.f32.xlu0 %v5606
      %v5608 = vpop.xlane.xlu0 %5607
      %v5609 = vsel %vm1188, %v5579, -inf
      %5610 = vmax.xlane.f32.xlu0 %v5609
      %v5611 = vpop.xlane.xlu0 %5610
      %v5612 = vsel %vm1188, %v5584, -inf
      %5613 = vmax.xlane.f32.xlu0 %v5612
      %v5614 = vpop.xlane.xlu0 %5613
      %v5615 = vsel %vm1188, %v5587, -inf
      %5616 = vmax.xlane.f32.xlu0 %v5615
      %v5617 = vpop.xlane.xlu0 %5616
      %v5618 = vsel %vm1188, %v5592, -inf
      %5619 = vmax.xlane.f32.xlu0 %v5618
      %v5620 = vpop.xlane.xlu0 %5619
      %v5621 = vsel %vm1188, %v5595, -inf
      %5622 = vmax.xlane.f32.xlu0 %v5621
      %v5623 = vpop.xlane.xlu0 %5622
      %v5624 = vsel %vm1188, %v5600, -inf
      %5625 = vmax.xlane.f32.xlu0 %v5624
      %v5626 = vpop.xlane.xlu0 %5625
      %v5627 = vsel %vm1188, %v5603, -inf
      %5628 = vmax.xlane.f32.xlu0 %v5627
      %v5629 = vpop.xlane.xlu0 %5628
      %v5630 = vsub.f32 %v5576, %v5608
      %v5631 = vsub.f32 %v5579, %v5611
      %v5632 = vsub.f32 %v5584, %v5614
      %v5633 = vsub.f32 %v5587, %v5617
      %v5634 = vsub.f32 %v5592, %v5620
      %v5635 = vsub.f32 %v5595, %v5623
      %v5636 = vsub.f32 %v5600, %v5626
      %v5637 = vsub.f32 %v5603, %v5629
      %v5638 = vmul.f32 %v5630, 1.442695
      %v5639 = vpow.pop %v5638
      %v5640 = vmul.f32 %v5631, 1.442695
      %v5641 = vpow.pop %v5640
      %v5642 = vmul.f32 %v5632, 1.442695
      %v5643 = vpow.pop %v5642
      %v5644 = vmul.f32 %v5633, 1.442695
      %v5645 = vpow.pop %v5644
      %v5646 = vmul.f32 %v5634, 1.442695
      %v5647 = vpow.pop %v5646
      %v5648 = vmul.f32 %v5635, 1.442695
      %v5649 = vpow.pop %v5648
      %v5650 = vmul.f32 %v5636, 1.442695
      %v5651 = vpow.pop %v5650
      %v5652 = vmul.f32 %v5637, 1.442695
      %v5653 = vpow.pop %v5652
      %v5654 = vsel %vm1188, %v5639, 0.0
      %5655 = vadd.xlane.f32.xlu0 %v5654
      %v5656 = vpop.xlane.xlu0 %5655
      %v5657 = vsel %vm1188, %v5641, 0.0
      %5658 = vadd.xlane.f32.xlu0 %v5657
      %v5659 = vpop.xlane.xlu0 %5658
      %v5660 = vsel %vm1188, %v5643, 0.0
      %5661 = vadd.xlane.f32.xlu0 %v5660
      %v5662 = vpop.xlane.xlu0 %5661
      %v5663 = vsel %vm1188, %v5645, 0.0
      %5664 = vadd.xlane.f32.xlu0 %v5663
      %v5665 = vpop.xlane.xlu0 %5664
      %v5666 = vsel %vm1188, %v5647, 0.0
      %5667 = vadd.xlane.f32.xlu0 %v5666
      %v5668 = vpop.xlane.xlu0 %5667
      %v5669 = vsel %vm1188, %v5649, 0.0
      %5670 = vadd.xlane.f32.xlu0 %v5669
      %v5671 = vpop.xlane.xlu0 %5670
      %v5672 = vsel %vm1188, %v5651, 0.0
      %5673 = vadd.xlane.f32.xlu0 %v5672
      %v5674 = vpop.xlane.xlu0 %5673
      %v5675 = vsel %vm1188, %v5653, 0.0
      %5676 = vadd.xlane.f32.xlu0 %v5675
      %v5677 = vpop.xlane.xlu0 %5676
      %v5678 = vrcp.pop %v5656
      %v5679 = vrcp.pop %v5659
      %v5680 = vrcp.pop %v5662
      %v5681 = vrcp.pop %v5665
      %v5682 = vrcp.pop %v5668
      %v5683 = vrcp.pop %v5671
      %v5684 = vrcp.pop %v5674
      %v5685 = vrcp.pop %v5677
      %v5686 = vmul.f32 %v5639, %v5678
      %v5687 = vmul.f32 %v5641, %v5679
      %v5688 = vmul.f32 %v5643, %v5680
      %v5689 = vmul.f32 %v5645, %v5681
      %v5690 = vmul.f32 %v5647, %v5682
      %v5691 = vmul.f32 %v5649, %v5683
      %v5692 = vmul.f32 %v5651, %v5684
      %v5693 = vmul.f32 %v5653, %v5685
      %v5694 = vpack.c.bf16 %v5687, %v5686
      %v5695 = vpack.c.bf16 %v5689, %v5688
      %v5696 = vpack.c.bf16 %v5691, %v5690
      %v5697 = vpack.c.bf16 %v5693, %v5692
      %v5698 = vpack.c.bf16 %v5474, %v5471
      %v5699 = vpack.c.bf16 %v5482, %v5479
      %v5700 = vpack.c.bf16 %v5490, %v5487
      %v5701 = vpack.c.bf16 %v5498, %v5495
      %v5703 = vsel %vm1188, %v5694, 0
      %v5706 = vsel %vm1188, %v5695, 0
      %v5709 = vsel %vm1188, %v5696, 0
      %v5712 = vsel %vm1188, %v5697, 0
      %5714 = vmatprep.subr.bf16.mxu0 0
      %5715 = vmatpush1.bf16.msra.mxu0 %v5698
      %5716 = vmatprep.subr.bf16.mxu0 0
      %5717 = vmatpush1.bf16.msra.mxu0 %v5699
      %5718 = vmatprep.subr.bf16.mxu0 0
      %5719 = vmatpush1.bf16.msra.mxu0 %v5700
      %5720 = vmatprep.subr.bf16.mxu0 0
      %5721 = vmatpush1.bf16.msra.mxu0 %v5701
      %5722 = vmatprep.subr.bf16.mxu0 0
      %5723 = vmatpush1.bf16.msra.mxu0 0
      %5724 = vmatprep.subr.bf16.mxu0 0
      %5725 = vmatpush1.bf16.msra.mxu0 0
      %5726 = vmatprep.subr.bf16.mxu0 0
      %5727 = vmatpush1.bf16.msra.mxu0 0
      %5728 = vmatprep.subr.bf16.mxu0 0
      %5729 = vmatpush1.bf16.msra.mxu0 0
      %5730 = vmatprep.subr.bf16.mxu0 0
      %5731 = vmatpush1.bf16.msra.mxu0 0
      %5732 = vmatprep.subr.bf16.mxu0 0
      %5733 = vmatpush1.bf16.msra.mxu0 0
      %5734 = vmatprep.subr.bf16.mxu0 0
      %5735 = vmatpush1.bf16.msra.mxu0 0
      %5736 = vmatprep.subr.bf16.mxu0 0
      %5737 = vmatpush1.bf16.msra.mxu0 0
      %5738 = vmatprep.subr.bf16.mxu0 0
      %5739 = vmatpush1.bf16.msra.mxu0 0
      %5740 = vmatprep.subr.bf16.mxu0 0
      %5741 = vmatpush1.bf16.msra.mxu0 0
      %5742 = vmatprep.subr.bf16.mxu0 0
      %5743 = vmatpush1.bf16.msra.mxu0 0
      %5744 = vmatprep.subr.bf16.mxu0 0
      %5745 = vmatpush1.bf16.msra.mxu0 0
      %5746 = vmatprep.mubr.bf16.mxu0 0
      %5747 = vmatmul.mubr.bf16.gmra.mrb[0].mxu0 %v5703
      %v5748 = vpop.f32.mrb[0].mxu0
      %v5749 = vadd.f32 0.0, %v5748
      %v5750 = vpop.f32.mrb[0].mxu0
      %v5751 = vpop.f32.mrb[0].mxu0
      %v5752 = vadd.f32 0.0, %v5751
      %v5753 = vpop.f32.mrb[0].mxu0
      %5754 = vmatprep.mubr.bf16.mxu0 0
      %5755 = vmatmul.mubr.bf16.gmra.mrb[0].mxu0 %v5706
      %v5756 = vpop.f32.mrb[0].mxu0
      %v5757 = vadd.f32 0.0, %v5756
      %v5758 = vpop.f32.mrb[0].mxu0
      %v5759 = vpop.f32.mrb[0].mxu0
      %v5760 = vadd.f32 0.0, %v5759
      %v5761 = vpop.f32.mrb[0].mxu0
      %5762 = vmatprep.mubr.bf16.mxu0 0
      %5763 = vmatmul.mubr.bf16.gmra.mrb[0].mxu0 %v5709
      %v5764 = vpop.f32.mrb[0].mxu0
      %v5765 = vadd.f32 0.0, %v5764
      %v5766 = vpop.f32.mrb[0].mxu0
      %v5767 = vpop.f32.mrb[0].mxu0
      %v5768 = vadd.f32 0.0, %v5767
      %v5769 = vpop.f32.mrb[0].mxu0
      %5770 = vmatprep.mubr.bf16.mxu0 0
      %5771 = vmatmul.mubr.bf16.gmra.mrb[0].mxu0 %v5712
      %v5772 = vpop.f32.mrb[0].mxu0
      %v5773 = vadd.f32 0.0, %v5772
      %v5774 = vpop.f32.mrb[0].mxu0
      %v5775 = vpop.f32.mrb[0].mxu0
      %v5776 = vadd.f32 0.0, %v5775
      %v5777 = vpop.f32.mrb[0].mxu0
      %5778 = vdwg.mxu0
      %v5779 = vpack.c.bf16 %v5752, %v5749
      %v5780 = vpack.c.bf16 %v5760, %v5757
      %v5781 = vpack.c.bf16 %v5768, %v5765
      %v5782 = vpack.c.bf16 %v5776, %v5773
      %s5783 = scalar_lea.vmem %s9, 24
      %v5784 = vld [vmem:[%s5783] sm:$0xf]
      %v5786 = vsel %vm1098, %v5779, 0
      %v5789 = vsel %vm1098, %v5780, 0
      %v5792 = vsel %vm1098, %v5781, 0
      %v5795 = vsel %vm1098, %v5782, 0
      %v5798 = vsel %vm1933, %v5784, 0
      %5800 = vmatprep.subr.bf16.mxu0 0
      %5801 = vmatpush1.bf16.msra.mxu0 %v5798
      %5802 = vmatprep.subr.bf16.mxu0 0
      %5803 = vmatpush1.bf16.msra.mxu0 0
      %5804 = vmatprep.subr.bf16.mxu0 0
      %5805 = vmatpush1.bf16.msra.mxu0 0
      %5806 = vmatprep.subr.bf16.mxu0 0
      %5807 = vmatpush1.bf16.msra.mxu0 0
      %5808 = vmatprep.subr.bf16.mxu0 0
      %5809 = vmatpush1.bf16.msra.mxu0 0
      %5810 = vmatprep.subr.bf16.mxu0 0
      %5811 = vmatpush1.bf16.msra.mxu0 0
      %5812 = vmatprep.subr.bf16.mxu0 0
      %5813 = vmatpush1.bf16.msra.mxu0 0
      %5814 = vmatprep.subr.bf16.mxu0 0
      %5815 = vmatpush1.bf16.msra.mxu0 0
      %5816 = vmatprep.subr.bf16.mxu0 0
      %5817 = vmatpush1.bf16.msra.mxu0 0
      %5818 = vmatprep.subr.bf16.mxu0 0
      %5819 = vmatpush1.bf16.msra.mxu0 0
      %5820 = vmatprep.subr.bf16.mxu0 0
      %5821 = vmatpush1.bf16.msra.mxu0 0
      %5822 = vmatprep.subr.bf16.mxu0 0
      %5823 = vmatpush1.bf16.msra.mxu0 0
      %5824 = vmatprep.subr.bf16.mxu0 0
      %5825 = vmatpush1.bf16.msra.mxu0 0
      %5826 = vmatprep.subr.bf16.mxu0 0
      %5827 = vmatpush1.bf16.msra.mxu0 0
      %5828 = vmatprep.subr.bf16.mxu0 0
      %5829 = vmatpush1.bf16.msra.mxu0 0
      %5830 = vmatprep.subr.bf16.mxu0 0
      %5831 = vmatpush1.bf16.msra.mxu0 0
      %5832 = vmatprep.mubr.bf16.mxu0 0
      %5833 = vmatmul.mubr.bf16.gmra.mrb[0].mxu0 %v5786
      %v5834 = vpop.f32.mrb[0].mxu0
      %v5835 = vadd.f32 0.0, %v5834
      %v5836 = vpop.f32.mrb[0].mxu0
      %v5837 = vpop.f32.mrb[0].mxu0
      %v5838 = vadd.f32 0.0, %v5837
      %v5839 = vpop.f32.mrb[0].mxu0
      %5840 = vmatprep.mubr.bf16.mxu0 0
      %5841 = vmatmul.mubr.bf16.gmra.mrb[0].mxu0 %v5789
      %v5842 = vpop.f32.mrb[0].mxu0
      %v5843 = vadd.f32 0.0, %v5842
      %v5844 = vpop.f32.mrb[0].mxu0
      %v5845 = vpop.f32.mrb[0].mxu0
      %v5846 = vadd.f32 0.0, %v5845
      %v5847 = vpop.f32.mrb[0].mxu0
      %5848 = vmatprep.mubr.bf16.mxu0 0
      %5849 = vmatmul.mubr.bf16.gmra.mrb[0].mxu0 %v5792
      %v5850 = vpop.f32.mrb[0].mxu0
      %v5851 = vadd.f32 0.0, %v5850
      %v5852 = vpop.f32.mrb[0].mxu0
      %v5853 = vpop.f32.mrb[0].mxu0
      %v5854 = vadd.f32 0.0, %v5853
      %v5855 = vpop.f32.mrb[0].mxu0
      %5856 = vmatprep.mubr.bf16.mxu0 0
      %5857 = vmatmul.mubr.bf16.gmra.mrb[0].mxu0 %v5795
      %v5858 = vpop.f32.mrb[0].mxu0
      %v5859 = vadd.f32 0.0, %v5858
      %v5860 = vpop.f32.mrb[0].mxu0
      %v5861 = vpop.f32.mrb[0].mxu0
      %v5862 = vadd.f32 0.0, %v5861
      %v5863 = vpop.f32.mrb[0].mxu0
      %5864 = vdwg.mxu0
      %v5865 = vadd.f32 %v5201, %v5835
      %v5866 = vadd.f32 %v5204, %v5838
      %v5867 = vadd.f32 %v5209, %v5843
      %v5868 = vadd.f32 %v5212, %v5846
      %v5869 = vadd.f32 %v5217, %v5851
      %v5870 = vadd.f32 %v5220, %v5854
      %v5871 = vadd.f32 %v5225, %v5859
      %v5872 = vadd.f32 %v5228, %v5862
      %s5873 = scalar_lea.vmem %s3, 112
      %v5874 = vld [vmem:[%s5873] sm:$0xf]
      %v5875 = vld [vmem:[%s5873 + $0x4] sm:$0xf]
      %v5876 = vld [vmem:[%s5873 + $0x8] sm:$0xf]
      %v5877 = vld [vmem:[%s5873 + $0xc] sm:$0xf]
      %s5878 = scalar_lea.vmem %s4, 7
      %v5879 = vld [vmem:[%s5878] sm:$0x1]
      %v5881 = vlaneseq
      %v5882 = vshrl.u32 %v5881, 7
      %v5883 = vsub.s32 0, %v5882
      %v5884 = vrot.slane %v5879, %v5883
      %v5890 = vunpack.c.l.b16 %v5874
      %v5891 = vunpack.c.l.b16 %v5875
      %v5892 = vunpack.c.l.b16 %v5876
      %v5893 = vunpack.c.l.b16 %v5877
      %v5894 = vpack.c.b16 %v5891, %v5890
      %v5895 = vpack.c.b16 %v5893, %v5892
      %5898 = vmatprep.subr.bf16.mxu0 0
      %5899 = vmatpush1.bf16.msra.mxu0 %v5894
      %5900 = vmatprep.subr.bf16.mxu0 0
      %5901 = vmatpush1.bf16.msra.mxu0 %v5895
      %5902 = vmatprep.subr.bf16.mxu0 0
      %5903 = vmatpush1.bf16.msra.mxu0 0
      %5904 = vmatprep.subr.bf16.mxu0 0
      %5905 = vmatpush1.bf16.msra.mxu0 0
      %5906 = vmatprep.subr.bf16.mxu0 0
      %5907 = vmatpush1.bf16.msra.mxu0 0
      %5908 = vmatprep.subr.bf16.mxu0 0
      %5909 = vmatpush1.bf16.msra.mxu0 0
      %5910 = vmatprep.subr.bf16.mxu0 0
      %5911 = vmatpush1.bf16.msra.mxu0 0
      %5912 = vmatprep.subr.bf16.mxu0 0
      %5913 = vmatpush1.bf16.msra.mxu0 0
      %5914 = vmatprep.subr.bf16.mxu0 0
      %5915 = vmatpush1.bf16.msra.mxu0 0
      %5916 = vmatprep.subr.bf16.mxu0 0
      %5917 = vmatpush1.bf16.msra.mxu0 0
      %5918 = vmatprep.subr.bf16.mxu0 0
      %5919 = vmatpush1.bf16.msra.mxu0 0
      %5920 = vmatprep.subr.bf16.mxu0 0
      %5921 = vmatpush1.bf16.msra.mxu0 0
      %5922 = vmatprep.subr.bf16.mxu0 0
      %5923 = vmatpush1.bf16.msra.mxu0 0
      %5924 = vmatprep.subr.bf16.mxu0 0
      %5925 = vmatpush1.bf16.msra.mxu0 0
      %5926 = vmatprep.subr.bf16.mxu0 0
      %5927 = vmatpush1.bf16.msra.mxu0 0
      %5928 = vmatprep.subr.bf16.mxu0 0
      %5929 = vmatpush1.bf16.msra.mxu0 0
      %5930 = vmatprep.mubr.bf16.mxu0 0
      %5931 = vmatmul.mubr.bf16.gmra.mrb[0].mxu0 %v3977
      %v5932 = vpop.f32.mrb[0].mxu0
      %v5933 = vadd.f32 %v5884, %v5932
      %v5934 = vpop.f32.mrb[0].mxu0
      %v5935 = vpop.f32.mrb[0].mxu0
      %v5936 = vadd.f32 %v5884, %v5935
      %v5937 = vpop.f32.mrb[0].mxu0
      %5938 = vmatprep.mubr.bf16.mxu0 0
      %5939 = vmatmul.mubr.bf16.gmra.mrb[0].mxu0 %v3980
      %v5940 = vpop.f32.mrb[0].mxu0
      %v5941 = vadd.f32 %v5884, %v5940
      %v5942 = vpop.f32.mrb[0].mxu0
      %v5943 = vpop.f32.mrb[0].mxu0
      %v5944 = vadd.f32 %v5884, %v5943
      %v5945 = vpop.f32.mrb[0].mxu0
      %5946 = vmatprep.mubr.bf16.mxu0 0
      %5947 = vmatmul.mubr.bf16.gmra.mrb[0].mxu0 %v3983
      %v5948 = vpop.f32.mrb[0].mxu0
      %v5949 = vadd.f32 %v5884, %v5948
      %v5950 = vpop.f32.mrb[0].mxu0
      %v5951 = vpop.f32.mrb[0].mxu0
      %v5952 = vadd.f32 %v5884, %v5951
      %v5953 = vpop.f32.mrb[0].mxu0
      %5954 = vmatprep.mubr.bf16.mxu0 0
      %5955 = vmatmul.mubr.bf16.gmra.mrb[0].mxu0 %v3986
      %v5956 = vpop.f32.mrb[0].mxu0
      %v5957 = vadd.f32 %v5884, %v5956
      %v5958 = vpop.f32.mrb[0].mxu0
      %v5959 = vpop.f32.mrb[0].mxu0
      %v5960 = vadd.f32 %v5884, %v5959
      %v5961 = vpop.f32.mrb[0].mxu0
      %5962 = vdwg.mxu0
      %s5963 = scalar_lea.vmem %s5, 112
      %v5964 = vld [vmem:[%s5963] sm:$0xf]
      %v5965 = vld [vmem:[%s5963 + $0x4] sm:$0xf]
      %v5966 = vld [vmem:[%s5963 + $0x8] sm:$0xf]
      %v5967 = vld [vmem:[%s5963 + $0xc] sm:$0xf]
      %s5968 = scalar_lea.vmem %s6, 7
      %v5969 = vld [vmem:[%s5968] sm:$0x1]
      %v5971 = vlaneseq
      %v5972 = vshrl.u32 %v5971, 7
      %v5973 = vsub.s32 0, %v5972
      %v5974 = vrot.slane %v5969, %v5973
      %v5980 = vunpack.c.l.b16 %v5964
      %v5981 = vunpack.c.l.b16 %v5965
      %v5982 = vunpack.c.l.b16 %v5966
      %v5983 = vunpack.c.l.b16 %v5967
      %v5984 = vpack.c.b16 %v5981, %v5980
      %v5985 = vpack.c.b16 %v5983, %v5982
      %5988 = vmatprep.subr.bf16.mxu0 0
      %5989 = vmatpush1.bf16.msra.mxu0 %v5984
      %5990 = vmatprep.subr.bf16.mxu0 0
      %5991 = vmatpush1.bf16.msra.mxu0 %v5985
      %5992 = vmatprep.subr.bf16.mxu0 0
      %5993 = vmatpush1.bf16.msra.mxu0 0
      %5994 = vmatprep.subr.bf16.mxu0 0
      %5995 = vmatpush1.bf16.msra.mxu0 0
      %5996 = vmatprep.subr.bf16.mxu0 0
      %5997 = vmatpush1.bf16.msra.mxu0 0
      %5998 = vmatprep.subr.bf16.mxu0 0
      %5999 = vmatpush1.bf16.msra.mxu0 0
      %6000 = vmatprep.subr.bf16.mxu0 0
      %6001 = vmatpush1.bf16.msra.mxu0 0
      %6002 = vmatprep.subr.bf16.mxu0 0
      %6003 = vmatpush1.bf16.msra.mxu0 0
      %6004 = vmatprep.subr.bf16.mxu0 0
      %6005 = vmatpush1.bf16.msra.mxu0 0
      %6006 = vmatprep.subr.bf16.mxu0 0
      %6007 = vmatpush1.bf16.msra.mxu0 0
      %6008 = vmatprep.subr.bf16.mxu0 0
      %6009 = vmatpush1.bf16.msra.mxu0 0
      %6010 = vmatprep.subr.bf16.mxu0 0
      %6011 = vmatpush1.bf16.msra.mxu0 0
      %6012 = vmatprep.subr.bf16.mxu0 0
      %6013 = vmatpush1.bf16.msra.mxu0 0
      %6014 = vmatprep.subr.bf16.mxu0 0
      %6015 = vmatpush1.bf16.msra.mxu0 0
      %6016 = vmatprep.subr.bf16.mxu0 0
      %6017 = vmatpush1.bf16.msra.mxu0 0
      %6018 = vmatprep.subr.bf16.mxu0 0
      %6019 = vmatpush1.bf16.msra.mxu0 0
      %6020 = vmatprep.mubr.bf16.mxu0 0
      %6021 = vmatmul.mubr.bf16.gmra.mrb[0].mxu0 %v3977
      %v6022 = vpop.f32.mrb[0].mxu0
      %v6023 = vadd.f32 %v5974, %v6022
      %v6024 = vpop.f32.mrb[0].mxu0
      %v6025 = vpop.f32.mrb[0].mxu0
      %v6026 = vadd.f32 %v5974, %v6025
      %v6027 = vpop.f32.mrb[0].mxu0
      %6028 = vmatprep.mubr.bf16.mxu0 0
      %6029 = vmatmul.mubr.bf16.gmra.mrb[0].mxu0 %v3980
      %v6030 = vpop.f32.mrb[0].mxu0
      %v6031 = vadd.f32 %v5974, %v6030
      %v6032 = vpop.f32.mrb[0].mxu0
      %v6033 = vpop.f32.mrb[0].mxu0
      %v6034 = vadd.f32 %v5974, %v6033
      %v6035 = vpop.f32.mrb[0].mxu0
      %6036 = vmatprep.mubr.bf16.mxu0 0
      %6037 = vmatmul.mubr.bf16.gmra.mrb[0].mxu0 %v3983
      %v6038 = vpop.f32.mrb[0].mxu0
      %v6039 = vadd.f32 %v5974, %v6038
      %v6040 = vpop.f32.mrb[0].mxu0
      %v6041 = vpop.f32.mrb[0].mxu0
      %v6042 = vadd.f32 %v5974, %v6041
      %v6043 = vpop.f32.mrb[0].mxu0
      %6044 = vmatprep.mubr.bf16.mxu0 0
      %6045 = vmatmul.mubr.bf16.gmra.mrb[0].mxu0 %v3986
      %v6046 = vpop.f32.mrb[0].mxu0
      %v6047 = vadd.f32 %v5974, %v6046
      %v6048 = vpop.f32.mrb[0].mxu0
      %v6049 = vpop.f32.mrb[0].mxu0
      %v6050 = vadd.f32 %v5974, %v6049
      %v6051 = vpop.f32.mrb[0].mxu0
      %6052 = vdwg.mxu0
      %s6053 = scalar_lea.vmem %s7, 112
      %v6054 = vld [vmem:[%s6053] sm:$0xf]
      %v6055 = vld [vmem:[%s6053 + $0x4] sm:$0xf]
      %v6056 = vld [vmem:[%s6053 + $0x8] sm:$0xf]
      %v6057 = vld [vmem:[%s6053 + $0xc] sm:$0xf]
      %s6058 = scalar_lea.vmem %s8, 7
      %v6059 = vld [vmem:[%s6058] sm:$0x1]
      %v6061 = vlaneseq
      %v6062 = vshrl.u32 %v6061, 7
      %v6063 = vsub.s32 0, %v6062
      %v6064 = vrot.slane %v6059, %v6063
      %v6070 = vunpack.c.l.b16 %v6054
      %v6071 = vunpack.c.l.b16 %v6055
      %v6072 = vunpack.c.l.b16 %v6056
      %v6073 = vunpack.c.l.b16 %v6057
      %v6074 = vpack.c.b16 %v6071, %v6070
      %v6075 = vpack.c.b16 %v6073, %v6072
      %6078 = vmatprep.subr.bf16.mxu0 0
      %6079 = vmatpush1.bf16.msra.mxu0 %v6074
      %6080 = vmatprep.subr.bf16.mxu0 0
      %6081 = vmatpush1.bf16.msra.mxu0 %v6075
      %6082 = vmatprep.subr.bf16.mxu0 0
      %6083 = vmatpush1.bf16.msra.mxu0 0
      %6084 = vmatprep.subr.bf16.mxu0 0
      %6085 = vmatpush1.bf16.msra.mxu0 0
      %6086 = vmatprep.subr.bf16.mxu0 0
      %6087 = vmatpush1.bf16.msra.mxu0 0
      %6088 = vmatprep.subr.bf16.mxu0 0
      %6089 = vmatpush1.bf16.msra.mxu0 0
      %6090 = vmatprep.subr.bf16.mxu0 0
      %6091 = vmatpush1.bf16.msra.mxu0 0
      %6092 = vmatprep.subr.bf16.mxu0 0
      %6093 = vmatpush1.bf16.msra.mxu0 0
      %6094 = vmatprep.subr.bf16.mxu0 0
      %6095 = vmatpush1.bf16.msra.mxu0 0
      %6096 = vmatprep.subr.bf16.mxu0 0
      %6097 = vmatpush1.bf16.msra.mxu0 0
      %6098 = vmatprep.subr.bf16.mxu0 0
      %6099 = vmatpush1.bf16.msra.mxu0 0
      %6100 = vmatprep.subr.bf16.mxu0 0
      %6101 = vmatpush1.bf16.msra.mxu0 0
      %6102 = vmatprep.subr.bf16.mxu0 0
      %6103 = vmatpush1.bf16.msra.mxu0 0
      %6104 = vmatprep.subr.bf16.mxu0 0
      %6105 = vmatpush1.bf16.msra.mxu0 0
      %6106 = vmatprep.subr.bf16.mxu0 0
      %6107 = vmatpush1.bf16.msra.mxu0 0
      %6108 = vmatprep.subr.bf16.mxu0 0
      %6109 = vmatpush1.bf16.msra.mxu0 0
      %6110 = vmatprep.mubr.bf16.mxu0 0
      %6111 = vmatmul.mubr.bf16.gmra.mrb[0].mxu0 %v3977
      %v6112 = vpop.f32.mrb[0].mxu0
      %v6113 = vadd.f32 %v6064, %v6112
      %v6114 = vpop.f32.mrb[0].mxu0
      %v6115 = vpop.f32.mrb[0].mxu0
      %v6116 = vadd.f32 %v6064, %v6115
      %v6117 = vpop.f32.mrb[0].mxu0
      %6118 = vmatprep.mubr.bf16.mxu0 0
      %6119 = vmatmul.mubr.bf16.gmra.mrb[0].mxu0 %v3980
      %v6120 = vpop.f32.mrb[0].mxu0
      %v6121 = vadd.f32 %v6064, %v6120
      %v6122 = vpop.f32.mrb[0].mxu0
      %v6123 = vpop.f32.mrb[0].mxu0
      %v6124 = vadd.f32 %v6064, %v6123
      %v6125 = vpop.f32.mrb[0].mxu0
      %6126 = vmatprep.mubr.bf16.mxu0 0
      %6127 = vmatmul.mubr.bf16.gmra.mrb[0].mxu0 %v3983
      %v6128 = vpop.f32.mrb[0].mxu0
      %v6129 = vadd.f32 %v6064, %v6128
      %v6130 = vpop.f32.mrb[0].mxu0
      %v6131 = vpop.f32.mrb[0].mxu0
      %v6132 = vadd.f32 %v6064, %v6131
      %v6133 = vpop.f32.mrb[0].mxu0
      %6134 = vmatprep.mubr.bf16.mxu0 0
      %6135 = vmatmul.mubr.bf16.gmra.mrb[0].mxu0 %v3986
      %v6136 = vpop.f32.mrb[0].mxu0
      %v6137 = vadd.f32 %v6064, %v6136
      %v6138 = vpop.f32.mrb[0].mxu0
      %v6139 = vpop.f32.mrb[0].mxu0
      %v6140 = vadd.f32 %v6064, %v6139
      %v6141 = vpop.f32.mrb[0].mxu0
      %6142 = vdwg.mxu0
      %v6143 = vmul.f32 %v5933, 0.35355338
      %v6144 = vmul.f32 %v5936, 0.35355338
      %v6145 = vmul.f32 %v5941, 0.35355338
      %v6146 = vmul.f32 %v5944, 0.35355338
      %v6147 = vmul.f32 %v5949, 0.35355338
      %v6148 = vmul.f32 %v5952, 0.35355338
      %v6149 = vmul.f32 %v5957, 0.35355338
      %v6150 = vmul.f32 %v5960, 0.35355338
      %v6151 = vpack.c.bf16 %v6144, %v6143
      %v6152 = vpack.c.bf16 %v6146, %v6145
      %v6153 = vpack.c.bf16 %v6148, %v6147
      %v6154 = vpack.c.bf16 %v6150, %v6149
      %v6155 = vpack.c.bf16 %v6026, %v6023
      %v6156 = vpack.c.bf16 %v6034, %v6031
      %v6157 = vpack.c.bf16 %v6042, %v6039
      %v6158 = vpack.c.bf16 %v6050, %v6047
      %v6160 = vsel %vm1098, %v6151, 0
      %v6163 = vsel %vm1098, %v6152, 0
      %v6166 = vsel %vm1098, %v6153, 0
      %v6169 = vsel %vm1098, %v6154, 0
      %v6172 = vsel %vm1098, %v6155, 0
      %v6175 = vsel %vm1098, %v6156, 0
      %v6178 = vsel %vm1098, %v6157, 0
      %v6181 = vsel %vm1098, %v6158, 0
      %6183 = vmatprep.subr.bf16.mxu0 0
      %6184 = vmatpush1.bf16.xpose.msra.mxu0 %v6172
      %6185 = vmatprep.subr.bf16.mxu0 0
      %6186 = vmatpush1.bf16.xpose.msra.mxu0 %v6175
      %6187 = vmatprep.subr.bf16.mxu0 0
      %6188 = vmatpush1.bf16.xpose.msra.mxu0 %v6178
      %6189 = vmatprep.subr.bf16.mxu0 0
      %6190 = vmatpush1.bf16.xpose.msra.mxu0 %v6181
      %6191 = vmatprep.subr.bf16.mxu0 0
      %6192 = vmatpush1.bf16.xpose.msra.mxu0 0
      %6193 = vmatprep.subr.bf16.mxu0 0
      %6194 = vmatpush1.bf16.xpose.msra.mxu0 0
      %6195 = vmatprep.subr.bf16.mxu0 0
      %6196 = vmatpush1.bf16.xpose.msra.mxu0 0
      %6197 = vmatprep.subr.bf16.mxu0 0
      %6198 = vmatpush1.bf16.xpose.msra.mxu0 0
      %6199 = vmatprep.subr.bf16.mxu0 0
      %6200 = vmatpush1.bf16.xpose.msra.mxu0 0
      %6201 = vmatprep.subr.bf16.mxu0 0
      %6202 = vmatpush1.bf16.xpose.msra.mxu0 0
      %6203 = vmatprep.subr.bf16.mxu0 0
      %6204 = vmatpush1.bf16.xpose.msra.mxu0 0
      %6205 = vmatprep.subr.bf16.mxu0 0
      %6206 = vmatpush1.bf16.xpose.msra.mxu0 0
      %6207 = vmatprep.subr.bf16.mxu0 0
      %6208 = vmatpush1.bf16.xpose.msra.mxu0 0
      %6209 = vmatprep.subr.bf16.mxu0 0
      %6210 = vmatpush1.bf16.xpose.msra.mxu0 0
      %6211 = vmatprep.subr.bf16.mxu0 0
      %6212 = vmatpush1.bf16.xpose.msra.mxu0 0
      %6213 = vmatprep.subr.bf16.mxu0 0
      %6214 = vmatpush1.bf16.xpose.msra.mxu0 0
      %6215 = vmatprep.mubr.bf16.mxu0 0
      %6216 = vmatmul.mubr.bf16.gmra.mrb[0].mxu0 %v6160
      %v6217 = vpop.f32.mrb[0].mxu0
      %v6218 = vadd.f32 0.0, %v6217
      %v6219 = vpop.f32.mrb[0].mxu0
      %v6220 = vpop.f32.mrb[0].mxu0
      %v6221 = vadd.f32 0.0, %v6220
      %v6222 = vpop.f32.mrb[0].mxu0
      %6223 = vmatprep.mubr.bf16.mxu0 0
      %6224 = vmatmul.mubr.bf16.gmra.mrb[0].mxu0 %v6163
      %v6225 = vpop.f32.mrb[0].mxu0
      %v6226 = vadd.f32 0.0, %v6225
      %v6227 = vpop.f32.mrb[0].mxu0
      %v6228 = vpop.f32.mrb[0].mxu0
      %v6229 = vadd.f32 0.0, %v6228
      %v6230 = vpop.f32.mrb[0].mxu0
      %6231 = vmatprep.mubr.bf16.mxu0 0
      %6232 = vmatmul.mubr.bf16.gmra.mrb[0].mxu0 %v6166
      %v6233 = vpop.f32.mrb[0].mxu0
      %v6234 = vadd.f32 0.0, %v6233
      %v6235 = vpop.f32.mrb[0].mxu0
      %v6236 = vpop.f32.mrb[0].mxu0
      %v6237 = vadd.f32 0.0, %v6236
      %v6238 = vpop.f32.mrb[0].mxu0
      %6239 = vmatprep.mubr.bf16.mxu0 0
      %6240 = vmatmul.mubr.bf16.gmra.mrb[0].mxu0 %v6169
      %v6241 = vpop.f32.mrb[0].mxu0
      %v6242 = vadd.f32 0.0, %v6241
      %v6243 = vpop.f32.mrb[0].mxu0
      %v6244 = vpop.f32.mrb[0].mxu0
      %v6245 = vadd.f32 0.0, %v6244
      %v6246 = vpop.f32.mrb[0].mxu0
      %6247 = vdwg.mxu0
      %v6248 = vsel %vm1188, %v6218, -inf
      %6249 = vmax.xlane.f32.xlu0 %v6248
      %v6250 = vpop.xlane.xlu0 %6249
      %v6251 = vsel %vm1188, %v6221, -inf
      %6252 = vmax.xlane.f32.xlu0 %v6251
      %v6253 = vpop.xlane.xlu0 %6252
      %v6254 = vsel %vm1188, %v6226, -inf
      %6255 = vmax.xlane.f32.xlu0 %v6254
      %v6256 = vpop.xlane.xlu0 %6255
      %v6257 = vsel %vm1188, %v6229, -inf
      %6258 = vmax.xlane.f32.xlu0 %v6257
      %v6259 = vpop.xlane.xlu0 %6258
      %v6260 = vsel %vm1188, %v6234, -inf
      %6261 = vmax.xlane.f32.xlu0 %v6260
      %v6262 = vpop.xlane.xlu0 %6261
      %v6263 = vsel %vm1188, %v6237, -inf
      %6264 = vmax.xlane.f32.xlu0 %v6263
      %v6265 = vpop.xlane.xlu0 %6264
      %v6266 = vsel %vm1188, %v6242, -inf
      %6267 = vmax.xlane.f32.xlu0 %v6266
      %v6268 = vpop.xlane.xlu0 %6267
      %v6269 = vsel %vm1188, %v6245, -inf
      %6270 = vmax.xlane.f32.xlu0 %v6269
      %v6271 = vpop.xlane.xlu0 %6270
      %v6272 = vsub.f32 %v6218, %v6250
      %v6273 = vsub.f32 %v6221, %v6253
      %v6274 = vsub.f32 %v6226, %v6256
      %v6275 = vsub.f32 %v6229, %v6259
      %v6276 = vsub.f32 %v6234, %v6262
      %v6277 = vsub.f32 %v6237, %v6265
      %v6278 = vsub.f32 %v6242, %v6268
      %v6279 = vsub.f32 %v6245, %v6271
      %v6280 = vmul.f32 %v6272, 1.442695
      %v6281 = vpow.pop %v6280
      %v6282 = vmul.f32 %v6273, 1.442695
      %v6283 = vpow.pop %v6282
      %v6284 = vmul.f32 %v6274, 1.442695
      %v6285 = vpow.pop %v6284
      %v6286 = vmul.f32 %v6275, 1.442695
      %v6287 = vpow.pop %v6286
      %v6288 = vmul.f32 %v6276, 1.442695
      %v6289 = vpow.pop %v6288
      %v6290 = vmul.f32 %v6277, 1.442695
      %v6291 = vpow.pop %v6290
      %v6292 = vmul.f32 %v6278, 1.442695
      %v6293 = vpow.pop %v6292
      %v6294 = vmul.f32 %v6279, 1.442695
      %v6295 = vpow.pop %v6294
      %v6296 = vsel %vm1188, %v6281, 0.0
      %6297 = vadd.xlane.f32.xlu0 %v6296
      %v6298 = vpop.xlane.xlu0 %6297
      %v6299 = vsel %vm1188, %v6283, 0.0
      %6300 = vadd.xlane.f32.xlu0 %v6299
      %v6301 = vpop.xlane.xlu0 %6300
      %v6302 = vsel %vm1188, %v6285, 0.0
      %6303 = vadd.xlane.f32.xlu0 %v6302
      %v6304 = vpop.xlane.xlu0 %6303
      %v6305 = vsel %vm1188, %v6287, 0.0
      %6306 = vadd.xlane.f32.xlu0 %v6305
      %v6307 = vpop.xlane.xlu0 %6306
      %v6308 = vsel %vm1188, %v6289, 0.0
      %6309 = vadd.xlane.f32.xlu0 %v6308
      %v6310 = vpop.xlane.xlu0 %6309
      %v6311 = vsel %vm1188, %v6291, 0.0
      %6312 = vadd.xlane.f32.xlu0 %v6311
      %v6313 = vpop.xlane.xlu0 %6312
      %v6314 = vsel %vm1188, %v6293, 0.0
      %6315 = vadd.xlane.f32.xlu0 %v6314
      %v6316 = vpop.xlane.xlu0 %6315
      %v6317 = vsel %vm1188, %v6295, 0.0
      %6318 = vadd.xlane.f32.xlu0 %v6317
      %v6319 = vpop.xlane.xlu0 %6318
      %v6320 = vrcp.pop %v6298
      %v6321 = vrcp.pop %v6301
      %v6322 = vrcp.pop %v6304
      %v6323 = vrcp.pop %v6307
      %v6324 = vrcp.pop %v6310
      %v6325 = vrcp.pop %v6313
      %v6326 = vrcp.pop %v6316
      %v6327 = vrcp.pop %v6319
      %v6328 = vmul.f32 %v6281, %v6320
      %v6329 = vmul.f32 %v6283, %v6321
      %v6330 = vmul.f32 %v6285, %v6322
      %v6331 = vmul.f32 %v6287, %v6323
      %v6332 = vmul.f32 %v6289, %v6324
      %v6333 = vmul.f32 %v6291, %v6325
      %v6334 = vmul.f32 %v6293, %v6326
      %v6335 = vmul.f32 %v6295, %v6327
      %v6336 = vpack.c.bf16 %v6329, %v6328
      %v6337 = vpack.c.bf16 %v6331, %v6330
      %v6338 = vpack.c.bf16 %v6333, %v6332
      %v6339 = vpack.c.bf16 %v6335, %v6334
      %v6340 = vpack.c.bf16 %v6116, %v6113
      %v6341 = vpack.c.bf16 %v6124, %v6121
      %v6342 = vpack.c.bf16 %v6132, %v6129
      %v6343 = vpack.c.bf16 %v6140, %v6137
      %v6345 = vsel %vm1188, %v6336, 0
      %v6348 = vsel %vm1188, %v6337, 0
      %v6351 = vsel %vm1188, %v6338, 0
      %v6354 = vsel %vm1188, %v6339, 0
      %6356 = vmatprep.subr.bf16.mxu0 0
      %6357 = vmatpush1.bf16.msra.mxu0 %v6340
      %6358 = vmatprep.subr.bf16.mxu0 0
      %6359 = vmatpush1.bf16.msra.mxu0 %v6341
      %6360 = vmatprep.subr.bf16.mxu0 0
      %6361 = vmatpush1.bf16.msra.mxu0 %v6342
      %6362 = vmatprep.subr.bf16.mxu0 0
      %6363 = vmatpush1.bf16.msra.mxu0 %v6343
      %6364 = vmatprep.subr.bf16.mxu0 0
      %6365 = vmatpush1.bf16.msra.mxu0 0
      %6366 = vmatprep.subr.bf16.mxu0 0
      %6367 = vmatpush1.bf16.msra.mxu0 0
      %6368 = vmatprep.subr.bf16.mxu0 0
      %6369 = vmatpush1.bf16.msra.mxu0 0
      %6370 = vmatprep.subr.bf16.mxu0 0
      %6371 = vmatpush1.bf16.msra.mxu0 0
      %6372 = vmatprep.subr.bf16.mxu0 0
      %6373 = vmatpush1.bf16.msra.mxu0 0
      %6374 = vmatprep.subr.bf16.mxu0 0
      %6375 = vmatpush1.bf16.msra.mxu0 0
      %6376 = vmatprep.subr.bf16.mxu0 0
      %6377 = vmatpush1.bf16.msra.mxu0 0
      %6378 = vmatprep.subr.bf16.mxu0 0
      %6379 = vmatpush1.bf16.msra.mxu0 0
      %6380 = vmatprep.subr.bf16.mxu0 0
      %6381 = vmatpush1.bf16.msra.mxu0 0
      %6382 = vmatprep.subr.bf16.mxu0 0
      %6383 = vmatpush1.bf16.msra.mxu0 0
      %6384 = vmatprep.subr.bf16.mxu0 0
      %6385 = vmatpush1.bf16.msra.mxu0 0
      %6386 = vmatprep.subr.bf16.mxu0 0
      %6387 = vmatpush1.bf16.msra.mxu0 0
      %6388 = vmatprep.mubr.bf16.mxu0 0
      %6389 = vmatmul.mubr.bf16.gmra.mrb[0].mxu0 %v6345
      %v6390 = vpop.f32.mrb[0].mxu0
      %v6391 = vadd.f32 0.0, %v6390
      %v6392 = vpop.f32.mrb[0].mxu0
      %v6393 = vpop.f32.mrb[0].mxu0
      %v6394 = vadd.f32 0.0, %v6393
      %v6395 = vpop.f32.mrb[0].mxu0
      %6396 = vmatprep.mubr.bf16.mxu0 0
      %6397 = vmatmul.mubr.bf16.gmra.mrb[0].mxu0 %v6348
      %v6398 = vpop.f32.mrb[0].mxu0
      %v6399 = vadd.f32 0.0, %v6398
      %v6400 = vpop.f32.mrb[0].mxu0
      %v6401 = vpop.f32.mrb[0].mxu0
      %v6402 = vadd.f32 0.0, %v6401
      %v6403 = vpop.f32.mrb[0].mxu0
      %6404 = vmatprep.mubr.bf16.mxu0 0
      %6405 = vmatmul.mubr.bf16.gmra.mrb[0].mxu0 %v6351
      %v6406 = vpop.f32.mrb[0].mxu0
      %v6407 = vadd.f32 0.0, %v6406
      %v6408 = vpop.f32.mrb[0].mxu0
      %v6409 = vpop.f32.mrb[0].mxu0
      %v6410 = vadd.f32 0.0, %v6409
      %v6411 = vpop.f32.mrb[0].mxu0
      %6412 = vmatprep.mubr.bf16.mxu0 0
      %6413 = vmatmul.mubr.bf16.gmra.mrb[0].mxu0 %v6354
      %v6414 = vpop.f32.mrb[0].mxu0
      %v6415 = vadd.f32 0.0, %v6414
      %v6416 = vpop.f32.mrb[0].mxu0
      %v6417 = vpop.f32.mrb[0].mxu0
      %v6418 = vadd.f32 0.0, %v6417
      %v6419 = vpop.f32.mrb[0].mxu0
      %6420 = vdwg.mxu0
      %v6421 = vpack.c.bf16 %v6394, %v6391
      %v6422 = vpack.c.bf16 %v6402, %v6399
      %v6423 = vpack.c.bf16 %v6410, %v6407
      %v6424 = vpack.c.bf16 %v6418, %v6415
      %s6425 = scalar_lea.vmem %s9, 28
      %v6426 = vld [vmem:[%s6425] sm:$0xf]
      %v6428 = vsel %vm1098, %v6421, 0
      %v6431 = vsel %vm1098, %v6422, 0
      %v6434 = vsel %vm1098, %v6423, 0
      %v6437 = vsel %vm1098, %v6424, 0
      %v6440 = vsel %vm1933, %v6426, 0
      %6442 = vmatprep.subr.bf16.mxu0 0
      %6443 = vmatpush1.bf16.msra.mxu0 %v6440
      %6444 = vmatprep.subr.bf16.mxu0 0
      %6445 = vmatpush1.bf16.msra.mxu0 0
      %6446 = vmatprep.subr.bf16.mxu0 0
      %6447 = vmatpush1.bf16.msra.mxu0 0
      %6448 = vmatprep.subr.bf16.mxu0 0
      %6449 = vmatpush1.bf16.msra.mxu0 0
      %6450 = vmatprep.subr.bf16.mxu0 0
      %6451 = vmatpush1.bf16.msra.mxu0 0
      %6452 = vmatprep.subr.bf16.mxu0 0
      %6453 = vmatpush1.bf16.msra.mxu0 0
      %6454 = vmatprep.subr.bf16.mxu0 0
      %6455 = vmatpush1.bf16.msra.mxu0 0
      %6456 = vmatprep.subr.bf16.mxu0 0
      %6457 = vmatpush1.bf16.msra.mxu0 0
      %6458 = vmatprep.subr.bf16.mxu0 0
      %6459 = vmatpush1.bf16.msra.mxu0 0
      %6460 = vmatprep.subr.bf16.mxu0 0
      %6461 = vmatpush1.bf16.msra.mxu0 0
      %6462 = vmatprep.subr.bf16.mxu0 0
      %6463 = vmatpush1.bf16.msra.mxu0 0
      %6464 = vmatprep.subr.bf16.mxu0 0
      %6465 = vmatpush1.bf16.msra.mxu0 0
      %6466 = vmatprep.subr.bf16.mxu0 0
      %6467 = vmatpush1.bf16.msra.mxu0 0
      %6468 = vmatprep.subr.bf16.mxu0 0
      %6469 = vmatpush1.bf16.msra.mxu0 0
      %6470 = vmatprep.subr.bf16.mxu0 0
      %6471 = vmatpush1.bf16.msra.mxu0 0
      %6472 = vmatprep.subr.bf16.mxu0 0
      %6473 = vmatpush1.bf16.msra.mxu0 0
      %6474 = vmatprep.mubr.bf16.mxu0 0
      %6475 = vmatmul.mubr.bf16.gmra.mrb[0].mxu0 %v6428
      %v6476 = vpop.f32.mrb[0].mxu0
      %v6477 = vadd.f32 0.0, %v6476
      %v6478 = vpop.f32.mrb[0].mxu0
      %v6479 = vpop.f32.mrb[0].mxu0
      %v6480 = vadd.f32 0.0, %v6479
      %v6481 = vpop.f32.mrb[0].mxu0
      %6482 = vmatprep.mubr.bf16.mxu0 0
      %6483 = vmatmul.mubr.bf16.gmra.mrb[0].mxu0 %v6431
      %v6484 = vpop.f32.mrb[0].mxu0
      %v6485 = vadd.f32 0.0, %v6484
      %v6486 = vpop.f32.mrb[0].mxu0
      %v6487 = vpop.f32.mrb[0].mxu0
      %v6488 = vadd.f32 0.0, %v6487
      %v6489 = vpop.f32.mrb[0].mxu0
      %6490 = vmatprep.mubr.bf16.mxu0 0
      %6491 = vmatmul.mubr.bf16.gmra.mrb[0].mxu0 %v6434
      %v6492 = vpop.f32.mrb[0].mxu0
      %v6493 = vadd.f32 0.0, %v6492
      %v6494 = vpop.f32.mrb[0].mxu0
      %v6495 = vpop.f32.mrb[0].mxu0
      %v6496 = vadd.f32 0.0, %v6495
      %v6497 = vpop.f32.mrb[0].mxu0
      %6498 = vmatprep.mubr.bf16.mxu0 0
      %6499 = vmatmul.mubr.bf16.gmra.mrb[0].mxu0 %v6437
      %v6500 = vpop.f32.mrb[0].mxu0
      %v6501 = vadd.f32 0.0, %v6500
      %v6502 = vpop.f32.mrb[0].mxu0
      %v6503 = vpop.f32.mrb[0].mxu0
      %v6504 = vadd.f32 0.0, %v6503
      %v6505 = vpop.f32.mrb[0].mxu0
      %6506 = vdwg.mxu0
      %v6507 = vadd.f32 %v5865, %v6477
      %v6508 = vadd.f32 %v5866, %v6480
      %v6509 = vadd.f32 %v5867, %v6485
      %v6510 = vadd.f32 %v5868, %v6488
      %v6511 = vadd.f32 %v5869, %v6493
      %v6512 = vadd.f32 %v5870, %v6496
      %v6513 = vadd.f32 %v5871, %v6501
      %v6514 = vadd.f32 %v5872, %v6504
      %v6515 = vadd.f32 %v3803, %v6507
      %v6516 = vadd.f32 %v3804, %v6508
      %v6517 = vadd.f32 %v3805, %v6509
      %v6518 = vadd.f32 %v3806, %v6510
      %v6519 = vadd.f32 %v3807, %v6511
      %v6520 = vadd.f32 %v3808, %v6512
      %v6521 = vadd.f32 %v3809, %v6513
      %v6522 = vadd.f32 %v3810, %v6514
      %s6523 = scalar_lea.vmem %s10, 1
      %v6524 = vld [vmem:[%s6523] sm:$0x1]
      %v6526 = vlaneseq
      %v6527 = vshrl.u32 %v6526, 7
      %v6528 = vsub.s32 0, %v6527
      %v6529 = vrot.slane %v6524, %v6528
      %v6531 = vadd.f32 %v6515, %v6529
      %v6532 = vadd.f32 %v6516, %v6529
      %v6533 = vadd.f32 %v6517, %v6529
      %v6534 = vadd.f32 %v6518, %v6529
      %v6535 = vadd.f32 %v6519, %v6529
      %v6536 = vadd.f32 %v6520, %v6529
      %v6537 = vadd.f32 %v6521, %v6529
      %v6538 = vadd.f32 %v6522, %v6529
      %s6539 = scalar_lea.vmem %s11, 1
      %v6540 = vld [vmem:[%s6539] sm:$0x1]
      %s6541 = scalar_lea.vmem %s12, 1
      %v6542 = vld [vmem:[%s6541] sm:$0x1]
      %v6543 = vsel %vm668, %v6531, 0.0
      %6544 = vadd.xlane.f32.xlu0 %v6543
      %v6545 = vpop.xlane.xlu0 %6544
      %v6546 = vsel %vm668, %v6532, 0.0
      %6547 = vadd.xlane.f32.xlu0 %v6546
      %v6548 = vpop.xlane.xlu0 %6547
      %v6549 = vsel %vm668, %v6533, 0.0
      %6550 = vadd.xlane.f32.xlu0 %v6549
      %v6551 = vpop.xlane.xlu0 %6550
      %v6552 = vsel %vm668, %v6534, 0.0
      %6553 = vadd.xlane.f32.xlu0 %v6552
      %v6554 = vpop.xlane.xlu0 %6553
      %v6555 = vsel %vm668, %v6535, 0.0
      %6556 = vadd.xlane.f32.xlu0 %v6555
      %v6557 = vpop.xlane.xlu0 %6556
      %v6558 = vsel %vm668, %v6536, 0.0
      %6559 = vadd.xlane.f32.xlu0 %v6558
      %v6560 = vpop.xlane.xlu0 %6559
      %v6561 = vsel %vm668, %v6537, 0.0
      %6562 = vadd.xlane.f32.xlu0 %v6561
      %v6563 = vpop.xlane.xlu0 %6562
      %v6564 = vsel %vm668, %v6538, 0.0
      %6565 = vadd.xlane.f32.xlu0 %v6564
      %v6566 = vpop.xlane.xlu0 %6565
      %v6567 = vmul.f32 %v6545, %v693
      %v6568 = vmul.f32 %v6548, %v693
      %v6569 = vmul.f32 %v6551, %v693
      %v6570 = vmul.f32 %v6554, %v693
      %v6571 = vmul.f32 %v6557, %v693
      %v6572 = vmul.f32 %v6560, %v693
      %v6573 = vmul.f32 %v6563, %v693
      %v6574 = vmul.f32 %v6566, %v693
      %v6575 = vsub.f32 %v6531, %v6567
      %v6576 = vsub.f32 %v6532, %v6568
      %v6577 = vsub.f32 %v6533, %v6569
      %v6578 = vsub.f32 %v6534, %v6570
      %v6579 = vsub.f32 %v6535, %v6571
      %v6580 = vsub.f32 %v6536, %v6572
      %v6581 = vsub.f32 %v6537, %v6573
      %v6582 = vsub.f32 %v6538, %v6574
      %v6583 = vmul.f32 %v6575, %v6575
      %v6584 = vmul.f32 %v6576, %v6576
      %v6585 = vmul.f32 %v6577, %v6577
      %v6586 = vmul.f32 %v6578, %v6578
      %v6587 = vmul.f32 %v6579, %v6579
      %v6588 = vmul.f32 %v6580, %v6580
      %v6589 = vmul.f32 %v6581, %v6581
      %v6590 = vmul.f32 %v6582, %v6582
      %v6591 = vsel %vm668, %v6583, 0.0
      %6592 = vadd.xlane.f32.xlu0 %v6591
      %v6593 = vpop.xlane.xlu0 %6592
      %v6594 = vsel %vm668, %v6584, 0.0
      %6595 = vadd.xlane.f32.xlu0 %v6594
      %v6596 = vpop.xlane.xlu0 %6595
      %v6597 = vsel %vm668, %v6585, 0.0
      %6598 = vadd.xlane.f32.xlu0 %v6597
      %v6599 = vpop.xlane.xlu0 %6598
      %v6600 = vsel %vm668, %v6586, 0.0
      %6601 = vadd.xlane.f32.xlu0 %v6600
      %v6602 = vpop.xlane.xlu0 %6601
      %v6603 = vsel %vm668, %v6587, 0.0
      %6604 = vadd.xlane.f32.xlu0 %v6603
      %v6605 = vpop.xlane.xlu0 %6604
      %v6606 = vsel %vm668, %v6588, 0.0
      %6607 = vadd.xlane.f32.xlu0 %v6606
      %v6608 = vpop.xlane.xlu0 %6607
      %v6609 = vsel %vm668, %v6589, 0.0
      %6610 = vadd.xlane.f32.xlu0 %v6609
      %v6611 = vpop.xlane.xlu0 %6610
      %v6612 = vsel %vm668, %v6590, 0.0
      %6613 = vadd.xlane.f32.xlu0 %v6612
      %v6614 = vpop.xlane.xlu0 %6613
      %v6615 = vmul.f32 %v6593, %v693
      %v6616 = vmul.f32 %v6596, %v693
      %v6617 = vmul.f32 %v6599, %v693
      %v6618 = vmul.f32 %v6602, %v693
      %v6619 = vmul.f32 %v6605, %v693
      %v6620 = vmul.f32 %v6608, %v693
      %v6621 = vmul.f32 %v6611, %v693
      %v6622 = vmul.f32 %v6614, %v693
      %v6623 = vadd.f32 %v6615, 1e-05
      %v6624 = vadd.f32 %v6616, 1e-05
      %v6625 = vadd.f32 %v6617, 1e-05
      %v6626 = vadd.f32 %v6618, 1e-05
      %v6627 = vadd.f32 %v6619, 1e-05
      %v6628 = vadd.f32 %v6620, 1e-05
      %v6629 = vadd.f32 %v6621, 1e-05
      %v6630 = vadd.f32 %v6622, 1e-05
      %v6631 = vrsqrt.pop %v6623
      %v6632 = vrsqrt.pop %v6624
      %v6633 = vrsqrt.pop %v6625
      %v6634 = vrsqrt.pop %v6626
      %v6635 = vrsqrt.pop %v6627
      %v6636 = vrsqrt.pop %v6628
      %v6637 = vrsqrt.pop %v6629
      %v6638 = vrsqrt.pop %v6630
      %v6639 = vmul.f32 %v6575, %v6631
      %v6640 = vmul.f32 %v6576, %v6632
      %v6641 = vmul.f32 %v6577, %v6633
      %v6642 = vmul.f32 %v6578, %v6634
      %v6643 = vmul.f32 %v6579, %v6635
      %v6644 = vmul.f32 %v6580, %v6636
      %v6645 = vmul.f32 %v6581, %v6637
      %v6646 = vmul.f32 %v6582, %v6638
      %v6648 = vlaneseq
      %v6649 = vshrl.u32 %v6648, 7
      %v6650 = vsub.s32 0, %v6649
      %v6651 = vrot.slane %v6540, %v6650
      %v6653 = vmul.f32 %v6639, %v6651
      %v6654 = vmul.f32 %v6640, %v6651
      %v6655 = vmul.f32 %v6641, %v6651
      %v6656 = vmul.f32 %v6642, %v6651
      %v6657 = vmul.f32 %v6643, %v6651
      %v6658 = vmul.f32 %v6644, %v6651
      %v6659 = vmul.f32 %v6645, %v6651
      %v6660 = vmul.f32 %v6646, %v6651
      %v6662 = vlaneseq
      %v6663 = vshrl.u32 %v6662, 7
      %v6664 = vsub.s32 0, %v6663
      %v6665 = vrot.slane %v6542, %v6664
      %v6667 = vadd.f32 %v6653, %v6665
      %v6668 = vadd.f32 %v6654, %v6665
      %v6669 = vadd.f32 %v6655, %v6665
      %v6670 = vadd.f32 %v6656, %v6665
      %v6671 = vadd.f32 %v6657, %v6665
      %v6672 = vadd.f32 %v6658, %v6665
      %v6673 = vadd.f32 %v6659, %v6665
      %v6674 = vadd.f32 %v6660, %v6665
      %v6675 = vpack.c.bf16 %v6668, %v6667
      %v6676 = vpack.c.bf16 %v6670, %v6669
      %v6677 = vpack.c.bf16 %v6672, %v6671
      %v6678 = vpack.c.bf16 %v6674, %v6673
      %s6679 = scalar_lea.vmem %s13, 16
      %v6680 = vld [vmem:[%s6679] sm:$0xf]
      %v6681 = vld [vmem:[%s6679 + $0x4] sm:$0xf]
      %v6682 = vld [vmem:[%s6679 + $0x8] sm:$0xf]
      %v6683 = vld [vmem:[%s6679 + $0xc] sm:$0xf]
      %s6684 = scalar_lea.vmem %s14, 1
      %v6685 = vld [vmem:[%s6684] sm:$0x1]
      %v6687 = vlaneseq
      %v6688 = vshrl.u32 %v6687, 7
      %v6689 = vsub.s32 0, %v6688
      %v6690 = vrot.slane %v6685, %v6689
      %v6696 = vunpack.c.l.b16 %v6680
      %v6697 = vunpack.c.l.b16 %v6681
      %v6698 = vunpack.c.l.b16 %v6682
      %v6699 = vunpack.c.l.b16 %v6683
      %v6700 = vpack.c.b16 %v6697, %v6696
      %v6701 = vpack.c.b16 %v6699, %v6698
      %v6705 = vsel %vm668, %v6675, 0
      %v6708 = vsel %vm668, %v6676, 0
      %v6711 = vsel %vm668, %v6677, 0
      %v6714 = vsel %vm668, %v6678, 0
      %6716 = vmatprep.subr.bf16.mxu0 0
      %6717 = vmatpush1.bf16.msra.mxu0 %v6700
      %6718 = vmatprep.subr.bf16.mxu0 0
      %6719 = vmatpush1.bf16.msra.mxu0 %v6701
      %6720 = vmatprep.subr.bf16.mxu0 0
      %6721 = vmatpush1.bf16.msra.mxu0 0
      %6722 = vmatprep.subr.bf16.mxu0 0
      %6723 = vmatpush1.bf16.msra.mxu0 0
      %6724 = vmatprep.subr.bf16.mxu0 0
      %6725 = vmatpush1.bf16.msra.mxu0 0
      %6726 = vmatprep.subr.bf16.mxu0 0
      %6727 = vmatpush1.bf16.msra.mxu0 0
      %6728 = vmatprep.subr.bf16.mxu0 0
      %6729 = vmatpush1.bf16.msra.mxu0 0
      %6730 = vmatprep.subr.bf16.mxu0 0
      %6731 = vmatpush1.bf16.msra.mxu0 0
      %6732 = vmatprep.subr.bf16.mxu0 0
      %6733 = vmatpush1.bf16.msra.mxu0 0
      %6734 = vmatprep.subr.bf16.mxu0 0
      %6735 = vmatpush1.bf16.msra.mxu0 0
      %6736 = vmatprep.subr.bf16.mxu0 0
      %6737 = vmatpush1.bf16.msra.mxu0 0
      %6738 = vmatprep.subr.bf16.mxu0 0
      %6739 = vmatpush1.bf16.msra.mxu0 0
      %6740 = vmatprep.subr.bf16.mxu0 0
      %6741 = vmatpush1.bf16.msra.mxu0 0
      %6742 = vmatprep.subr.bf16.mxu0 0
      %6743 = vmatpush1.bf16.msra.mxu0 0
      %6744 = vmatprep.subr.bf16.mxu0 0
      %6745 = vmatpush1.bf16.msra.mxu0 0
      %6746 = vmatprep.subr.bf16.mxu0 0
      %6747 = vmatpush1.bf16.msra.mxu0 0
      %6748 = vmatprep.mubr.bf16.mxu0 0
      %6749 = vmatmul.mubr.bf16.gmra.mrb[0].mxu0 %v6705
      %v6750 = vpop.f32.mrb[0].mxu0
      %v6751 = vadd.f32 %v6690, %v6750
      %v6752 = vpop.f32.mrb[0].mxu0
      %v6753 = vpop.f32.mrb[0].mxu0
      %v6754 = vadd.f32 %v6690, %v6753
      %v6755 = vpop.f32.mrb[0].mxu0
      %6756 = vmatprep.mubr.bf16.mxu0 0
      %6757 = vmatmul.mubr.bf16.gmra.mrb[0].mxu0 %v6708
      %v6758 = vpop.f32.mrb[0].mxu0
      %v6759 = vadd.f32 %v6690, %v6758
      %v6760 = vpop.f32.mrb[0].mxu0
      %v6761 = vpop.f32.mrb[0].mxu0
      %v6762 = vadd.f32 %v6690, %v6761
      %v6763 = vpop.f32.mrb[0].mxu0
      %6764 = vmatprep.mubr.bf16.mxu0 0
      %6765 = vmatmul.mubr.bf16.gmra.mrb[0].mxu0 %v6711
      %v6766 = vpop.f32.mrb[0].mxu0
      %v6767 = vadd.f32 %v6690, %v6766
      %v6768 = vpop.f32.mrb[0].mxu0
      %v6769 = vpop.f32.mrb[0].mxu0
      %v6770 = vadd.f32 %v6690, %v6769
      %v6771 = vpop.f32.mrb[0].mxu0
      %6772 = vmatprep.mubr.bf16.mxu0 0
      %6773 = vmatmul.mubr.bf16.gmra.mrb[0].mxu0 %v6714
      %v6774 = vpop.f32.mrb[0].mxu0
      %v6775 = vadd.f32 %v6690, %v6774
      %v6776 = vpop.f32.mrb[0].mxu0
      %v6777 = vpop.f32.mrb[0].mxu0
      %v6778 = vadd.f32 %v6690, %v6777
      %v6779 = vpop.f32.mrb[0].mxu0
      %6780 = vdwg.mxu0
      %v6781 = vxor.u32 %v6751, 2147483648
      %v6782 = vxor.u32 %v6754, 2147483648
      %v6783 = vxor.u32 %v6759, 2147483648
      %v6784 = vxor.u32 %v6762, 2147483648
      %v6785 = vxor.u32 %v6767, 2147483648
      %v6786 = vxor.u32 %v6770, 2147483648
      %v6787 = vxor.u32 %v6775, 2147483648
      %v6788 = vxor.u32 %v6778, 2147483648
      %v6789 = vmul.f32 %v6781, 1.442695
      %v6790 = vpow.pop %v6789
      %v6791 = vmul.f32 %v6782, 1.442695
      %v6792 = vpow.pop %v6791
      %v6793 = vmul.f32 %v6783, 1.442695
      %v6794 = vpow.pop %v6793
      %v6795 = vmul.f32 %v6784, 1.442695
      %v6796 = vpow.pop %v6795
      %v6797 = vmul.f32 %v6785, 1.442695
      %v6798 = vpow.pop %v6797
      %v6799 = vmul.f32 %v6786, 1.442695
      %v6800 = vpow.pop %v6799
      %v6801 = vmul.f32 %v6787, 1.442695
      %v6802 = vpow.pop %v6801
      %v6803 = vmul.f32 %v6788, 1.442695
      %v6804 = vpow.pop %v6803
      %v6805 = vadd.f32 %v6790, 1.0
      %v6806 = vadd.f32 %v6792, 1.0
      %v6807 = vadd.f32 %v6794, 1.0
      %v6808 = vadd.f32 %v6796, 1.0
      %v6809 = vadd.f32 %v6798, 1.0
      %v6810 = vadd.f32 %v6800, 1.0
      %v6811 = vadd.f32 %v6802, 1.0
      %v6812 = vadd.f32 %v6804, 1.0
      %v6813 = vrcp.pop %v6805
      %v6814 = vmul.f32 1.0, %v6813
      %v6815 = vrcp.pop %v6806
      %v6816 = vmul.f32 1.0, %v6815
      %v6817 = vrcp.pop %v6807
      %v6818 = vmul.f32 1.0, %v6817
      %v6819 = vrcp.pop %v6808
      %v6820 = vmul.f32 1.0, %v6819
      %v6821 = vrcp.pop %v6809
      %v6822 = vmul.f32 1.0, %v6821
      %v6823 = vrcp.pop %v6810
      %v6824 = vmul.f32 1.0, %v6823
      %v6825 = vrcp.pop %v6811
      %v6826 = vmul.f32 1.0, %v6825
      %v6827 = vrcp.pop %v6812
      %v6828 = vmul.f32 1.0, %v6827
      %v6829 = vmul.f32 %v6751, %v6814
      %v6830 = vmul.f32 %v6754, %v6816
      %v6831 = vmul.f32 %v6759, %v6818
      %v6832 = vmul.f32 %v6762, %v6820
      %v6833 = vmul.f32 %v6767, %v6822
      %v6834 = vmul.f32 %v6770, %v6824
      %v6835 = vmul.f32 %v6775, %v6826
      %v6836 = vmul.f32 %v6778, %v6828
      %v6837 = vpack.c.bf16 %v6830, %v6829
      %v6838 = vpack.c.bf16 %v6832, %v6831
      %v6839 = vpack.c.bf16 %v6834, %v6833
      %v6840 = vpack.c.bf16 %v6836, %v6835
      %s6841 = scalar_lea.vmem %s15, 32
      %v6842 = vld [vmem:[%s6841] sm:$0xf]
      %v6843 = vld [vmem:[%s6841 + $0x4] sm:$0xf]
      %v6844 = vld [vmem:[%s6841 + $0x8] sm:$0xf]
      %v6845 = vld [vmem:[%s6841 + $0xc] sm:$0xf]
      %v6846 = vld [vmem:[%s6841 + $0x10] sm:$0xf]
      %v6847 = vld [vmem:[%s6841 + $0x14] sm:$0xf]
      %v6848 = vld [vmem:[%s6841 + $0x18] sm:$0xf]
      %v6849 = vld [vmem:[%s6841 + $0x1c] sm:$0xf]
      %s6850 = scalar_lea.vmem %s16, 1
      %v6851 = vld [vmem:[%s6850] sm:$0x1]
      %v6853 = vlaneseq
      %v6854 = vshrl.u32 %v6853, 7
      %v6855 = vsub.s32 0, %v6854
      %v6856 = vrot.slane %v6851, %v6855
      %v6866 = vunpack.c.l.b16 %v6842
      %v6867 = vunpack.c.l.b16 %v6843
      %v6868 = vunpack.c.l.b16 %v6844
      %v6869 = vunpack.c.l.b16 %v6845
      %v6870 = vunpack.c.l.b16 %v6846
      %v6871 = vunpack.c.l.b16 %v6847
      %v6872 = vunpack.c.l.b16 %v6848
      %v6873 = vunpack.c.l.b16 %v6849
      %v6874 = vpack.c.b16 %v6867, %v6866
      %v6875 = vpack.c.b16 %v6869, %v6868
      %v6876 = vpack.c.b16 %v6871, %v6870
      %v6877 = vpack.c.b16 %v6873, %v6872
      %v6883 = vsel %vm1188, %v6837, 0
      %v6886 = vsel %vm1188, %v6838, 0
      %v6889 = vsel %vm1188, %v6839, 0
      %v6892 = vsel %vm1188, %v6840, 0
      %6894 = vmatprep.subr.bf16.mxu0 0
      %6895 = vmatpush1.bf16.msra.mxu0 %v6874
      %6896 = vmatprep.subr.bf16.mxu0 0
      %6897 = vmatpush1.bf16.msra.mxu0 %v6875
      %6898 = vmatprep.subr.bf16.mxu0 0
      %6899 = vmatpush1.bf16.msra.mxu0 %v6876
      %6900 = vmatprep.subr.bf16.mxu0 0
      %6901 = vmatpush1.bf16.msra.mxu0 %v6877
      %6902 = vmatprep.subr.bf16.mxu0 0
      %6903 = vmatpush1.bf16.msra.mxu0 0
      %6904 = vmatprep.subr.bf16.mxu0 0
      %6905 = vmatpush1.bf16.msra.mxu0 0
      %6906 = vmatprep.subr.bf16.mxu0 0
      %6907 = vmatpush1.bf16.msra.mxu0 0
      %6908 = vmatprep.subr.bf16.mxu0 0
      %6909 = vmatpush1.bf16.msra.mxu0 0
      %6910 = vmatprep.subr.bf16.mxu0 0
      %6911 = vmatpush1.bf16.msra.mxu0 0
      %6912 = vmatprep.subr.bf16.mxu0 0
      %6913 = vmatpush1.bf16.msra.mxu0 0
      %6914 = vmatprep.subr.bf16.mxu0 0
      %6915 = vmatpush1.bf16.msra.mxu0 0
      %6916 = vmatprep.subr.bf16.mxu0 0
      %6917 = vmatpush1.bf16.msra.mxu0 0
      %6918 = vmatprep.subr.bf16.mxu0 0
      %6919 = vmatpush1.bf16.msra.mxu0 0
      %6920 = vmatprep.subr.bf16.mxu0 0
      %6921 = vmatpush1.bf16.msra.mxu0 0
      %6922 = vmatprep.subr.bf16.mxu0 0
      %6923 = vmatpush1.bf16.msra.mxu0 0
      %6924 = vmatprep.subr.bf16.mxu0 0
      %6925 = vmatpush1.bf16.msra.mxu0 0
      %6926 = vmatprep.mubr.bf16.mxu0 0
      %6927 = vmatmul.mubr.bf16.gmra.mrb[0].mxu0 %v6883
      %v6928 = vpop.f32.mrb[0].mxu0
      %v6929 = vadd.f32 %v6856, %v6928
      %v6930 = vpop.f32.mrb[0].mxu0
      %v6931 = vpop.f32.mrb[0].mxu0
      %v6932 = vadd.f32 %v6856, %v6931
      %v6933 = vpop.f32.mrb[0].mxu0
      %6934 = vmatprep.mubr.bf16.mxu0 0
      %6935 = vmatmul.mubr.bf16.gmra.mrb[0].mxu0 %v6886
      %v6936 = vpop.f32.mrb[0].mxu0
      %v6937 = vadd.f32 %v6856, %v6936
      %v6938 = vpop.f32.mrb[0].mxu0
      %v6939 = vpop.f32.mrb[0].mxu0
      %v6940 = vadd.f32 %v6856, %v6939
      %v6941 = vpop.f32.mrb[0].mxu0
      %6942 = vmatprep.mubr.bf16.mxu0 0
      %6943 = vmatmul.mubr.bf16.gmra.mrb[0].mxu0 %v6889
      %v6944 = vpop.f32.mrb[0].mxu0
      %v6945 = vadd.f32 %v6856, %v6944
      %v6946 = vpop.f32.mrb[0].mxu0
      %v6947 = vpop.f32.mrb[0].mxu0
      %v6948 = vadd.f32 %v6856, %v6947
      %v6949 = vpop.f32.mrb[0].mxu0
      %6950 = vmatprep.mubr.bf16.mxu0 0
      %6951 = vmatmul.mubr.bf16.gmra.mrb[0].mxu0 %v6892
      %v6952 = vpop.f32.mrb[0].mxu0
      %v6953 = vadd.f32 %v6856, %v6952
      %v6954 = vpop.f32.mrb[0].mxu0
      %v6955 = vpop.f32.mrb[0].mxu0
      %v6956 = vadd.f32 %v6856, %v6955
      %v6957 = vpop.f32.mrb[0].mxu0
      %6958 = vdwg.mxu0
      %v6959 = vadd.f32 %v6531, %v6929
      %v6960 = vadd.f32 %v6532, %v6932
      %v6961 = vadd.f32 %v6533, %v6937
      %v6962 = vadd.f32 %v6534, %v6940
      %v6963 = vadd.f32 %v6535, %v6945
      %v6964 = vadd.f32 %v6536, %v6948
      %v6965 = vadd.f32 %v6537, %v6953
      %v6966 = vadd.f32 %v6538, %v6956
      %v6967 = vld [vmem:[%s17] sm:$0x1]
      %v6968 = vld [vmem:[%s18] sm:$0x1]
      %v6969 = vsel %vm668, %v6959, 0.0
      %6970 = vadd.xlane.f32.xlu0 %v6969
      %v6971 = vpop.xlane.xlu0 %6970
      %v6972 = vsel %vm668, %v6960, 0.0
      %6973 = vadd.xlane.f32.xlu0 %v6972
      %v6974 = vpop.xlane.xlu0 %6973
      %v6975 = vsel %vm668, %v6961, 0.0
      %6976 = vadd.xlane.f32.xlu0 %v6975
      %v6977 = vpop.xlane.xlu0 %6976
      %v6978 = vsel %vm668, %v6962, 0.0
      %6979 = vadd.xlane.f32.xlu0 %v6978
      %v6980 = vpop.xlane.xlu0 %6979
      %v6981 = vsel %vm668, %v6963, 0.0
      %6982 = vadd.xlane.f32.xlu0 %v6981
      %v6983 = vpop.xlane.xlu0 %6982
      %v6984 = vsel %vm668, %v6964, 0.0
      %6985 = vadd.xlane.f32.xlu0 %v6984
      %v6986 = vpop.xlane.xlu0 %6985
      %v6987 = vsel %vm668, %v6965, 0.0
      %6988 = vadd.xlane.f32.xlu0 %v6987
      %v6989 = vpop.xlane.xlu0 %6988
      %v6990 = vsel %vm668, %v6966, 0.0
      %6991 = vadd.xlane.f32.xlu0 %v6990
      %v6992 = vpop.xlane.xlu0 %6991
      %v6993 = vmul.f32 %v6971, %v693
      %v6994 = vmul.f32 %v6974, %v693
      %v6995 = vmul.f32 %v6977, %v693
      %v6996 = vmul.f32 %v6980, %v693
      %v6997 = vmul.f32 %v6983, %v693
      %v6998 = vmul.f32 %v6986, %v693
      %v6999 = vmul.f32 %v6989, %v693
      %v7000 = vmul.f32 %v6992, %v693
      %v7001 = vsub.f32 %v6959, %v6993
      %v7002 = vsub.f32 %v6960, %v6994
      %v7003 = vsub.f32 %v6961, %v6995
      %v7004 = vsub.f32 %v6962, %v6996
      %v7005 = vsub.f32 %v6963, %v6997
      %v7006 = vsub.f32 %v6964, %v6998
      %v7007 = vsub.f32 %v6965, %v6999
      %v7008 = vsub.f32 %v6966, %v7000
      %v7009 = vmul.f32 %v7001, %v7001
      %v7010 = vmul.f32 %v7002, %v7002
      %v7011 = vmul.f32 %v7003, %v7003
      %v7012 = vmul.f32 %v7004, %v7004
      %v7013 = vmul.f32 %v7005, %v7005
      %v7014 = vmul.f32 %v7006, %v7006
      %v7015 = vmul.f32 %v7007, %v7007
      %v7016 = vmul.f32 %v7008, %v7008
      %v7017 = vsel %vm668, %v7009, 0.0
      %7018 = vadd.xlane.f32.xlu0 %v7017
      %v7019 = vpop.xlane.xlu0 %7018
      %v7020 = vsel %vm668, %v7010, 0.0
      %7021 = vadd.xlane.f32.xlu0 %v7020
      %v7022 = vpop.xlane.xlu0 %7021
      %v7023 = vsel %vm668, %v7011, 0.0
      %7024 = vadd.xlane.f32.xlu0 %v7023
      %v7025 = vpop.xlane.xlu0 %7024
      %v7026 = vsel %vm668, %v7012, 0.0
      %7027 = vadd.xlane.f32.xlu0 %v7026
      %v7028 = vpop.xlane.xlu0 %7027
      %v7029 = vsel %vm668, %v7013, 0.0
      %7030 = vadd.xlane.f32.xlu0 %v7029
      %v7031 = vpop.xlane.xlu0 %7030
      %v7032 = vsel %vm668, %v7014, 0.0
      %7033 = vadd.xlane.f32.xlu0 %v7032
      %v7034 = vpop.xlane.xlu0 %7033
      %v7035 = vsel %vm668, %v7015, 0.0
      %7036 = vadd.xlane.f32.xlu0 %v7035
      %v7037 = vpop.xlane.xlu0 %7036
      %v7038 = vsel %vm668, %v7016, 0.0
      %7039 = vadd.xlane.f32.xlu0 %v7038
      %v7040 = vpop.xlane.xlu0 %7039
      %v7041 = vmul.f32 %v7019, %v693
      %v7042 = vmul.f32 %v7022, %v693
      %v7043 = vmul.f32 %v7025, %v693
      %v7044 = vmul.f32 %v7028, %v693
      %v7045 = vmul.f32 %v7031, %v693
      %v7046 = vmul.f32 %v7034, %v693
      %v7047 = vmul.f32 %v7037, %v693
      %v7048 = vmul.f32 %v7040, %v693
      %v7049 = vadd.f32 %v7041, 1e-05
      %v7050 = vadd.f32 %v7042, 1e-05
      %v7051 = vadd.f32 %v7043, 1e-05
      %v7052 = vadd.f32 %v7044, 1e-05
      %v7053 = vadd.f32 %v7045, 1e-05
      %v7054 = vadd.f32 %v7046, 1e-05
      %v7055 = vadd.f32 %v7047, 1e-05
      %v7056 = vadd.f32 %v7048, 1e-05
      %v7057 = vrsqrt.pop %v7049
      %v7058 = vrsqrt.pop %v7050
      %v7059 = vrsqrt.pop %v7051
      %v7060 = vrsqrt.pop %v7052
      %v7061 = vrsqrt.pop %v7053
      %v7062 = vrsqrt.pop %v7054
      %v7063 = vrsqrt.pop %v7055
      %v7064 = vrsqrt.pop %v7056
      %v7065 = vmul.f32 %v7001, %v7057
      %v7066 = vmul.f32 %v7002, %v7058
      %v7067 = vmul.f32 %v7003, %v7059
      %v7068 = vmul.f32 %v7004, %v7060
      %v7069 = vmul.f32 %v7005, %v7061
      %v7070 = vmul.f32 %v7006, %v7062
      %v7071 = vmul.f32 %v7007, %v7063
      %v7072 = vmul.f32 %v7008, %v7064
      %v7074 = vlaneseq
      %v7075 = vshrl.u32 %v7074, 7
      %v7076 = vsub.s32 0, %v7075
      %v7077 = vrot.slane %v6967, %v7076
      %v7079 = vmul.f32 %v7065, %v7077
      %v7080 = vmul.f32 %v7066, %v7077
      %v7081 = vmul.f32 %v7067, %v7077
      %v7082 = vmul.f32 %v7068, %v7077
      %v7083 = vmul.f32 %v7069, %v7077
      %v7084 = vmul.f32 %v7070, %v7077
      %v7085 = vmul.f32 %v7071, %v7077
      %v7086 = vmul.f32 %v7072, %v7077
      %v7088 = vlaneseq
      %v7089 = vshrl.u32 %v7088, 7
      %v7090 = vsub.s32 0, %v7089
      %v7091 = vrot.slane %v6968, %v7090
      %v7093 = vadd.f32 %v7079, %v7091
      %v7094 = vadd.f32 %v7080, %v7091
      %v7095 = vadd.f32 %v7081, %v7091
      %v7096 = vadd.f32 %v7082, %v7091
      %v7097 = vadd.f32 %v7083, %v7091
      %v7098 = vadd.f32 %v7084, %v7091
      %v7099 = vadd.f32 %v7085, %v7091
      %v7100 = vadd.f32 %v7086, %v7091
      %v7101 = vpack.c.bf16 %v7094, %v7093
      %v7102 = vpack.c.bf16 %v7096, %v7095
      %v7103 = vpack.c.bf16 %v7098, %v7097
      %v7104 = vpack.c.bf16 %v7100, %v7099
      %v7105 = vld [vmem:[%s19] sm:$0xf]
      %v7106 = vld [vmem:[%s19 + $0x4] sm:$0xf]
      %v7107 = vld [vmem:[%s19 + $0x8] sm:$0xf]
      %v7108 = vld [vmem:[%s19 + $0xc] sm:$0xf]
      %v7109 = vld [vmem:[%s20] sm:$0x1]
      %v7111 = vlaneseq
      %v7112 = vshrl.u32 %v7111, 7
      %v7113 = vsub.s32 0, %v7112
      %v7114 = vrot.slane %v7109, %v7113
      %v7120 = vunpack.c.l.b16 %v7105
      %v7121 = vunpack.c.l.b16 %v7106
      %v7122 = vunpack.c.l.b16 %v7107
      %v7123 = vunpack.c.l.b16 %v7108
      %v7124 = vpack.c.b16 %v7121, %v7120
      %v7125 = vpack.c.b16 %v7123, %v7122
      %v7129 = vsel %vm668, %v7101, 0
      %v7132 = vsel %vm668, %v7102, 0
      %v7135 = vsel %vm668, %v7103, 0
      %v7138 = vsel %vm668, %v7104, 0
      %7140 = vmatprep.subr.bf16.mxu0 0
      %7141 = vmatpush1.bf16.msra.mxu0 %v7124
      %7142 = vmatprep.subr.bf16.mxu0 0
      %7143 = vmatpush1.bf16.msra.mxu0 %v7125
      %7144 = vmatprep.subr.bf16.mxu0 0
      %7145 = vmatpush1.bf16.msra.mxu0 0
      %7146 = vmatprep.subr.bf16.mxu0 0
      %7147 = vmatpush1.bf16.msra.mxu0 0
      %7148 = vmatprep.subr.bf16.mxu0 0
      %7149 = vmatpush1.bf16.msra.mxu0 0
      %7150 = vmatprep.subr.bf16.mxu0 0
      %7151 = vmatpush1.bf16.msra.mxu0 0
      %7152 = vmatprep.subr.bf16.mxu0 0
      %7153 = vmatpush1.bf16.msra.mxu0 0
      %7154 = vmatprep.subr.bf16.mxu0 0
      %7155 = vmatpush1.bf16.msra.mxu0 0
      %7156 = vmatprep.subr.bf16.mxu0 0
      %7157 = vmatpush1.bf16.msra.mxu0 0
      %7158 = vmatprep.subr.bf16.mxu0 0
      %7159 = vmatpush1.bf16.msra.mxu0 0
      %7160 = vmatprep.subr.bf16.mxu0 0
      %7161 = vmatpush1.bf16.msra.mxu0 0
      %7162 = vmatprep.subr.bf16.mxu0 0
      %7163 = vmatpush1.bf16.msra.mxu0 0
      %7164 = vmatprep.subr.bf16.mxu0 0
      %7165 = vmatpush1.bf16.msra.mxu0 0
      %7166 = vmatprep.subr.bf16.mxu0 0
      %7167 = vmatpush1.bf16.msra.mxu0 0
      %7168 = vmatprep.subr.bf16.mxu0 0
      %7169 = vmatpush1.bf16.msra.mxu0 0
      %7170 = vmatprep.subr.bf16.mxu0 0
      %7171 = vmatpush1.bf16.msra.mxu0 0
      %7172 = vmatprep.mubr.bf16.mxu0 0
      %7173 = vmatmul.mubr.bf16.gmra.mrb[0].mxu0 %v7129
      %v7174 = vpop.f32.mrb[0].mxu0
      %v7175 = vadd.f32 %v7114, %v7174
      %v7176 = vpop.f32.mrb[0].mxu0
      %v7177 = vpop.f32.mrb[0].mxu0
      %v7178 = vadd.f32 %v7114, %v7177
      %v7179 = vpop.f32.mrb[0].mxu0
      %7180 = vmatprep.mubr.bf16.mxu0 0
      %7181 = vmatmul.mubr.bf16.gmra.mrb[0].mxu0 %v7132
      %v7182 = vpop.f32.mrb[0].mxu0
      %v7183 = vadd.f32 %v7114, %v7182
      %v7184 = vpop.f32.mrb[0].mxu0
      %v7185 = vpop.f32.mrb[0].mxu0
      %v7186 = vadd.f32 %v7114, %v7185
      %v7187 = vpop.f32.mrb[0].mxu0
      %7188 = vmatprep.mubr.bf16.mxu0 0
      %7189 = vmatmul.mubr.bf16.gmra.mrb[0].mxu0 %v7135
      %v7190 = vpop.f32.mrb[0].mxu0
      %v7191 = vadd.f32 %v7114, %v7190
      %v7192 = vpop.f32.mrb[0].mxu0
      %v7193 = vpop.f32.mrb[0].mxu0
      %v7194 = vadd.f32 %v7114, %v7193
      %v7195 = vpop.f32.mrb[0].mxu0
      %7196 = vmatprep.mubr.bf16.mxu0 0
      %7197 = vmatmul.mubr.bf16.gmra.mrb[0].mxu0 %v7138
      %v7198 = vpop.f32.mrb[0].mxu0
      %v7199 = vadd.f32 %v7114, %v7198
      %v7200 = vpop.f32.mrb[0].mxu0
      %v7201 = vpop.f32.mrb[0].mxu0
      %v7202 = vadd.f32 %v7114, %v7201
      %v7203 = vpop.f32.mrb[0].mxu0
      %7204 = vdwg.mxu0
      %v7205 = vxor.u32 %v7175, 2147483648
      %v7206 = vxor.u32 %v7178, 2147483648
      %v7207 = vxor.u32 %v7183, 2147483648
      %v7208 = vxor.u32 %v7186, 2147483648
      %v7209 = vxor.u32 %v7191, 2147483648
      %v7210 = vxor.u32 %v7194, 2147483648
      %v7211 = vxor.u32 %v7199, 2147483648
      %v7212 = vxor.u32 %v7202, 2147483648
      %v7213 = vmul.f32 %v7205, 1.442695
      %v7214 = vpow.pop %v7213
      %v7215 = vmul.f32 %v7206, 1.442695
      %v7216 = vpow.pop %v7215
      %v7217 = vmul.f32 %v7207, 1.442695
      %v7218 = vpow.pop %v7217
      %v7219 = vmul.f32 %v7208, 1.442695
      %v7220 = vpow.pop %v7219
      %v7221 = vmul.f32 %v7209, 1.442695
      %v7222 = vpow.pop %v7221
      %v7223 = vmul.f32 %v7210, 1.442695
      %v7224 = vpow.pop %v7223
      %v7225 = vmul.f32 %v7211, 1.442695
      %v7226 = vpow.pop %v7225
      %v7227 = vmul.f32 %v7212, 1.442695
      %v7228 = vpow.pop %v7227
      %v7229 = vadd.f32 %v7214, 1.0
      %v7230 = vadd.f32 %v7216, 1.0
      %v7231 = vadd.f32 %v7218, 1.0
      %v7232 = vadd.f32 %v7220, 1.0
      %v7233 = vadd.f32 %v7222, 1.0
      %v7234 = vadd.f32 %v7224, 1.0
      %v7235 = vadd.f32 %v7226, 1.0
      %v7236 = vadd.f32 %v7228, 1.0
      %v7237 = vrcp.pop %v7229
      %v7238 = vmul.f32 1.0, %v7237
      %v7239 = vrcp.pop %v7230
      %v7240 = vmul.f32 1.0, %v7239
      %v7241 = vrcp.pop %v7231
      %v7242 = vmul.f32 1.0, %v7241
      %v7243 = vrcp.pop %v7232
      %v7244 = vmul.f32 1.0, %v7243
      %v7245 = vrcp.pop %v7233
      %v7246 = vmul.f32 1.0, %v7245
      %v7247 = vrcp.pop %v7234
      %v7248 = vmul.f32 1.0, %v7247
      %v7249 = vrcp.pop %v7235
      %v7250 = vmul.f32 1.0, %v7249
      %v7251 = vrcp.pop %v7236
      %v7252 = vmul.f32 1.0, %v7251
      %v7253 = vmul.f32 %v7175, %v7238
      %v7254 = vmul.f32 %v7178, %v7240
      %v7255 = vmul.f32 %v7183, %v7242
      %v7256 = vmul.f32 %v7186, %v7244
      %v7257 = vmul.f32 %v7191, %v7246
      %v7258 = vmul.f32 %v7194, %v7248
      %v7259 = vmul.f32 %v7199, %v7250
      %v7260 = vmul.f32 %v7202, %v7252
      %vm7261 = vcmask 130048
      %7262 = vst.msk [vmem:[%s656] sm:$0xff] %vm7261, %v7253
      %7263 = vst.msk [vmem:[%s656 + $0x8] sm:$0xff] %vm7261, %v7254
      %7264 = vst.msk [vmem:[%s656 + $0x10] sm:$0xff] %vm7261, %v7255
      %7265 = vst.msk [vmem:[%s656 + $0x18] sm:$0xff] %vm7261, %v7256
      %7266 = vst.msk [vmem:[%s656 + $0x20] sm:$0xff] %vm7261, %v7257
      %7267 = vst.msk [vmem:[%s656 + $0x28] sm:$0xff] %vm7261, %v7258
      %7268 = vst.msk [vmem:[%s656 + $0x30] sm:$0xff] %vm7261, %v7259
      %7269 = vst.msk [vmem:[%s656 + $0x38] sm:$0xff] %vm7261, %v7260
      %p7270 = scmp.lt.s32.totalorder %s32, 7
      %s7271 = scalar_select %p7270, %s32, 7
      %s7272 = smul.addr %s7271, 8
      %s7273 = smul.addr %s7272, 8
      %s7274 = scalar_lea.vmem %s21, %s7273
      // Predicated region
      $region105: #{forward.4} parent=103 // pred_check
        %p7275 = pneg %p496
      $region106: #{forward.4} parent=103 // pred_check_branch
        %7277 = sbr.rel (%p7275) target = $region108
      $region107: #{forward.4} parent=103 // pred_region
        _
      $region108: #{forward.4} parent=103 // pred_fallthru
        _
    $region104: #{forward.4} parent=5 // pred_fallthru
      _
    %p7278 = scmp.le.s32.totalorder 2, %s27
    // Predicated region
    $region109: #{forward.4} parent=5 // pred_check
      %p7279 = pneg %p7278
    $region110: #{forward.4} parent=5 // pred_check_branch
      %7281 = sbr.rel (%p7279) target = $region112
    $region111: #{forward.4} parent=5 // pred_region
      %s7282 = ssub.s32 %s27, 2
      // Predicated region
      $region113: #{forward.4} parent=111 // pred_check
        %p7283 = pneg %p502
      $region114: #{forward.4} parent=111 // pred_check_branch
        %7285 = sbr.rel (%p7283) target = $region116
      $region115: #{forward.4} parent=111 // pred_region
        %p7286 = scmp.lt.s32.totalorder %s33, 7
        %s7287 = scalar_select %p7286, %s33, 7
        %s7288 = smul.addr %s7287, 8
        %s7289 = smul.addr %s7288, 8
        %s7290 = scalar_lea.vmem %s21, %s7289
      $region116: #{forward.4} parent=111 // pred_fallthru
        _
    $region112: #{forward.4} parent=5 // pred_fallthru
      _
  $region6: #{forward.4} parent=0 // loop_footer
    %s31 = sadd.s32 1, %s27
  $region7: #{forward.4} parent=0 // loop_footer_branch
    %26 = sbr.rel target = $region3
  $region8: #{forward.4} parent=0 // loop_exit
    _

</llo_original>
